<compile_context>
chip_gen: v7x
topology: tpu7x:2x2x1
jax: 0.10.0
libtpu: 0.0.40
codegen_flags: <defaults>
</compile_context>

<pallas_src>
import math

import numpy as np

import jax
import jax.numpy as jnp
from jax import lax
from jax.experimental import pallas as pl
from jax.experimental.pallas import tpu as pltpu

EPS = 1e-5
CHANNELS = [(2, 8), (8, 16), (16, 32)]   # (Cin, Cout) of conv1..conv3


def _vmem():
    return pl.BlockSpec(memory_space=pltpu.MemorySpace.VMEM)


def _layer_dims(h, w):
    """Static geometry of one conv(3x3,pad1) stage in the flat row layout."""
    wp = w + 2
    return dict(
        h=h, w=w, wp=wp,
        npad=(h + 2) * wp + 2,   # padded input rows incl. 1 guard row each end
        m=h * wp,                # conv output rows: (h, w_padded) incl. border cols
        l=h * wp - wp - 1,       # rows of the 2x2-window running max
    )


# ------------------------------- fused kernel --------------------------------

def _make_kernel(dims, ci, s_spatial):
    """Single fused forward kernel.  All sizes are static Python ints."""

    def conv_bn_relu(xp_ref, wt_ref, sh_ref, y_ref, d, k_lanes):
        wp, m = d["wp"], d["m"]
        acc = None
        for t in range(9):                      # 3x3 taps: shifted-window matmuls
            off = (t // 3) * wp + (t % 3)
            lhs = xp_ref[pl.ds(off, m), :]                       # (M, B*Cin)
            rhs = wt_ref[pl.ds(t * k_lanes, k_lanes), :]         # (B*Cin, B*Cout)
            part = jnp.dot(lhs, rhs, preferred_element_type=jnp.float32)
            acc = part if acc is None else acc + part
        # BN scale already folded into the weights; only shift + ReLU remain.
        y_ref[...] = jnp.maximum(acc + sh_ref[...], 0.0)

    def pool2x2(y_ref, p_ref, d):
        wp, l = d["wp"], d["l"]
        hm = jnp.maximum(
            jnp.maximum(y_ref[pl.ds(0, l), :], y_ref[pl.ds(1, l), :]),
            jnp.maximum(y_ref[pl.ds(wp, l), :], y_ref[pl.ds(wp + 1, l), :]))
        # 0/1 selection matmul: picks the stride-2 window maxima and scatters
        # them straight into the destination's zero-padded flat layout.
        return jnp.dot(p_ref[...], hm, preferred_element_type=jnp.float32)

    def kernel(xp1_ref,
               wt1_ref, sh1_ref, p1_ref,
               wt2_ref, sh2_ref, p2_ref,
               wt3_ref, sh3_ref, p3_ref,
               a1_ref, b1_ref, w2_ref, b2_ref,
               out_ref,
               y1_ref, xp2_ref, y2_ref, xp3_ref, y3_ref, feat_ref):
        # stage 1: conv1 + bn1 + relu + pool
        conv_bn_relu(xp1_ref, wt1_ref, sh1_ref, y1_ref, dims[0], ci[0])
        xp2_ref[...] = pool2x2(y1_ref, p1_ref, dims[0])
        # stage 2
        conv_bn_relu(xp2_ref, wt2_ref, sh2_ref, y2_ref, dims[1], ci[1])
        xp3_ref[...] = pool2x2(y2_ref, p2_ref, dims[1])
        # stage 3
        conv_bn_relu(xp3_ref, wt3_ref, sh3_ref, y3_ref, dims[2], ci[2])
        feat_ref[...] = pool2x2(y3_ref, p3_ref, dims[2])   # (S, B*32), rows = (ho, wo)

        # MLP on batch-packed lanes; the torch NCHW flatten order is folded
        # into the per-spatial-slot block-diagonal weights a1.
        kk = feat_ref.shape[1]
        hidden = b1_ref[...]                               # (1, B*hidden)
        for s in range(s_spatial):
            hidden = hidden + jnp.dot(feat_ref[pl.ds(s, 1), :],
                                      a1_ref[pl.ds(s * kk, kk), :],
                                      preferred_element_type=jnp.float32)
        hidden = jnp.maximum(hidden, 0.0)
        out_ref[...] = jnp.dot(hidden, w2_ref[...],
                               preferred_element_type=jnp.float32) + b2_ref[...]

    return kernel


# --------------------------------- forward -----------------------------------

def _prep_board(board_nchw):
    """NCHW board -> flat padded layout (( (H+2)*(W+2) + 2 guards ), B*Cin)."""
    b, cin, h, w = board_nchw.shape
    x = jnp.transpose(board_nchw.astype(jnp.float32), (2, 3, 0, 1))  # (H, W, B, Cin)
    x = x.reshape(h, w, b * cin)
    x = jnp.pad(x, ((1, 1), (1, 1), (0, 0)))                         # spatial zero pad
    x = x.reshape((h + 2) * (w + 2), b * cin)
    return jnp.pad(x, ((1, 1), (0, 0)))                              # guard rows


def cnn_forward(params, direction, food_distance, snake_body_danger,
                snake_wall_danger, board_nchw):
    # The extra observation tensors are unused, mirroring the PyTorch forward().
    del direction, food_distance, snake_body_danger, snake_wall_danger
    batch, _, h0, w0 = board_nchw.shape

    dims = []
    h, w = h0, w0
    for _ in range(3):
        assert h % 2 == 0 and w % 2 == 0, "even spatial dims assumed (see TODO)"
        dims.append(_layer_dims(h, w))
        h, w = h // 2, w // 2
    s_spatial = h * w                                   # spatial slots after 3 pools
    n_out = params["b2p"].shape[1] // batch

    ci = [batch * c for c, _ in CHANNELS]               # packed conv input lanes
    co = [batch * c for _, c in CHANNELS]               # packed conv output lanes

    xp1 = _prep_board(board_nchw)
    kernel = _make_kernel(dims, ci, s_spatial)

    args = (xp1,
            params["wt1"], params["sh1"], params["p1"],
            params["wt2"], params["sh2"], params["p2"],
            params["wt3"], params["sh3"], params["p3"],
            params["a1"], params["b1p"], params["w2b"], params["b2p"])

    scratch = [
        pltpu.VMEM((dims[0]["m"], co[0]), jnp.float32),      # y1
        pltpu.VMEM((dims[1]["npad"], co[0]), jnp.float32),   # xp2
        pltpu.VMEM((dims[1]["m"], co[1]), jnp.float32),      # y2
        pltpu.VMEM((dims[2]["npad"], co[1]), jnp.float32),   # xp3
        pltpu.VMEM((dims[2]["m"], co[2]), jnp.float32),      # y3
        pltpu.VMEM((s_spatial, co[2]), jnp.float32),         # pooled features
    ]

    out_packed = pl.pallas_call(
        kernel,
        out_shape=jax.ShapeDtypeStruct((1, batch * n_out), jnp.float32),
        in_specs=[_vmem()] * len(args),
        out_specs=_vmem(),
        scratch_shapes=scratch,
    )(*args)
    return out_packed.reshape(batch, n_out)


# ------------------------------ parameters -----------------------------------

def _cnn_ax_out(d):
    for _ in range(3):
        d = math.ceil(d / 2)
    return int(d)


def _block_diag(mat, n):
    k, m = mat.shape
    out = jnp.zeros((n * k, n * m), mat.dtype)
    for i in range(n):
        out = out.at[i * k:(i + 1) * k, i * m:(i + 1) * m].set(mat)
    return out


def _pool_matrix(h, w, last):
    """0/1 matrix turning the 2x2-window running max (length L) into either the
    next stage's zero-padded flat input buffer or (last stage) the (ho, wo)
    ordered pooled features."""
    wp = w + 2
    l = h * wp - wp - 1
    hh, wh = h // 2, w // 2
    if last:
        p = np.zeros((hh * wh, l), np.float32)
        for ho in range(hh):
            for wo in range(wh):
                p[ho * wh + wo, 2 * ho * wp + 2 * wo + 1] = 1.0
    else:
        wpn = wh + 2
        p = np.zeros(((hh + 2) * wpn + 2, l), np.float32)
        for ho in range(hh):
            for wo in range(wh):
                dst = 1 + (ho + 1) * wpn + (wo + 1)
                p[dst, 2 * ho * wp + 2 * wo + 1] = 1.0
    return p


def init_params(key, surface_dimensions, output_size, hidden_size, batch):
    h0, w0 = surface_dimensions
    s_spatial = _cnn_ax_out(h0) * _cnn_ax_out(w0)
    cnn_output_size = 32 * s_spatial

    keys = jax.random.split(key, len(CHANNELS) + 2)
    raw = {"convs": []}
    params = {}

    for idx, (cin, cout) in enumerate(CHANNELS):
        k = jax.random.split(keys[idx], 6)
        w = 0.1 * jax.random.normal(k[0], (cout, cin, 3, 3), jnp.float32)   # OIHW
        b = 0.1 * jax.random.normal(k[1], (cout,), jnp.float32)
        gamma = 1.0 + 0.1 * jax.random.normal(k[2], (cout,), jnp.float32)
        beta = 0.1 * jax.random.normal(k[3], (cout,), jnp.float32)
        mean = 0.1 * jax.random.normal(k[4], (cout,), jnp.float32)
        var = 1.0 + 0.1 * jnp.abs(jax.random.normal(k[5], (cout,), jnp.float32))
        raw["convs"].append(dict(w=w, b=b, gamma=gamma, beta=beta, mean=mean, var=var))

        # Fold eval-mode BN into the conv: scale goes into the weights, the
        # remaining per-channel shift (incl. conv bias and running mean) is a
        # single vector add in the kernel.
        scale = gamma / jnp.sqrt(var + EPS)
        shift = beta + scale * (b - mean)
        # Per-tap (Cin, Cout) scaled weights, block-diagonal over the
        # batch-packed lanes.
        taps = []
        for dy in range(3):
            for dx in range(3):
                tap = jnp.transpose(w[:, :, dy, dx]) * scale[None, :]   # (Cin, Cout)
                taps.append(_block_diag(tap, batch))
        params[f"wt{idx + 1}"] = jnp.concatenate(taps, axis=0)   # (9*B*Cin, B*Cout)
        params[f"sh{idx + 1}"] = jnp.tile(shift, batch)[None, :]

    # 2x2 max-pool selection/scatter matrices (geometry only).
    h, w_sp = h0, w0
    for li in range(3):
        params[f"p{li + 1}"] = jnp.asarray(_pool_matrix(h, w_sp, last=(li == 2)))
        h, w_sp = h // 2, w_sp // 2

    kh = jax.random.split(keys[-2], 2)
    ko = jax.random.split(keys[-1], 2)
    w1 = 0.1 * jax.random.normal(kh[0], (cnn_output_size, hidden_size), jnp.float32)
    b1 = 0.1 * jax.random.normal(kh[1], (hidden_size,), jnp.float32)
    w2 = 0.1 * jax.random.normal(ko[0], (hidden_size, output_size), jnp.float32)
    b2 = 0.1 * jax.random.normal(ko[1], (output_size,), jnp.float32)
    raw.update(w1=w1, b1=b1, w2=w2, b2=b2)

    # Hidden layer reindexed per spatial slot s (torch flatten order f = c*S + s)
    # and block-diagonalized over batch.
    c3 = CHANNELS[-1][1]
    w1r = w1.reshape(c3, s_spatial, hidden_size)
    a1_blocks = [_block_diag(w1r[:, s, :], batch) for s in range(s_spatial)]
    params["a1"] = jnp.concatenate(a1_blocks, axis=0)            # (S*B*C3, B*hidden)
    params["b1p"] = jnp.tile(b1, batch)[None, :]
    params["w2b"] = _block_diag(w2, batch)                       # (B*hidden, B*out)
    params["b2p"] = jnp.tile(b2, batch)[None, :]
    return raw, params


# --------------------------- pure-JAX reference ------------------------------

def reference_forward(raw, board_nchw):
    x = board_nchw.astype(jnp.float32)
    for p in raw["convs"]:
        y = lax.conv_general_dilated(x, p["w"], (1, 1), "SAME",
                                     dimension_numbers=("NCHW", "OIHW", "NCHW"))
        y = y + p["b"][None, :, None, None]
        y = (y - p["mean"][None, :, None, None]) / jnp.sqrt(p["var"] + EPS)[None, :, None, None]
        y = y * p["gamma"][None, :, None, None] + p["beta"][None, :, None, None]
        y = jnp.maximum(y, 0.0)
        x = lax.reduce_window(y, -jnp.inf, lax.max, (1, 1, 2, 2), (1, 1, 2, 2), "VALID")
    b = x.shape[0]
    f = x.reshape(b, -1)
    h = jnp.maximum(f @ raw["w1"] + raw["b1"][None, :], 0.0)
    return h @ raw["w2"] + raw["b2"][None, :]


# ----------------------------------- main ------------------------------------

if __name__ == "__main__":
    surface_dimensions = (16, 16)
    batch, output_size, hidden_size = 2, 4, 32

    key = jax.random.PRNGKey(0)
    k_params, k_inputs = jax.random.split(key)
    raw, params = init_params(k_params, surface_dimensions, output_size,
                              hidden_size, batch)

    ks = jax.random.split(k_inputs, 5)
    direction = jax.random.normal(ks[0], (batch, 4), jnp.float32)
    food_distance = jax.random.normal(ks[1], (batch, 2), jnp.float32)
    snake_body_danger = jax.random.normal(ks[2], (batch, 3), jnp.float32)
    snake_wall_danger = jax.random.normal(ks[3], (batch, 3), jnp.float32)
    board_tensor = jax.random.normal(
        ks[4], (batch, 2, surface_dimensions[0], surface_dimensions[1]), jnp.float32)

    forward = jax.jit(cnn_forward)
    out = forward(params, direction, food_distance, snake_body_danger,
                  snake_wall_danger, board_tensor)
    out = jax.block_until_ready(out)

    assert out.shape == (batch, output_size)
    ref = reference_forward(raw, board_tensor)
    np.testing.assert_allclose(np.asarray(out), np.asarray(ref), rtol=1e-4, atol=1e-4)

    print("KERNEL_OK")
</pallas_src>

<mosaic_0001>
module attributes {stable_mosaic.version = 11 : i64} {
  func.func @kernel(%arg0: memref<326x4xf32, #tpu.memory_space<vmem>>, %arg1: memref<36x16xf32, #tpu.memory_space<vmem>>, %arg2: memref<1x16xf32, #tpu.memory_space<vmem>>, %arg3: memref<102x269xf32, #tpu.memory_space<vmem>>, %arg4: memref<144x32xf32, #tpu.memory_space<vmem>>, %arg5: memref<1x32xf32, #tpu.memory_space<vmem>>, %arg6: memref<38x69xf32, #tpu.memory_space<vmem>>, %arg7: memref<288x64xf32, #tpu.memory_space<vmem>>, %arg8: memref<1x64xf32, #tpu.memory_space<vmem>>, %arg9: memref<4x17xf32, #tpu.memory_space<vmem>>, %arg10: memref<256x64xf32, #tpu.memory_space<vmem>>, %arg11: memref<1x64xf32, #tpu.memory_space<vmem>>, %arg12: memref<64x8xf32, #tpu.memory_space<vmem>>, %arg13: memref<1x8xf32, #tpu.memory_space<vmem>>, %arg14: memref<1x8xf32, #tpu.memory_space<vmem>>, %arg15: memref<288x16xf32, #tpu.memory_space<vmem>>, %arg16: memref<102x16xf32, #tpu.memory_space<vmem>>, %arg17: memref<80x32xf32, #tpu.memory_space<vmem>>, %arg18: memref<38x32xf32, #tpu.memory_space<vmem>>, %arg19: memref<24x64xf32, #tpu.memory_space<vmem>>, %arg20: memref<4x64xf32, #tpu.memory_space<vmem>>) attributes {dimension_semantics = [], scalar_prefetch = 0 : i64, scratch_operands = 6 : i64, tpu.core_type = #tpu.core_type<tc>} {
    %c0 = arith.constant 0 : index
    %c0_0 = arith.constant 0 : index
    %0 = vector.load %arg0[%c0, %c0_0] : memref<326x4xf32, #tpu.memory_space<vmem>>, vector<288x4xf32>
    %c0_1 = arith.constant 0 : index
    %c0_2 = arith.constant 0 : index
    %1 = vector.load %arg1[%c0_1, %c0_2] : memref<36x16xf32, #tpu.memory_space<vmem>>, vector<4x16xf32>
    %cst = arith.constant dense<0.000000e+00> : vector<288x16xf32>
    %2 = tpu.matmul %0, %1, %cst {dimension_numbers = #tpu.dot_dimension_numbers<[1], [0], [0], [1], [0, 0, 1, 1], [], []>} : vector<288x4xf32>, vector<4x16xf32>, vector<288x16xf32> -> vector<288x16xf32>
    %c1 = arith.constant 1 : index
    %c0_3 = arith.constant 0 : index
    %3 = vector.load %arg0[%c1, %c0_3] : memref<326x4xf32, #tpu.memory_space<vmem>>, vector<288x4xf32>
    %c4 = arith.constant 4 : index
    %c0_4 = arith.constant 0 : index
    %4 = vector.load %arg1[%c4, %c0_4] : memref<36x16xf32, #tpu.memory_space<vmem>>, vector<4x16xf32>
    %cst_5 = arith.constant dense<0.000000e+00> : vector<288x16xf32>
    %5 = tpu.matmul %3, %4, %cst_5 {dimension_numbers = #tpu.dot_dimension_numbers<[1], [0], [0], [1], [0, 0, 1, 1], [], []>} : vector<288x4xf32>, vector<4x16xf32>, vector<288x16xf32> -> vector<288x16xf32>
    %6 = arith.addf %2, %5 : vector<288x16xf32>
    %c2 = arith.constant 2 : index
    %c0_6 = arith.constant 0 : index
    %7 = vector.load %arg0[%c2, %c0_6] : memref<326x4xf32, #tpu.memory_space<vmem>>, vector<288x4xf32>
    %c8 = arith.constant 8 : index
    %c0_7 = arith.constant 0 : index
    %8 = vector.load %arg1[%c8, %c0_7] : memref<36x16xf32, #tpu.memory_space<vmem>>, vector<4x16xf32>
    %cst_8 = arith.constant dense<0.000000e+00> : vector<288x16xf32>
    %9 = tpu.matmul %7, %8, %cst_8 {dimension_numbers = #tpu.dot_dimension_numbers<[1], [0], [0], [1], [0, 0, 1, 1], [], []>} : vector<288x4xf32>, vector<4x16xf32>, vector<288x16xf32> -> vector<288x16xf32>
    %10 = arith.addf %6, %9 : vector<288x16xf32>
    %c18 = arith.constant 18 : index
    %c0_9 = arith.constant 0 : index
    %11 = vector.load %arg0[%c18, %c0_9] : memref<326x4xf32, #tpu.memory_space<vmem>>, vector<288x4xf32>
    %c12 = arith.constant 12 : index
    %c0_10 = arith.constant 0 : index
    %12 = vector.load %arg1[%c12, %c0_10] : memref<36x16xf32, #tpu.memory_space<vmem>>, vector<4x16xf32>
    %cst_11 = arith.constant dense<0.000000e+00> : vector<288x16xf32>
    %13 = tpu.matmul %11, %12, %cst_11 {dimension_numbers = #tpu.dot_dimension_numbers<[1], [0], [0], [1], [0, 0, 1, 1], [], []>} : vector<288x4xf32>, vector<4x16xf32>, vector<288x16xf32> -> vector<288x16xf32>
    %14 = arith.addf %10, %13 : vector<288x16xf32>
    %c19 = arith.constant 19 : index
    %c0_12 = arith.constant 0 : index
    %15 = vector.load %arg0[%c19, %c0_12] : memref<326x4xf32, #tpu.memory_space<vmem>>, vector<288x4xf32>
    %c16 = arith.constant 16 : index
    %c0_13 = arith.constant 0 : index
    %16 = vector.load %arg1[%c16, %c0_13] : memref<36x16xf32, #tpu.memory_space<vmem>>, vector<4x16xf32>
    %cst_14 = arith.constant dense<0.000000e+00> : vector<288x16xf32>
    %17 = tpu.matmul %15, %16, %cst_14 {dimension_numbers = #tpu.dot_dimension_numbers<[1], [0], [0], [1], [0, 0, 1, 1], [], []>} : vector<288x4xf32>, vector<4x16xf32>, vector<288x16xf32> -> vector<288x16xf32>
    %18 = arith.addf %14, %17 : vector<288x16xf32>
    %c20 = arith.constant 20 : index
    %c0_15 = arith.constant 0 : index
    %19 = vector.load %arg0[%c20, %c0_15] : memref<326x4xf32, #tpu.memory_space<vmem>>, vector<288x4xf32>
    %c20_16 = arith.constant 20 : index
    %c0_17 = arith.constant 0 : index
    %20 = vector.load %arg1[%c20_16, %c0_17] : memref<36x16xf32, #tpu.memory_space<vmem>>, vector<4x16xf32>
    %cst_18 = arith.constant dense<0.000000e+00> : vector<288x16xf32>
    %21 = tpu.matmul %19, %20, %cst_18 {dimension_numbers = #tpu.dot_dimension_numbers<[1], [0], [0], [1], [0, 0, 1, 1], [], []>} : vector<288x4xf32>, vector<4x16xf32>, vector<288x16xf32> -> vector<288x16xf32>
    %22 = arith.addf %18, %21 : vector<288x16xf32>
    %c36 = arith.constant 36 : index
    %c0_19 = arith.constant 0 : index
    %23 = vector.load %arg0[%c36, %c0_19] : memref<326x4xf32, #tpu.memory_space<vmem>>, vector<288x4xf32>
    %c24 = arith.constant 24 : index
    %c0_20 = arith.constant 0 : index
    %24 = vector.load %arg1[%c24, %c0_20] : memref<36x16xf32, #tpu.memory_space<vmem>>, vector<4x16xf32>
    %cst_21 = arith.constant dense<0.000000e+00> : vector<288x16xf32>
    %25 = tpu.matmul %23, %24, %cst_21 {dimension_numbers = #tpu.dot_dimension_numbers<[1], [0], [0], [1], [0, 0, 1, 1], [], []>} : vector<288x4xf32>, vector<4x16xf32>, vector<288x16xf32> -> vector<288x16xf32>
    %26 = arith.addf %22, %25 : vector<288x16xf32>
    %c37 = arith.constant 37 : index
    %c0_22 = arith.constant 0 : index
    %27 = vector.load %arg0[%c37, %c0_22] : memref<326x4xf32, #tpu.memory_space<vmem>>, vector<288x4xf32>
    %c28 = arith.constant 28 : index
    %c0_23 = arith.constant 0 : index
    %28 = vector.load %arg1[%c28, %c0_23] : memref<36x16xf32, #tpu.memory_space<vmem>>, vector<4x16xf32>
    %cst_24 = arith.constant dense<0.000000e+00> : vector<288x16xf32>
    %29 = tpu.matmul %27, %28, %cst_24 {dimension_numbers = #tpu.dot_dimension_numbers<[1], [0], [0], [1], [0, 0, 1, 1], [], []>} : vector<288x4xf32>, vector<4x16xf32>, vector<288x16xf32> -> vector<288x16xf32>
    %30 = arith.addf %26, %29 : vector<288x16xf32>
    %c38 = arith.constant 38 : index
    %c0_25 = arith.constant 0 : index
    %31 = vector.load %arg0[%c38, %c0_25] : memref<326x4xf32, #tpu.memory_space<vmem>>, vector<288x4xf32>
    %c32 = arith.constant 32 : index
    %c0_26 = arith.constant 0 : index
    %32 = vector.load %arg1[%c32, %c0_26] : memref<36x16xf32, #tpu.memory_space<vmem>>, vector<4x16xf32>
    %cst_27 = arith.constant dense<0.000000e+00> : vector<288x16xf32>
    %33 = tpu.matmul %31, %32, %cst_27 {dimension_numbers = #tpu.dot_dimension_numbers<[1], [0], [0], [1], [0, 0, 1, 1], [], []>} : vector<288x4xf32>, vector<4x16xf32>, vector<288x16xf32> -> vector<288x16xf32>
    %34 = arith.addf %30, %33 : vector<288x16xf32>
    %c0_28 = arith.constant 0 : index
    %c0_29 = arith.constant 0 : index
    %35 = vector.load %arg2[%c0_28, %c0_29] : memref<1x16xf32, #tpu.memory_space<vmem>>, vector<1x16xf32>
    %36 = vector.broadcast %35 : vector<1x16xf32> to vector<288x16xf32>
    %37 = arith.addf %34, %36 : vector<288x16xf32>
    %cst_30 = arith.constant 0.000000e+00 : f32
    %38 = vector.broadcast %cst_30 : f32 to vector<288x16xf32>
    %39 = arith.maximumf %37, %38 : vector<288x16xf32>
    %c0_31 = arith.constant 0 : index
    %c0_32 = arith.constant 0 : index
    %40 = vector.load %arg15[%c0_31, %c0_32] : memref<288x16xf32, #tpu.memory_space<vmem>>, vector<288x16xf32>
    tpu.vector_store %arg15[%c0_31, %c0_32], %39 {strides = array<i32>} : memref<288x16xf32, #tpu.memory_space<vmem>>, vector<288x16xf32>,
    %c0_33 = arith.constant 0 : index
    %c0_34 = arith.constant 0 : index
    %41 = vector.load %arg15[%c0_33, %c0_34] : memref<288x16xf32, #tpu.memory_space<vmem>>, vector<269x16xf32>
    %c1_35 = arith.constant 1 : index
    %c0_36 = arith.constant 0 : index
    %42 = vector.load %arg15[%c1_35, %c0_36] : memref<288x16xf32, #tpu.memory_space<vmem>>, vector<269x16xf32>
    %43 = arith.maximumf %41, %42 : vector<269x16xf32>
    %c18_37 = arith.constant 18 : index
    %c0_38 = arith.constant 0 : index
    %44 = vector.load %arg15[%c18_37, %c0_38] : memref<288x16xf32, #tpu.memory_space<vmem>>, vector<269x16xf32>
    %c19_39 = arith.constant 19 : index
    %c0_40 = arith.constant 0 : index
    %45 = vector.load %arg15[%c19_39, %c0_40] : memref<288x16xf32, #tpu.memory_space<vmem>>, vector<269x16xf32>
    %46 = arith.maximumf %44, %45 : vector<269x16xf32>
    %47 = arith.maximumf %43, %46 : vector<269x16xf32>
    %c0_41 = arith.constant 0 : index
    %c0_42 = arith.constant 0 : index
    %48 = vector.load %arg3[%c0_41, %c0_42] : memref<102x269xf32, #tpu.memory_space<vmem>>, vector<102x269xf32>
    %cst_43 = arith.constant dense<0.000000e+00> : vector<102x16xf32>
    %49 = tpu.matmul %48, %47, %cst_43 {dimension_numbers = #tpu.dot_dimension_numbers<[1], [0], [0], [1], [0, 0, 1, 1], [], []>} : vector<102x269xf32>, vector<269x16xf32>, vector<102x16xf32> -> vector<102x16xf32>
    %c0_44 = arith.constant 0 : index
    %c0_45 = arith.constant 0 : index
    %50 = vector.load %arg16[%c0_44, %c0_45] : memref<102x16xf32, #tpu.memory_space<vmem>>, vector<102x16xf32>
    tpu.vector_store %arg16[%c0_44, %c0_45], %49 {strides = array<i32>} : memref<102x16xf32, #tpu.memory_space<vmem>>, vector<102x16xf32>,
    %c0_46 = arith.constant 0 : index
    %c0_47 = arith.constant 0 : index
    %51 = vector.load %arg16[%c0_46, %c0_47] : memref<102x16xf32, #tpu.memory_space<vmem>>, vector<80x16xf32>
    %c0_48 = arith.constant 0 : index
    %c0_49 = arith.constant 0 : index
    %52 = vector.load %arg4[%c0_48, %c0_49] : memref<144x32xf32, #tpu.memory_space<vmem>>, vector<16x32xf32>
    %cst_50 = arith.constant dense<0.000000e+00> : vector<80x32xf32>
    %53 = tpu.matmul %51, %52, %cst_50 {dimension_numbers = #tpu.dot_dimension_numbers<[1], [0], [0], [1], [0, 0, 1, 1], [], []>} : vector<80x16xf32>, vector<16x32xf32>, vector<80x32xf32> -> vector<80x32xf32>
    %c1_51 = arith.constant 1 : index
    %c0_52 = arith.constant 0 : index
    %54 = vector.load %arg16[%c1_51, %c0_52] : memref<102x16xf32, #tpu.memory_space<vmem>>, vector<80x16xf32>
    %c16_53 = arith.constant 16 : index
    %c0_54 = arith.constant 0 : index
    %55 = vector.load %arg4[%c16_53, %c0_54] : memref<144x32xf32, #tpu.memory_space<vmem>>, vector<16x32xf32>
    %cst_55 = arith.constant dense<0.000000e+00> : vector<80x32xf32>
    %56 = tpu.matmul %54, %55, %cst_55 {dimension_numbers = #tpu.dot_dimension_numbers<[1], [0], [0], [1], [0, 0, 1, 1], [], []>} : vector<80x16xf32>, vector<16x32xf32>, vector<80x32xf32> -> vector<80x32xf32>
    %57 = arith.addf %53, %56 : vector<80x32xf32>
    %c2_56 = arith.constant 2 : index
    %c0_57 = arith.constant 0 : index
    %58 = vector.load %arg16[%c2_56, %c0_57] : memref<102x16xf32, #tpu.memory_space<vmem>>, vector<80x16xf32>
    %c32_58 = arith.constant 32 : index
    %c0_59 = arith.constant 0 : index
    %59 = vector.load %arg4[%c32_58, %c0_59] : memref<144x32xf32, #tpu.memory_space<vmem>>, vector<16x32xf32>
    %cst_60 = arith.constant dense<0.000000e+00> : vector<80x32xf32>
    %60 = tpu.matmul %58, %59, %cst_60 {dimension_numbers = #tpu.dot_dimension_numbers<[1], [0], [0], [1], [0, 0, 1, 1], [], []>} : vector<80x16xf32>, vector<16x32xf32>, vector<80x32xf32> -> vector<80x32xf32>
    %61 = arith.addf %57, %60 : vector<80x32xf32>
    %c10 = arith.constant 10 : index
    %c0_61 = arith.constant 0 : index
    %62 = vector.load %arg16[%c10, %c0_61] : memref<102x16xf32, #tpu.memory_space<vmem>>, vector<80x16xf32>
    %c48 = arith.constant 48 : index
    %c0_62 = arith.constant 0 : index
    %63 = vector.load %arg4[%c48, %c0_62] : memref<144x32xf32, #tpu.memory_space<vmem>>, vector<16x32xf32>
    %cst_63 = arith.constant dense<0.000000e+00> : vector<80x32xf32>
    %64 = tpu.matmul %62, %63, %cst_63 {dimension_numbers = #tpu.dot_dimension_numbers<[1], [0], [0], [1], [0, 0, 1, 1], [], []>} : vector<80x16xf32>, vector<16x32xf32>, vector<80x32xf32> -> vector<80x32xf32>
    %65 = arith.addf %61, %64 : vector<80x32xf32>
    %c11 = arith.constant 11 : index
    %c0_64 = arith.constant 0 : index
    %66 = vector.load %arg16[%c11, %c0_64] : memref<102x16xf32, #tpu.memory_space<vmem>>, vector<80x16xf32>
    %c64 = arith.constant 64 : index
    %c0_65 = arith.constant 0 : index
    %67 = vector.load %arg4[%c64, %c0_65] : memref<144x32xf32, #tpu.memory_space<vmem>>, vector<16x32xf32>
    %cst_66 = arith.constant dense<0.000000e+00> : vector<80x32xf32>
    %68 = tpu.matmul %66, %67, %cst_66 {dimension_numbers = #tpu.dot_dimension_numbers<[1], [0], [0], [1], [0, 0, 1, 1], [], []>} : vector<80x16xf32>, vector<16x32xf32>, vector<80x32xf32> -> vector<80x32xf32>
    %69 = arith.addf %65, %68 : vector<80x32xf32>
    %c12_67 = arith.constant 12 : index
    %c0_68 = arith.constant 0 : index
    %70 = vector.load %arg16[%c12_67, %c0_68] : memref<102x16xf32, #tpu.memory_space<vmem>>, vector<80x16xf32>
    %c80 = arith.constant 80 : index
    %c0_69 = arith.constant 0 : index
    %71 = vector.load %arg4[%c80, %c0_69] : memref<144x32xf32, #tpu.memory_space<vmem>>, vector<16x32xf32>
    %cst_70 = arith.constant dense<0.000000e+00> : vector<80x32xf32>
    %72 = tpu.matmul %70, %71, %cst_70 {dimension_numbers = #tpu.dot_dimension_numbers<[1], [0], [0], [1], [0, 0, 1, 1], [], []>} : vector<80x16xf32>, vector<16x32xf32>, vector<80x32xf32> -> vector<80x32xf32>
    %73 = arith.addf %69, %72 : vector<80x32xf32>
    %c20_71 = arith.constant 20 : index
    %c0_72 = arith.constant 0 : index
    %74 = vector.load %arg16[%c20_71, %c0_72] : memref<102x16xf32, #tpu.memory_space<vmem>>, vector<80x16xf32>
    %c96 = arith.constant 96 : index
    %c0_73 = arith.constant 0 : index
    %75 = vector.load %arg4[%c96, %c0_73] : memref<144x32xf32, #tpu.memory_space<vmem>>, vector<16x32xf32>
    %cst_74 = arith.constant dense<0.000000e+00> : vector<80x32xf32>
    %76 = tpu.matmul %74, %75, %cst_74 {dimension_numbers = #tpu.dot_dimension_numbers<[1], [0], [0], [1], [0, 0, 1, 1], [], []>} : vector<80x16xf32>, vector<16x32xf32>, vector<80x32xf32> -> vector<80x32xf32>
    %77 = arith.addf %73, %76 : vector<80x32xf32>
    %c21 = arith.constant 21 : index
    %c0_75 = arith.constant 0 : index
    %78 = vector.load %arg16[%c21, %c0_75] : memref<102x16xf32, #tpu.memory_space<vmem>>, vector<80x16xf32>
    %c112 = arith.constant 112 : index
    %c0_76 = arith.constant 0 : index
    %79 = vector.load %arg4[%c112, %c0_76] : memref<144x32xf32, #tpu.memory_space<vmem>>, vector<16x32xf32>
    %cst_77 = arith.constant dense<0.000000e+00> : vector<80x32xf32>
    %80 = tpu.matmul %78, %79, %cst_77 {dimension_numbers = #tpu.dot_dimension_numbers<[1], [0], [0], [1], [0, 0, 1, 1], [], []>} : vector<80x16xf32>, vector<16x32xf32>, vector<80x32xf32> -> vector<80x32xf32>
    %81 = arith.addf %77, %80 : vector<80x32xf32>
    %c22 = arith.constant 22 : index
    %c0_78 = arith.constant 0 : index
    %82 = vector.load %arg16[%c22, %c0_78] : memref<102x16xf32, #tpu.memory_space<vmem>>, vector<80x16xf32>
    %c128 = arith.constant 128 : index
    %c0_79 = arith.constant 0 : index
    %83 = vector.load %arg4[%c128, %c0_79] : memref<144x32xf32, #tpu.memory_space<vmem>>, vector<16x32xf32>
    %cst_80 = arith.constant dense<0.000000e+00> : vector<80x32xf32>
    %84 = tpu.matmul %82, %83, %cst_80 {dimension_numbers = #tpu.dot_dimension_numbers<[1], [0], [0], [1], [0, 0, 1, 1], [], []>} : vector<80x16xf32>, vector<16x32xf32>, vector<80x32xf32> -> vector<80x32xf32>
    %85 = arith.addf %81, %84 : vector<80x32xf32>
    %c0_81 = arith.constant 0 : index
    %c0_82 = arith.constant 0 : index
    %86 = vector.load %arg5[%c0_81, %c0_82] : memref<1x32xf32, #tpu.memory_space<vmem>>, vector<1x32xf32>
    %87 = vector.broadcast %86 : vector<1x32xf32> to vector<80x32xf32>
    %88 = arith.addf %85, %87 : vector<80x32xf32>
    %cst_83 = arith.constant 0.000000e+00 : f32
    %89 = vector.broadcast %cst_83 : f32 to vector<80x32xf32>
    %90 = arith.maximumf %88, %89 : vector<80x32xf32>
    %c0_84 = arith.constant 0 : index
    %c0_85 = arith.constant 0 : index
    %91 = vector.load %arg17[%c0_84, %c0_85] : memref<80x32xf32, #tpu.memory_space<vmem>>, vector<80x32xf32>
    tpu.vector_store %arg17[%c0_84, %c0_85], %90 {strides = array<i32>} : memref<80x32xf32, #tpu.memory_space<vmem>>, vector<80x32xf32>,
    %c0_86 = arith.constant 0 : index
    %c0_87 = arith.constant 0 : index
    %92 = vector.load %arg17[%c0_86, %c0_87] : memref<80x32xf32, #tpu.memory_space<vmem>>, vector<69x32xf32>
    %c1_88 = arith.constant 1 : index
    %c0_89 = arith.constant 0 : index
    %93 = vector.load %arg17[%c1_88, %c0_89] : memref<80x32xf32, #tpu.memory_space<vmem>>, vector<69x32xf32>
    %94 = arith.maximumf %92, %93 : vector<69x32xf32>
    %c10_90 = arith.constant 10 : index
    %c0_91 = arith.constant 0 : index
    %95 = vector.load %arg17[%c10_90, %c0_91] : memref<80x32xf32, #tpu.memory_space<vmem>>, vector<69x32xf32>
    %c11_92 = arith.constant 11 : index
    %c0_93 = arith.constant 0 : index
    %96 = vector.load %arg17[%c11_92, %c0_93] : memref<80x32xf32, #tpu.memory_space<vmem>>, vector<69x32xf32>
    %97 = arith.maximumf %95, %96 : vector<69x32xf32>
    %98 = arith.maximumf %94, %97 : vector<69x32xf32>
    %c0_94 = arith.constant 0 : index
    %c0_95 = arith.constant 0 : index
    %99 = vector.load %arg6[%c0_94, %c0_95] : memref<38x69xf32, #tpu.memory_space<vmem>>, vector<38x69xf32>
    %cst_96 = arith.constant dense<0.000000e+00> : vector<38x32xf32>
    %100 = tpu.matmul %99, %98, %cst_96 {dimension_numbers = #tpu.dot_dimension_numbers<[1], [0], [0], [1], [0, 0, 1, 1], [], []>} : vector<38x69xf32>, vector<69x32xf32>, vector<38x32xf32> -> vector<38x32xf32>
    %c0_97 = arith.constant 0 : index
    %c0_98 = arith.constant 0 : index
    %101 = vector.load %arg18[%c0_97, %c0_98] : memref<38x32xf32, #tpu.memory_space<vmem>>, vector<38x32xf32>
    tpu.vector_store %arg18[%c0_97, %c0_98], %100 {strides = array<i32>} : memref<38x32xf32, #tpu.memory_space<vmem>>, vector<38x32xf32>,
    %c0_99 = arith.constant 0 : index
    %c0_100 = arith.constant 0 : index
    %102 = vector.load %arg18[%c0_99, %c0_100] : memref<38x32xf32, #tpu.memory_space<vmem>>, vector<24x32xf32>
    %c0_101 = arith.constant 0 : index
    %c0_102 = arith.constant 0 : index
    %103 = vector.load %arg7[%c0_101, %c0_102] : memref<288x64xf32, #tpu.memory_space<vmem>>, vector<32x64xf32>
    %cst_103 = arith.constant dense<0.000000e+00> : vector<24x64xf32>
    %104 = tpu.matmul %102, %103, %cst_103 {dimension_numbers = #tpu.dot_dimension_numbers<[1], [0], [0], [1], [0, 0, 1, 1], [], []>} : vector<24x32xf32>, vector<32x64xf32>, vector<24x64xf32> -> vector<24x64xf32>
    %c1_104 = arith.constant 1 : index
    %c0_105 = arith.constant 0 : index
    %105 = vector.load %arg18[%c1_104, %c0_105] : memref<38x32xf32, #tpu.memory_space<vmem>>, vector<24x32xf32>
    %c32_106 = arith.constant 32 : index
    %c0_107 = arith.constant 0 : index
    %106 = vector.load %arg7[%c32_106, %c0_107] : memref<288x64xf32, #tpu.memory_space<vmem>>, vector<32x64xf32>
    %cst_108 = arith.constant dense<0.000000e+00> : vector<24x64xf32>
    %107 = tpu.matmul %105, %106, %cst_108 {dimension_numbers = #tpu.dot_dimension_numbers<[1], [0], [0], [1], [0, 0, 1, 1], [], []>} : vector<24x32xf32>, vector<32x64xf32>, vector<24x64xf32> -> vector<24x64xf32>
    %108 = arith.addf %104, %107 : vector<24x64xf32>
    %c2_109 = arith.constant 2 : index
    %c0_110 = arith.constant 0 : index
    %109 = vector.load %arg18[%c2_109, %c0_110] : memref<38x32xf32, #tpu.memory_space<vmem>>, vector<24x32xf32>
    %c64_111 = arith.constant 64 : index
    %c0_112 = arith.constant 0 : index
    %110 = vector.load %arg7[%c64_111, %c0_112] : memref<288x64xf32, #tpu.memory_space<vmem>>, vector<32x64xf32>
    %cst_113 = arith.constant dense<0.000000e+00> : vector<24x64xf32>
    %111 = tpu.matmul %109, %110, %cst_113 {dimension_numbers = #tpu.dot_dimension_numbers<[1], [0], [0], [1], [0, 0, 1, 1], [], []>} : vector<24x32xf32>, vector<32x64xf32>, vector<24x64xf32> -> vector<24x64xf32>
    %112 = arith.addf %108, %111 : vector<24x64xf32>
    %c6 = arith.constant 6 : index
    %c0_114 = arith.constant 0 : index
    %113 = vector.load %arg18[%c6, %c0_114] : memref<38x32xf32, #tpu.memory_space<vmem>>, vector<24x32xf32>
    %c96_115 = arith.constant 96 : index
    %c0_116 = arith.constant 0 : index
    %114 = vector.load %arg7[%c96_115, %c0_116] : memref<288x64xf32, #tpu.memory_space<vmem>>, vector<32x64xf32>
    %cst_117 = arith.constant dense<0.000000e+00> : vector<24x64xf32>
    %115 = tpu.matmul %113, %114, %cst_117 {dimension_numbers = #tpu.dot_dimension_numbers<[1], [0], [0], [1], [0, 0, 1, 1], [], []>} : vector<24x32xf32>, vector<32x64xf32>, vector<24x64xf32> -> vector<24x64xf32>
    %116 = arith.addf %112, %115 : vector<24x64xf32>
    %c7 = arith.constant 7 : index
    %c0_118 = arith.constant 0 : index
    %117 = vector.load %arg18[%c7, %c0_118] : memref<38x32xf32, #tpu.memory_space<vmem>>, vector<24x32xf32>
    %c128_119 = arith.constant 128 : index
    %c0_120 = arith.constant 0 : index
    %118 = vector.load %arg7[%c128_119, %c0_120] : memref<288x64xf32, #tpu.memory_space<vmem>>, vector<32x64xf32>
    %cst_121 = arith.constant dense<0.000000e+00> : vector<24x64xf32>
    %119 = tpu.matmul %117, %118, %cst_121 {dimension_numbers = #tpu.dot_dimension_numbers<[1], [0], [0], [1], [0, 0, 1, 1], [], []>} : vector<24x32xf32>, vector<32x64xf32>, vector<24x64xf32> -> vector<24x64xf32>
    %120 = arith.addf %116, %119 : vector<24x64xf32>
    %c8_122 = arith.constant 8 : index
    %c0_123 = arith.constant 0 : index
    %121 = vector.load %arg18[%c8_122, %c0_123] : memref<38x32xf32, #tpu.memory_space<vmem>>, vector<24x32xf32>
    %c160 = arith.constant 160 : index
    %c0_124 = arith.constant 0 : index
    %122 = vector.load %arg7[%c160, %c0_124] : memref<288x64xf32, #tpu.memory_space<vmem>>, vector<32x64xf32>
    %cst_125 = arith.constant dense<0.000000e+00> : vector<24x64xf32>
    %123 = tpu.matmul %121, %122, %cst_125 {dimension_numbers = #tpu.dot_dimension_numbers<[1], [0], [0], [1], [0, 0, 1, 1], [], []>} : vector<24x32xf32>, vector<32x64xf32>, vector<24x64xf32> -> vector<24x64xf32>
    %124 = arith.addf %120, %123 : vector<24x64xf32>
    %c12_126 = arith.constant 12 : index
    %c0_127 = arith.constant 0 : index
    %125 = vector.load %arg18[%c12_126, %c0_127] : memref<38x32xf32, #tpu.memory_space<vmem>>, vector<24x32xf32>
    %c192 = arith.constant 192 : index
    %c0_128 = arith.constant 0 : index
    %126 = vector.load %arg7[%c192, %c0_128] : memref<288x64xf32, #tpu.memory_space<vmem>>, vector<32x64xf32>
    %cst_129 = arith.constant dense<0.000000e+00> : vector<24x64xf32>
    %127 = tpu.matmul %125, %126, %cst_129 {dimension_numbers = #tpu.dot_dimension_numbers<[1], [0], [0], [1], [0, 0, 1, 1], [], []>} : vector<24x32xf32>, vector<32x64xf32>, vector<24x64xf32> -> vector<24x64xf32>
    %128 = arith.addf %124, %127 : vector<24x64xf32>
    %c13 = arith.constant 13 : index
    %c0_130 = arith.constant 0 : index
    %129 = vector.load %arg18[%c13, %c0_130] : memref<38x32xf32, #tpu.memory_space<vmem>>, vector<24x32xf32>
    %c224 = arith.constant 224 : index
    %c0_131 = arith.constant 0 : index
    %130 = vector.load %arg7[%c224, %c0_131] : memref<288x64xf32, #tpu.memory_space<vmem>>, vector<32x64xf32>
    %cst_132 = arith.constant dense<0.000000e+00> : vector<24x64xf32>
    %131 = tpu.matmul %129, %130, %cst_132 {dimension_numbers = #tpu.dot_dimension_numbers<[1], [0], [0], [1], [0, 0, 1, 1], [], []>} : vector<24x32xf32>, vector<32x64xf32>, vector<24x64xf32> -> vector<24x64xf32>
    %132 = arith.addf %128, %131 : vector<24x64xf32>
    %c14 = arith.constant 14 : index
    %c0_133 = arith.constant 0 : index
    %133 = vector.load %arg18[%c14, %c0_133] : memref<38x32xf32, #tpu.memory_space<vmem>>, vector<24x32xf32>
    %c256 = arith.constant 256 : index
    %c0_134 = arith.constant 0 : index
    %134 = vector.load %arg7[%c256, %c0_134] : memref<288x64xf32, #tpu.memory_space<vmem>>, vector<32x64xf32>
    %cst_135 = arith.constant dense<0.000000e+00> : vector<24x64xf32>
    %135 = tpu.matmul %133, %134, %cst_135 {dimension_numbers = #tpu.dot_dimension_numbers<[1], [0], [0], [1], [0, 0, 1, 1], [], []>} : vector<24x32xf32>, vector<32x64xf32>, vector<24x64xf32> -> vector<24x64xf32>
    %136 = arith.addf %132, %135 : vector<24x64xf32>
    %c0_136 = arith.constant 0 : index
    %c0_137 = arith.constant 0 : index
    %137 = vector.load %arg8[%c0_136, %c0_137] : memref<1x64xf32, #tpu.memory_space<vmem>>, vector<1x64xf32>
    %138 = vector.broadcast %137 : vector<1x64xf32> to vector<24x64xf32>
    %139 = arith.addf %136, %138 : vector<24x64xf32>
    %cst_138 = arith.constant 0.000000e+00 : f32
    %140 = vector.broadcast %cst_138 : f32 to vector<24x64xf32>
    %141 = arith.maximumf %139, %140 : vector<24x64xf32>
    %c0_139 = arith.constant 0 : index
    %c0_140 = arith.constant 0 : index
    %142 = vector.load %arg19[%c0_139, %c0_140] : memref<24x64xf32, #tpu.memory_space<vmem>>, vector<24x64xf32>
    tpu.vector_store %arg19[%c0_139, %c0_140], %141 {strides = array<i32>} : memref<24x64xf32, #tpu.memory_space<vmem>>, vector<24x64xf32>,
    %c0_141 = arith.constant 0 : index
    %c0_142 = arith.constant 0 : index
    %143 = vector.load %arg19[%c0_141, %c0_142] : memref<24x64xf32, #tpu.memory_space<vmem>>, vector<17x64xf32>
    %c1_143 = arith.constant 1 : index
    %c0_144 = arith.constant 0 : index
    %144 = vector.load %arg19[%c1_143, %c0_144] : memref<24x64xf32, #tpu.memory_space<vmem>>, vector<17x64xf32>
    %145 = arith.maximumf %143, %144 : vector<17x64xf32>
    %c6_145 = arith.constant 6 : index
    %c0_146 = arith.constant 0 : index
    %146 = vector.load %arg19[%c6_145, %c0_146] : memref<24x64xf32, #tpu.memory_space<vmem>>, vector<17x64xf32>
    %c7_147 = arith.constant 7 : index
    %c0_148 = arith.constant 0 : index
    %147 = vector.load %arg19[%c7_147, %c0_148] : memref<24x64xf32, #tpu.memory_space<vmem>>, vector<17x64xf32>
    %148 = arith.maximumf %146, %147 : vector<17x64xf32>
    %149 = arith.maximumf %145, %148 : vector<17x64xf32>
    %c0_149 = arith.constant 0 : index
    %c0_150 = arith.constant 0 : index
    %150 = vector.load %arg9[%c0_149, %c0_150] : memref<4x17xf32, #tpu.memory_space<vmem>>, vector<4x17xf32>
    %cst_151 = arith.constant dense<0.000000e+00> : vector<4x64xf32>
    %151 = tpu.matmul %150, %149, %cst_151 {dimension_numbers = #tpu.dot_dimension_numbers<[1], [0], [0], [1], [0, 0, 1, 1], [], []>} : vector<4x17xf32>, vector<17x64xf32>, vector<4x64xf32> -> vector<4x64xf32>
    %c0_152 = arith.constant 0 : index
    %c0_153 = arith.constant 0 : index
    %152 = vector.load %arg20[%c0_152, %c0_153] : memref<4x64xf32, #tpu.memory_space<vmem>>, vector<4x64xf32>
    tpu.vector_store %arg20[%c0_152, %c0_153], %151 {strides = array<i32>} : memref<4x64xf32, #tpu.memory_space<vmem>>, vector<4x64xf32>,
    %c0_154 = arith.constant 0 : index
    %c0_155 = arith.constant 0 : index
    %153 = vector.load %arg11[%c0_154, %c0_155] : memref<1x64xf32, #tpu.memory_space<vmem>>, vector<1x64xf32>
    %c0_156 = arith.constant 0 : index
    %c0_157 = arith.constant 0 : index
    %154 = vector.load %arg20[%c0_156, %c0_157] : memref<4x64xf32, #tpu.memory_space<vmem>>, vector<1x64xf32>
    %c0_158 = arith.constant 0 : index
    %c0_159 = arith.constant 0 : index
    %155 = vector.load %arg10[%c0_158, %c0_159] : memref<256x64xf32, #tpu.memory_space<vmem>>, vector<64x64xf32>
    %cst_160 = arith.constant dense<0.000000e+00> : vector<1x64xf32>
    %156 = tpu.matmul %154, %155, %cst_160 {dimension_numbers = #tpu.dot_dimension_numbers<[1], [0], [0], [1], [0, 0, 1, 1], [], []>} : vector<1x64xf32>, vector<64x64xf32>, vector<1x64xf32> -> vector<1x64xf32>
    %157 = arith.addf %153, %156 : vector<1x64xf32>
    %c1_161 = arith.constant 1 : index
    %c0_162 = arith.constant 0 : index
    %158 = vector.load %arg20[%c1_161, %c0_162] : memref<4x64xf32, #tpu.memory_space<vmem>>, vector<1x64xf32>
    %c64_163 = arith.constant 64 : index
    %c0_164 = arith.constant 0 : index
    %159 = vector.load %arg10[%c64_163, %c0_164] : memref<256x64xf32, #tpu.memory_space<vmem>>, vector<64x64xf32>
    %cst_165 = arith.constant dense<0.000000e+00> : vector<1x64xf32>
    %160 = tpu.matmul %158, %159, %cst_165 {dimension_numbers = #tpu.dot_dimension_numbers<[1], [0], [0], [1], [0, 0, 1, 1], [], []>} : vector<1x64xf32>, vector<64x64xf32>, vector<1x64xf32> -> vector<1x64xf32>
    %161 = arith.addf %157, %160 : vector<1x64xf32>
    %c2_166 = arith.constant 2 : index
    %c0_167 = arith.constant 0 : index
    %162 = vector.load %arg20[%c2_166, %c0_167] : memref<4x64xf32, #tpu.memory_space<vmem>>, vector<1x64xf32>
    %c128_168 = arith.constant 128 : index
    %c0_169 = arith.constant 0 : index
    %163 = vector.load %arg10[%c128_168, %c0_169] : memref<256x64xf32, #tpu.memory_space<vmem>>, vector<64x64xf32>
    %cst_170 = arith.constant dense<0.000000e+00> : vector<1x64xf32>
    %164 = tpu.matmul %162, %163, %cst_170 {dimension_numbers = #tpu.dot_dimension_numbers<[1], [0], [0], [1], [0, 0, 1, 1], [], []>} : vector<1x64xf32>, vector<64x64xf32>, vector<1x64xf32> -> vector<1x64xf32>
    %165 = arith.addf %161, %164 : vector<1x64xf32>
    %c3 = arith.constant 3 : index
    %c0_171 = arith.constant 0 : index
    %166 = vector.load %arg20[%c3, %c0_171] : memref<4x64xf32, #tpu.memory_space<vmem>>, vector<1x64xf32>
    %c192_172 = arith.constant 192 : index
    %c0_173 = arith.constant 0 : index
    %167 = vector.load %arg10[%c192_172, %c0_173] : memref<256x64xf32, #tpu.memory_space<vmem>>, vector<64x64xf32>
    %cst_174 = arith.constant dense<0.000000e+00> : vector<1x64xf32>
    %168 = tpu.matmul %166, %167, %cst_174 {dimension_numbers = #tpu.dot_dimension_numbers<[1], [0], [0], [1], [0, 0, 1, 1], [], []>} : vector<1x64xf32>, vector<64x64xf32>, vector<1x64xf32> -> vector<1x64xf32>
    %169 = arith.addf %165, %168 : vector<1x64xf32>
    %cst_175 = arith.constant 0.000000e+00 : f32
    %170 = vector.broadcast %cst_175 : f32 to vector<1x64xf32>
    %171 = arith.maximumf %169, %170 : vector<1x64xf32>
    %c0_176 = arith.constant 0 : index
    %c0_177 = arith.constant 0 : index
    %172 = vector.load %arg12[%c0_176, %c0_177] : memref<64x8xf32, #tpu.memory_space<vmem>>, vector<64x8xf32>
    %cst_178 = arith.constant dense<0.000000e+00> : vector<1x8xf32>
    %173 = tpu.matmul %171, %172, %cst_178 {dimension_numbers = #tpu.dot_dimension_numbers<[1], [0], [0], [1], [0, 0, 1, 1], [], []>} : vector<1x64xf32>, vector<64x8xf32>, vector<1x8xf32> -> vector<1x8xf32>
    %c0_179 = arith.constant 0 : index
    %c0_180 = arith.constant 0 : index
    %174 = vector.load %arg13[%c0_179, %c0_180] : memref<1x8xf32, #tpu.memory_space<vmem>>, vector<1x8xf32>
    %175 = arith.addf %173, %174 : vector<1x8xf32>
    %c0_181 = arith.constant 0 : index
    %c0_182 = arith.constant 0 : index
    %176 = vector.load %arg14[%c0_181, %c0_182] : memref<1x8xf32, #tpu.memory_space<vmem>>, vector<1x8xf32>
    tpu.vector_store %arg14[%c0_181, %c0_182], %175 {strides = array<i32>} : memref<1x8xf32, #tpu.memory_space<vmem>>, vector<1x8xf32>,
    return
  }
}

</mosaic_0001>

<llo_original>
// kernel: cnn_forward.1
$region0: #{cnn_forward.1}
  #allocation0 [shape = 'u32[]', space=smem, size = 0x4, offset = 0x4, fixed_abs, tag = 'smem constant byte address 0x4 - core index']
  #allocation1 [shape = 'u32[144,128]{1,0:T(1,128)}', space=vmem, size = 0x12000, scoped, tag = 'internal scratch']
  #allocation2 [shape = 'f32[288,16]{1,0:T(8,128)}', space=vmem, size = 0x24000, scoped, tag = 'scratch operand']
  #allocation3 [shape = 'f32[102,16]{1,0:T(8,128)}', space=vmem, size = 0xd000, scoped, tag = 'scratch operand']
  #allocation4 [shape = 'f32[80,32]{1,0:T(8,128)}', space=vmem, size = 0xa000, scoped, tag = 'scratch operand']
  #allocation5 [shape = 'f32[38,32]{1,0:T(8,128)}', space=vmem, size = 0x5000, scoped, tag = 'scratch operand']
  #allocation6 [shape = 'f32[24,64]{1,0:T(8,128)}', space=vmem, size = 0x3000, scoped, tag = 'scratch operand']
  #allocation7 [shape = 'f32[4,64]{1,0:T(4,128)}', space=vmem, size = 0x800, scoped, tag = 'scratch operand']
  %s0 = inlined_call_operand.vmem [shape: f32[326,4], index: 0, kind: input, shape index: {}]
  %s1 = inlined_call_operand.vmem [shape: f32[36,16], index: 1, kind: input, shape index: {}]
  %s2 = inlined_call_operand.vmem [shape: f32[1,16], index: 2, kind: input, shape index: {}]
  %s3 = inlined_call_operand.vmem [shape: f32[102,269], index: 3, kind: input, shape index: {}]
  %s4 = inlined_call_operand.vmem [shape: f32[144,32], index: 4, kind: input, shape index: {}]
  %s5 = inlined_call_operand.vmem [shape: f32[1,32], index: 5, kind: input, shape index: {}]
  %s6 = inlined_call_operand.vmem [shape: f32[38,69], index: 6, kind: input, shape index: {}]
  %s7 = inlined_call_operand.vmem [shape: f32[288,64], index: 7, kind: input, shape index: {}]
  %s8 = inlined_call_operand.vmem [shape: f32[1,64], index: 8, kind: input, shape index: {}]
  %s9 = inlined_call_operand.vmem [shape: f32[4,17], index: 9, kind: input, shape index: {}]
  %s10 = inlined_call_operand.vmem [shape: f32[256,64], index: 10, kind: input, shape index: {}]
  %s11 = inlined_call_operand.vmem [shape: f32[1,64], index: 11, kind: input, shape index: {}]
  %s12 = inlined_call_operand.vmem [shape: f32[64,8], index: 12, kind: input, shape index: {}]
  %s13 = inlined_call_operand.vmem [shape: f32[1,8], index: 13, kind: input, shape index: {}]
  %s14 = inlined_call_operand.vmem [shape: f32[1,8], index: 14, kind: output, shape index: {}]
  %s15 = sld [smem:[#allocation0]]
  $region66: #{cnn_forward.1} parent=0
    _
  %s17 = ssub.s32 1, %s15
  %s18 = scalar_select 0, %s17, %s15
  // Predicated region
  $region2: #{cnn_forward.1} parent=0 // pred_check
    _
  $region3: #{cnn_forward.1} parent=0 // pred_check_branch
    %20 = sbr.rel (0) target = $region5
  $region4: #{cnn_forward.1} parent=0 // pred_region
    _
  $region5: #{cnn_forward.1} parent=0 // pred_fallthru
    _
  // Predicated region
  $region6: #{cnn_forward.1} parent=0 // pred_check
    _
  $region7: #{cnn_forward.1} parent=0 // pred_check_branch
    %22 = sbr.rel (0) target = $region9
  $region8: #{cnn_forward.1} parent=0 // pred_region
    _
  $region9: #{cnn_forward.1} parent=0 // pred_fallthru
    _
  // Predicated region
  $region10: #{cnn_forward.1} parent=0 // pred_check
    _
  $region11: #{cnn_forward.1} parent=0 // pred_check_branch
    %24 = sbr.rel (0) target = $region13
  $region12: #{cnn_forward.1} parent=0 // pred_region
    _
  $region13: #{cnn_forward.1} parent=0 // pred_fallthru
    _
  // Predicated region
  $region14: #{cnn_forward.1} parent=0 // pred_check
    _
  $region15: #{cnn_forward.1} parent=0 // pred_check_branch
    %26 = sbr.rel (0) target = $region17
  $region16: #{cnn_forward.1} parent=0 // pred_region
    _
  $region17: #{cnn_forward.1} parent=0 // pred_fallthru
    _
  // Predicated region
  $region18: #{cnn_forward.1} parent=0 // pred_check
    _
  $region19: #{cnn_forward.1} parent=0 // pred_check_branch
    %28 = sbr.rel (0) target = $region21
  $region20: #{cnn_forward.1} parent=0 // pred_region
    _
  $region21: #{cnn_forward.1} parent=0 // pred_fallthru
    _
  // Predicated region
  $region22: #{cnn_forward.1} parent=0 // pred_check
    _
  $region23: #{cnn_forward.1} parent=0 // pred_check_branch
    %30 = sbr.rel (0) target = $region25
  $region24: #{cnn_forward.1} parent=0 // pred_region
    _
  $region25: #{cnn_forward.1} parent=0 // pred_fallthru
    _
  // Predicated region
  $region26: #{cnn_forward.1} parent=0 // pred_check
    _
  $region27: #{cnn_forward.1} parent=0 // pred_check_branch
    %32 = sbr.rel (0) target = $region29
  $region28: #{cnn_forward.1} parent=0 // pred_region
    _
  $region29: #{cnn_forward.1} parent=0 // pred_fallthru
    _
  // Predicated region
  $region30: #{cnn_forward.1} parent=0 // pred_check
    _
  $region31: #{cnn_forward.1} parent=0 // pred_check_branch
    %34 = sbr.rel (0) target = $region33
  $region32: #{cnn_forward.1} parent=0 // pred_region
    _
  $region33: #{cnn_forward.1} parent=0 // pred_fallthru
    _
  // Predicated region
  $region34: #{cnn_forward.1} parent=0 // pred_check
    _
  $region35: #{cnn_forward.1} parent=0 // pred_check_branch
    %36 = sbr.rel (0) target = $region37
  $region36: #{cnn_forward.1} parent=0 // pred_region
    _
  $region37: #{cnn_forward.1} parent=0 // pred_fallthru
    _
  // Predicated region
  $region38: #{cnn_forward.1} parent=0 // pred_check
    _
  $region39: #{cnn_forward.1} parent=0 // pred_check_branch
    %38 = sbr.rel (0) target = $region41
  $region40: #{cnn_forward.1} parent=0 // pred_region
    _
  $region41: #{cnn_forward.1} parent=0 // pred_fallthru
    _
  // Predicated region
  $region42: #{cnn_forward.1} parent=0 // pred_check
    _
  $region43: #{cnn_forward.1} parent=0 // pred_check_branch
    %40 = sbr.rel (0) target = $region45
  $region44: #{cnn_forward.1} parent=0 // pred_region
    _
  $region45: #{cnn_forward.1} parent=0 // pred_fallthru
    _
  // Predicated region
  $region46: #{cnn_forward.1} parent=0 // pred_check
    _
  $region47: #{cnn_forward.1} parent=0 // pred_check_branch
    %42 = sbr.rel (0) target = $region49
  $region48: #{cnn_forward.1} parent=0 // pred_region
    _
  $region49: #{cnn_forward.1} parent=0 // pred_fallthru
    _
  // Predicated region
  $region50: #{cnn_forward.1} parent=0 // pred_check
    _
  $region51: #{cnn_forward.1} parent=0 // pred_check_branch
    %44 = sbr.rel (0) target = $region53
  $region52: #{cnn_forward.1} parent=0 // pred_region
    _
  $region53: #{cnn_forward.1} parent=0 // pred_fallthru
    _
  // Predicated region
  $region54: #{cnn_forward.1} parent=0 // pred_check
    _
  $region55: #{cnn_forward.1} parent=0 // pred_check_branch
    %46 = sbr.rel (0) target = $region57
  $region56: #{cnn_forward.1} parent=0 // pred_region
    _
  $region57: #{cnn_forward.1} parent=0 // pred_fallthru
    _
  %v47 = vld [vmem:[%s0] sm:$0xff]
  %v48 = vld [vmem:[%s0 + $0x8] sm:$0xff]
  %v49 = vld [vmem:[%s0 + $0x10] sm:$0xff]
  %v50 = vld [vmem:[%s0 + $0x18] sm:$0xff]
  %v51 = vld [vmem:[%s0 + $0x20] sm:$0xff]
  %v52 = vld [vmem:[%s0 + $0x28] sm:$0xff]
  %v53 = vld [vmem:[%s0 + $0x30] sm:$0xff]
  %v54 = vld [vmem:[%s0 + $0x38] sm:$0xff]
  %v55 = vld [vmem:[%s0 + $0x40] sm:$0xff]
  %v56 = vld [vmem:[%s0 + $0x48] sm:$0xff]
  %v57 = vld [vmem:[%s0 + $0x50] sm:$0xff]
  %v58 = vld [vmem:[%s0 + $0x58] sm:$0xff]
  %v59 = vld [vmem:[%s0 + $0x60] sm:$0xff]
  %v60 = vld [vmem:[%s0 + $0x68] sm:$0xff]
  %v61 = vld [vmem:[%s0 + $0x70] sm:$0xff]
  %v62 = vld [vmem:[%s0 + $0x78] sm:$0xff]
  %v63 = vld [vmem:[%s0 + $0x80] sm:$0xff]
  %v64 = vld [vmem:[%s0 + $0x88] sm:$0xff]
  %v65 = vld [vmem:[%s0 + $0x90] sm:$0xff]
  %v66 = vld [vmem:[%s0 + $0x98] sm:$0xff]
  %v67 = vld [vmem:[%s0 + $0xa0] sm:$0xff]
  %v68 = vld [vmem:[%s0 + $0xa8] sm:$0xff]
  %v69 = vld [vmem:[%s0 + $0xb0] sm:$0xff]
  %v70 = vld [vmem:[%s0 + $0xb8] sm:$0xff]
  %v71 = vld [vmem:[%s0 + $0xc0] sm:$0xff]
  %v72 = vld [vmem:[%s0 + $0xc8] sm:$0xff]
  %v73 = vld [vmem:[%s0 + $0xd0] sm:$0xff]
  %v74 = vld [vmem:[%s0 + $0xd8] sm:$0xff]
  %v75 = vld [vmem:[%s0 + $0xe0] sm:$0xff]
  %v76 = vld [vmem:[%s0 + $0xe8] sm:$0xff]
  %v77 = vld [vmem:[%s0 + $0xf0] sm:$0xff]
  %v78 = vld [vmem:[%s0 + $0xf8] sm:$0xff]
  %v79 = vld [vmem:[%s0 + $0x100] sm:$0xff]
  %v80 = vld [vmem:[%s0 + $0x108] sm:$0xff]
  %v81 = vld [vmem:[%s0 + $0x110] sm:$0xff]
  %v82 = vld [vmem:[%s0 + $0x118] sm:$0xff]
  %v83 = vld [vmem:[%s1] sm:$0xf]
  %v84 = vld [vmem:[%s0 + $0x1] sm:$0xff]
  %v85 = vld [vmem:[%s0 + $0x9] sm:$0xff]
  %v86 = vld [vmem:[%s0 + $0x11] sm:$0xff]
  %v87 = vld [vmem:[%s0 + $0x19] sm:$0xff]
  %v88 = vld [vmem:[%s0 + $0x21] sm:$0xff]
  %v89 = vld [vmem:[%s0 + $0x29] sm:$0xff]
  %v90 = vld [vmem:[%s0 + $0x31] sm:$0xff]
  %v91 = vld [vmem:[%s0 + $0x39] sm:$0xff]
  %v92 = vld [vmem:[%s0 + $0x41] sm:$0xff]
  %v93 = vld [vmem:[%s0 + $0x49] sm:$0xff]
  %v94 = vld [vmem:[%s0 + $0x51] sm:$0xff]
  %v95 = vld [vmem:[%s0 + $0x59] sm:$0xff]
  %v96 = vld [vmem:[%s0 + $0x61] sm:$0xff]
  %v97 = vld [vmem:[%s0 + $0x69] sm:$0xff]
  %v98 = vld [vmem:[%s0 + $0x71] sm:$0xff]
  %v99 = vld [vmem:[%s0 + $0x79] sm:$0xff]
  %v100 = vld [vmem:[%s0 + $0x81] sm:$0xff]
  %v101 = vld [vmem:[%s0 + $0x89] sm:$0xff]
  %v102 = vld [vmem:[%s0 + $0x91] sm:$0xff]
  %v103 = vld [vmem:[%s0 + $0x99] sm:$0xff]
  %v104 = vld [vmem:[%s0 + $0xa1] sm:$0xff]
  %v105 = vld [vmem:[%s0 + $0xa9] sm:$0xff]
  %v106 = vld [vmem:[%s0 + $0xb1] sm:$0xff]
  %v107 = vld [vmem:[%s0 + $0xb9] sm:$0xff]
  %v108 = vld [vmem:[%s0 + $0xc1] sm:$0xff]
  %v109 = vld [vmem:[%s0 + $0xc9] sm:$0xff]
  %v110 = vld [vmem:[%s0 + $0xd1] sm:$0xff]
  %v111 = vld [vmem:[%s0 + $0xd9] sm:$0xff]
  %v112 = vld [vmem:[%s0 + $0xe1] sm:$0xff]
  %v113 = vld [vmem:[%s0 + $0xe9] sm:$0xff]
  %v114 = vld [vmem:[%s0 + $0xf1] sm:$0xff]
  %v115 = vld [vmem:[%s0 + $0xf9] sm:$0xff]
  %v116 = vld [vmem:[%s0 + $0x101] sm:$0xff]
  %v117 = vld [vmem:[%s0 + $0x109] sm:$0xff]
  %v118 = vld [vmem:[%s0 + $0x111] sm:$0xff]
  %v119 = vld [vmem:[%s0 + $0x119] sm:$0xff]
  %v120 = vld [vmem:[%s1 + $0x4] sm:$0xf]
  %vm121 = vcmask 31744
  %v123 = vsel %vm121, %v84, 0
  %v126 = vsel %vm121, %v85, 0
  %v129 = vsel %vm121, %v86, 0
  %v132 = vsel %vm121, %v87, 0
  %v135 = vsel %vm121, %v88, 0
  %v138 = vsel %vm121, %v89, 0
  %v141 = vsel %vm121, %v90, 0
  %v144 = vsel %vm121, %v91, 0
  %v147 = vsel %vm121, %v92, 0
  %v150 = vsel %vm121, %v93, 0
  %v153 = vsel %vm121, %v94, 0
  %v156 = vsel %vm121, %v95, 0
  %v159 = vsel %vm121, %v96, 0
  %v162 = vsel %vm121, %v97, 0
  %v165 = vsel %vm121, %v98, 0
  %v168 = vsel %vm121, %v99, 0
  %v171 = vsel %vm121, %v100, 0
  %v174 = vsel %vm121, %v101, 0
  %v177 = vsel %vm121, %v102, 0
  %v180 = vsel %vm121, %v103, 0
  %v183 = vsel %vm121, %v104, 0
  %v186 = vsel %vm121, %v105, 0
  %v189 = vsel %vm121, %v106, 0
  %v192 = vsel %vm121, %v107, 0
  %v195 = vsel %vm121, %v108, 0
  %v198 = vsel %vm121, %v109, 0
  %v201 = vsel %vm121, %v110, 0
  %v204 = vsel %vm121, %v111, 0
  %v207 = vsel %vm121, %v112, 0
  %v210 = vsel %vm121, %v113, 0
  %v213 = vsel %vm121, %v114, 0
  %v216 = vsel %vm121, %v115, 0
  %v219 = vsel %vm121, %v116, 0
  %v222 = vsel %vm121, %v117, 0
  %v225 = vsel %vm121, %v118, 0
  %v228 = vsel %vm121, %v119, 0
  %vm230 = vcmask 1043456
  %v232 = vsel %vm230, %v120, 0
  %234 = vmatprep.subr.mxu0 0.0
  %235 = vmatpush1.msra.mxu0 %v232
  %236 = vmatprep.subr.mxu0 0.0
  %237 = vmatpush1.msra.mxu0 0.0
  %238 = vmatprep.subr.mxu0 0.0
  %239 = vmatpush1.msra.mxu0 0.0
  %240 = vmatprep.subr.mxu0 0.0
  %241 = vmatpush1.msra.mxu0 0.0
  %242 = vmatprep.subr.mxu0 0.0
  %243 = vmatpush1.msra.mxu0 0.0
  %244 = vmatprep.subr.mxu0 0.0
  %245 = vmatpush1.msra.mxu0 0.0
  %246 = vmatprep.subr.mxu0 0.0
  %247 = vmatpush1.msra.mxu0 0.0
  %248 = vmatprep.subr.mxu0 0.0
  %249 = vmatpush1.msra.mxu0 0.0
  %250 = vmatprep.subr.mxu0 0.0
  %251 = vmatpush1.msra.mxu0 0.0
  %252 = vmatprep.subr.mxu0 0.0
  %253 = vmatpush1.msra.mxu0 0.0
  %254 = vmatprep.subr.mxu0 0.0
  %255 = vmatpush1.msra.mxu0 0.0
  %256 = vmatprep.subr.mxu0 0.0
  %257 = vmatpush1.msra.mxu0 0.0
  %258 = vmatprep.subr.mxu0 0.0
  %259 = vmatpush1.msra.mxu0 0.0
  %260 = vmatprep.subr.mxu0 0.0
  %261 = vmatpush1.msra.mxu0 0.0
  %262 = vmatprep.subr.mxu0 0.0
  %263 = vmatpush1.msra.mxu0 0.0
  %264 = vmatprep.subr.mxu0 0.0
  %265 = vmatpush1.msra.mxu0 0.0
  %266 = vmatprep.subr.mxu0 0.0
  %267 = vmatpush1.msra.mxu0 0.0
  %268 = vmatprep.subr.mxu0 0.0
  %269 = vmatpush1.msra.mxu0 0.0
  %270 = vmatprep.subr.mxu0 0.0
  %271 = vmatpush1.msra.mxu0 0.0
  %272 = vmatprep.subr.mxu0 0.0
  %273 = vmatpush1.msra.mxu0 0.0
  %274 = vmatprep.subr.mxu0 0.0
  %275 = vmatpush1.msra.mxu0 0.0
  %276 = vmatprep.subr.mxu0 0.0
  %277 = vmatpush1.msra.mxu0 0.0
  %278 = vmatprep.subr.mxu0 0.0
  %279 = vmatpush1.msra.mxu0 0.0
  %280 = vmatprep.subr.mxu0 0.0
  %281 = vmatpush1.msra.mxu0 0.0
  %282 = vmatprep.subr.mxu0 0.0
  %283 = vmatpush1.msra.mxu0 0.0
  %284 = vmatprep.subr.mxu0 0.0
  %285 = vmatpush1.msra.mxu0 0.0
  %286 = vmatprep.subr.mxu0 0.0
  %287 = vmatpush1.msra.mxu0 0.0
  %288 = vmatprep.subr.mxu0 0.0
  %289 = vmatpush1.msra.mxu0 0.0
  %290 = vmatprep.subr.mxu0 0.0
  %291 = vmatpush1.msra.mxu0 0.0
  %292 = vmatprep.subr.mxu0 0.0
  %293 = vmatpush1.msra.mxu0 0.0
  %294 = vmatprep.subr.mxu0 0.0
  %295 = vmatpush1.msra.mxu0 0.0
  %296 = vmatprep.subr.mxu0 0.0
  %297 = vmatpush1.msra.mxu0 0.0
  %298 = vmatprep.mubr.f32.mxu0 0.0
  %299 = vmatmul.mubr.f32.gmra.mrb[0].mxu0 %v123
  %v300 = vpop.f32.mrb[0].mxu0
  %v301 = vadd.f32 0.0, %v300
  %v302 = vpop.f32.mrb[0].mxu0
  %303 = vmatprep.mubr.f32.mxu0 0.0
  %304 = vmatmul.mubr.f32.gmra.mrb[0].mxu0 %v126
  %v305 = vpop.f32.mrb[0].mxu0
  %v306 = vadd.f32 0.0, %v305
  %v307 = vpop.f32.mrb[0].mxu0
  %308 = vmatprep.mubr.f32.mxu0 0.0
  %309 = vmatmul.mubr.f32.gmra.mrb[0].mxu0 %v129
  %v310 = vpop.f32.mrb[0].mxu0
  %v311 = vadd.f32 0.0, %v310
  %v312 = vpop.f32.mrb[0].mxu0
  %313 = vmatprep.mubr.f32.mxu0 0.0
  %314 = vmatmul.mubr.f32.gmra.mrb[0].mxu0 %v132
  %v315 = vpop.f32.mrb[0].mxu0
  %v316 = vadd.f32 0.0, %v315
  %v317 = vpop.f32.mrb[0].mxu0
  %318 = vmatprep.mubr.f32.mxu0 0.0
  %319 = vmatmul.mubr.f32.gmra.mrb[0].mxu0 %v135
  %v320 = vpop.f32.mrb[0].mxu0
  %v321 = vadd.f32 0.0, %v320
  %v322 = vpop.f32.mrb[0].mxu0
  %323 = vmatprep.mubr.f32.mxu0 0.0
  %324 = vmatmul.mubr.f32.gmra.mrb[0].mxu0 %v138
  %v325 = vpop.f32.mrb[0].mxu0
  %v326 = vadd.f32 0.0, %v325
  %v327 = vpop.f32.mrb[0].mxu0
  %328 = vmatprep.mubr.f32.mxu0 0.0
  %329 = vmatmul.mubr.f32.gmra.mrb[0].mxu0 %v141
  %v330 = vpop.f32.mrb[0].mxu0
  %v331 = vadd.f32 0.0, %v330
  %v332 = vpop.f32.mrb[0].mxu0
  %333 = vmatprep.mubr.f32.mxu0 0.0
  %334 = vmatmul.mubr.f32.gmra.mrb[0].mxu0 %v144
  %v335 = vpop.f32.mrb[0].mxu0
  %v336 = vadd.f32 0.0, %v335
  %v337 = vpop.f32.mrb[0].mxu0
  %338 = vmatprep.mubr.f32.mxu0 0.0
  %339 = vmatmul.mubr.f32.gmra.mrb[0].mxu0 %v147
  %v340 = vpop.f32.mrb[0].mxu0
  %v341 = vadd.f32 0.0, %v340
  %v342 = vpop.f32.mrb[0].mxu0
  %343 = vmatprep.mubr.f32.mxu0 0.0
  %344 = vmatmul.mubr.f32.gmra.mrb[0].mxu0 %v150
  %v345 = vpop.f32.mrb[0].mxu0
  %v346 = vadd.f32 0.0, %v345
  %v347 = vpop.f32.mrb[0].mxu0
  %348 = vmatprep.mubr.f32.mxu0 0.0
  %349 = vmatmul.mubr.f32.gmra.mrb[0].mxu0 %v153
  %v350 = vpop.f32.mrb[0].mxu0
  %v351 = vadd.f32 0.0, %v350
  %v352 = vpop.f32.mrb[0].mxu0
  %353 = vmatprep.mubr.f32.mxu0 0.0
  %354 = vmatmul.mubr.f32.gmra.mrb[0].mxu0 %v156
  %v355 = vpop.f32.mrb[0].mxu0
  %v356 = vadd.f32 0.0, %v355
  %v357 = vpop.f32.mrb[0].mxu0
  %358 = vmatprep.mubr.f32.mxu0 0.0
  %359 = vmatmul.mubr.f32.gmra.mrb[0].mxu0 %v159
  %v360 = vpop.f32.mrb[0].mxu0
  %v361 = vadd.f32 0.0, %v360
  %v362 = vpop.f32.mrb[0].mxu0
  %363 = vmatprep.mubr.f32.mxu0 0.0
  %364 = vmatmul.mubr.f32.gmra.mrb[0].mxu0 %v162
  %v365 = vpop.f32.mrb[0].mxu0
  %v366 = vadd.f32 0.0, %v365
  %v367 = vpop.f32.mrb[0].mxu0
  %368 = vmatprep.mubr.f32.mxu0 0.0
  %369 = vmatmul.mubr.f32.gmra.mrb[0].mxu0 %v165
  %v370 = vpop.f32.mrb[0].mxu0
  %v371 = vadd.f32 0.0, %v370
  %v372 = vpop.f32.mrb[0].mxu0
  %373 = vmatprep.mubr.f32.mxu0 0.0
  %374 = vmatmul.mubr.f32.gmra.mrb[0].mxu0 %v168
  %v375 = vpop.f32.mrb[0].mxu0
  %v376 = vadd.f32 0.0, %v375
  %v377 = vpop.f32.mrb[0].mxu0
  %378 = vmatprep.mubr.f32.mxu0 0.0
  %379 = vmatmul.mubr.f32.gmra.mrb[0].mxu0 %v171
  %v380 = vpop.f32.mrb[0].mxu0
  %v381 = vadd.f32 0.0, %v380
  %v382 = vpop.f32.mrb[0].mxu0
  %383 = vmatprep.mubr.f32.mxu0 0.0
  %384 = vmatmul.mubr.f32.gmra.mrb[0].mxu0 %v174
  %v385 = vpop.f32.mrb[0].mxu0
  %v386 = vadd.f32 0.0, %v385
  %v387 = vpop.f32.mrb[0].mxu0
  %388 = vmatprep.mubr.f32.mxu0 0.0
  %389 = vmatmul.mubr.f32.gmra.mrb[0].mxu0 %v177
  %v390 = vpop.f32.mrb[0].mxu0
  %v391 = vadd.f32 0.0, %v390
  %v392 = vpop.f32.mrb[0].mxu0
  %393 = vmatprep.mubr.f32.mxu0 0.0
  %394 = vmatmul.mubr.f32.gmra.mrb[0].mxu0 %v180
  %v395 = vpop.f32.mrb[0].mxu0
  %v396 = vadd.f32 0.0, %v395
  %v397 = vpop.f32.mrb[0].mxu0
  %398 = vmatprep.mubr.f32.mxu0 0.0
  %399 = vmatmul.mubr.f32.gmra.mrb[0].mxu0 %v183
  %v400 = vpop.f32.mrb[0].mxu0
  %v401 = vadd.f32 0.0, %v400
  %v402 = vpop.f32.mrb[0].mxu0
  %403 = vmatprep.mubr.f32.mxu0 0.0
  %404 = vmatmul.mubr.f32.gmra.mrb[0].mxu0 %v186
  %v405 = vpop.f32.mrb[0].mxu0
  %v406 = vadd.f32 0.0, %v405
  %v407 = vpop.f32.mrb[0].mxu0
  %408 = vmatprep.mubr.f32.mxu0 0.0
  %409 = vmatmul.mubr.f32.gmra.mrb[0].mxu0 %v189
  %v410 = vpop.f32.mrb[0].mxu0
  %v411 = vadd.f32 0.0, %v410
  %v412 = vpop.f32.mrb[0].mxu0
  %413 = vmatprep.mubr.f32.mxu0 0.0
  %414 = vmatmul.mubr.f32.gmra.mrb[0].mxu0 %v192
  %v415 = vpop.f32.mrb[0].mxu0
  %v416 = vadd.f32 0.0, %v415
  %v417 = vpop.f32.mrb[0].mxu0
  %418 = vmatprep.mubr.f32.mxu0 0.0
  %419 = vmatmul.mubr.f32.gmra.mrb[0].mxu0 %v195
  %v420 = vpop.f32.mrb[0].mxu0
  %v421 = vadd.f32 0.0, %v420
  %v422 = vpop.f32.mrb[0].mxu0
  %423 = vmatprep.mubr.f32.mxu0 0.0
  %424 = vmatmul.mubr.f32.gmra.mrb[0].mxu0 %v198
  %v425 = vpop.f32.mrb[0].mxu0
  %v426 = vadd.f32 0.0, %v425
  %v427 = vpop.f32.mrb[0].mxu0
  %428 = vmatprep.mubr.f32.mxu0 0.0
  %429 = vmatmul.mubr.f32.gmra.mrb[0].mxu0 %v201
  %v430 = vpop.f32.mrb[0].mxu0
  %v431 = vadd.f32 0.0, %v430
  %v432 = vpop.f32.mrb[0].mxu0
  %433 = vmatprep.mubr.f32.mxu0 0.0
  %434 = vmatmul.mubr.f32.gmra.mrb[0].mxu0 %v204
  %v435 = vpop.f32.mrb[0].mxu0
  %v436 = vadd.f32 0.0, %v435
  %v437 = vpop.f32.mrb[0].mxu0
  %438 = vmatprep.mubr.f32.mxu0 0.0
  %439 = vmatmul.mubr.f32.gmra.mrb[0].mxu0 %v207
  %v440 = vpop.f32.mrb[0].mxu0
  %v441 = vadd.f32 0.0, %v440
  %v442 = vpop.f32.mrb[0].mxu0
  %443 = vmatprep.mubr.f32.mxu0 0.0
  %444 = vmatmul.mubr.f32.gmra.mrb[0].mxu0 %v210
  %v445 = vpop.f32.mrb[0].mxu0
  %v446 = vadd.f32 0.0, %v445
  %v447 = vpop.f32.mrb[0].mxu0
  %448 = vmatprep.mubr.f32.mxu0 0.0
  %449 = vmatmul.mubr.f32.gmra.mrb[0].mxu0 %v213
  %v450 = vpop.f32.mrb[0].mxu0
  %v451 = vadd.f32 0.0, %v450
  %v452 = vpop.f32.mrb[0].mxu0
  %453 = vmatprep.mubr.f32.mxu0 0.0
  %454 = vmatmul.mubr.f32.gmra.mrb[0].mxu0 %v216
  %v455 = vpop.f32.mrb[0].mxu0
  %v456 = vadd.f32 0.0, %v455
  %v457 = vpop.f32.mrb[0].mxu0
  %458 = vmatprep.mubr.f32.mxu0 0.0
  %459 = vmatmul.mubr.f32.gmra.mrb[0].mxu0 %v219
  %v460 = vpop.f32.mrb[0].mxu0
  %v461 = vadd.f32 0.0, %v460
  %v462 = vpop.f32.mrb[0].mxu0
  %463 = vmatprep.mubr.f32.mxu0 0.0
  %464 = vmatmul.mubr.f32.gmra.mrb[0].mxu0 %v222
  %v465 = vpop.f32.mrb[0].mxu0
  %v466 = vadd.f32 0.0, %v465
  %v467 = vpop.f32.mrb[0].mxu0
  %468 = vmatprep.mubr.f32.mxu0 0.0
  %469 = vmatmul.mubr.f32.gmra.mrb[0].mxu0 %v225
  %v470 = vpop.f32.mrb[0].mxu0
  %v471 = vadd.f32 0.0, %v470
  %v472 = vpop.f32.mrb[0].mxu0
  %473 = vmatprep.mubr.f32.mxu0 0.0
  %474 = vmatmul.mubr.f32.gmra.mrb[0].mxu0 %v228
  %v475 = vpop.f32.mrb[0].mxu0
  %v476 = vadd.f32 0.0, %v475
  %v477 = vpop.f32.mrb[0].mxu0
  %478 = vdwg.mxu0
  %v480 = vsel %vm121, %v47, 0
  %v483 = vsel %vm121, %v48, 0
  %v486 = vsel %vm121, %v49, 0
  %v489 = vsel %vm121, %v50, 0
  %v492 = vsel %vm121, %v51, 0
  %v495 = vsel %vm121, %v52, 0
  %v498 = vsel %vm121, %v53, 0
  %v501 = vsel %vm121, %v54, 0
  %v504 = vsel %vm121, %v55, 0
  %v507 = vsel %vm121, %v56, 0
  %v510 = vsel %vm121, %v57, 0
  %v513 = vsel %vm121, %v58, 0
  %v516 = vsel %vm121, %v59, 0
  %v519 = vsel %vm121, %v60, 0
  %v522 = vsel %vm121, %v61, 0
  %v525 = vsel %vm121, %v62, 0
  %v528 = vsel %vm121, %v63, 0
  %v531 = vsel %vm121, %v64, 0
  %v534 = vsel %vm121, %v65, 0
  %v537 = vsel %vm121, %v66, 0
  %v540 = vsel %vm121, %v67, 0
  %v543 = vsel %vm121, %v68, 0
  %v546 = vsel %vm121, %v69, 0
  %v549 = vsel %vm121, %v70, 0
  %v552 = vsel %vm121, %v71, 0
  %v555 = vsel %vm121, %v72, 0
  %v558 = vsel %vm121, %v73, 0
  %v561 = vsel %vm121, %v74, 0
  %v564 = vsel %vm121, %v75, 0
  %v567 = vsel %vm121, %v76, 0
  %v570 = vsel %vm121, %v77, 0
  %v573 = vsel %vm121, %v78, 0
  %v576 = vsel %vm121, %v79, 0
  %v579 = vsel %vm121, %v80, 0
  %v582 = vsel %vm121, %v81, 0
  %v585 = vsel %vm121, %v82, 0
  %v588 = vsel %vm230, %v83, 0
  %590 = vmatprep.subr.mxu0 0.0
  %591 = vmatpush1.msra.mxu0 %v588
  %592 = vmatprep.subr.mxu0 0.0
  %593 = vmatpush1.msra.mxu0 0.0
  %594 = vmatprep.subr.mxu0 0.0
  %595 = vmatpush1.msra.mxu0 0.0
  %596 = vmatprep.subr.mxu0 0.0
  %597 = vmatpush1.msra.mxu0 0.0
  %598 = vmatprep.subr.mxu0 0.0
  %599 = vmatpush1.msra.mxu0 0.0
  %600 = vmatprep.subr.mxu0 0.0
  %601 = vmatpush1.msra.mxu0 0.0
  %602 = vmatprep.subr.mxu0 0.0
  %603 = vmatpush1.msra.mxu0 0.0
  %604 = vmatprep.subr.mxu0 0.0
  %605 = vmatpush1.msra.mxu0 0.0
  %606 = vmatprep.subr.mxu0 0.0
  %607 = vmatpush1.msra.mxu0 0.0
  %608 = vmatprep.subr.mxu0 0.0
  %609 = vmatpush1.msra.mxu0 0.0
  %610 = vmatprep.subr.mxu0 0.0
  %611 = vmatpush1.msra.mxu0 0.0
  %612 = vmatprep.subr.mxu0 0.0
  %613 = vmatpush1.msra.mxu0 0.0
  %614 = vmatprep.subr.mxu0 0.0
  %615 = vmatpush1.msra.mxu0 0.0
  %616 = vmatprep.subr.mxu0 0.0
  %617 = vmatpush1.msra.mxu0 0.0
  %618 = vmatprep.subr.mxu0 0.0
  %619 = vmatpush1.msra.mxu0 0.0
  %620 = vmatprep.subr.mxu0 0.0
  %621 = vmatpush1.msra.mxu0 0.0
  %622 = vmatprep.subr.mxu0 0.0
  %623 = vmatpush1.msra.mxu0 0.0
  %624 = vmatprep.subr.mxu0 0.0
  %625 = vmatpush1.msra.mxu0 0.0
  %626 = vmatprep.subr.mxu0 0.0
  %627 = vmatpush1.msra.mxu0 0.0
  %628 = vmatprep.subr.mxu0 0.0
  %629 = vmatpush1.msra.mxu0 0.0
  %630 = vmatprep.subr.mxu0 0.0
  %631 = vmatpush1.msra.mxu0 0.0
  %632 = vmatprep.subr.mxu0 0.0
  %633 = vmatpush1.msra.mxu0 0.0
  %634 = vmatprep.subr.mxu0 0.0
  %635 = vmatpush1.msra.mxu0 0.0
  %636 = vmatprep.subr.mxu0 0.0
  %637 = vmatpush1.msra.mxu0 0.0
  %638 = vmatprep.subr.mxu0 0.0
  %639 = vmatpush1.msra.mxu0 0.0
  %640 = vmatprep.subr.mxu0 0.0
  %641 = vmatpush1.msra.mxu0 0.0
  %642 = vmatprep.subr.mxu0 0.0
  %643 = vmatpush1.msra.mxu0 0.0
  %644 = vmatprep.subr.mxu0 0.0
  %645 = vmatpush1.msra.mxu0 0.0
  %646 = vmatprep.subr.mxu0 0.0
  %647 = vmatpush1.msra.mxu0 0.0
  %648 = vmatprep.subr.mxu0 0.0
  %649 = vmatpush1.msra.mxu0 0.0
  %650 = vmatprep.subr.mxu0 0.0
  %651 = vmatpush1.msra.mxu0 0.0
  %652 = vmatprep.subr.mxu0 0.0
  %653 = vmatpush1.msra.mxu0 0.0
  %654 = vmatprep.mubr.f32.mxu0 0.0
  %655 = vmatmul.mubr.f32.gmra.mrb[0].mxu0 %v480
  %v656 = vpop.f32.mrb[0].mxu0
  %v657 = vadd.f32 %v301, %v656
  %v658 = vpop.f32.mrb[0].mxu0
  %659 = vmatprep.mubr.f32.mxu0 0.0
  %660 = vmatmul.mubr.f32.gmra.mrb[0].mxu0 %v483
  %v661 = vpop.f32.mrb[0].mxu0
  %v662 = vadd.f32 %v306, %v661
  %v663 = vpop.f32.mrb[0].mxu0
  %664 = vmatprep.mubr.f32.mxu0 0.0
  %665 = vmatmul.mubr.f32.gmra.mrb[0].mxu0 %v486
  %v666 = vpop.f32.mrb[0].mxu0
  %v667 = vadd.f32 %v311, %v666
  %v668 = vpop.f32.mrb[0].mxu0
  %669 = vmatprep.mubr.f32.mxu0 0.0
  %670 = vmatmul.mubr.f32.gmra.mrb[0].mxu0 %v489
  %v671 = vpop.f32.mrb[0].mxu0
  %v672 = vadd.f32 %v316, %v671
  %v673 = vpop.f32.mrb[0].mxu0
  %674 = vmatprep.mubr.f32.mxu0 0.0
  %675 = vmatmul.mubr.f32.gmra.mrb[0].mxu0 %v492
  %v676 = vpop.f32.mrb[0].mxu0
  %v677 = vadd.f32 %v321, %v676
  %v678 = vpop.f32.mrb[0].mxu0
  %679 = vmatprep.mubr.f32.mxu0 0.0
  %680 = vmatmul.mubr.f32.gmra.mrb[0].mxu0 %v495
  %v681 = vpop.f32.mrb[0].mxu0
  %v682 = vadd.f32 %v326, %v681
  %v683 = vpop.f32.mrb[0].mxu0
  %684 = vmatprep.mubr.f32.mxu0 0.0
  %685 = vmatmul.mubr.f32.gmra.mrb[0].mxu0 %v498
  %v686 = vpop.f32.mrb[0].mxu0
  %v687 = vadd.f32 %v331, %v686
  %v688 = vpop.f32.mrb[0].mxu0
  %689 = vmatprep.mubr.f32.mxu0 0.0
  %690 = vmatmul.mubr.f32.gmra.mrb[0].mxu0 %v501
  %v691 = vpop.f32.mrb[0].mxu0
  %v692 = vadd.f32 %v336, %v691
  %v693 = vpop.f32.mrb[0].mxu0
  %694 = vmatprep.mubr.f32.mxu0 0.0
  %695 = vmatmul.mubr.f32.gmra.mrb[0].mxu0 %v504
  %v696 = vpop.f32.mrb[0].mxu0
  %v697 = vadd.f32 %v341, %v696
  %v698 = vpop.f32.mrb[0].mxu0
  %699 = vmatprep.mubr.f32.mxu0 0.0
  %700 = vmatmul.mubr.f32.gmra.mrb[0].mxu0 %v507
  %v701 = vpop.f32.mrb[0].mxu0
  %v702 = vadd.f32 %v346, %v701
  %v703 = vpop.f32.mrb[0].mxu0
  %704 = vmatprep.mubr.f32.mxu0 0.0
  %705 = vmatmul.mubr.f32.gmra.mrb[0].mxu0 %v510
  %v706 = vpop.f32.mrb[0].mxu0
  %v707 = vadd.f32 %v351, %v706
  %v708 = vpop.f32.mrb[0].mxu0
  %709 = vmatprep.mubr.f32.mxu0 0.0
  %710 = vmatmul.mubr.f32.gmra.mrb[0].mxu0 %v513
  %v711 = vpop.f32.mrb[0].mxu0
  %v712 = vadd.f32 %v356, %v711
  %v713 = vpop.f32.mrb[0].mxu0
  %714 = vmatprep.mubr.f32.mxu0 0.0
  %715 = vmatmul.mubr.f32.gmra.mrb[0].mxu0 %v516
  %v716 = vpop.f32.mrb[0].mxu0
  %v717 = vadd.f32 %v361, %v716
  %v718 = vpop.f32.mrb[0].mxu0
  %719 = vmatprep.mubr.f32.mxu0 0.0
  %720 = vmatmul.mubr.f32.gmra.mrb[0].mxu0 %v519
  %v721 = vpop.f32.mrb[0].mxu0
  %v722 = vadd.f32 %v366, %v721
  %v723 = vpop.f32.mrb[0].mxu0
  %724 = vmatprep.mubr.f32.mxu0 0.0
  %725 = vmatmul.mubr.f32.gmra.mrb[0].mxu0 %v522
  %v726 = vpop.f32.mrb[0].mxu0
  %v727 = vadd.f32 %v371, %v726
  %v728 = vpop.f32.mrb[0].mxu0
  %729 = vmatprep.mubr.f32.mxu0 0.0
  %730 = vmatmul.mubr.f32.gmra.mrb[0].mxu0 %v525
  %v731 = vpop.f32.mrb[0].mxu0
  %v732 = vadd.f32 %v376, %v731
  %v733 = vpop.f32.mrb[0].mxu0
  %734 = vmatprep.mubr.f32.mxu0 0.0
  %735 = vmatmul.mubr.f32.gmra.mrb[0].mxu0 %v528
  %v736 = vpop.f32.mrb[0].mxu0
  %v737 = vadd.f32 %v381, %v736
  %v738 = vpop.f32.mrb[0].mxu0
  %739 = vmatprep.mubr.f32.mxu0 0.0
  %740 = vmatmul.mubr.f32.gmra.mrb[0].mxu0 %v531
  %v741 = vpop.f32.mrb[0].mxu0
  %v742 = vadd.f32 %v386, %v741
  %v743 = vpop.f32.mrb[0].mxu0
  %744 = vmatprep.mubr.f32.mxu0 0.0
  %745 = vmatmul.mubr.f32.gmra.mrb[0].mxu0 %v534
  %v746 = vpop.f32.mrb[0].mxu0
  %v747 = vadd.f32 %v391, %v746
  %v748 = vpop.f32.mrb[0].mxu0
  %749 = vmatprep.mubr.f32.mxu0 0.0
  %750 = vmatmul.mubr.f32.gmra.mrb[0].mxu0 %v537
  %v751 = vpop.f32.mrb[0].mxu0
  %v752 = vadd.f32 %v396, %v751
  %v753 = vpop.f32.mrb[0].mxu0
  %754 = vmatprep.mubr.f32.mxu0 0.0
  %755 = vmatmul.mubr.f32.gmra.mrb[0].mxu0 %v540
  %v756 = vpop.f32.mrb[0].mxu0
  %v757 = vadd.f32 %v401, %v756
  %v758 = vpop.f32.mrb[0].mxu0
  %759 = vmatprep.mubr.f32.mxu0 0.0
  %760 = vmatmul.mubr.f32.gmra.mrb[0].mxu0 %v543
  %v761 = vpop.f32.mrb[0].mxu0
  %v762 = vadd.f32 %v406, %v761
  %v763 = vpop.f32.mrb[0].mxu0
  %764 = vmatprep.mubr.f32.mxu0 0.0
  %765 = vmatmul.mubr.f32.gmra.mrb[0].mxu0 %v546
  %v766 = vpop.f32.mrb[0].mxu0
  %v767 = vadd.f32 %v411, %v766
  %v768 = vpop.f32.mrb[0].mxu0
  %769 = vmatprep.mubr.f32.mxu0 0.0
  %770 = vmatmul.mubr.f32.gmra.mrb[0].mxu0 %v549
  %v771 = vpop.f32.mrb[0].mxu0
  %v772 = vadd.f32 %v416, %v771
  %v773 = vpop.f32.mrb[0].mxu0
  %774 = vmatprep.mubr.f32.mxu0 0.0
  %775 = vmatmul.mubr.f32.gmra.mrb[0].mxu0 %v552
  %v776 = vpop.f32.mrb[0].mxu0
  %v777 = vadd.f32 %v421, %v776
  %v778 = vpop.f32.mrb[0].mxu0
  %779 = vmatprep.mubr.f32.mxu0 0.0
  %780 = vmatmul.mubr.f32.gmra.mrb[0].mxu0 %v555
  %v781 = vpop.f32.mrb[0].mxu0
  %v782 = vadd.f32 %v426, %v781
  %v783 = vpop.f32.mrb[0].mxu0
  %784 = vmatprep.mubr.f32.mxu0 0.0
  %785 = vmatmul.mubr.f32.gmra.mrb[0].mxu0 %v558
  %v786 = vpop.f32.mrb[0].mxu0
  %v787 = vadd.f32 %v431, %v786
  %v788 = vpop.f32.mrb[0].mxu0
  %789 = vmatprep.mubr.f32.mxu0 0.0
  %790 = vmatmul.mubr.f32.gmra.mrb[0].mxu0 %v561
  %v791 = vpop.f32.mrb[0].mxu0
  %v792 = vadd.f32 %v436, %v791
  %v793 = vpop.f32.mrb[0].mxu0
  %794 = vmatprep.mubr.f32.mxu0 0.0
  %795 = vmatmul.mubr.f32.gmra.mrb[0].mxu0 %v564
  %v796 = vpop.f32.mrb[0].mxu0
  %v797 = vadd.f32 %v441, %v796
  %v798 = vpop.f32.mrb[0].mxu0
  %799 = vmatprep.mubr.f32.mxu0 0.0
  %800 = vmatmul.mubr.f32.gmra.mrb[0].mxu0 %v567
  %v801 = vpop.f32.mrb[0].mxu0
  %v802 = vadd.f32 %v446, %v801
  %v803 = vpop.f32.mrb[0].mxu0
  %804 = vmatprep.mubr.f32.mxu0 0.0
  %805 = vmatmul.mubr.f32.gmra.mrb[0].mxu0 %v570
  %v806 = vpop.f32.mrb[0].mxu0
  %v807 = vadd.f32 %v451, %v806
  %v808 = vpop.f32.mrb[0].mxu0
  %809 = vmatprep.mubr.f32.mxu0 0.0
  %810 = vmatmul.mubr.f32.gmra.mrb[0].mxu0 %v573
  %v811 = vpop.f32.mrb[0].mxu0
  %v812 = vadd.f32 %v456, %v811
  %v813 = vpop.f32.mrb[0].mxu0
  %814 = vmatprep.mubr.f32.mxu0 0.0
  %815 = vmatmul.mubr.f32.gmra.mrb[0].mxu0 %v576
  %v816 = vpop.f32.mrb[0].mxu0
  %v817 = vadd.f32 %v461, %v816
  %v818 = vpop.f32.mrb[0].mxu0
  %819 = vmatprep.mubr.f32.mxu0 0.0
  %820 = vmatmul.mubr.f32.gmra.mrb[0].mxu0 %v579
  %v821 = vpop.f32.mrb[0].mxu0
  %v822 = vadd.f32 %v466, %v821
  %v823 = vpop.f32.mrb[0].mxu0
  %824 = vmatprep.mubr.f32.mxu0 0.0
  %825 = vmatmul.mubr.f32.gmra.mrb[0].mxu0 %v582
  %v826 = vpop.f32.mrb[0].mxu0
  %v827 = vadd.f32 %v471, %v826
  %v828 = vpop.f32.mrb[0].mxu0
  %829 = vmatprep.mubr.f32.mxu0 0.0
  %830 = vmatmul.mubr.f32.gmra.mrb[0].mxu0 %v585
  %v831 = vpop.f32.mrb[0].mxu0
  %v832 = vadd.f32 %v476, %v831
  %v833 = vpop.f32.mrb[0].mxu0
  %834 = vdwg.mxu0
  %v835 = vld [vmem:[%s0 + $0x2] sm:$0xff]
  %v836 = vld [vmem:[%s0 + $0xa] sm:$0xff]
  %v837 = vld [vmem:[%s0 + $0x12] sm:$0xff]
  %v838 = vld [vmem:[%s0 + $0x1a] sm:$0xff]
  %v839 = vld [vmem:[%s0 + $0x22] sm:$0xff]
  %v840 = vld [vmem:[%s0 + $0x2a] sm:$0xff]
  %v841 = vld [vmem:[%s0 + $0x32] sm:$0xff]
  %v842 = vld [vmem:[%s0 + $0x3a] sm:$0xff]
  %v843 = vld [vmem:[%s0 + $0x42] sm:$0xff]
  %v844 = vld [vmem:[%s0 + $0x4a] sm:$0xff]
  %v845 = vld [vmem:[%s0 + $0x52] sm:$0xff]
  %v846 = vld [vmem:[%s0 + $0x5a] sm:$0xff]
  %v847 = vld [vmem:[%s0 + $0x62] sm:$0xff]
  %v848 = vld [vmem:[%s0 + $0x6a] sm:$0xff]
  %v849 = vld [vmem:[%s0 + $0x72] sm:$0xff]
  %v850 = vld [vmem:[%s0 + $0x7a] sm:$0xff]
  %v851 = vld [vmem:[%s0 + $0x82] sm:$0xff]
  %v852 = vld [vmem:[%s0 + $0x8a] sm:$0xff]
  %v853 = vld [vmem:[%s0 + $0x92] sm:$0xff]
  %v854 = vld [vmem:[%s0 + $0x9a] sm:$0xff]
  %v855 = vld [vmem:[%s0 + $0xa2] sm:$0xff]
  %v856 = vld [vmem:[%s0 + $0xaa] sm:$0xff]
  %v857 = vld [vmem:[%s0 + $0xb2] sm:$0xff]
  %v858 = vld [vmem:[%s0 + $0xba] sm:$0xff]
  %v859 = vld [vmem:[%s0 + $0xc2] sm:$0xff]
  %v860 = vld [vmem:[%s0 + $0xca] sm:$0xff]
  %v861 = vld [vmem:[%s0 + $0xd2] sm:$0xff]
  %v862 = vld [vmem:[%s0 + $0xda] sm:$0xff]
  %v863 = vld [vmem:[%s0 + $0xe2] sm:$0xff]
  %v864 = vld [vmem:[%s0 + $0xea] sm:$0xff]
  %v865 = vld [vmem:[%s0 + $0xf2] sm:$0xff]
  %v866 = vld [vmem:[%s0 + $0xfa] sm:$0xff]
  %v867 = vld [vmem:[%s0 + $0x102] sm:$0xff]
  %v868 = vld [vmem:[%s0 + $0x10a] sm:$0xff]
  %v869 = vld [vmem:[%s0 + $0x112] sm:$0xff]
  %v870 = vld [vmem:[%s0 + $0x11a] sm:$0xff]
  %v871 = vld [vmem:[%s1 + $0x8] sm:$0xf]
  %v873 = vsel %vm121, %v835, 0
  %v876 = vsel %vm121, %v836, 0
  %v879 = vsel %vm121, %v837, 0
  %v882 = vsel %vm121, %v838, 0
  %v885 = vsel %vm121, %v839, 0
  %v888 = vsel %vm121, %v840, 0
  %v891 = vsel %vm121, %v841, 0
  %v894 = vsel %vm121, %v842, 0
  %v897 = vsel %vm121, %v843, 0
  %v900 = vsel %vm121, %v844, 0
  %v903 = vsel %vm121, %v845, 0
  %v906 = vsel %vm121, %v846, 0
  %v909 = vsel %vm121, %v847, 0
  %v912 = vsel %vm121, %v848, 0
  %v915 = vsel %vm121, %v849, 0
  %v918 = vsel %vm121, %v850, 0
  %v921 = vsel %vm121, %v851, 0
  %v924 = vsel %vm121, %v852, 0
  %v927 = vsel %vm121, %v853, 0
  %v930 = vsel %vm121, %v854, 0
  %v933 = vsel %vm121, %v855, 0
  %v936 = vsel %vm121, %v856, 0
  %v939 = vsel %vm121, %v857, 0
  %v942 = vsel %vm121, %v858, 0
  %v945 = vsel %vm121, %v859, 0
  %v948 = vsel %vm121, %v860, 0
  %v951 = vsel %vm121, %v861, 0
  %v954 = vsel %vm121, %v862, 0
  %v957 = vsel %vm121, %v863, 0
  %v960 = vsel %vm121, %v864, 0
  %v963 = vsel %vm121, %v865, 0
  %v966 = vsel %vm121, %v866, 0
  %v969 = vsel %vm121, %v867, 0
  %v972 = vsel %vm121, %v868, 0
  %v975 = vsel %vm121, %v869, 0
  %v978 = vsel %vm121, %v870, 0
  %v981 = vsel %vm230, %v871, 0
  %983 = vmatprep.subr.mxu0 0.0
  %984 = vmatpush1.msra.mxu0 %v981
  %985 = vmatprep.subr.mxu0 0.0
  %986 = vmatpush1.msra.mxu0 0.0
  %987 = vmatprep.subr.mxu0 0.0
  %988 = vmatpush1.msra.mxu0 0.0
  %989 = vmatprep.subr.mxu0 0.0
  %990 = vmatpush1.msra.mxu0 0.0
  %991 = vmatprep.subr.mxu0 0.0
  %992 = vmatpush1.msra.mxu0 0.0
  %993 = vmatprep.subr.mxu0 0.0
  %994 = vmatpush1.msra.mxu0 0.0
  %995 = vmatprep.subr.mxu0 0.0
  %996 = vmatpush1.msra.mxu0 0.0
  %997 = vmatprep.subr.mxu0 0.0
  %998 = vmatpush1.msra.mxu0 0.0
  %999 = vmatprep.subr.mxu0 0.0
  %1000 = vmatpush1.msra.mxu0 0.0
  %1001 = vmatprep.subr.mxu0 0.0
  %1002 = vmatpush1.msra.mxu0 0.0
  %1003 = vmatprep.subr.mxu0 0.0
  %1004 = vmatpush1.msra.mxu0 0.0
  %1005 = vmatprep.subr.mxu0 0.0
  %1006 = vmatpush1.msra.mxu0 0.0
  %1007 = vmatprep.subr.mxu0 0.0
  %1008 = vmatpush1.msra.mxu0 0.0
  %1009 = vmatprep.subr.mxu0 0.0
  %1010 = vmatpush1.msra.mxu0 0.0
  %1011 = vmatprep.subr.mxu0 0.0
  %1012 = vmatpush1.msra.mxu0 0.0
  %1013 = vmatprep.subr.mxu0 0.0
  %1014 = vmatpush1.msra.mxu0 0.0
  %1015 = vmatprep.subr.mxu0 0.0
  %1016 = vmatpush1.msra.mxu0 0.0
  %1017 = vmatprep.subr.mxu0 0.0
  %1018 = vmatpush1.msra.mxu0 0.0
  %1019 = vmatprep.subr.mxu0 0.0
  %1020 = vmatpush1.msra.mxu0 0.0
  %1021 = vmatprep.subr.mxu0 0.0
  %1022 = vmatpush1.msra.mxu0 0.0
  %1023 = vmatprep.subr.mxu0 0.0
  %1024 = vmatpush1.msra.mxu0 0.0
  %1025 = vmatprep.subr.mxu0 0.0
  %1026 = vmatpush1.msra.mxu0 0.0
  %1027 = vmatprep.subr.mxu0 0.0
  %1028 = vmatpush1.msra.mxu0 0.0
  %1029 = vmatprep.subr.mxu0 0.0
  %1030 = vmatpush1.msra.mxu0 0.0
  %1031 = vmatprep.subr.mxu0 0.0
  %1032 = vmatpush1.msra.mxu0 0.0
  %1033 = vmatprep.subr.mxu0 0.0
  %1034 = vmatpush1.msra.mxu0 0.0
  %1035 = vmatprep.subr.mxu0 0.0
  %1036 = vmatpush1.msra.mxu0 0.0
  %1037 = vmatprep.subr.mxu0 0.0
  %1038 = vmatpush1.msra.mxu0 0.0
  %1039 = vmatprep.subr.mxu0 0.0
  %1040 = vmatpush1.msra.mxu0 0.0
  %1041 = vmatprep.subr.mxu0 0.0
  %1042 = vmatpush1.msra.mxu0 0.0
  %1043 = vmatprep.subr.mxu0 0.0
  %1044 = vmatpush1.msra.mxu0 0.0
  %1045 = vmatprep.subr.mxu0 0.0
  %1046 = vmatpush1.msra.mxu0 0.0
  %1047 = vmatprep.mubr.f32.mxu0 0.0
  %1048 = vmatmul.mubr.f32.gmra.mrb[0].mxu0 %v873
  %v1049 = vpop.f32.mrb[0].mxu0
  %v1050 = vadd.f32 0.0, %v1049
  %v1051 = vpop.f32.mrb[0].mxu0
  %1052 = vmatprep.mubr.f32.mxu0 0.0
  %1053 = vmatmul.mubr.f32.gmra.mrb[0].mxu0 %v876
  %v1054 = vpop.f32.mrb[0].mxu0
  %v1055 = vadd.f32 0.0, %v1054
  %v1056 = vpop.f32.mrb[0].mxu0
  %1057 = vmatprep.mubr.f32.mxu0 0.0
  %1058 = vmatmul.mubr.f32.gmra.mrb[0].mxu0 %v879
  %v1059 = vpop.f32.mrb[0].mxu0
  %v1060 = vadd.f32 0.0, %v1059
  %v1061 = vpop.f32.mrb[0].mxu0
  %1062 = vmatprep.mubr.f32.mxu0 0.0
  %1063 = vmatmul.mubr.f32.gmra.mrb[0].mxu0 %v882
  %v1064 = vpop.f32.mrb[0].mxu0
  %v1065 = vadd.f32 0.0, %v1064
  %v1066 = vpop.f32.mrb[0].mxu0
  %1067 = vmatprep.mubr.f32.mxu0 0.0
  %1068 = vmatmul.mubr.f32.gmra.mrb[0].mxu0 %v885
  %v1069 = vpop.f32.mrb[0].mxu0
  %v1070 = vadd.f32 0.0, %v1069
  %v1071 = vpop.f32.mrb[0].mxu0
  %1072 = vmatprep.mubr.f32.mxu0 0.0
  %1073 = vmatmul.mubr.f32.gmra.mrb[0].mxu0 %v888
  %v1074 = vpop.f32.mrb[0].mxu0
  %v1075 = vadd.f32 0.0, %v1074
  %v1076 = vpop.f32.mrb[0].mxu0
  %1077 = vmatprep.mubr.f32.mxu0 0.0
  %1078 = vmatmul.mubr.f32.gmra.mrb[0].mxu0 %v891
  %v1079 = vpop.f32.mrb[0].mxu0
  %v1080 = vadd.f32 0.0, %v1079
  %v1081 = vpop.f32.mrb[0].mxu0
  %1082 = vmatprep.mubr.f32.mxu0 0.0
  %1083 = vmatmul.mubr.f32.gmra.mrb[0].mxu0 %v894
  %v1084 = vpop.f32.mrb[0].mxu0
  %v1085 = vadd.f32 0.0, %v1084
  %v1086 = vpop.f32.mrb[0].mxu0
  %1087 = vmatprep.mubr.f32.mxu0 0.0
  %1088 = vmatmul.mubr.f32.gmra.mrb[0].mxu0 %v897
  %v1089 = vpop.f32.mrb[0].mxu0
  %v1090 = vadd.f32 0.0, %v1089
  %v1091 = vpop.f32.mrb[0].mxu0
  %1092 = vmatprep.mubr.f32.mxu0 0.0
  %1093 = vmatmul.mubr.f32.gmra.mrb[0].mxu0 %v900
  %v1094 = vpop.f32.mrb[0].mxu0
  %v1095 = vadd.f32 0.0, %v1094
  %v1096 = vpop.f32.mrb[0].mxu0
  %1097 = vmatprep.mubr.f32.mxu0 0.0
  %1098 = vmatmul.mubr.f32.gmra.mrb[0].mxu0 %v903
  %v1099 = vpop.f32.mrb[0].mxu0
  %v1100 = vadd.f32 0.0, %v1099
  %v1101 = vpop.f32.mrb[0].mxu0
  %1102 = vmatprep.mubr.f32.mxu0 0.0
  %1103 = vmatmul.mubr.f32.gmra.mrb[0].mxu0 %v906
  %v1104 = vpop.f32.mrb[0].mxu0
  %v1105 = vadd.f32 0.0, %v1104
  %v1106 = vpop.f32.mrb[0].mxu0
  %1107 = vmatprep.mubr.f32.mxu0 0.0
  %1108 = vmatmul.mubr.f32.gmra.mrb[0].mxu0 %v909
  %v1109 = vpop.f32.mrb[0].mxu0
  %v1110 = vadd.f32 0.0, %v1109
  %v1111 = vpop.f32.mrb[0].mxu0
  %1112 = vmatprep.mubr.f32.mxu0 0.0
  %1113 = vmatmul.mubr.f32.gmra.mrb[0].mxu0 %v912
  %v1114 = vpop.f32.mrb[0].mxu0
  %v1115 = vadd.f32 0.0, %v1114
  %v1116 = vpop.f32.mrb[0].mxu0
  %1117 = vmatprep.mubr.f32.mxu0 0.0
  %1118 = vmatmul.mubr.f32.gmra.mrb[0].mxu0 %v915
  %v1119 = vpop.f32.mrb[0].mxu0
  %v1120 = vadd.f32 0.0, %v1119
  %v1121 = vpop.f32.mrb[0].mxu0
  %1122 = vmatprep.mubr.f32.mxu0 0.0
  %1123 = vmatmul.mubr.f32.gmra.mrb[0].mxu0 %v918
  %v1124 = vpop.f32.mrb[0].mxu0
  %v1125 = vadd.f32 0.0, %v1124
  %v1126 = vpop.f32.mrb[0].mxu0
  %1127 = vmatprep.mubr.f32.mxu0 0.0
  %1128 = vmatmul.mubr.f32.gmra.mrb[0].mxu0 %v921
  %v1129 = vpop.f32.mrb[0].mxu0
  %v1130 = vadd.f32 0.0, %v1129
  %v1131 = vpop.f32.mrb[0].mxu0
  %1132 = vmatprep.mubr.f32.mxu0 0.0
  %1133 = vmatmul.mubr.f32.gmra.mrb[0].mxu0 %v924
  %v1134 = vpop.f32.mrb[0].mxu0
  %v1135 = vadd.f32 0.0, %v1134
  %v1136 = vpop.f32.mrb[0].mxu0
  %1137 = vmatprep.mubr.f32.mxu0 0.0
  %1138 = vmatmul.mubr.f32.gmra.mrb[0].mxu0 %v927
  %v1139 = vpop.f32.mrb[0].mxu0
  %v1140 = vadd.f32 0.0, %v1139
  %v1141 = vpop.f32.mrb[0].mxu0
  %1142 = vmatprep.mubr.f32.mxu0 0.0
  %1143 = vmatmul.mubr.f32.gmra.mrb[0].mxu0 %v930
  %v1144 = vpop.f32.mrb[0].mxu0
  %v1145 = vadd.f32 0.0, %v1144
  %v1146 = vpop.f32.mrb[0].mxu0
  %1147 = vmatprep.mubr.f32.mxu0 0.0
  %1148 = vmatmul.mubr.f32.gmra.mrb[0].mxu0 %v933
  %v1149 = vpop.f32.mrb[0].mxu0
  %v1150 = vadd.f32 0.0, %v1149
  %v1151 = vpop.f32.mrb[0].mxu0
  %1152 = vmatprep.mubr.f32.mxu0 0.0
  %1153 = vmatmul.mubr.f32.gmra.mrb[0].mxu0 %v936
  %v1154 = vpop.f32.mrb[0].mxu0
  %v1155 = vadd.f32 0.0, %v1154
  %v1156 = vpop.f32.mrb[0].mxu0
  %1157 = vmatprep.mubr.f32.mxu0 0.0
  %1158 = vmatmul.mubr.f32.gmra.mrb[0].mxu0 %v939
  %v1159 = vpop.f32.mrb[0].mxu0
  %v1160 = vadd.f32 0.0, %v1159
  %v1161 = vpop.f32.mrb[0].mxu0
  %1162 = vmatprep.mubr.f32.mxu0 0.0
  %1163 = vmatmul.mubr.f32.gmra.mrb[0].mxu0 %v942
  %v1164 = vpop.f32.mrb[0].mxu0
  %v1165 = vadd.f32 0.0, %v1164
  %v1166 = vpop.f32.mrb[0].mxu0
  %1167 = vmatprep.mubr.f32.mxu0 0.0
  %1168 = vmatmul.mubr.f32.gmra.mrb[0].mxu0 %v945
  %v1169 = vpop.f32.mrb[0].mxu0
  %v1170 = vadd.f32 0.0, %v1169
  %v1171 = vpop.f32.mrb[0].mxu0
  %1172 = vmatprep.mubr.f32.mxu0 0.0
  %1173 = vmatmul.mubr.f32.gmra.mrb[0].mxu0 %v948
  %v1174 = vpop.f32.mrb[0].mxu0
  %v1175 = vadd.f32 0.0, %v1174
  %v1176 = vpop.f32.mrb[0].mxu0
  %1177 = vmatprep.mubr.f32.mxu0 0.0
  %1178 = vmatmul.mubr.f32.gmra.mrb[0].mxu0 %v951
  %v1179 = vpop.f32.mrb[0].mxu0
  %v1180 = vadd.f32 0.0, %v1179
  %v1181 = vpop.f32.mrb[0].mxu0
  %1182 = vmatprep.mubr.f32.mxu0 0.0
  %1183 = vmatmul.mubr.f32.gmra.mrb[0].mxu0 %v954
  %v1184 = vpop.f32.mrb[0].mxu0
  %v1185 = vadd.f32 0.0, %v1184
  %v1186 = vpop.f32.mrb[0].mxu0
  %1187 = vmatprep.mubr.f32.mxu0 0.0
  %1188 = vmatmul.mubr.f32.gmra.mrb[0].mxu0 %v957
  %v1189 = vpop.f32.mrb[0].mxu0
  %v1190 = vadd.f32 0.0, %v1189
  %v1191 = vpop.f32.mrb[0].mxu0
  %1192 = vmatprep.mubr.f32.mxu0 0.0
  %1193 = vmatmul.mubr.f32.gmra.mrb[0].mxu0 %v960
  %v1194 = vpop.f32.mrb[0].mxu0
  %v1195 = vadd.f32 0.0, %v1194
  %v1196 = vpop.f32.mrb[0].mxu0
  %1197 = vmatprep.mubr.f32.mxu0 0.0
  %1198 = vmatmul.mubr.f32.gmra.mrb[0].mxu0 %v963
  %v1199 = vpop.f32.mrb[0].mxu0
  %v1200 = vadd.f32 0.0, %v1199
  %v1201 = vpop.f32.mrb[0].mxu0
  %1202 = vmatprep.mubr.f32.mxu0 0.0
  %1203 = vmatmul.mubr.f32.gmra.mrb[0].mxu0 %v966
  %v1204 = vpop.f32.mrb[0].mxu0
  %v1205 = vadd.f32 0.0, %v1204
  %v1206 = vpop.f32.mrb[0].mxu0
  %1207 = vmatprep.mubr.f32.mxu0 0.0
  %1208 = vmatmul.mubr.f32.gmra.mrb[0].mxu0 %v969
  %v1209 = vpop.f32.mrb[0].mxu0
  %v1210 = vadd.f32 0.0, %v1209
  %v1211 = vpop.f32.mrb[0].mxu0
  %1212 = vmatprep.mubr.f32.mxu0 0.0
  %1213 = vmatmul.mubr.f32.gmra.mrb[0].mxu0 %v972
  %v1214 = vpop.f32.mrb[0].mxu0
  %v1215 = vadd.f32 0.0, %v1214
  %v1216 = vpop.f32.mrb[0].mxu0
  %1217 = vmatprep.mubr.f32.mxu0 0.0
  %1218 = vmatmul.mubr.f32.gmra.mrb[0].mxu0 %v975
  %v1219 = vpop.f32.mrb[0].mxu0
  %v1220 = vadd.f32 0.0, %v1219
  %v1221 = vpop.f32.mrb[0].mxu0
  %1222 = vmatprep.mubr.f32.mxu0 0.0
  %1223 = vmatmul.mubr.f32.gmra.mrb[0].mxu0 %v978
  %v1224 = vpop.f32.mrb[0].mxu0
  %v1225 = vadd.f32 0.0, %v1224
  %v1226 = vpop.f32.mrb[0].mxu0
  %1227 = vdwg.mxu0
  %v1228 = vadd.f32 %v657, %v1050
  %v1229 = vadd.f32 %v662, %v1055
  %v1230 = vadd.f32 %v667, %v1060
  %v1231 = vadd.f32 %v672, %v1065
  %v1232 = vadd.f32 %v677, %v1070
  %v1233 = vadd.f32 %v682, %v1075
  %v1234 = vadd.f32 %v687, %v1080
  %v1235 = vadd.f32 %v692, %v1085
  %v1236 = vadd.f32 %v697, %v1090
  %v1237 = vadd.f32 %v702, %v1095
  %v1238 = vadd.f32 %v707, %v1100
  %v1239 = vadd.f32 %v712, %v1105
  %v1240 = vadd.f32 %v717, %v1110
  %v1241 = vadd.f32 %v722, %v1115
  %v1242 = vadd.f32 %v727, %v1120
  %v1243 = vadd.f32 %v732, %v1125
  %v1244 = vadd.f32 %v737, %v1130
  %v1245 = vadd.f32 %v742, %v1135
  %v1246 = vadd.f32 %v747, %v1140
  %v1247 = vadd.f32 %v752, %v1145
  %v1248 = vadd.f32 %v757, %v1150
  %v1249 = vadd.f32 %v762, %v1155
  %v1250 = vadd.f32 %v767, %v1160
  %v1251 = vadd.f32 %v772, %v1165
  %v1252 = vadd.f32 %v777, %v1170
  %v1253 = vadd.f32 %v782, %v1175
  %v1254 = vadd.f32 %v787, %v1180
  %v1255 = vadd.f32 %v792, %v1185
  %v1256 = vadd.f32 %v797, %v1190
  %v1257 = vadd.f32 %v802, %v1195
  %v1258 = vadd.f32 %v807, %v1200
  %v1259 = vadd.f32 %v812, %v1205
  %v1260 = vadd.f32 %v817, %v1210
  %v1261 = vadd.f32 %v822, %v1215
  %v1262 = vadd.f32 %v827, %v1220
  %v1263 = vadd.f32 %v832, %v1225
  %v1264 = vld [vmem:[%s0 + $0x12] sm:$0xff]
  %v1265 = vld [vmem:[%s0 + $0x1a] sm:$0xff]
  %v1266 = vld [vmem:[%s0 + $0x22] sm:$0xff]
  %v1267 = vld [vmem:[%s0 + $0x2a] sm:$0xff]
  %v1268 = vld [vmem:[%s0 + $0x32] sm:$0xff]
  %v1269 = vld [vmem:[%s0 + $0x3a] sm:$0xff]
  %v1270 = vld [vmem:[%s0 + $0x42] sm:$0xff]
  %v1271 = vld [vmem:[%s0 + $0x4a] sm:$0xff]
  %v1272 = vld [vmem:[%s0 + $0x52] sm:$0xff]
  %v1273 = vld [vmem:[%s0 + $0x5a] sm:$0xff]
  %v1274 = vld [vmem:[%s0 + $0x62] sm:$0xff]
  %v1275 = vld [vmem:[%s0 + $0x6a] sm:$0xff]
  %v1276 = vld [vmem:[%s0 + $0x72] sm:$0xff]
  %v1277 = vld [vmem:[%s0 + $0x7a] sm:$0xff]
  %v1278 = vld [vmem:[%s0 + $0x82] sm:$0xff]
  %v1279 = vld [vmem:[%s0 + $0x8a] sm:$0xff]
  %v1280 = vld [vmem:[%s0 + $0x92] sm:$0xff]
  %v1281 = vld [vmem:[%s0 + $0x9a] sm:$0xff]
  %v1282 = vld [vmem:[%s0 + $0xa2] sm:$0xff]
  %v1283 = vld [vmem:[%s0 + $0xaa] sm:$0xff]
  %v1284 = vld [vmem:[%s0 + $0xb2] sm:$0xff]
  %v1285 = vld [vmem:[%s0 + $0xba] sm:$0xff]
  %v1286 = vld [vmem:[%s0 + $0xc2] sm:$0xff]
  %v1287 = vld [vmem:[%s0 + $0xca] sm:$0xff]
  %v1288 = vld [vmem:[%s0 + $0xd2] sm:$0xff]
  %v1289 = vld [vmem:[%s0 + $0xda] sm:$0xff]
  %v1290 = vld [vmem:[%s0 + $0xe2] sm:$0xff]
  %v1291 = vld [vmem:[%s0 + $0xea] sm:$0xff]
  %v1292 = vld [vmem:[%s0 + $0xf2] sm:$0xff]
  %v1293 = vld [vmem:[%s0 + $0xfa] sm:$0xff]
  %v1294 = vld [vmem:[%s0 + $0x102] sm:$0xff]
  %v1295 = vld [vmem:[%s0 + $0x10a] sm:$0xff]
  %v1296 = vld [vmem:[%s0 + $0x112] sm:$0xff]
  %v1297 = vld [vmem:[%s0 + $0x11a] sm:$0xff]
  %v1298 = vld [vmem:[%s0 + $0x122] sm:$0xff]
  %v1299 = vld [vmem:[%s0 + $0x12a] sm:$0xff]
  %v1300 = vld [vmem:[%s1 + $0xc] sm:$0xf]
  %v1302 = vsel %vm121, %v1264, 0
  %v1305 = vsel %vm121, %v1265, 0
  %v1308 = vsel %vm121, %v1266, 0
  %v1311 = vsel %vm121, %v1267, 0
  %v1314 = vsel %vm121, %v1268, 0
  %v1317 = vsel %vm121, %v1269, 0
  %v1320 = vsel %vm121, %v1270, 0
  %v1323 = vsel %vm121, %v1271, 0
  %v1326 = vsel %vm121, %v1272, 0
  %v1329 = vsel %vm121, %v1273, 0
  %v1332 = vsel %vm121, %v1274, 0
  %v1335 = vsel %vm121, %v1275, 0
  %v1338 = vsel %vm121, %v1276, 0
  %v1341 = vsel %vm121, %v1277, 0
  %v1344 = vsel %vm121, %v1278, 0
  %v1347 = vsel %vm121, %v1279, 0
  %v1350 = vsel %vm121, %v1280, 0
  %v1353 = vsel %vm121, %v1281, 0
  %v1356 = vsel %vm121, %v1282, 0
  %v1359 = vsel %vm121, %v1283, 0
  %v1362 = vsel %vm121, %v1284, 0
  %v1365 = vsel %vm121, %v1285, 0
  %v1368 = vsel %vm121, %v1286, 0
  %v1371 = vsel %vm121, %v1287, 0
  %v1374 = vsel %vm121, %v1288, 0
  %v1377 = vsel %vm121, %v1289, 0
  %v1380 = vsel %vm121, %v1290, 0
  %v1383 = vsel %vm121, %v1291, 0
  %v1386 = vsel %vm121, %v1292, 0
  %v1389 = vsel %vm121, %v1293, 0
  %v1392 = vsel %vm121, %v1294, 0
  %v1395 = vsel %vm121, %v1295, 0
  %v1398 = vsel %vm121, %v1296, 0
  %v1401 = vsel %vm121, %v1297, 0
  %v1404 = vsel %vm121, %v1298, 0
  %v1407 = vsel %vm121, %v1299, 0
  %v1410 = vsel %vm230, %v1300, 0
  %1412 = vmatprep.subr.mxu0 0.0
  %1413 = vmatpush1.msra.mxu0 %v1410
  %1414 = vmatprep.subr.mxu0 0.0
  %1415 = vmatpush1.msra.mxu0 0.0
  %1416 = vmatprep.subr.mxu0 0.0
  %1417 = vmatpush1.msra.mxu0 0.0
  %1418 = vmatprep.subr.mxu0 0.0
  %1419 = vmatpush1.msra.mxu0 0.0
  %1420 = vmatprep.subr.mxu0 0.0
  %1421 = vmatpush1.msra.mxu0 0.0
  %1422 = vmatprep.subr.mxu0 0.0
  %1423 = vmatpush1.msra.mxu0 0.0
  %1424 = vmatprep.subr.mxu0 0.0
  %1425 = vmatpush1.msra.mxu0 0.0
  %1426 = vmatprep.subr.mxu0 0.0
  %1427 = vmatpush1.msra.mxu0 0.0
  %1428 = vmatprep.subr.mxu0 0.0
  %1429 = vmatpush1.msra.mxu0 0.0
  %1430 = vmatprep.subr.mxu0 0.0
  %1431 = vmatpush1.msra.mxu0 0.0
  %1432 = vmatprep.subr.mxu0 0.0
  %1433 = vmatpush1.msra.mxu0 0.0
  %1434 = vmatprep.subr.mxu0 0.0
  %1435 = vmatpush1.msra.mxu0 0.0
  %1436 = vmatprep.subr.mxu0 0.0
  %1437 = vmatpush1.msra.mxu0 0.0
  %1438 = vmatprep.subr.mxu0 0.0
  %1439 = vmatpush1.msra.mxu0 0.0
  %1440 = vmatprep.subr.mxu0 0.0
  %1441 = vmatpush1.msra.mxu0 0.0
  %1442 = vmatprep.subr.mxu0 0.0
  %1443 = vmatpush1.msra.mxu0 0.0
  %1444 = vmatprep.subr.mxu0 0.0
  %1445 = vmatpush1.msra.mxu0 0.0
  %1446 = vmatprep.subr.mxu0 0.0
  %1447 = vmatpush1.msra.mxu0 0.0
  %1448 = vmatprep.subr.mxu0 0.0
  %1449 = vmatpush1.msra.mxu0 0.0
  %1450 = vmatprep.subr.mxu0 0.0
  %1451 = vmatpush1.msra.mxu0 0.0
  %1452 = vmatprep.subr.mxu0 0.0
  %1453 = vmatpush1.msra.mxu0 0.0
  %1454 = vmatprep.subr.mxu0 0.0
  %1455 = vmatpush1.msra.mxu0 0.0
  %1456 = vmatprep.subr.mxu0 0.0
  %1457 = vmatpush1.msra.mxu0 0.0
  %1458 = vmatprep.subr.mxu0 0.0
  %1459 = vmatpush1.msra.mxu0 0.0
  %1460 = vmatprep.subr.mxu0 0.0
  %1461 = vmatpush1.msra.mxu0 0.0
  %1462 = vmatprep.subr.mxu0 0.0
  %1463 = vmatpush1.msra.mxu0 0.0
  %1464 = vmatprep.subr.mxu0 0.0
  %1465 = vmatpush1.msra.mxu0 0.0
  %1466 = vmatprep.subr.mxu0 0.0
  %1467 = vmatpush1.msra.mxu0 0.0
  %1468 = vmatprep.subr.mxu0 0.0
  %1469 = vmatpush1.msra.mxu0 0.0
  %1470 = vmatprep.subr.mxu0 0.0
  %1471 = vmatpush1.msra.mxu0 0.0
  %1472 = vmatprep.subr.mxu0 0.0
  %1473 = vmatpush1.msra.mxu0 0.0
  %1474 = vmatprep.subr.mxu0 0.0
  %1475 = vmatpush1.msra.mxu0 0.0
  %1476 = vmatprep.mubr.f32.mxu0 0.0
  %1477 = vmatmul.mubr.f32.gmra.mrb[0].mxu0 %v1302
  %v1478 = vpop.f32.mrb[0].mxu0
  %v1479 = vadd.f32 0.0, %v1478
  %v1480 = vpop.f32.mrb[0].mxu0
  %1481 = vmatprep.mubr.f32.mxu0 0.0
  %1482 = vmatmul.mubr.f32.gmra.mrb[0].mxu0 %v1305
  %v1483 = vpop.f32.mrb[0].mxu0
  %v1484 = vadd.f32 0.0, %v1483
  %v1485 = vpop.f32.mrb[0].mxu0
  %1486 = vmatprep.mubr.f32.mxu0 0.0
  %1487 = vmatmul.mubr.f32.gmra.mrb[0].mxu0 %v1308
  %v1488 = vpop.f32.mrb[0].mxu0
  %v1489 = vadd.f32 0.0, %v1488
  %v1490 = vpop.f32.mrb[0].mxu0
  %1491 = vmatprep.mubr.f32.mxu0 0.0
  %1492 = vmatmul.mubr.f32.gmra.mrb[0].mxu0 %v1311
  %v1493 = vpop.f32.mrb[0].mxu0
  %v1494 = vadd.f32 0.0, %v1493
  %v1495 = vpop.f32.mrb[0].mxu0
  %1496 = vmatprep.mubr.f32.mxu0 0.0
  %1497 = vmatmul.mubr.f32.gmra.mrb[0].mxu0 %v1314
  %v1498 = vpop.f32.mrb[0].mxu0
  %v1499 = vadd.f32 0.0, %v1498
  %v1500 = vpop.f32.mrb[0].mxu0
  %1501 = vmatprep.mubr.f32.mxu0 0.0
  %1502 = vmatmul.mubr.f32.gmra.mrb[0].mxu0 %v1317
  %v1503 = vpop.f32.mrb[0].mxu0
  %v1504 = vadd.f32 0.0, %v1503
  %v1505 = vpop.f32.mrb[0].mxu0
  %1506 = vmatprep.mubr.f32.mxu0 0.0
  %1507 = vmatmul.mubr.f32.gmra.mrb[0].mxu0 %v1320
  %v1508 = vpop.f32.mrb[0].mxu0
  %v1509 = vadd.f32 0.0, %v1508
  %v1510 = vpop.f32.mrb[0].mxu0
  %1511 = vmatprep.mubr.f32.mxu0 0.0
  %1512 = vmatmul.mubr.f32.gmra.mrb[0].mxu0 %v1323
  %v1513 = vpop.f32.mrb[0].mxu0
  %v1514 = vadd.f32 0.0, %v1513
  %v1515 = vpop.f32.mrb[0].mxu0
  %1516 = vmatprep.mubr.f32.mxu0 0.0
  %1517 = vmatmul.mubr.f32.gmra.mrb[0].mxu0 %v1326
  %v1518 = vpop.f32.mrb[0].mxu0
  %v1519 = vadd.f32 0.0, %v1518
  %v1520 = vpop.f32.mrb[0].mxu0
  %1521 = vmatprep.mubr.f32.mxu0 0.0
  %1522 = vmatmul.mubr.f32.gmra.mrb[0].mxu0 %v1329
  %v1523 = vpop.f32.mrb[0].mxu0
  %v1524 = vadd.f32 0.0, %v1523
  %v1525 = vpop.f32.mrb[0].mxu0
  %1526 = vmatprep.mubr.f32.mxu0 0.0
  %1527 = vmatmul.mubr.f32.gmra.mrb[0].mxu0 %v1332
  %v1528 = vpop.f32.mrb[0].mxu0
  %v1529 = vadd.f32 0.0, %v1528
  %v1530 = vpop.f32.mrb[0].mxu0
  %1531 = vmatprep.mubr.f32.mxu0 0.0
  %1532 = vmatmul.mubr.f32.gmra.mrb[0].mxu0 %v1335
  %v1533 = vpop.f32.mrb[0].mxu0
  %v1534 = vadd.f32 0.0, %v1533
  %v1535 = vpop.f32.mrb[0].mxu0
  %1536 = vmatprep.mubr.f32.mxu0 0.0
  %1537 = vmatmul.mubr.f32.gmra.mrb[0].mxu0 %v1338
  %v1538 = vpop.f32.mrb[0].mxu0
  %v1539 = vadd.f32 0.0, %v1538
  %v1540 = vpop.f32.mrb[0].mxu0
  %1541 = vmatprep.mubr.f32.mxu0 0.0
  %1542 = vmatmul.mubr.f32.gmra.mrb[0].mxu0 %v1341
  %v1543 = vpop.f32.mrb[0].mxu0
  %v1544 = vadd.f32 0.0, %v1543
  %v1545 = vpop.f32.mrb[0].mxu0
  %1546 = vmatprep.mubr.f32.mxu0 0.0
  %1547 = vmatmul.mubr.f32.gmra.mrb[0].mxu0 %v1344
  %v1548 = vpop.f32.mrb[0].mxu0
  %v1549 = vadd.f32 0.0, %v1548
  %v1550 = vpop.f32.mrb[0].mxu0
  %1551 = vmatprep.mubr.f32.mxu0 0.0
  %1552 = vmatmul.mubr.f32.gmra.mrb[0].mxu0 %v1347
  %v1553 = vpop.f32.mrb[0].mxu0
  %v1554 = vadd.f32 0.0, %v1553
  %v1555 = vpop.f32.mrb[0].mxu0
  %1556 = vmatprep.mubr.f32.mxu0 0.0
  %1557 = vmatmul.mubr.f32.gmra.mrb[0].mxu0 %v1350
  %v1558 = vpop.f32.mrb[0].mxu0
  %v1559 = vadd.f32 0.0, %v1558
  %v1560 = vpop.f32.mrb[0].mxu0
  %1561 = vmatprep.mubr.f32.mxu0 0.0
  %1562 = vmatmul.mubr.f32.gmra.mrb[0].mxu0 %v1353
  %v1563 = vpop.f32.mrb[0].mxu0
  %v1564 = vadd.f32 0.0, %v1563
  %v1565 = vpop.f32.mrb[0].mxu0
  %1566 = vmatprep.mubr.f32.mxu0 0.0
  %1567 = vmatmul.mubr.f32.gmra.mrb[0].mxu0 %v1356
  %v1568 = vpop.f32.mrb[0].mxu0
  %v1569 = vadd.f32 0.0, %v1568
  %v1570 = vpop.f32.mrb[0].mxu0
  %1571 = vmatprep.mubr.f32.mxu0 0.0
  %1572 = vmatmul.mubr.f32.gmra.mrb[0].mxu0 %v1359
  %v1573 = vpop.f32.mrb[0].mxu0
  %v1574 = vadd.f32 0.0, %v1573
  %v1575 = vpop.f32.mrb[0].mxu0
  %1576 = vmatprep.mubr.f32.mxu0 0.0
  %1577 = vmatmul.mubr.f32.gmra.mrb[0].mxu0 %v1362
  %v1578 = vpop.f32.mrb[0].mxu0
  %v1579 = vadd.f32 0.0, %v1578
  %v1580 = vpop.f32.mrb[0].mxu0
  %1581 = vmatprep.mubr.f32.mxu0 0.0
  %1582 = vmatmul.mubr.f32.gmra.mrb[0].mxu0 %v1365
  %v1583 = vpop.f32.mrb[0].mxu0
  %v1584 = vadd.f32 0.0, %v1583
  %v1585 = vpop.f32.mrb[0].mxu0
  %1586 = vmatprep.mubr.f32.mxu0 0.0
  %1587 = vmatmul.mubr.f32.gmra.mrb[0].mxu0 %v1368
  %v1588 = vpop.f32.mrb[0].mxu0
  %v1589 = vadd.f32 0.0, %v1588
  %v1590 = vpop.f32.mrb[0].mxu0
  %1591 = vmatprep.mubr.f32.mxu0 0.0
  %1592 = vmatmul.mubr.f32.gmra.mrb[0].mxu0 %v1371
  %v1593 = vpop.f32.mrb[0].mxu0
  %v1594 = vadd.f32 0.0, %v1593
  %v1595 = vpop.f32.mrb[0].mxu0
  %1596 = vmatprep.mubr.f32.mxu0 0.0
  %1597 = vmatmul.mubr.f32.gmra.mrb[0].mxu0 %v1374
  %v1598 = vpop.f32.mrb[0].mxu0
  %v1599 = vadd.f32 0.0, %v1598
  %v1600 = vpop.f32.mrb[0].mxu0
  %1601 = vmatprep.mubr.f32.mxu0 0.0
  %1602 = vmatmul.mubr.f32.gmra.mrb[0].mxu0 %v1377
  %v1603 = vpop.f32.mrb[0].mxu0
  %v1604 = vadd.f32 0.0, %v1603
  %v1605 = vpop.f32.mrb[0].mxu0
  %1606 = vmatprep.mubr.f32.mxu0 0.0
  %1607 = vmatmul.mubr.f32.gmra.mrb[0].mxu0 %v1380
  %v1608 = vpop.f32.mrb[0].mxu0
  %v1609 = vadd.f32 0.0, %v1608
  %v1610 = vpop.f32.mrb[0].mxu0
  %1611 = vmatprep.mubr.f32.mxu0 0.0
  %1612 = vmatmul.mubr.f32.gmra.mrb[0].mxu0 %v1383
  %v1613 = vpop.f32.mrb[0].mxu0
  %v1614 = vadd.f32 0.0, %v1613
  %v1615 = vpop.f32.mrb[0].mxu0
  %1616 = vmatprep.mubr.f32.mxu0 0.0
  %1617 = vmatmul.mubr.f32.gmra.mrb[0].mxu0 %v1386
  %v1618 = vpop.f32.mrb[0].mxu0
  %v1619 = vadd.f32 0.0, %v1618
  %v1620 = vpop.f32.mrb[0].mxu0
  %1621 = vmatprep.mubr.f32.mxu0 0.0
  %1622 = vmatmul.mubr.f32.gmra.mrb[0].mxu0 %v1389
  %v1623 = vpop.f32.mrb[0].mxu0
  %v1624 = vadd.f32 0.0, %v1623
  %v1625 = vpop.f32.mrb[0].mxu0
  %1626 = vmatprep.mubr.f32.mxu0 0.0
  %1627 = vmatmul.mubr.f32.gmra.mrb[0].mxu0 %v1392
  %v1628 = vpop.f32.mrb[0].mxu0
  %v1629 = vadd.f32 0.0, %v1628
  %v1630 = vpop.f32.mrb[0].mxu0
  %1631 = vmatprep.mubr.f32.mxu0 0.0
  %1632 = vmatmul.mubr.f32.gmra.mrb[0].mxu0 %v1395
  %v1633 = vpop.f32.mrb[0].mxu0
  %v1634 = vadd.f32 0.0, %v1633
  %v1635 = vpop.f32.mrb[0].mxu0
  %1636 = vmatprep.mubr.f32.mxu0 0.0
  %1637 = vmatmul.mubr.f32.gmra.mrb[0].mxu0 %v1398
  %v1638 = vpop.f32.mrb[0].mxu0
  %v1639 = vadd.f32 0.0, %v1638
  %v1640 = vpop.f32.mrb[0].mxu0
  %1641 = vmatprep.mubr.f32.mxu0 0.0
  %1642 = vmatmul.mubr.f32.gmra.mrb[0].mxu0 %v1401
  %v1643 = vpop.f32.mrb[0].mxu0
  %v1644 = vadd.f32 0.0, %v1643
  %v1645 = vpop.f32.mrb[0].mxu0
  %1646 = vmatprep.mubr.f32.mxu0 0.0
  %1647 = vmatmul.mubr.f32.gmra.mrb[0].mxu0 %v1404
  %v1648 = vpop.f32.mrb[0].mxu0
  %v1649 = vadd.f32 0.0, %v1648
  %v1650 = vpop.f32.mrb[0].mxu0
  %1651 = vmatprep.mubr.f32.mxu0 0.0
  %1652 = vmatmul.mubr.f32.gmra.mrb[0].mxu0 %v1407
  %v1653 = vpop.f32.mrb[0].mxu0
  %v1654 = vadd.f32 0.0, %v1653
  %v1655 = vpop.f32.mrb[0].mxu0
  %1656 = vdwg.mxu0
  %v1657 = vadd.f32 %v1228, %v1479
  %v1658 = vadd.f32 %v1229, %v1484
  %v1659 = vadd.f32 %v1230, %v1489
  %v1660 = vadd.f32 %v1231, %v1494
  %v1661 = vadd.f32 %v1232, %v1499
  %v1662 = vadd.f32 %v1233, %v1504
  %v1663 = vadd.f32 %v1234, %v1509
  %v1664 = vadd.f32 %v1235, %v1514
  %v1665 = vadd.f32 %v1236, %v1519
  %v1666 = vadd.f32 %v1237, %v1524
  %v1667 = vadd.f32 %v1238, %v1529
  %v1668 = vadd.f32 %v1239, %v1534
  %v1669 = vadd.f32 %v1240, %v1539
  %v1670 = vadd.f32 %v1241, %v1544
  %v1671 = vadd.f32 %v1242, %v1549
  %v1672 = vadd.f32 %v1243, %v1554
  %v1673 = vadd.f32 %v1244, %v1559
  %v1674 = vadd.f32 %v1245, %v1564
  %v1675 = vadd.f32 %v1246, %v1569
  %v1676 = vadd.f32 %v1247, %v1574
  %v1677 = vadd.f32 %v1248, %v1579
  %v1678 = vadd.f32 %v1249, %v1584
  %v1679 = vadd.f32 %v1250, %v1589
  %v1680 = vadd.f32 %v1251, %v1594
  %v1681 = vadd.f32 %v1252, %v1599
  %v1682 = vadd.f32 %v1253, %v1604
  %v1683 = vadd.f32 %v1254, %v1609
  %v1684 = vadd.f32 %v1255, %v1614
  %v1685 = vadd.f32 %v1256, %v1619
  %v1686 = vadd.f32 %v1257, %v1624
  %v1687 = vadd.f32 %v1258, %v1629
  %v1688 = vadd.f32 %v1259, %v1634
  %v1689 = vadd.f32 %v1260, %v1639
  %v1690 = vadd.f32 %v1261, %v1644
  %v1691 = vadd.f32 %v1262, %v1649
  %v1692 = vadd.f32 %v1263, %v1654
  %v1693 = vld [vmem:[%s0 + $0x13] sm:$0xff]
  %v1694 = vld [vmem:[%s0 + $0x1b] sm:$0xff]
  %v1695 = vld [vmem:[%s0 + $0x23] sm:$0xff]
  %v1696 = vld [vmem:[%s0 + $0x2b] sm:$0xff]
  %v1697 = vld [vmem:[%s0 + $0x33] sm:$0xff]
  %v1698 = vld [vmem:[%s0 + $0x3b] sm:$0xff]
  %v1699 = vld [vmem:[%s0 + $0x43] sm:$0xff]
  %v1700 = vld [vmem:[%s0 + $0x4b] sm:$0xff]
  %v1701 = vld [vmem:[%s0 + $0x53] sm:$0xff]
  %v1702 = vld [vmem:[%s0 + $0x5b] sm:$0xff]
  %v1703 = vld [vmem:[%s0 + $0x63] sm:$0xff]
  %v1704 = vld [vmem:[%s0 + $0x6b] sm:$0xff]
  %v1705 = vld [vmem:[%s0 + $0x73] sm:$0xff]
  %v1706 = vld [vmem:[%s0 + $0x7b] sm:$0xff]
  %v1707 = vld [vmem:[%s0 + $0x83] sm:$0xff]
  %v1708 = vld [vmem:[%s0 + $0x8b] sm:$0xff]
  %v1709 = vld [vmem:[%s0 + $0x93] sm:$0xff]
  %v1710 = vld [vmem:[%s0 + $0x9b] sm:$0xff]
  %v1711 = vld [vmem:[%s0 + $0xa3] sm:$0xff]
  %v1712 = vld [vmem:[%s0 + $0xab] sm:$0xff]
  %v1713 = vld [vmem:[%s0 + $0xb3] sm:$0xff]
  %v1714 = vld [vmem:[%s0 + $0xbb] sm:$0xff]
  %v1715 = vld [vmem:[%s0 + $0xc3] sm:$0xff]
  %v1716 = vld [vmem:[%s0 + $0xcb] sm:$0xff]
  %v1717 = vld [vmem:[%s0 + $0xd3] sm:$0xff]
  %v1718 = vld [vmem:[%s0 + $0xdb] sm:$0xff]
  %v1719 = vld [vmem:[%s0 + $0xe3] sm:$0xff]
  %v1720 = vld [vmem:[%s0 + $0xeb] sm:$0xff]
  %v1721 = vld [vmem:[%s0 + $0xf3] sm:$0xff]
  %v1722 = vld [vmem:[%s0 + $0xfb] sm:$0xff]
  %v1723 = vld [vmem:[%s0 + $0x103] sm:$0xff]
  %v1724 = vld [vmem:[%s0 + $0x10b] sm:$0xff]
  %v1725 = vld [vmem:[%s0 + $0x113] sm:$0xff]
  %v1726 = vld [vmem:[%s0 + $0x11b] sm:$0xff]
  %v1727 = vld [vmem:[%s0 + $0x123] sm:$0xff]
  %v1728 = vld [vmem:[%s0 + $0x12b] sm:$0xff]
  %v1729 = vld [vmem:[%s1 + $0x10] sm:$0xf]
  %v1731 = vsel %vm121, %v1693, 0
  %v1734 = vsel %vm121, %v1694, 0
  %v1737 = vsel %vm121, %v1695, 0
  %v1740 = vsel %vm121, %v1696, 0
  %v1743 = vsel %vm121, %v1697, 0
  %v1746 = vsel %vm121, %v1698, 0
  %v1749 = vsel %vm121, %v1699, 0
  %v1752 = vsel %vm121, %v1700, 0
  %v1755 = vsel %vm121, %v1701, 0
  %v1758 = vsel %vm121, %v1702, 0
  %v1761 = vsel %vm121, %v1703, 0
  %v1764 = vsel %vm121, %v1704, 0
  %v1767 = vsel %vm121, %v1705, 0
  %v1770 = vsel %vm121, %v1706, 0
  %v1773 = vsel %vm121, %v1707, 0
  %v1776 = vsel %vm121, %v1708, 0
  %v1779 = vsel %vm121, %v1709, 0
  %v1782 = vsel %vm121, %v1710, 0
  %v1785 = vsel %vm121, %v1711, 0
  %v1788 = vsel %vm121, %v1712, 0
  %v1791 = vsel %vm121, %v1713, 0
  %v1794 = vsel %vm121, %v1714, 0
  %v1797 = vsel %vm121, %v1715, 0
  %v1800 = vsel %vm121, %v1716, 0
  %v1803 = vsel %vm121, %v1717, 0
  %v1806 = vsel %vm121, %v1718, 0
  %v1809 = vsel %vm121, %v1719, 0
  %v1812 = vsel %vm121, %v1720, 0
  %v1815 = vsel %vm121, %v1721, 0
  %v1818 = vsel %vm121, %v1722, 0
  %v1821 = vsel %vm121, %v1723, 0
  %v1824 = vsel %vm121, %v1724, 0
  %v1827 = vsel %vm121, %v1725, 0
  %v1830 = vsel %vm121, %v1726, 0
  %v1833 = vsel %vm121, %v1727, 0
  %v1836 = vsel %vm121, %v1728, 0
  %v1839 = vsel %vm230, %v1729, 0
  %1841 = vmatprep.subr.mxu0 0.0
  %1842 = vmatpush1.msra.mxu0 %v1839
  %1843 = vmatprep.subr.mxu0 0.0
  %1844 = vmatpush1.msra.mxu0 0.0
  %1845 = vmatprep.subr.mxu0 0.0
  %1846 = vmatpush1.msra.mxu0 0.0
  %1847 = vmatprep.subr.mxu0 0.0
  %1848 = vmatpush1.msra.mxu0 0.0
  %1849 = vmatprep.subr.mxu0 0.0
  %1850 = vmatpush1.msra.mxu0 0.0
  %1851 = vmatprep.subr.mxu0 0.0
  %1852 = vmatpush1.msra.mxu0 0.0
  %1853 = vmatprep.subr.mxu0 0.0
  %1854 = vmatpush1.msra.mxu0 0.0
  %1855 = vmatprep.subr.mxu0 0.0
  %1856 = vmatpush1.msra.mxu0 0.0
  %1857 = vmatprep.subr.mxu0 0.0
  %1858 = vmatpush1.msra.mxu0 0.0
  %1859 = vmatprep.subr.mxu0 0.0
  %1860 = vmatpush1.msra.mxu0 0.0
  %1861 = vmatprep.subr.mxu0 0.0
  %1862 = vmatpush1.msra.mxu0 0.0
  %1863 = vmatprep.subr.mxu0 0.0
  %1864 = vmatpush1.msra.mxu0 0.0
  %1865 = vmatprep.subr.mxu0 0.0
  %1866 = vmatpush1.msra.mxu0 0.0
  %1867 = vmatprep.subr.mxu0 0.0
  %1868 = vmatpush1.msra.mxu0 0.0
  %1869 = vmatprep.subr.mxu0 0.0
  %1870 = vmatpush1.msra.mxu0 0.0
  %1871 = vmatprep.subr.mxu0 0.0
  %1872 = vmatpush1.msra.mxu0 0.0
  %1873 = vmatprep.subr.mxu0 0.0
  %1874 = vmatpush1.msra.mxu0 0.0
  %1875 = vmatprep.subr.mxu0 0.0
  %1876 = vmatpush1.msra.mxu0 0.0
  %1877 = vmatprep.subr.mxu0 0.0
  %1878 = vmatpush1.msra.mxu0 0.0
  %1879 = vmatprep.subr.mxu0 0.0
  %1880 = vmatpush1.msra.mxu0 0.0
  %1881 = vmatprep.subr.mxu0 0.0
  %1882 = vmatpush1.msra.mxu0 0.0
  %1883 = vmatprep.subr.mxu0 0.0
  %1884 = vmatpush1.msra.mxu0 0.0
  %1885 = vmatprep.subr.mxu0 0.0
  %1886 = vmatpush1.msra.mxu0 0.0
  %1887 = vmatprep.subr.mxu0 0.0
  %1888 = vmatpush1.msra.mxu0 0.0
  %1889 = vmatprep.subr.mxu0 0.0
  %1890 = vmatpush1.msra.mxu0 0.0
  %1891 = vmatprep.subr.mxu0 0.0
  %1892 = vmatpush1.msra.mxu0 0.0
  %1893 = vmatprep.subr.mxu0 0.0
  %1894 = vmatpush1.msra.mxu0 0.0
  %1895 = vmatprep.subr.mxu0 0.0
  %1896 = vmatpush1.msra.mxu0 0.0
  %1897 = vmatprep.subr.mxu0 0.0
  %1898 = vmatpush1.msra.mxu0 0.0
  %1899 = vmatprep.subr.mxu0 0.0
  %1900 = vmatpush1.msra.mxu0 0.0
  %1901 = vmatprep.subr.mxu0 0.0
  %1902 = vmatpush1.msra.mxu0 0.0
  %1903 = vmatprep.subr.mxu0 0.0
  %1904 = vmatpush1.msra.mxu0 0.0
  %1905 = vmatprep.mubr.f32.mxu0 0.0
  %1906 = vmatmul.mubr.f32.gmra.mrb[0].mxu0 %v1731
  %v1907 = vpop.f32.mrb[0].mxu0
  %v1908 = vadd.f32 0.0, %v1907
  %v1909 = vpop.f32.mrb[0].mxu0
  %1910 = vmatprep.mubr.f32.mxu0 0.0
  %1911 = vmatmul.mubr.f32.gmra.mrb[0].mxu0 %v1734
  %v1912 = vpop.f32.mrb[0].mxu0
  %v1913 = vadd.f32 0.0, %v1912
  %v1914 = vpop.f32.mrb[0].mxu0
  %1915 = vmatprep.mubr.f32.mxu0 0.0
  %1916 = vmatmul.mubr.f32.gmra.mrb[0].mxu0 %v1737
  %v1917 = vpop.f32.mrb[0].mxu0
  %v1918 = vadd.f32 0.0, %v1917
  %v1919 = vpop.f32.mrb[0].mxu0
  %1920 = vmatprep.mubr.f32.mxu0 0.0
  %1921 = vmatmul.mubr.f32.gmra.mrb[0].mxu0 %v1740
  %v1922 = vpop.f32.mrb[0].mxu0
  %v1923 = vadd.f32 0.0, %v1922
  %v1924 = vpop.f32.mrb[0].mxu0
  %1925 = vmatprep.mubr.f32.mxu0 0.0
  %1926 = vmatmul.mubr.f32.gmra.mrb[0].mxu0 %v1743
  %v1927 = vpop.f32.mrb[0].mxu0
  %v1928 = vadd.f32 0.0, %v1927
  %v1929 = vpop.f32.mrb[0].mxu0
  %1930 = vmatprep.mubr.f32.mxu0 0.0
  %1931 = vmatmul.mubr.f32.gmra.mrb[0].mxu0 %v1746
  %v1932 = vpop.f32.mrb[0].mxu0
  %v1933 = vadd.f32 0.0, %v1932
  %v1934 = vpop.f32.mrb[0].mxu0
  %1935 = vmatprep.mubr.f32.mxu0 0.0
  %1936 = vmatmul.mubr.f32.gmra.mrb[0].mxu0 %v1749
  %v1937 = vpop.f32.mrb[0].mxu0
  %v1938 = vadd.f32 0.0, %v1937
  %v1939 = vpop.f32.mrb[0].mxu0
  %1940 = vmatprep.mubr.f32.mxu0 0.0
  %1941 = vmatmul.mubr.f32.gmra.mrb[0].mxu0 %v1752
  %v1942 = vpop.f32.mrb[0].mxu0
  %v1943 = vadd.f32 0.0, %v1942
  %v1944 = vpop.f32.mrb[0].mxu0
  %1945 = vmatprep.mubr.f32.mxu0 0.0
  %1946 = vmatmul.mubr.f32.gmra.mrb[0].mxu0 %v1755
  %v1947 = vpop.f32.mrb[0].mxu0
  %v1948 = vadd.f32 0.0, %v1947
  %v1949 = vpop.f32.mrb[0].mxu0
  %1950 = vmatprep.mubr.f32.mxu0 0.0
  %1951 = vmatmul.mubr.f32.gmra.mrb[0].mxu0 %v1758
  %v1952 = vpop.f32.mrb[0].mxu0
  %v1953 = vadd.f32 0.0, %v1952
  %v1954 = vpop.f32.mrb[0].mxu0
  %1955 = vmatprep.mubr.f32.mxu0 0.0
  %1956 = vmatmul.mubr.f32.gmra.mrb[0].mxu0 %v1761
  %v1957 = vpop.f32.mrb[0].mxu0
  %v1958 = vadd.f32 0.0, %v1957
  %v1959 = vpop.f32.mrb[0].mxu0
  %1960 = vmatprep.mubr.f32.mxu0 0.0
  %1961 = vmatmul.mubr.f32.gmra.mrb[0].mxu0 %v1764
  %v1962 = vpop.f32.mrb[0].mxu0
  %v1963 = vadd.f32 0.0, %v1962
  %v1964 = vpop.f32.mrb[0].mxu0
  %1965 = vmatprep.mubr.f32.mxu0 0.0
  %1966 = vmatmul.mubr.f32.gmra.mrb[0].mxu0 %v1767
  %v1967 = vpop.f32.mrb[0].mxu0
  %v1968 = vadd.f32 0.0, %v1967
  %v1969 = vpop.f32.mrb[0].mxu0
  %1970 = vmatprep.mubr.f32.mxu0 0.0
  %1971 = vmatmul.mubr.f32.gmra.mrb[0].mxu0 %v1770
  %v1972 = vpop.f32.mrb[0].mxu0
  %v1973 = vadd.f32 0.0, %v1972
  %v1974 = vpop.f32.mrb[0].mxu0
  %1975 = vmatprep.mubr.f32.mxu0 0.0
  %1976 = vmatmul.mubr.f32.gmra.mrb[0].mxu0 %v1773
  %v1977 = vpop.f32.mrb[0].mxu0
  %v1978 = vadd.f32 0.0, %v1977
  %v1979 = vpop.f32.mrb[0].mxu0
  %1980 = vmatprep.mubr.f32.mxu0 0.0
  %1981 = vmatmul.mubr.f32.gmra.mrb[0].mxu0 %v1776
  %v1982 = vpop.f32.mrb[0].mxu0
  %v1983 = vadd.f32 0.0, %v1982
  %v1984 = vpop.f32.mrb[0].mxu0
  %1985 = vmatprep.mubr.f32.mxu0 0.0
  %1986 = vmatmul.mubr.f32.gmra.mrb[0].mxu0 %v1779
  %v1987 = vpop.f32.mrb[0].mxu0
  %v1988 = vadd.f32 0.0, %v1987
  %v1989 = vpop.f32.mrb[0].mxu0
  %1990 = vmatprep.mubr.f32.mxu0 0.0
  %1991 = vmatmul.mubr.f32.gmra.mrb[0].mxu0 %v1782
  %v1992 = vpop.f32.mrb[0].mxu0
  %v1993 = vadd.f32 0.0, %v1992
  %v1994 = vpop.f32.mrb[0].mxu0
  %1995 = vmatprep.mubr.f32.mxu0 0.0
  %1996 = vmatmul.mubr.f32.gmra.mrb[0].mxu0 %v1785
  %v1997 = vpop.f32.mrb[0].mxu0
  %v1998 = vadd.f32 0.0, %v1997
  %v1999 = vpop.f32.mrb[0].mxu0
  %2000 = vmatprep.mubr.f32.mxu0 0.0
  %2001 = vmatmul.mubr.f32.gmra.mrb[0].mxu0 %v1788
  %v2002 = vpop.f32.mrb[0].mxu0
  %v2003 = vadd.f32 0.0, %v2002
  %v2004 = vpop.f32.mrb[0].mxu0
  %2005 = vmatprep.mubr.f32.mxu0 0.0
  %2006 = vmatmul.mubr.f32.gmra.mrb[0].mxu0 %v1791
  %v2007 = vpop.f32.mrb[0].mxu0
  %v2008 = vadd.f32 0.0, %v2007
  %v2009 = vpop.f32.mrb[0].mxu0
  %2010 = vmatprep.mubr.f32.mxu0 0.0
  %2011 = vmatmul.mubr.f32.gmra.mrb[0].mxu0 %v1794
  %v2012 = vpop.f32.mrb[0].mxu0
  %v2013 = vadd.f32 0.0, %v2012
  %v2014 = vpop.f32.mrb[0].mxu0
  %2015 = vmatprep.mubr.f32.mxu0 0.0
  %2016 = vmatmul.mubr.f32.gmra.mrb[0].mxu0 %v1797
  %v2017 = vpop.f32.mrb[0].mxu0
  %v2018 = vadd.f32 0.0, %v2017
  %v2019 = vpop.f32.mrb[0].mxu0
  %2020 = vmatprep.mubr.f32.mxu0 0.0
  %2021 = vmatmul.mubr.f32.gmra.mrb[0].mxu0 %v1800
  %v2022 = vpop.f32.mrb[0].mxu0
  %v2023 = vadd.f32 0.0, %v2022
  %v2024 = vpop.f32.mrb[0].mxu0
  %2025 = vmatprep.mubr.f32.mxu0 0.0
  %2026 = vmatmul.mubr.f32.gmra.mrb[0].mxu0 %v1803
  %v2027 = vpop.f32.mrb[0].mxu0
  %v2028 = vadd.f32 0.0, %v2027
  %v2029 = vpop.f32.mrb[0].mxu0
  %2030 = vmatprep.mubr.f32.mxu0 0.0
  %2031 = vmatmul.mubr.f32.gmra.mrb[0].mxu0 %v1806
  %v2032 = vpop.f32.mrb[0].mxu0
  %v2033 = vadd.f32 0.0, %v2032
  %v2034 = vpop.f32.mrb[0].mxu0
  %2035 = vmatprep.mubr.f32.mxu0 0.0
  %2036 = vmatmul.mubr.f32.gmra.mrb[0].mxu0 %v1809
  %v2037 = vpop.f32.mrb[0].mxu0
  %v2038 = vadd.f32 0.0, %v2037
  %v2039 = vpop.f32.mrb[0].mxu0
  %2040 = vmatprep.mubr.f32.mxu0 0.0
  %2041 = vmatmul.mubr.f32.gmra.mrb[0].mxu0 %v1812
  %v2042 = vpop.f32.mrb[0].mxu0
  %v2043 = vadd.f32 0.0, %v2042
  %v2044 = vpop.f32.mrb[0].mxu0
  %2045 = vmatprep.mubr.f32.mxu0 0.0
  %2046 = vmatmul.mubr.f32.gmra.mrb[0].mxu0 %v1815
  %v2047 = vpop.f32.mrb[0].mxu0
  %v2048 = vadd.f32 0.0, %v2047
  %v2049 = vpop.f32.mrb[0].mxu0
  %2050 = vmatprep.mubr.f32.mxu0 0.0
  %2051 = vmatmul.mubr.f32.gmra.mrb[0].mxu0 %v1818
  %v2052 = vpop.f32.mrb[0].mxu0
  %v2053 = vadd.f32 0.0, %v2052
  %v2054 = vpop.f32.mrb[0].mxu0
  %2055 = vmatprep.mubr.f32.mxu0 0.0
  %2056 = vmatmul.mubr.f32.gmra.mrb[0].mxu0 %v1821
  %v2057 = vpop.f32.mrb[0].mxu0
  %v2058 = vadd.f32 0.0, %v2057
  %v2059 = vpop.f32.mrb[0].mxu0
  %2060 = vmatprep.mubr.f32.mxu0 0.0
  %2061 = vmatmul.mubr.f32.gmra.mrb[0].mxu0 %v1824
  %v2062 = vpop.f32.mrb[0].mxu0
  %v2063 = vadd.f32 0.0, %v2062
  %v2064 = vpop.f32.mrb[0].mxu0
  %2065 = vmatprep.mubr.f32.mxu0 0.0
  %2066 = vmatmul.mubr.f32.gmra.mrb[0].mxu0 %v1827
  %v2067 = vpop.f32.mrb[0].mxu0
  %v2068 = vadd.f32 0.0, %v2067
  %v2069 = vpop.f32.mrb[0].mxu0
  %2070 = vmatprep.mubr.f32.mxu0 0.0
  %2071 = vmatmul.mubr.f32.gmra.mrb[0].mxu0 %v1830
  %v2072 = vpop.f32.mrb[0].mxu0
  %v2073 = vadd.f32 0.0, %v2072
  %v2074 = vpop.f32.mrb[0].mxu0
  %2075 = vmatprep.mubr.f32.mxu0 0.0
  %2076 = vmatmul.mubr.f32.gmra.mrb[0].mxu0 %v1833
  %v2077 = vpop.f32.mrb[0].mxu0
  %v2078 = vadd.f32 0.0, %v2077
  %v2079 = vpop.f32.mrb[0].mxu0
  %2080 = vmatprep.mubr.f32.mxu0 0.0
  %2081 = vmatmul.mubr.f32.gmra.mrb[0].mxu0 %v1836
  %v2082 = vpop.f32.mrb[0].mxu0
  %v2083 = vadd.f32 0.0, %v2082
  %v2084 = vpop.f32.mrb[0].mxu0
  %2085 = vdwg.mxu0
  %v2086 = vadd.f32 %v1657, %v1908
  %v2087 = vadd.f32 %v1658, %v1913
  %v2088 = vadd.f32 %v1659, %v1918
  %v2089 = vadd.f32 %v1660, %v1923
  %v2090 = vadd.f32 %v1661, %v1928
  %v2091 = vadd.f32 %v1662, %v1933
  %v2092 = vadd.f32 %v1663, %v1938
  %v2093 = vadd.f32 %v1664, %v1943
  %v2094 = vadd.f32 %v1665, %v1948
  %v2095 = vadd.f32 %v1666, %v1953
  %v2096 = vadd.f32 %v1667, %v1958
  %v2097 = vadd.f32 %v1668, %v1963
  %v2098 = vadd.f32 %v1669, %v1968
  %v2099 = vadd.f32 %v1670, %v1973
  %v2100 = vadd.f32 %v1671, %v1978
  %v2101 = vadd.f32 %v1672, %v1983
  %v2102 = vadd.f32 %v1673, %v1988
  %v2103 = vadd.f32 %v1674, %v1993
  %v2104 = vadd.f32 %v1675, %v1998
  %v2105 = vadd.f32 %v1676, %v2003
  %v2106 = vadd.f32 %v1677, %v2008
  %v2107 = vadd.f32 %v1678, %v2013
  %v2108 = vadd.f32 %v1679, %v2018
  %v2109 = vadd.f32 %v1680, %v2023
  %v2110 = vadd.f32 %v1681, %v2028
  %v2111 = vadd.f32 %v1682, %v2033
  %v2112 = vadd.f32 %v1683, %v2038
  %v2113 = vadd.f32 %v1684, %v2043
  %v2114 = vadd.f32 %v1685, %v2048
  %v2115 = vadd.f32 %v1686, %v2053
  %v2116 = vadd.f32 %v1687, %v2058
  %v2117 = vadd.f32 %v1688, %v2063
  %v2118 = vadd.f32 %v1689, %v2068
  %v2119 = vadd.f32 %v1690, %v2073
  %v2120 = vadd.f32 %v1691, %v2078
  %v2121 = vadd.f32 %v1692, %v2083
  %v2122 = vld [vmem:[%s0 + $0x14] sm:$0xff]
  %v2123 = vld [vmem:[%s0 + $0x1c] sm:$0xff]
  %v2124 = vld [vmem:[%s0 + $0x24] sm:$0xff]
  %v2125 = vld [vmem:[%s0 + $0x2c] sm:$0xff]
  %v2126 = vld [vmem:[%s0 + $0x34] sm:$0xff]
  %v2127 = vld [vmem:[%s0 + $0x3c] sm:$0xff]
  %v2128 = vld [vmem:[%s0 + $0x44] sm:$0xff]
  %v2129 = vld [vmem:[%s0 + $0x4c] sm:$0xff]
  %v2130 = vld [vmem:[%s0 + $0x54] sm:$0xff]
  %v2131 = vld [vmem:[%s0 + $0x5c] sm:$0xff]
  %v2132 = vld [vmem:[%s0 + $0x64] sm:$0xff]
  %v2133 = vld [vmem:[%s0 + $0x6c] sm:$0xff]
  %v2134 = vld [vmem:[%s0 + $0x74] sm:$0xff]
  %v2135 = vld [vmem:[%s0 + $0x7c] sm:$0xff]
  %v2136 = vld [vmem:[%s0 + $0x84] sm:$0xff]
  %v2137 = vld [vmem:[%s0 + $0x8c] sm:$0xff]
  %v2138 = vld [vmem:[%s0 + $0x94] sm:$0xff]
  %v2139 = vld [vmem:[%s0 + $0x9c] sm:$0xff]
  %v2140 = vld [vmem:[%s0 + $0xa4] sm:$0xff]
  %v2141 = vld [vmem:[%s0 + $0xac] sm:$0xff]
  %v2142 = vld [vmem:[%s0 + $0xb4] sm:$0xff]
  %v2143 = vld [vmem:[%s0 + $0xbc] sm:$0xff]
  %v2144 = vld [vmem:[%s0 + $0xc4] sm:$0xff]
  %v2145 = vld [vmem:[%s0 + $0xcc] sm:$0xff]
  %v2146 = vld [vmem:[%s0 + $0xd4] sm:$0xff]
  %v2147 = vld [vmem:[%s0 + $0xdc] sm:$0xff]
  %v2148 = vld [vmem:[%s0 + $0xe4] sm:$0xff]
  %v2149 = vld [vmem:[%s0 + $0xec] sm:$0xff]
  %v2150 = vld [vmem:[%s0 + $0xf4] sm:$0xff]
  %v2151 = vld [vmem:[%s0 + $0xfc] sm:$0xff]
  %v2152 = vld [vmem:[%s0 + $0x104] sm:$0xff]
  %v2153 = vld [vmem:[%s0 + $0x10c] sm:$0xff]
  %v2154 = vld [vmem:[%s0 + $0x114] sm:$0xff]
  %v2155 = vld [vmem:[%s0 + $0x11c] sm:$0xff]
  %v2156 = vld [vmem:[%s0 + $0x124] sm:$0xff]
  %v2157 = vld [vmem:[%s0 + $0x12c] sm:$0xff]
  %v2158 = vld [vmem:[%s1 + $0x14] sm:$0xf]
  %v2160 = vsel %vm121, %v2122, 0
  %v2163 = vsel %vm121, %v2123, 0
  %v2166 = vsel %vm121, %v2124, 0
  %v2169 = vsel %vm121, %v2125, 0
  %v2172 = vsel %vm121, %v2126, 0
  %v2175 = vsel %vm121, %v2127, 0
  %v2178 = vsel %vm121, %v2128, 0
  %v2181 = vsel %vm121, %v2129, 0
  %v2184 = vsel %vm121, %v2130, 0
  %v2187 = vsel %vm121, %v2131, 0
  %v2190 = vsel %vm121, %v2132, 0
  %v2193 = vsel %vm121, %v2133, 0
  %v2196 = vsel %vm121, %v2134, 0
  %v2199 = vsel %vm121, %v2135, 0
  %v2202 = vsel %vm121, %v2136, 0
  %v2205 = vsel %vm121, %v2137, 0
  %v2208 = vsel %vm121, %v2138, 0
  %v2211 = vsel %vm121, %v2139, 0
  %v2214 = vsel %vm121, %v2140, 0
  %v2217 = vsel %vm121, %v2141, 0
  %v2220 = vsel %vm121, %v2142, 0
  %v2223 = vsel %vm121, %v2143, 0
  %v2226 = vsel %vm121, %v2144, 0
  %v2229 = vsel %vm121, %v2145, 0
  %v2232 = vsel %vm121, %v2146, 0
  %v2235 = vsel %vm121, %v2147, 0
  %v2238 = vsel %vm121, %v2148, 0
  %v2241 = vsel %vm121, %v2149, 0
  %v2244 = vsel %vm121, %v2150, 0
  %v2247 = vsel %vm121, %v2151, 0
  %v2250 = vsel %vm121, %v2152, 0
  %v2253 = vsel %vm121, %v2153, 0
  %v2256 = vsel %vm121, %v2154, 0
  %v2259 = vsel %vm121, %v2155, 0
  %v2262 = vsel %vm121, %v2156, 0
  %v2265 = vsel %vm121, %v2157, 0
  %v2268 = vsel %vm230, %v2158, 0
  %2270 = vmatprep.subr.mxu0 0.0
  %2271 = vmatpush1.msra.mxu0 %v2268
  %2272 = vmatprep.subr.mxu0 0.0
  %2273 = vmatpush1.msra.mxu0 0.0
  %2274 = vmatprep.subr.mxu0 0.0
  %2275 = vmatpush1.msra.mxu0 0.0
  %2276 = vmatprep.subr.mxu0 0.0
  %2277 = vmatpush1.msra.mxu0 0.0
  %2278 = vmatprep.subr.mxu0 0.0
  %2279 = vmatpush1.msra.mxu0 0.0
  %2280 = vmatprep.subr.mxu0 0.0
  %2281 = vmatpush1.msra.mxu0 0.0
  %2282 = vmatprep.subr.mxu0 0.0
  %2283 = vmatpush1.msra.mxu0 0.0
  %2284 = vmatprep.subr.mxu0 0.0
  %2285 = vmatpush1.msra.mxu0 0.0
  %2286 = vmatprep.subr.mxu0 0.0
  %2287 = vmatpush1.msra.mxu0 0.0
  %2288 = vmatprep.subr.mxu0 0.0
  %2289 = vmatpush1.msra.mxu0 0.0
  %2290 = vmatprep.subr.mxu0 0.0
  %2291 = vmatpush1.msra.mxu0 0.0
  %2292 = vmatprep.subr.mxu0 0.0
  %2293 = vmatpush1.msra.mxu0 0.0
  %2294 = vmatprep.subr.mxu0 0.0
  %2295 = vmatpush1.msra.mxu0 0.0
  %2296 = vmatprep.subr.mxu0 0.0
  %2297 = vmatpush1.msra.mxu0 0.0
  %2298 = vmatprep.subr.mxu0 0.0
  %2299 = vmatpush1.msra.mxu0 0.0
  %2300 = vmatprep.subr.mxu0 0.0
  %2301 = vmatpush1.msra.mxu0 0.0
  %2302 = vmatprep.subr.mxu0 0.0
  %2303 = vmatpush1.msra.mxu0 0.0
  %2304 = vmatprep.subr.mxu0 0.0
  %2305 = vmatpush1.msra.mxu0 0.0
  %2306 = vmatprep.subr.mxu0 0.0
  %2307 = vmatpush1.msra.mxu0 0.0
  %2308 = vmatprep.subr.mxu0 0.0
  %2309 = vmatpush1.msra.mxu0 0.0
  %2310 = vmatprep.subr.mxu0 0.0
  %2311 = vmatpush1.msra.mxu0 0.0
  %2312 = vmatprep.subr.mxu0 0.0
  %2313 = vmatpush1.msra.mxu0 0.0
  %2314 = vmatprep.subr.mxu0 0.0
  %2315 = vmatpush1.msra.mxu0 0.0
  %2316 = vmatprep.subr.mxu0 0.0
  %2317 = vmatpush1.msra.mxu0 0.0
  %2318 = vmatprep.subr.mxu0 0.0
  %2319 = vmatpush1.msra.mxu0 0.0
  %2320 = vmatprep.subr.mxu0 0.0
  %2321 = vmatpush1.msra.mxu0 0.0
  %2322 = vmatprep.subr.mxu0 0.0
  %2323 = vmatpush1.msra.mxu0 0.0
  %2324 = vmatprep.subr.mxu0 0.0
  %2325 = vmatpush1.msra.mxu0 0.0
  %2326 = vmatprep.subr.mxu0 0.0
  %2327 = vmatpush1.msra.mxu0 0.0
  %2328 = vmatprep.subr.mxu0 0.0
  %2329 = vmatpush1.msra.mxu0 0.0
  %2330 = vmatprep.subr.mxu0 0.0
  %2331 = vmatpush1.msra.mxu0 0.0
  %2332 = vmatprep.subr.mxu0 0.0
  %2333 = vmatpush1.msra.mxu0 0.0
  %2334 = vmatprep.mubr.f32.mxu0 0.0
  %2335 = vmatmul.mubr.f32.gmra.mrb[0].mxu0 %v2160
  %v2336 = vpop.f32.mrb[0].mxu0
  %v2337 = vadd.f32 0.0, %v2336
  %v2338 = vpop.f32.mrb[0].mxu0
  %2339 = vmatprep.mubr.f32.mxu0 0.0
  %2340 = vmatmul.mubr.f32.gmra.mrb[0].mxu0 %v2163
  %v2341 = vpop.f32.mrb[0].mxu0
  %v2342 = vadd.f32 0.0, %v2341
  %v2343 = vpop.f32.mrb[0].mxu0
  %2344 = vmatprep.mubr.f32.mxu0 0.0
  %2345 = vmatmul.mubr.f32.gmra.mrb[0].mxu0 %v2166
  %v2346 = vpop.f32.mrb[0].mxu0
  %v2347 = vadd.f32 0.0, %v2346
  %v2348 = vpop.f32.mrb[0].mxu0
  %2349 = vmatprep.mubr.f32.mxu0 0.0
  %2350 = vmatmul.mubr.f32.gmra.mrb[0].mxu0 %v2169
  %v2351 = vpop.f32.mrb[0].mxu0
  %v2352 = vadd.f32 0.0, %v2351
  %v2353 = vpop.f32.mrb[0].mxu0
  %2354 = vmatprep.mubr.f32.mxu0 0.0
  %2355 = vmatmul.mubr.f32.gmra.mrb[0].mxu0 %v2172
  %v2356 = vpop.f32.mrb[0].mxu0
  %v2357 = vadd.f32 0.0, %v2356
  %v2358 = vpop.f32.mrb[0].mxu0
  %2359 = vmatprep.mubr.f32.mxu0 0.0
  %2360 = vmatmul.mubr.f32.gmra.mrb[0].mxu0 %v2175
  %v2361 = vpop.f32.mrb[0].mxu0
  %v2362 = vadd.f32 0.0, %v2361
  %v2363 = vpop.f32.mrb[0].mxu0
  %2364 = vmatprep.mubr.f32.mxu0 0.0
  %2365 = vmatmul.mubr.f32.gmra.mrb[0].mxu0 %v2178
  %v2366 = vpop.f32.mrb[0].mxu0
  %v2367 = vadd.f32 0.0, %v2366
  %v2368 = vpop.f32.mrb[0].mxu0
  %2369 = vmatprep.mubr.f32.mxu0 0.0
  %2370 = vmatmul.mubr.f32.gmra.mrb[0].mxu0 %v2181
  %v2371 = vpop.f32.mrb[0].mxu0
  %v2372 = vadd.f32 0.0, %v2371
  %v2373 = vpop.f32.mrb[0].mxu0
  %2374 = vmatprep.mubr.f32.mxu0 0.0
  %2375 = vmatmul.mubr.f32.gmra.mrb[0].mxu0 %v2184
  %v2376 = vpop.f32.mrb[0].mxu0
  %v2377 = vadd.f32 0.0, %v2376
  %v2378 = vpop.f32.mrb[0].mxu0
  %2379 = vmatprep.mubr.f32.mxu0 0.0
  %2380 = vmatmul.mubr.f32.gmra.mrb[0].mxu0 %v2187
  %v2381 = vpop.f32.mrb[0].mxu0
  %v2382 = vadd.f32 0.0, %v2381
  %v2383 = vpop.f32.mrb[0].mxu0
  %2384 = vmatprep.mubr.f32.mxu0 0.0
  %2385 = vmatmul.mubr.f32.gmra.mrb[0].mxu0 %v2190
  %v2386 = vpop.f32.mrb[0].mxu0
  %v2387 = vadd.f32 0.0, %v2386
  %v2388 = vpop.f32.mrb[0].mxu0
  %2389 = vmatprep.mubr.f32.mxu0 0.0
  %2390 = vmatmul.mubr.f32.gmra.mrb[0].mxu0 %v2193
  %v2391 = vpop.f32.mrb[0].mxu0
  %v2392 = vadd.f32 0.0, %v2391
  %v2393 = vpop.f32.mrb[0].mxu0
  %2394 = vmatprep.mubr.f32.mxu0 0.0
  %2395 = vmatmul.mubr.f32.gmra.mrb[0].mxu0 %v2196
  %v2396 = vpop.f32.mrb[0].mxu0
  %v2397 = vadd.f32 0.0, %v2396
  %v2398 = vpop.f32.mrb[0].mxu0
  %2399 = vmatprep.mubr.f32.mxu0 0.0
  %2400 = vmatmul.mubr.f32.gmra.mrb[0].mxu0 %v2199
  %v2401 = vpop.f32.mrb[0].mxu0
  %v2402 = vadd.f32 0.0, %v2401
  %v2403 = vpop.f32.mrb[0].mxu0
  %2404 = vmatprep.mubr.f32.mxu0 0.0
  %2405 = vmatmul.mubr.f32.gmra.mrb[0].mxu0 %v2202
  %v2406 = vpop.f32.mrb[0].mxu0
  %v2407 = vadd.f32 0.0, %v2406
  %v2408 = vpop.f32.mrb[0].mxu0
  %2409 = vmatprep.mubr.f32.mxu0 0.0
  %2410 = vmatmul.mubr.f32.gmra.mrb[0].mxu0 %v2205
  %v2411 = vpop.f32.mrb[0].mxu0
  %v2412 = vadd.f32 0.0, %v2411
  %v2413 = vpop.f32.mrb[0].mxu0
  %2414 = vmatprep.mubr.f32.mxu0 0.0
  %2415 = vmatmul.mubr.f32.gmra.mrb[0].mxu0 %v2208
  %v2416 = vpop.f32.mrb[0].mxu0
  %v2417 = vadd.f32 0.0, %v2416
  %v2418 = vpop.f32.mrb[0].mxu0
  %2419 = vmatprep.mubr.f32.mxu0 0.0
  %2420 = vmatmul.mubr.f32.gmra.mrb[0].mxu0 %v2211
  %v2421 = vpop.f32.mrb[0].mxu0
  %v2422 = vadd.f32 0.0, %v2421
  %v2423 = vpop.f32.mrb[0].mxu0
  %2424 = vmatprep.mubr.f32.mxu0 0.0
  %2425 = vmatmul.mubr.f32.gmra.mrb[0].mxu0 %v2214
  %v2426 = vpop.f32.mrb[0].mxu0
  %v2427 = vadd.f32 0.0, %v2426
  %v2428 = vpop.f32.mrb[0].mxu0
  %2429 = vmatprep.mubr.f32.mxu0 0.0
  %2430 = vmatmul.mubr.f32.gmra.mrb[0].mxu0 %v2217
  %v2431 = vpop.f32.mrb[0].mxu0
  %v2432 = vadd.f32 0.0, %v2431
  %v2433 = vpop.f32.mrb[0].mxu0
  %2434 = vmatprep.mubr.f32.mxu0 0.0
  %2435 = vmatmul.mubr.f32.gmra.mrb[0].mxu0 %v2220
  %v2436 = vpop.f32.mrb[0].mxu0
  %v2437 = vadd.f32 0.0, %v2436
  %v2438 = vpop.f32.mrb[0].mxu0
  %2439 = vmatprep.mubr.f32.mxu0 0.0
  %2440 = vmatmul.mubr.f32.gmra.mrb[0].mxu0 %v2223
  %v2441 = vpop.f32.mrb[0].mxu0
  %v2442 = vadd.f32 0.0, %v2441
  %v2443 = vpop.f32.mrb[0].mxu0
  %2444 = vmatprep.mubr.f32.mxu0 0.0
  %2445 = vmatmul.mubr.f32.gmra.mrb[0].mxu0 %v2226
  %v2446 = vpop.f32.mrb[0].mxu0
  %v2447 = vadd.f32 0.0, %v2446
  %v2448 = vpop.f32.mrb[0].mxu0
  %2449 = vmatprep.mubr.f32.mxu0 0.0
  %2450 = vmatmul.mubr.f32.gmra.mrb[0].mxu0 %v2229
  %v2451 = vpop.f32.mrb[0].mxu0
  %v2452 = vadd.f32 0.0, %v2451
  %v2453 = vpop.f32.mrb[0].mxu0
  %2454 = vmatprep.mubr.f32.mxu0 0.0
  %2455 = vmatmul.mubr.f32.gmra.mrb[0].mxu0 %v2232
  %v2456 = vpop.f32.mrb[0].mxu0
  %v2457 = vadd.f32 0.0, %v2456
  %v2458 = vpop.f32.mrb[0].mxu0
  %2459 = vmatprep.mubr.f32.mxu0 0.0
  %2460 = vmatmul.mubr.f32.gmra.mrb[0].mxu0 %v2235
  %v2461 = vpop.f32.mrb[0].mxu0
  %v2462 = vadd.f32 0.0, %v2461
  %v2463 = vpop.f32.mrb[0].mxu0
  %2464 = vmatprep.mubr.f32.mxu0 0.0
  %2465 = vmatmul.mubr.f32.gmra.mrb[0].mxu0 %v2238
  %v2466 = vpop.f32.mrb[0].mxu0
  %v2467 = vadd.f32 0.0, %v2466
  %v2468 = vpop.f32.mrb[0].mxu0
  %2469 = vmatprep.mubr.f32.mxu0 0.0
  %2470 = vmatmul.mubr.f32.gmra.mrb[0].mxu0 %v2241
  %v2471 = vpop.f32.mrb[0].mxu0
  %v2472 = vadd.f32 0.0, %v2471
  %v2473 = vpop.f32.mrb[0].mxu0
  %2474 = vmatprep.mubr.f32.mxu0 0.0
  %2475 = vmatmul.mubr.f32.gmra.mrb[0].mxu0 %v2244
  %v2476 = vpop.f32.mrb[0].mxu0
  %v2477 = vadd.f32 0.0, %v2476
  %v2478 = vpop.f32.mrb[0].mxu0
  %2479 = vmatprep.mubr.f32.mxu0 0.0
  %2480 = vmatmul.mubr.f32.gmra.mrb[0].mxu0 %v2247
  %v2481 = vpop.f32.mrb[0].mxu0
  %v2482 = vadd.f32 0.0, %v2481
  %v2483 = vpop.f32.mrb[0].mxu0
  %2484 = vmatprep.mubr.f32.mxu0 0.0
  %2485 = vmatmul.mubr.f32.gmra.mrb[0].mxu0 %v2250
  %v2486 = vpop.f32.mrb[0].mxu0
  %v2487 = vadd.f32 0.0, %v2486
  %v2488 = vpop.f32.mrb[0].mxu0
  %2489 = vmatprep.mubr.f32.mxu0 0.0
  %2490 = vmatmul.mubr.f32.gmra.mrb[0].mxu0 %v2253
  %v2491 = vpop.f32.mrb[0].mxu0
  %v2492 = vadd.f32 0.0, %v2491
  %v2493 = vpop.f32.mrb[0].mxu0
  %2494 = vmatprep.mubr.f32.mxu0 0.0
  %2495 = vmatmul.mubr.f32.gmra.mrb[0].mxu0 %v2256
  %v2496 = vpop.f32.mrb[0].mxu0
  %v2497 = vadd.f32 0.0, %v2496
  %v2498 = vpop.f32.mrb[0].mxu0
  %2499 = vmatprep.mubr.f32.mxu0 0.0
  %2500 = vmatmul.mubr.f32.gmra.mrb[0].mxu0 %v2259
  %v2501 = vpop.f32.mrb[0].mxu0
  %v2502 = vadd.f32 0.0, %v2501
  %v2503 = vpop.f32.mrb[0].mxu0
  %2504 = vmatprep.mubr.f32.mxu0 0.0
  %2505 = vmatmul.mubr.f32.gmra.mrb[0].mxu0 %v2262
  %v2506 = vpop.f32.mrb[0].mxu0
  %v2507 = vadd.f32 0.0, %v2506
  %v2508 = vpop.f32.mrb[0].mxu0
  %2509 = vmatprep.mubr.f32.mxu0 0.0
  %2510 = vmatmul.mubr.f32.gmra.mrb[0].mxu0 %v2265
  %v2511 = vpop.f32.mrb[0].mxu0
  %v2512 = vadd.f32 0.0, %v2511
  %v2513 = vpop.f32.mrb[0].mxu0
  %2514 = vdwg.mxu0
  %v2515 = vadd.f32 %v2086, %v2337
  %v2516 = vadd.f32 %v2087, %v2342
  %v2517 = vadd.f32 %v2088, %v2347
  %v2518 = vadd.f32 %v2089, %v2352
  %v2519 = vadd.f32 %v2090, %v2357
  %v2520 = vadd.f32 %v2091, %v2362
  %v2521 = vadd.f32 %v2092, %v2367
  %v2522 = vadd.f32 %v2093, %v2372
  %v2523 = vadd.f32 %v2094, %v2377
  %v2524 = vadd.f32 %v2095, %v2382
  %v2525 = vadd.f32 %v2096, %v2387
  %v2526 = vadd.f32 %v2097, %v2392
  %v2527 = vadd.f32 %v2098, %v2397
  %v2528 = vadd.f32 %v2099, %v2402
  %v2529 = vadd.f32 %v2100, %v2407
  %v2530 = vadd.f32 %v2101, %v2412
  %v2531 = vadd.f32 %v2102, %v2417
  %v2532 = vadd.f32 %v2103, %v2422
  %v2533 = vadd.f32 %v2104, %v2427
  %v2534 = vadd.f32 %v2105, %v2432
  %v2535 = vadd.f32 %v2106, %v2437
  %v2536 = vadd.f32 %v2107, %v2442
  %v2537 = vadd.f32 %v2108, %v2447
  %v2538 = vadd.f32 %v2109, %v2452
  %v2539 = vadd.f32 %v2110, %v2457
  %v2540 = vadd.f32 %v2111, %v2462
  %v2541 = vadd.f32 %v2112, %v2467
  %v2542 = vadd.f32 %v2113, %v2472
  %v2543 = vadd.f32 %v2114, %v2477
  %v2544 = vadd.f32 %v2115, %v2482
  %v2545 = vadd.f32 %v2116, %v2487
  %v2546 = vadd.f32 %v2117, %v2492
  %v2547 = vadd.f32 %v2118, %v2497
  %v2548 = vadd.f32 %v2119, %v2502
  %v2549 = vadd.f32 %v2120, %v2507
  %v2550 = vadd.f32 %v2121, %v2512
  %v2551 = vld [vmem:[%s0 + $0x24] sm:$0xff]
  %v2552 = vld [vmem:[%s0 + $0x2c] sm:$0xff]
  %v2553 = vld [vmem:[%s0 + $0x34] sm:$0xff]
  %v2554 = vld [vmem:[%s0 + $0x3c] sm:$0xff]
  %v2555 = vld [vmem:[%s0 + $0x44] sm:$0xff]
  %v2556 = vld [vmem:[%s0 + $0x4c] sm:$0xff]
  %v2557 = vld [vmem:[%s0 + $0x54] sm:$0xff]
  %v2558 = vld [vmem:[%s0 + $0x5c] sm:$0xff]
  %v2559 = vld [vmem:[%s0 + $0x64] sm:$0xff]
  %v2560 = vld [vmem:[%s0 + $0x6c] sm:$0xff]
  %v2561 = vld [vmem:[%s0 + $0x74] sm:$0xff]
  %v2562 = vld [vmem:[%s0 + $0x7c] sm:$0xff]
  %v2563 = vld [vmem:[%s0 + $0x84] sm:$0xff]
  %v2564 = vld [vmem:[%s0 + $0x8c] sm:$0xff]
  %v2565 = vld [vmem:[%s0 + $0x94] sm:$0xff]
  %v2566 = vld [vmem:[%s0 + $0x9c] sm:$0xff]
  %v2567 = vld [vmem:[%s0 + $0xa4] sm:$0xff]
  %v2568 = vld [vmem:[%s0 + $0xac] sm:$0xff]
  %v2569 = vld [vmem:[%s0 + $0xb4] sm:$0xff]
  %v2570 = vld [vmem:[%s0 + $0xbc] sm:$0xff]
  %v2571 = vld [vmem:[%s0 + $0xc4] sm:$0xff]
  %v2572 = vld [vmem:[%s0 + $0xcc] sm:$0xff]
  %v2573 = vld [vmem:[%s0 + $0xd4] sm:$0xff]
  %v2574 = vld [vmem:[%s0 + $0xdc] sm:$0xff]
  %v2575 = vld [vmem:[%s0 + $0xe4] sm:$0xff]
  %v2576 = vld [vmem:[%s0 + $0xec] sm:$0xff]
  %v2577 = vld [vmem:[%s0 + $0xf4] sm:$0xff]
  %v2578 = vld [vmem:[%s0 + $0xfc] sm:$0xff]
  %v2579 = vld [vmem:[%s0 + $0x104] sm:$0xff]
  %v2580 = vld [vmem:[%s0 + $0x10c] sm:$0xff]
  %v2581 = vld [vmem:[%s0 + $0x114] sm:$0xff]
  %v2582 = vld [vmem:[%s0 + $0x11c] sm:$0xff]
  %v2583 = vld [vmem:[%s0 + $0x124] sm:$0xff]
  %v2584 = vld [vmem:[%s0 + $0x12c] sm:$0xff]
  %v2585 = vld [vmem:[%s0 + $0x134] sm:$0xff]
  %v2586 = vld [vmem:[%s0 + $0x13c] sm:$0xff]
  %v2587 = vld [vmem:[%s1 + $0x18] sm:$0xf]
  %v2589 = vsel %vm121, %v2551, 0
  %v2592 = vsel %vm121, %v2552, 0
  %v2595 = vsel %vm121, %v2553, 0
  %v2598 = vsel %vm121, %v2554, 0
  %v2601 = vsel %vm121, %v2555, 0
  %v2604 = vsel %vm121, %v2556, 0
  %v2607 = vsel %vm121, %v2557, 0
  %v2610 = vsel %vm121, %v2558, 0
  %v2613 = vsel %vm121, %v2559, 0
  %v2616 = vsel %vm121, %v2560, 0
  %v2619 = vsel %vm121, %v2561, 0
  %v2622 = vsel %vm121, %v2562, 0
  %v2625 = vsel %vm121, %v2563, 0
  %v2628 = vsel %vm121, %v2564, 0
  %v2631 = vsel %vm121, %v2565, 0
  %v2634 = vsel %vm121, %v2566, 0
  %v2637 = vsel %vm121, %v2567, 0
  %v2640 = vsel %vm121, %v2568, 0
  %v2643 = vsel %vm121, %v2569, 0
  %v2646 = vsel %vm121, %v2570, 0
  %v2649 = vsel %vm121, %v2571, 0
  %v2652 = vsel %vm121, %v2572, 0
  %v2655 = vsel %vm121, %v2573, 0
  %v2658 = vsel %vm121, %v2574, 0
  %v2661 = vsel %vm121, %v2575, 0
  %v2664 = vsel %vm121, %v2576, 0
  %v2667 = vsel %vm121, %v2577, 0
  %v2670 = vsel %vm121, %v2578, 0
  %v2673 = vsel %vm121, %v2579, 0
  %v2676 = vsel %vm121, %v2580, 0
  %v2679 = vsel %vm121, %v2581, 0
  %v2682 = vsel %vm121, %v2582, 0
  %v2685 = vsel %vm121, %v2583, 0
  %v2688 = vsel %vm121, %v2584, 0
  %v2691 = vsel %vm121, %v2585, 0
  %v2694 = vsel %vm121, %v2586, 0
  %v2697 = vsel %vm230, %v2587, 0
  %2699 = vmatprep.subr.mxu0 0.0
  %2700 = vmatpush1.msra.mxu0 %v2697
  %2701 = vmatprep.subr.mxu0 0.0
  %2702 = vmatpush1.msra.mxu0 0.0
  %2703 = vmatprep.subr.mxu0 0.0
  %2704 = vmatpush1.msra.mxu0 0.0
  %2705 = vmatprep.subr.mxu0 0.0
  %2706 = vmatpush1.msra.mxu0 0.0
  %2707 = vmatprep.subr.mxu0 0.0
  %2708 = vmatpush1.msra.mxu0 0.0
  %2709 = vmatprep.subr.mxu0 0.0
  %2710 = vmatpush1.msra.mxu0 0.0
  %2711 = vmatprep.subr.mxu0 0.0
  %2712 = vmatpush1.msra.mxu0 0.0
  %2713 = vmatprep.subr.mxu0 0.0
  %2714 = vmatpush1.msra.mxu0 0.0
  %2715 = vmatprep.subr.mxu0 0.0
  %2716 = vmatpush1.msra.mxu0 0.0
  %2717 = vmatprep.subr.mxu0 0.0
  %2718 = vmatpush1.msra.mxu0 0.0
  %2719 = vmatprep.subr.mxu0 0.0
  %2720 = vmatpush1.msra.mxu0 0.0
  %2721 = vmatprep.subr.mxu0 0.0
  %2722 = vmatpush1.msra.mxu0 0.0
  %2723 = vmatprep.subr.mxu0 0.0
  %2724 = vmatpush1.msra.mxu0 0.0
  %2725 = vmatprep.subr.mxu0 0.0
  %2726 = vmatpush1.msra.mxu0 0.0
  %2727 = vmatprep.subr.mxu0 0.0
  %2728 = vmatpush1.msra.mxu0 0.0
  %2729 = vmatprep.subr.mxu0 0.0
  %2730 = vmatpush1.msra.mxu0 0.0
  %2731 = vmatprep.subr.mxu0 0.0
  %2732 = vmatpush1.msra.mxu0 0.0
  %2733 = vmatprep.subr.mxu0 0.0
  %2734 = vmatpush1.msra.mxu0 0.0
  %2735 = vmatprep.subr.mxu0 0.0
  %2736 = vmatpush1.msra.mxu0 0.0
  %2737 = vmatprep.subr.mxu0 0.0
  %2738 = vmatpush1.msra.mxu0 0.0
  %2739 = vmatprep.subr.mxu0 0.0
  %2740 = vmatpush1.msra.mxu0 0.0
  %2741 = vmatprep.subr.mxu0 0.0
  %2742 = vmatpush1.msra.mxu0 0.0
  %2743 = vmatprep.subr.mxu0 0.0
  %2744 = vmatpush1.msra.mxu0 0.0
  %2745 = vmatprep.subr.mxu0 0.0
  %2746 = vmatpush1.msra.mxu0 0.0
  %2747 = vmatprep.subr.mxu0 0.0
  %2748 = vmatpush1.msra.mxu0 0.0
  %2749 = vmatprep.subr.mxu0 0.0
  %2750 = vmatpush1.msra.mxu0 0.0
  %2751 = vmatprep.subr.mxu0 0.0
  %2752 = vmatpush1.msra.mxu0 0.0
  %2753 = vmatprep.subr.mxu0 0.0
  %2754 = vmatpush1.msra.mxu0 0.0
  %2755 = vmatprep.subr.mxu0 0.0
  %2756 = vmatpush1.msra.mxu0 0.0
  %2757 = vmatprep.subr.mxu0 0.0
  %2758 = vmatpush1.msra.mxu0 0.0
  %2759 = vmatprep.subr.mxu0 0.0
  %2760 = vmatpush1.msra.mxu0 0.0
  %2761 = vmatprep.subr.mxu0 0.0
  %2762 = vmatpush1.msra.mxu0 0.0
  %2763 = vmatprep.mubr.f32.mxu0 0.0
  %2764 = vmatmul.mubr.f32.gmra.mrb[0].mxu0 %v2589
  %v2765 = vpop.f32.mrb[0].mxu0
  %v2766 = vadd.f32 0.0, %v2765
  %v2767 = vpop.f32.mrb[0].mxu0
  %2768 = vmatprep.mubr.f32.mxu0 0.0
  %2769 = vmatmul.mubr.f32.gmra.mrb[0].mxu0 %v2592
  %v2770 = vpop.f32.mrb[0].mxu0
  %v2771 = vadd.f32 0.0, %v2770
  %v2772 = vpop.f32.mrb[0].mxu0
  %2773 = vmatprep.mubr.f32.mxu0 0.0
  %2774 = vmatmul.mubr.f32.gmra.mrb[0].mxu0 %v2595
  %v2775 = vpop.f32.mrb[0].mxu0
  %v2776 = vadd.f32 0.0, %v2775
  %v2777 = vpop.f32.mrb[0].mxu0
  %2778 = vmatprep.mubr.f32.mxu0 0.0
  %2779 = vmatmul.mubr.f32.gmra.mrb[0].mxu0 %v2598
  %v2780 = vpop.f32.mrb[0].mxu0
  %v2781 = vadd.f32 0.0, %v2780
  %v2782 = vpop.f32.mrb[0].mxu0
  %2783 = vmatprep.mubr.f32.mxu0 0.0
  %2784 = vmatmul.mubr.f32.gmra.mrb[0].mxu0 %v2601
  %v2785 = vpop.f32.mrb[0].mxu0
  %v2786 = vadd.f32 0.0, %v2785
  %v2787 = vpop.f32.mrb[0].mxu0
  %2788 = vmatprep.mubr.f32.mxu0 0.0
  %2789 = vmatmul.mubr.f32.gmra.mrb[0].mxu0 %v2604
  %v2790 = vpop.f32.mrb[0].mxu0
  %v2791 = vadd.f32 0.0, %v2790
  %v2792 = vpop.f32.mrb[0].mxu0
  %2793 = vmatprep.mubr.f32.mxu0 0.0
  %2794 = vmatmul.mubr.f32.gmra.mrb[0].mxu0 %v2607
  %v2795 = vpop.f32.mrb[0].mxu0
  %v2796 = vadd.f32 0.0, %v2795
  %v2797 = vpop.f32.mrb[0].mxu0
  %2798 = vmatprep.mubr.f32.mxu0 0.0
  %2799 = vmatmul.mubr.f32.gmra.mrb[0].mxu0 %v2610
  %v2800 = vpop.f32.mrb[0].mxu0
  %v2801 = vadd.f32 0.0, %v2800
  %v2802 = vpop.f32.mrb[0].mxu0
  %2803 = vmatprep.mubr.f32.mxu0 0.0
  %2804 = vmatmul.mubr.f32.gmra.mrb[0].mxu0 %v2613
  %v2805 = vpop.f32.mrb[0].mxu0
  %v2806 = vadd.f32 0.0, %v2805
  %v2807 = vpop.f32.mrb[0].mxu0
  %2808 = vmatprep.mubr.f32.mxu0 0.0
  %2809 = vmatmul.mubr.f32.gmra.mrb[0].mxu0 %v2616
  %v2810 = vpop.f32.mrb[0].mxu0
  %v2811 = vadd.f32 0.0, %v2810
  %v2812 = vpop.f32.mrb[0].mxu0
  %2813 = vmatprep.mubr.f32.mxu0 0.0
  %2814 = vmatmul.mubr.f32.gmra.mrb[0].mxu0 %v2619
  %v2815 = vpop.f32.mrb[0].mxu0
  %v2816 = vadd.f32 0.0, %v2815
  %v2817 = vpop.f32.mrb[0].mxu0
  %2818 = vmatprep.mubr.f32.mxu0 0.0
  %2819 = vmatmul.mubr.f32.gmra.mrb[0].mxu0 %v2622
  %v2820 = vpop.f32.mrb[0].mxu0
  %v2821 = vadd.f32 0.0, %v2820
  %v2822 = vpop.f32.mrb[0].mxu0
  %2823 = vmatprep.mubr.f32.mxu0 0.0
  %2824 = vmatmul.mubr.f32.gmra.mrb[0].mxu0 %v2625
  %v2825 = vpop.f32.mrb[0].mxu0
  %v2826 = vadd.f32 0.0, %v2825
  %v2827 = vpop.f32.mrb[0].mxu0
  %2828 = vmatprep.mubr.f32.mxu0 0.0
  %2829 = vmatmul.mubr.f32.gmra.mrb[0].mxu0 %v2628
  %v2830 = vpop.f32.mrb[0].mxu0
  %v2831 = vadd.f32 0.0, %v2830
  %v2832 = vpop.f32.mrb[0].mxu0
  %2833 = vmatprep.mubr.f32.mxu0 0.0
  %2834 = vmatmul.mubr.f32.gmra.mrb[0].mxu0 %v2631
  %v2835 = vpop.f32.mrb[0].mxu0
  %v2836 = vadd.f32 0.0, %v2835
  %v2837 = vpop.f32.mrb[0].mxu0
  %2838 = vmatprep.mubr.f32.mxu0 0.0
  %2839 = vmatmul.mubr.f32.gmra.mrb[0].mxu0 %v2634
  %v2840 = vpop.f32.mrb[0].mxu0
  %v2841 = vadd.f32 0.0, %v2840
  %v2842 = vpop.f32.mrb[0].mxu0
  %2843 = vmatprep.mubr.f32.mxu0 0.0
  %2844 = vmatmul.mubr.f32.gmra.mrb[0].mxu0 %v2637
  %v2845 = vpop.f32.mrb[0].mxu0
  %v2846 = vadd.f32 0.0, %v2845
  %v2847 = vpop.f32.mrb[0].mxu0
  %2848 = vmatprep.mubr.f32.mxu0 0.0
  %2849 = vmatmul.mubr.f32.gmra.mrb[0].mxu0 %v2640
  %v2850 = vpop.f32.mrb[0].mxu0
  %v2851 = vadd.f32 0.0, %v2850
  %v2852 = vpop.f32.mrb[0].mxu0
  %2853 = vmatprep.mubr.f32.mxu0 0.0
  %2854 = vmatmul.mubr.f32.gmra.mrb[0].mxu0 %v2643
  %v2855 = vpop.f32.mrb[0].mxu0
  %v2856 = vadd.f32 0.0, %v2855
  %v2857 = vpop.f32.mrb[0].mxu0
  %2858 = vmatprep.mubr.f32.mxu0 0.0
  %2859 = vmatmul.mubr.f32.gmra.mrb[0].mxu0 %v2646
  %v2860 = vpop.f32.mrb[0].mxu0
  %v2861 = vadd.f32 0.0, %v2860
  %v2862 = vpop.f32.mrb[0].mxu0
  %2863 = vmatprep.mubr.f32.mxu0 0.0
  %2864 = vmatmul.mubr.f32.gmra.mrb[0].mxu0 %v2649
  %v2865 = vpop.f32.mrb[0].mxu0
  %v2866 = vadd.f32 0.0, %v2865
  %v2867 = vpop.f32.mrb[0].mxu0
  %2868 = vmatprep.mubr.f32.mxu0 0.0
  %2869 = vmatmul.mubr.f32.gmra.mrb[0].mxu0 %v2652
  %v2870 = vpop.f32.mrb[0].mxu0
  %v2871 = vadd.f32 0.0, %v2870
  %v2872 = vpop.f32.mrb[0].mxu0
  %2873 = vmatprep.mubr.f32.mxu0 0.0
  %2874 = vmatmul.mubr.f32.gmra.mrb[0].mxu0 %v2655
  %v2875 = vpop.f32.mrb[0].mxu0
  %v2876 = vadd.f32 0.0, %v2875
  %v2877 = vpop.f32.mrb[0].mxu0
  %2878 = vmatprep.mubr.f32.mxu0 0.0
  %2879 = vmatmul.mubr.f32.gmra.mrb[0].mxu0 %v2658
  %v2880 = vpop.f32.mrb[0].mxu0
  %v2881 = vadd.f32 0.0, %v2880
  %v2882 = vpop.f32.mrb[0].mxu0
  %2883 = vmatprep.mubr.f32.mxu0 0.0
  %2884 = vmatmul.mubr.f32.gmra.mrb[0].mxu0 %v2661
  %v2885 = vpop.f32.mrb[0].mxu0
  %v2886 = vadd.f32 0.0, %v2885
  %v2887 = vpop.f32.mrb[0].mxu0
  %2888 = vmatprep.mubr.f32.mxu0 0.0
  %2889 = vmatmul.mubr.f32.gmra.mrb[0].mxu0 %v2664
  %v2890 = vpop.f32.mrb[0].mxu0
  %v2891 = vadd.f32 0.0, %v2890
  %v2892 = vpop.f32.mrb[0].mxu0
  %2893 = vmatprep.mubr.f32.mxu0 0.0
  %2894 = vmatmul.mubr.f32.gmra.mrb[0].mxu0 %v2667
  %v2895 = vpop.f32.mrb[0].mxu0
  %v2896 = vadd.f32 0.0, %v2895
  %v2897 = vpop.f32.mrb[0].mxu0
  %2898 = vmatprep.mubr.f32.mxu0 0.0
  %2899 = vmatmul.mubr.f32.gmra.mrb[0].mxu0 %v2670
  %v2900 = vpop.f32.mrb[0].mxu0
  %v2901 = vadd.f32 0.0, %v2900
  %v2902 = vpop.f32.mrb[0].mxu0
  %2903 = vmatprep.mubr.f32.mxu0 0.0
  %2904 = vmatmul.mubr.f32.gmra.mrb[0].mxu0 %v2673
  %v2905 = vpop.f32.mrb[0].mxu0
  %v2906 = vadd.f32 0.0, %v2905
  %v2907 = vpop.f32.mrb[0].mxu0
  %2908 = vmatprep.mubr.f32.mxu0 0.0
  %2909 = vmatmul.mubr.f32.gmra.mrb[0].mxu0 %v2676
  %v2910 = vpop.f32.mrb[0].mxu0
  %v2911 = vadd.f32 0.0, %v2910
  %v2912 = vpop.f32.mrb[0].mxu0
  %2913 = vmatprep.mubr.f32.mxu0 0.0
  %2914 = vmatmul.mubr.f32.gmra.mrb[0].mxu0 %v2679
  %v2915 = vpop.f32.mrb[0].mxu0
  %v2916 = vadd.f32 0.0, %v2915
  %v2917 = vpop.f32.mrb[0].mxu0
  %2918 = vmatprep.mubr.f32.mxu0 0.0
  %2919 = vmatmul.mubr.f32.gmra.mrb[0].mxu0 %v2682
  %v2920 = vpop.f32.mrb[0].mxu0
  %v2921 = vadd.f32 0.0, %v2920
  %v2922 = vpop.f32.mrb[0].mxu0
  %2923 = vmatprep.mubr.f32.mxu0 0.0
  %2924 = vmatmul.mubr.f32.gmra.mrb[0].mxu0 %v2685
  %v2925 = vpop.f32.mrb[0].mxu0
  %v2926 = vadd.f32 0.0, %v2925
  %v2927 = vpop.f32.mrb[0].mxu0
  %2928 = vmatprep.mubr.f32.mxu0 0.0
  %2929 = vmatmul.mubr.f32.gmra.mrb[0].mxu0 %v2688
  %v2930 = vpop.f32.mrb[0].mxu0
  %v2931 = vadd.f32 0.0, %v2930
  %v2932 = vpop.f32.mrb[0].mxu0
  %2933 = vmatprep.mubr.f32.mxu0 0.0
  %2934 = vmatmul.mubr.f32.gmra.mrb[0].mxu0 %v2691
  %v2935 = vpop.f32.mrb[0].mxu0
  %v2936 = vadd.f32 0.0, %v2935
  %v2937 = vpop.f32.mrb[0].mxu0
  %2938 = vmatprep.mubr.f32.mxu0 0.0
  %2939 = vmatmul.mubr.f32.gmra.mrb[0].mxu0 %v2694
  %v2940 = vpop.f32.mrb[0].mxu0
  %v2941 = vadd.f32 0.0, %v2940
  %v2942 = vpop.f32.mrb[0].mxu0
  %2943 = vdwg.mxu0
  %v2944 = vadd.f32 %v2515, %v2766
  %v2945 = vadd.f32 %v2516, %v2771
  %v2946 = vadd.f32 %v2517, %v2776
  %v2947 = vadd.f32 %v2518, %v2781
  %v2948 = vadd.f32 %v2519, %v2786
  %v2949 = vadd.f32 %v2520, %v2791
  %v2950 = vadd.f32 %v2521, %v2796
  %v2951 = vadd.f32 %v2522, %v2801
  %v2952 = vadd.f32 %v2523, %v2806
  %v2953 = vadd.f32 %v2524, %v2811
  %v2954 = vadd.f32 %v2525, %v2816
  %v2955 = vadd.f32 %v2526, %v2821
  %v2956 = vadd.f32 %v2527, %v2826
  %v2957 = vadd.f32 %v2528, %v2831
  %v2958 = vadd.f32 %v2529, %v2836
  %v2959 = vadd.f32 %v2530, %v2841
  %v2960 = vadd.f32 %v2531, %v2846
  %v2961 = vadd.f32 %v2532, %v2851
  %v2962 = vadd.f32 %v2533, %v2856
  %v2963 = vadd.f32 %v2534, %v2861
  %v2964 = vadd.f32 %v2535, %v2866
  %v2965 = vadd.f32 %v2536, %v2871
  %v2966 = vadd.f32 %v2537, %v2876
  %v2967 = vadd.f32 %v2538, %v2881
  %v2968 = vadd.f32 %v2539, %v2886
  %v2969 = vadd.f32 %v2540, %v2891
  %v2970 = vadd.f32 %v2541, %v2896
  %v2971 = vadd.f32 %v2542, %v2901
  %v2972 = vadd.f32 %v2543, %v2906
  %v2973 = vadd.f32 %v2544, %v2911
  %v2974 = vadd.f32 %v2545, %v2916
  %v2975 = vadd.f32 %v2546, %v2921
  %v2976 = vadd.f32 %v2547, %v2926
  %v2977 = vadd.f32 %v2548, %v2931
  %v2978 = vadd.f32 %v2549, %v2936
  %v2979 = vadd.f32 %v2550, %v2941
  %v2980 = vld [vmem:[%s0 + $0x25] sm:$0xff]
  %v2981 = vld [vmem:[%s0 + $0x2d] sm:$0xff]
  %v2982 = vld [vmem:[%s0 + $0x35] sm:$0xff]
  %v2983 = vld [vmem:[%s0 + $0x3d] sm:$0xff]
  %v2984 = vld [vmem:[%s0 + $0x45] sm:$0xff]
  %v2985 = vld [vmem:[%s0 + $0x4d] sm:$0xff]
  %v2986 = vld [vmem:[%s0 + $0x55] sm:$0xff]
  %v2987 = vld [vmem:[%s0 + $0x5d] sm:$0xff]
  %v2988 = vld [vmem:[%s0 + $0x65] sm:$0xff]
  %v2989 = vld [vmem:[%s0 + $0x6d] sm:$0xff]
  %v2990 = vld [vmem:[%s0 + $0x75] sm:$0xff]
  %v2991 = vld [vmem:[%s0 + $0x7d] sm:$0xff]
  %v2992 = vld [vmem:[%s0 + $0x85] sm:$0xff]
  %v2993 = vld [vmem:[%s0 + $0x8d] sm:$0xff]
  %v2994 = vld [vmem:[%s0 + $0x95] sm:$0xff]
  %v2995 = vld [vmem:[%s0 + $0x9d] sm:$0xff]
  %v2996 = vld [vmem:[%s0 + $0xa5] sm:$0xff]
  %v2997 = vld [vmem:[%s0 + $0xad] sm:$0xff]
  %v2998 = vld [vmem:[%s0 + $0xb5] sm:$0xff]
  %v2999 = vld [vmem:[%s0 + $0xbd] sm:$0xff]
  %v3000 = vld [vmem:[%s0 + $0xc5] sm:$0xff]
  %v3001 = vld [vmem:[%s0 + $0xcd] sm:$0xff]
  %v3002 = vld [vmem:[%s0 + $0xd5] sm:$0xff]
  %v3003 = vld [vmem:[%s0 + $0xdd] sm:$0xff]
  %v3004 = vld [vmem:[%s0 + $0xe5] sm:$0xff]
  %v3005 = vld [vmem:[%s0 + $0xed] sm:$0xff]
  %v3006 = vld [vmem:[%s0 + $0xf5] sm:$0xff]
  %v3007 = vld [vmem:[%s0 + $0xfd] sm:$0xff]
  %v3008 = vld [vmem:[%s0 + $0x105] sm:$0xff]
  %v3009 = vld [vmem:[%s0 + $0x10d] sm:$0xff]
  %v3010 = vld [vmem:[%s0 + $0x115] sm:$0xff]
  %v3011 = vld [vmem:[%s0 + $0x11d] sm:$0xff]
  %v3012 = vld [vmem:[%s0 + $0x125] sm:$0xff]
  %v3013 = vld [vmem:[%s0 + $0x12d] sm:$0xff]
  %v3014 = vld [vmem:[%s0 + $0x135] sm:$0xff]
  %v3015 = vld [vmem:[%s0 + $0x13d] sm:$0xff]
  %v3016 = vld [vmem:[%s1 + $0x1c] sm:$0xf]
  %v3018 = vsel %vm121, %v2980, 0
  %v3021 = vsel %vm121, %v2981, 0
  %v3024 = vsel %vm121, %v2982, 0
  %v3027 = vsel %vm121, %v2983, 0
  %v3030 = vsel %vm121, %v2984, 0
  %v3033 = vsel %vm121, %v2985, 0
  %v3036 = vsel %vm121, %v2986, 0
  %v3039 = vsel %vm121, %v2987, 0
  %v3042 = vsel %vm121, %v2988, 0
  %v3045 = vsel %vm121, %v2989, 0
  %v3048 = vsel %vm121, %v2990, 0
  %v3051 = vsel %vm121, %v2991, 0
  %v3054 = vsel %vm121, %v2992, 0
  %v3057 = vsel %vm121, %v2993, 0
  %v3060 = vsel %vm121, %v2994, 0
  %v3063 = vsel %vm121, %v2995, 0
  %v3066 = vsel %vm121, %v2996, 0
  %v3069 = vsel %vm121, %v2997, 0
  %v3072 = vsel %vm121, %v2998, 0
  %v3075 = vsel %vm121, %v2999, 0
  %v3078 = vsel %vm121, %v3000, 0
  %v3081 = vsel %vm121, %v3001, 0
  %v3084 = vsel %vm121, %v3002, 0
  %v3087 = vsel %vm121, %v3003, 0
  %v3090 = vsel %vm121, %v3004, 0
  %v3093 = vsel %vm121, %v3005, 0
  %v3096 = vsel %vm121, %v3006, 0
  %v3099 = vsel %vm121, %v3007, 0
  %v3102 = vsel %vm121, %v3008, 0
  %v3105 = vsel %vm121, %v3009, 0
  %v3108 = vsel %vm121, %v3010, 0
  %v3111 = vsel %vm121, %v3011, 0
  %v3114 = vsel %vm121, %v3012, 0
  %v3117 = vsel %vm121, %v3013, 0
  %v3120 = vsel %vm121, %v3014, 0
  %v3123 = vsel %vm121, %v3015, 0
  %v3126 = vsel %vm230, %v3016, 0
  %3128 = vmatprep.subr.mxu0 0.0
  %3129 = vmatpush1.msra.mxu0 %v3126
  %3130 = vmatprep.subr.mxu0 0.0
  %3131 = vmatpush1.msra.mxu0 0.0
  %3132 = vmatprep.subr.mxu0 0.0
  %3133 = vmatpush1.msra.mxu0 0.0
  %3134 = vmatprep.subr.mxu0 0.0
  %3135 = vmatpush1.msra.mxu0 0.0
  %3136 = vmatprep.subr.mxu0 0.0
  %3137 = vmatpush1.msra.mxu0 0.0
  %3138 = vmatprep.subr.mxu0 0.0
  %3139 = vmatpush1.msra.mxu0 0.0
  %3140 = vmatprep.subr.mxu0 0.0
  %3141 = vmatpush1.msra.mxu0 0.0
  %3142 = vmatprep.subr.mxu0 0.0
  %3143 = vmatpush1.msra.mxu0 0.0
  %3144 = vmatprep.subr.mxu0 0.0
  %3145 = vmatpush1.msra.mxu0 0.0
  %3146 = vmatprep.subr.mxu0 0.0
  %3147 = vmatpush1.msra.mxu0 0.0
  %3148 = vmatprep.subr.mxu0 0.0
  %3149 = vmatpush1.msra.mxu0 0.0
  %3150 = vmatprep.subr.mxu0 0.0
  %3151 = vmatpush1.msra.mxu0 0.0
  %3152 = vmatprep.subr.mxu0 0.0
  %3153 = vmatpush1.msra.mxu0 0.0
  %3154 = vmatprep.subr.mxu0 0.0
  %3155 = vmatpush1.msra.mxu0 0.0
  %3156 = vmatprep.subr.mxu0 0.0
  %3157 = vmatpush1.msra.mxu0 0.0
  %3158 = vmatprep.subr.mxu0 0.0
  %3159 = vmatpush1.msra.mxu0 0.0
  %3160 = vmatprep.subr.mxu0 0.0
  %3161 = vmatpush1.msra.mxu0 0.0
  %3162 = vmatprep.subr.mxu0 0.0
  %3163 = vmatpush1.msra.mxu0 0.0
  %3164 = vmatprep.subr.mxu0 0.0
  %3165 = vmatpush1.msra.mxu0 0.0
  %3166 = vmatprep.subr.mxu0 0.0
  %3167 = vmatpush1.msra.mxu0 0.0
  %3168 = vmatprep.subr.mxu0 0.0
  %3169 = vmatpush1.msra.mxu0 0.0
  %3170 = vmatprep.subr.mxu0 0.0
  %3171 = vmatpush1.msra.mxu0 0.0
  %3172 = vmatprep.subr.mxu0 0.0
  %3173 = vmatpush1.msra.mxu0 0.0
  %3174 = vmatprep.subr.mxu0 0.0
  %3175 = vmatpush1.msra.mxu0 0.0
  %3176 = vmatprep.subr.mxu0 0.0
  %3177 = vmatpush1.msra.mxu0 0.0
  %3178 = vmatprep.subr.mxu0 0.0
  %3179 = vmatpush1.msra.mxu0 0.0
  %3180 = vmatprep.subr.mxu0 0.0
  %3181 = vmatpush1.msra.mxu0 0.0
  %3182 = vmatprep.subr.mxu0 0.0
  %3183 = vmatpush1.msra.mxu0 0.0
  %3184 = vmatprep.subr.mxu0 0.0
  %3185 = vmatpush1.msra.mxu0 0.0
  %3186 = vmatprep.subr.mxu0 0.0
  %3187 = vmatpush1.msra.mxu0 0.0
  %3188 = vmatprep.subr.mxu0 0.0
  %3189 = vmatpush1.msra.mxu0 0.0
  %3190 = vmatprep.subr.mxu0 0.0
  %3191 = vmatpush1.msra.mxu0 0.0
  %3192 = vmatprep.mubr.f32.mxu0 0.0
  %3193 = vmatmul.mubr.f32.gmra.mrb[0].mxu0 %v3018
  %v3194 = vpop.f32.mrb[0].mxu0
  %v3195 = vadd.f32 0.0, %v3194
  %v3196 = vpop.f32.mrb[0].mxu0
  %3197 = vmatprep.mubr.f32.mxu0 0.0
  %3198 = vmatmul.mubr.f32.gmra.mrb[0].mxu0 %v3021
  %v3199 = vpop.f32.mrb[0].mxu0
  %v3200 = vadd.f32 0.0, %v3199
  %v3201 = vpop.f32.mrb[0].mxu0
  %3202 = vmatprep.mubr.f32.mxu0 0.0
  %3203 = vmatmul.mubr.f32.gmra.mrb[0].mxu0 %v3024
  %v3204 = vpop.f32.mrb[0].mxu0
  %v3205 = vadd.f32 0.0, %v3204
  %v3206 = vpop.f32.mrb[0].mxu0
  %3207 = vmatprep.mubr.f32.mxu0 0.0
  %3208 = vmatmul.mubr.f32.gmra.mrb[0].mxu0 %v3027
  %v3209 = vpop.f32.mrb[0].mxu0
  %v3210 = vadd.f32 0.0, %v3209
  %v3211 = vpop.f32.mrb[0].mxu0
  %3212 = vmatprep.mubr.f32.mxu0 0.0
  %3213 = vmatmul.mubr.f32.gmra.mrb[0].mxu0 %v3030
  %v3214 = vpop.f32.mrb[0].mxu0
  %v3215 = vadd.f32 0.0, %v3214
  %v3216 = vpop.f32.mrb[0].mxu0
  %3217 = vmatprep.mubr.f32.mxu0 0.0
  %3218 = vmatmul.mubr.f32.gmra.mrb[0].mxu0 %v3033
  %v3219 = vpop.f32.mrb[0].mxu0
  %v3220 = vadd.f32 0.0, %v3219
  %v3221 = vpop.f32.mrb[0].mxu0
  %3222 = vmatprep.mubr.f32.mxu0 0.0
  %3223 = vmatmul.mubr.f32.gmra.mrb[0].mxu0 %v3036
  %v3224 = vpop.f32.mrb[0].mxu0
  %v3225 = vadd.f32 0.0, %v3224
  %v3226 = vpop.f32.mrb[0].mxu0
  %3227 = vmatprep.mubr.f32.mxu0 0.0
  %3228 = vmatmul.mubr.f32.gmra.mrb[0].mxu0 %v3039
  %v3229 = vpop.f32.mrb[0].mxu0
  %v3230 = vadd.f32 0.0, %v3229
  %v3231 = vpop.f32.mrb[0].mxu0
  %3232 = vmatprep.mubr.f32.mxu0 0.0
  %3233 = vmatmul.mubr.f32.gmra.mrb[0].mxu0 %v3042
  %v3234 = vpop.f32.mrb[0].mxu0
  %v3235 = vadd.f32 0.0, %v3234
  %v3236 = vpop.f32.mrb[0].mxu0
  %3237 = vmatprep.mubr.f32.mxu0 0.0
  %3238 = vmatmul.mubr.f32.gmra.mrb[0].mxu0 %v3045
  %v3239 = vpop.f32.mrb[0].mxu0
  %v3240 = vadd.f32 0.0, %v3239
  %v3241 = vpop.f32.mrb[0].mxu0
  %3242 = vmatprep.mubr.f32.mxu0 0.0
  %3243 = vmatmul.mubr.f32.gmra.mrb[0].mxu0 %v3048
  %v3244 = vpop.f32.mrb[0].mxu0
  %v3245 = vadd.f32 0.0, %v3244
  %v3246 = vpop.f32.mrb[0].mxu0
  %3247 = vmatprep.mubr.f32.mxu0 0.0
  %3248 = vmatmul.mubr.f32.gmra.mrb[0].mxu0 %v3051
  %v3249 = vpop.f32.mrb[0].mxu0
  %v3250 = vadd.f32 0.0, %v3249
  %v3251 = vpop.f32.mrb[0].mxu0
  %3252 = vmatprep.mubr.f32.mxu0 0.0
  %3253 = vmatmul.mubr.f32.gmra.mrb[0].mxu0 %v3054
  %v3254 = vpop.f32.mrb[0].mxu0
  %v3255 = vadd.f32 0.0, %v3254
  %v3256 = vpop.f32.mrb[0].mxu0
  %3257 = vmatprep.mubr.f32.mxu0 0.0
  %3258 = vmatmul.mubr.f32.gmra.mrb[0].mxu0 %v3057
  %v3259 = vpop.f32.mrb[0].mxu0
  %v3260 = vadd.f32 0.0, %v3259
  %v3261 = vpop.f32.mrb[0].mxu0
  %3262 = vmatprep.mubr.f32.mxu0 0.0
  %3263 = vmatmul.mubr.f32.gmra.mrb[0].mxu0 %v3060
  %v3264 = vpop.f32.mrb[0].mxu0
  %v3265 = vadd.f32 0.0, %v3264
  %v3266 = vpop.f32.mrb[0].mxu0
  %3267 = vmatprep.mubr.f32.mxu0 0.0
  %3268 = vmatmul.mubr.f32.gmra.mrb[0].mxu0 %v3063
  %v3269 = vpop.f32.mrb[0].mxu0
  %v3270 = vadd.f32 0.0, %v3269
  %v3271 = vpop.f32.mrb[0].mxu0
  %3272 = vmatprep.mubr.f32.mxu0 0.0
  %3273 = vmatmul.mubr.f32.gmra.mrb[0].mxu0 %v3066
  %v3274 = vpop.f32.mrb[0].mxu0
  %v3275 = vadd.f32 0.0, %v3274
  %v3276 = vpop.f32.mrb[0].mxu0
  %3277 = vmatprep.mubr.f32.mxu0 0.0
  %3278 = vmatmul.mubr.f32.gmra.mrb[0].mxu0 %v3069
  %v3279 = vpop.f32.mrb[0].mxu0
  %v3280 = vadd.f32 0.0, %v3279
  %v3281 = vpop.f32.mrb[0].mxu0
  %3282 = vmatprep.mubr.f32.mxu0 0.0
  %3283 = vmatmul.mubr.f32.gmra.mrb[0].mxu0 %v3072
  %v3284 = vpop.f32.mrb[0].mxu0
  %v3285 = vadd.f32 0.0, %v3284
  %v3286 = vpop.f32.mrb[0].mxu0
  %3287 = vmatprep.mubr.f32.mxu0 0.0
  %3288 = vmatmul.mubr.f32.gmra.mrb[0].mxu0 %v3075
  %v3289 = vpop.f32.mrb[0].mxu0
  %v3290 = vadd.f32 0.0, %v3289
  %v3291 = vpop.f32.mrb[0].mxu0
  %3292 = vmatprep.mubr.f32.mxu0 0.0
  %3293 = vmatmul.mubr.f32.gmra.mrb[0].mxu0 %v3078
  %v3294 = vpop.f32.mrb[0].mxu0
  %v3295 = vadd.f32 0.0, %v3294
  %v3296 = vpop.f32.mrb[0].mxu0
  %3297 = vmatprep.mubr.f32.mxu0 0.0
  %3298 = vmatmul.mubr.f32.gmra.mrb[0].mxu0 %v3081
  %v3299 = vpop.f32.mrb[0].mxu0
  %v3300 = vadd.f32 0.0, %v3299
  %v3301 = vpop.f32.mrb[0].mxu0
  %3302 = vmatprep.mubr.f32.mxu0 0.0
  %3303 = vmatmul.mubr.f32.gmra.mrb[0].mxu0 %v3084
  %v3304 = vpop.f32.mrb[0].mxu0
  %v3305 = vadd.f32 0.0, %v3304
  %v3306 = vpop.f32.mrb[0].mxu0
  %3307 = vmatprep.mubr.f32.mxu0 0.0
  %3308 = vmatmul.mubr.f32.gmra.mrb[0].mxu0 %v3087
  %v3309 = vpop.f32.mrb[0].mxu0
  %v3310 = vadd.f32 0.0, %v3309
  %v3311 = vpop.f32.mrb[0].mxu0
  %3312 = vmatprep.mubr.f32.mxu0 0.0
  %3313 = vmatmul.mubr.f32.gmra.mrb[0].mxu0 %v3090
  %v3314 = vpop.f32.mrb[0].mxu0
  %v3315 = vadd.f32 0.0, %v3314
  %v3316 = vpop.f32.mrb[0].mxu0
  %3317 = vmatprep.mubr.f32.mxu0 0.0
  %3318 = vmatmul.mubr.f32.gmra.mrb[0].mxu0 %v3093
  %v3319 = vpop.f32.mrb[0].mxu0
  %v3320 = vadd.f32 0.0, %v3319
  %v3321 = vpop.f32.mrb[0].mxu0
  %3322 = vmatprep.mubr.f32.mxu0 0.0
  %3323 = vmatmul.mubr.f32.gmra.mrb[0].mxu0 %v3096
  %v3324 = vpop.f32.mrb[0].mxu0
  %v3325 = vadd.f32 0.0, %v3324
  %v3326 = vpop.f32.mrb[0].mxu0
  %3327 = vmatprep.mubr.f32.mxu0 0.0
  %3328 = vmatmul.mubr.f32.gmra.mrb[0].mxu0 %v3099
  %v3329 = vpop.f32.mrb[0].mxu0
  %v3330 = vadd.f32 0.0, %v3329
  %v3331 = vpop.f32.mrb[0].mxu0
  %3332 = vmatprep.mubr.f32.mxu0 0.0
  %3333 = vmatmul.mubr.f32.gmra.mrb[0].mxu0 %v3102
  %v3334 = vpop.f32.mrb[0].mxu0
  %v3335 = vadd.f32 0.0, %v3334
  %v3336 = vpop.f32.mrb[0].mxu0
  %3337 = vmatprep.mubr.f32.mxu0 0.0
  %3338 = vmatmul.mubr.f32.gmra.mrb[0].mxu0 %v3105
  %v3339 = vpop.f32.mrb[0].mxu0
  %v3340 = vadd.f32 0.0, %v3339
  %v3341 = vpop.f32.mrb[0].mxu0
  %3342 = vmatprep.mubr.f32.mxu0 0.0
  %3343 = vmatmul.mubr.f32.gmra.mrb[0].mxu0 %v3108
  %v3344 = vpop.f32.mrb[0].mxu0
  %v3345 = vadd.f32 0.0, %v3344
  %v3346 = vpop.f32.mrb[0].mxu0
  %3347 = vmatprep.mubr.f32.mxu0 0.0
  %3348 = vmatmul.mubr.f32.gmra.mrb[0].mxu0 %v3111
  %v3349 = vpop.f32.mrb[0].mxu0
  %v3350 = vadd.f32 0.0, %v3349
  %v3351 = vpop.f32.mrb[0].mxu0
  %3352 = vmatprep.mubr.f32.mxu0 0.0
  %3353 = vmatmul.mubr.f32.gmra.mrb[0].mxu0 %v3114
  %v3354 = vpop.f32.mrb[0].mxu0
  %v3355 = vadd.f32 0.0, %v3354
  %v3356 = vpop.f32.mrb[0].mxu0
  %3357 = vmatprep.mubr.f32.mxu0 0.0
  %3358 = vmatmul.mubr.f32.gmra.mrb[0].mxu0 %v3117
  %v3359 = vpop.f32.mrb[0].mxu0
  %v3360 = vadd.f32 0.0, %v3359
  %v3361 = vpop.f32.mrb[0].mxu0
  %3362 = vmatprep.mubr.f32.mxu0 0.0
  %3363 = vmatmul.mubr.f32.gmra.mrb[0].mxu0 %v3120
  %v3364 = vpop.f32.mrb[0].mxu0
  %v3365 = vadd.f32 0.0, %v3364
  %v3366 = vpop.f32.mrb[0].mxu0
  %3367 = vmatprep.mubr.f32.mxu0 0.0
  %3368 = vmatmul.mubr.f32.gmra.mrb[0].mxu0 %v3123
  %v3369 = vpop.f32.mrb[0].mxu0
  %v3370 = vadd.f32 0.0, %v3369
  %v3371 = vpop.f32.mrb[0].mxu0
  %3372 = vdwg.mxu0
  %v3373 = vadd.f32 %v2944, %v3195
  %v3374 = vadd.f32 %v2945, %v3200
  %v3375 = vadd.f32 %v2946, %v3205
  %v3376 = vadd.f32 %v2947, %v3210
  %v3377 = vadd.f32 %v2948, %v3215
  %v3378 = vadd.f32 %v2949, %v3220
  %v3379 = vadd.f32 %v2950, %v3225
  %v3380 = vadd.f32 %v2951, %v3230
  %v3381 = vadd.f32 %v2952, %v3235
  %v3382 = vadd.f32 %v2953, %v3240
  %v3383 = vadd.f32 %v2954, %v3245
  %v3384 = vadd.f32 %v2955, %v3250
  %v3385 = vadd.f32 %v2956, %v3255
  %v3386 = vadd.f32 %v2957, %v3260
  %v3387 = vadd.f32 %v2958, %v3265
  %v3388 = vadd.f32 %v2959, %v3270
  %v3389 = vadd.f32 %v2960, %v3275
  %v3390 = vadd.f32 %v2961, %v3280
  %v3391 = vadd.f32 %v2962, %v3285
  %v3392 = vadd.f32 %v2963, %v3290
  %v3393 = vadd.f32 %v2964, %v3295
  %v3394 = vadd.f32 %v2965, %v3300
  %v3395 = vadd.f32 %v2966, %v3305
  %v3396 = vadd.f32 %v2967, %v3310
  %v3397 = vadd.f32 %v2968, %v3315
  %v3398 = vadd.f32 %v2969, %v3320
  %v3399 = vadd.f32 %v2970, %v3325
  %v3400 = vadd.f32 %v2971, %v3330
  %v3401 = vadd.f32 %v2972, %v3335
  %v3402 = vadd.f32 %v2973, %v3340
  %v3403 = vadd.f32 %v2974, %v3345
  %v3404 = vadd.f32 %v2975, %v3350
  %v3405 = vadd.f32 %v2976, %v3355
  %v3406 = vadd.f32 %v2977, %v3360
  %v3407 = vadd.f32 %v2978, %v3365
  %v3408 = vadd.f32 %v2979, %v3370
  %v3409 = vld [vmem:[%s0 + $0x26] sm:$0xff]
  %v3410 = vld [vmem:[%s0 + $0x2e] sm:$0xff]
  %v3411 = vld [vmem:[%s0 + $0x36] sm:$0xff]
  %v3412 = vld [vmem:[%s0 + $0x3e] sm:$0xff]
  %v3413 = vld [vmem:[%s0 + $0x46] sm:$0xff]
  %v3414 = vld [vmem:[%s0 + $0x4e] sm:$0xff]
  %v3415 = vld [vmem:[%s0 + $0x56] sm:$0xff]
  %v3416 = vld [vmem:[%s0 + $0x5e] sm:$0xff]
  %v3417 = vld [vmem:[%s0 + $0x66] sm:$0xff]
  %v3418 = vld [vmem:[%s0 + $0x6e] sm:$0xff]
  %v3419 = vld [vmem:[%s0 + $0x76] sm:$0xff]
  %v3420 = vld [vmem:[%s0 + $0x7e] sm:$0xff]
  %v3421 = vld [vmem:[%s0 + $0x86] sm:$0xff]
  %v3422 = vld [vmem:[%s0 + $0x8e] sm:$0xff]
  %v3423 = vld [vmem:[%s0 + $0x96] sm:$0xff]
  %v3424 = vld [vmem:[%s0 + $0x9e] sm:$0xff]
  %v3425 = vld [vmem:[%s0 + $0xa6] sm:$0xff]
  %v3426 = vld [vmem:[%s0 + $0xae] sm:$0xff]
  %v3427 = vld [vmem:[%s0 + $0xb6] sm:$0xff]
  %v3428 = vld [vmem:[%s0 + $0xbe] sm:$0xff]
  %v3429 = vld [vmem:[%s0 + $0xc6] sm:$0xff]
  %v3430 = vld [vmem:[%s0 + $0xce] sm:$0xff]
  %v3431 = vld [vmem:[%s0 + $0xd6] sm:$0xff]
  %v3432 = vld [vmem:[%s0 + $0xde] sm:$0xff]
  %v3433 = vld [vmem:[%s0 + $0xe6] sm:$0xff]
  %v3434 = vld [vmem:[%s0 + $0xee] sm:$0xff]
  %v3435 = vld [vmem:[%s0 + $0xf6] sm:$0xff]
  %v3436 = vld [vmem:[%s0 + $0xfe] sm:$0xff]
  %v3437 = vld [vmem:[%s0 + $0x106] sm:$0xff]
  %v3438 = vld [vmem:[%s0 + $0x10e] sm:$0xff]
  %v3439 = vld [vmem:[%s0 + $0x116] sm:$0xff]
  %v3440 = vld [vmem:[%s0 + $0x11e] sm:$0xff]
  %v3441 = vld [vmem:[%s0 + $0x126] sm:$0xff]
  %v3442 = vld [vmem:[%s0 + $0x12e] sm:$0xff]
  %v3443 = vld [vmem:[%s0 + $0x136] sm:$0xff]
  %v3444 = vld [vmem:[%s0 + $0x13e] sm:$0xff]
  %v3445 = vld [vmem:[%s1 + $0x20] sm:$0xf]
  %v3447 = vsel %vm121, %v3409, 0
  %v3450 = vsel %vm121, %v3410, 0
  %v3453 = vsel %vm121, %v3411, 0
  %v3456 = vsel %vm121, %v3412, 0
  %v3459 = vsel %vm121, %v3413, 0
  %v3462 = vsel %vm121, %v3414, 0
  %v3465 = vsel %vm121, %v3415, 0
  %v3468 = vsel %vm121, %v3416, 0
  %v3471 = vsel %vm121, %v3417, 0
  %v3474 = vsel %vm121, %v3418, 0
  %v3477 = vsel %vm121, %v3419, 0
  %v3480 = vsel %vm121, %v3420, 0
  %v3483 = vsel %vm121, %v3421, 0
  %v3486 = vsel %vm121, %v3422, 0
  %v3489 = vsel %vm121, %v3423, 0
  %v3492 = vsel %vm121, %v3424, 0
  %v3495 = vsel %vm121, %v3425, 0
  %v3498 = vsel %vm121, %v3426, 0
  %v3501 = vsel %vm121, %v3427, 0
  %v3504 = vsel %vm121, %v3428, 0
  %v3507 = vsel %vm121, %v3429, 0
  %v3510 = vsel %vm121, %v3430, 0
  %v3513 = vsel %vm121, %v3431, 0
  %v3516 = vsel %vm121, %v3432, 0
  %v3519 = vsel %vm121, %v3433, 0
  %v3522 = vsel %vm121, %v3434, 0
  %v3525 = vsel %vm121, %v3435, 0
  %v3528 = vsel %vm121, %v3436, 0
  %v3531 = vsel %vm121, %v3437, 0
  %v3534 = vsel %vm121, %v3438, 0
  %v3537 = vsel %vm121, %v3439, 0
  %v3540 = vsel %vm121, %v3440, 0
  %v3543 = vsel %vm121, %v3441, 0
  %v3546 = vsel %vm121, %v3442, 0
  %v3549 = vsel %vm121, %v3443, 0
  %v3552 = vsel %vm121, %v3444, 0
  %v3555 = vsel %vm230, %v3445, 0
  %3557 = vmatprep.subr.mxu0 0.0
  %3558 = vmatpush1.msra.mxu0 %v3555
  %3559 = vmatprep.subr.mxu0 0.0
  %3560 = vmatpush1.msra.mxu0 0.0
  %3561 = vmatprep.subr.mxu0 0.0
  %3562 = vmatpush1.msra.mxu0 0.0
  %3563 = vmatprep.subr.mxu0 0.0
  %3564 = vmatpush1.msra.mxu0 0.0
  %3565 = vmatprep.subr.mxu0 0.0
  %3566 = vmatpush1.msra.mxu0 0.0
  %3567 = vmatprep.subr.mxu0 0.0
  %3568 = vmatpush1.msra.mxu0 0.0
  %3569 = vmatprep.subr.mxu0 0.0
  %3570 = vmatpush1.msra.mxu0 0.0
  %3571 = vmatprep.subr.mxu0 0.0
  %3572 = vmatpush1.msra.mxu0 0.0
  %3573 = vmatprep.subr.mxu0 0.0
  %3574 = vmatpush1.msra.mxu0 0.0
  %3575 = vmatprep.subr.mxu0 0.0
  %3576 = vmatpush1.msra.mxu0 0.0
  %3577 = vmatprep.subr.mxu0 0.0
  %3578 = vmatpush1.msra.mxu0 0.0
  %3579 = vmatprep.subr.mxu0 0.0
  %3580 = vmatpush1.msra.mxu0 0.0
  %3581 = vmatprep.subr.mxu0 0.0
  %3582 = vmatpush1.msra.mxu0 0.0
  %3583 = vmatprep.subr.mxu0 0.0
  %3584 = vmatpush1.msra.mxu0 0.0
  %3585 = vmatprep.subr.mxu0 0.0
  %3586 = vmatpush1.msra.mxu0 0.0
  %3587 = vmatprep.subr.mxu0 0.0
  %3588 = vmatpush1.msra.mxu0 0.0
  %3589 = vmatprep.subr.mxu0 0.0
  %3590 = vmatpush1.msra.mxu0 0.0
  %3591 = vmatprep.subr.mxu0 0.0
  %3592 = vmatpush1.msra.mxu0 0.0
  %3593 = vmatprep.subr.mxu0 0.0
  %3594 = vmatpush1.msra.mxu0 0.0
  %3595 = vmatprep.subr.mxu0 0.0
  %3596 = vmatpush1.msra.mxu0 0.0
  %3597 = vmatprep.subr.mxu0 0.0
  %3598 = vmatpush1.msra.mxu0 0.0
  %3599 = vmatprep.subr.mxu0 0.0
  %3600 = vmatpush1.msra.mxu0 0.0
  %3601 = vmatprep.subr.mxu0 0.0
  %3602 = vmatpush1.msra.mxu0 0.0
  %3603 = vmatprep.subr.mxu0 0.0
  %3604 = vmatpush1.msra.mxu0 0.0
  %3605 = vmatprep.subr.mxu0 0.0
  %3606 = vmatpush1.msra.mxu0 0.0
  %3607 = vmatprep.subr.mxu0 0.0
  %3608 = vmatpush1.msra.mxu0 0.0
  %3609 = vmatprep.subr.mxu0 0.0
  %3610 = vmatpush1.msra.mxu0 0.0
  %3611 = vmatprep.subr.mxu0 0.0
  %3612 = vmatpush1.msra.mxu0 0.0
  %3613 = vmatprep.subr.mxu0 0.0
  %3614 = vmatpush1.msra.mxu0 0.0
  %3615 = vmatprep.subr.mxu0 0.0
  %3616 = vmatpush1.msra.mxu0 0.0
  %3617 = vmatprep.subr.mxu0 0.0
  %3618 = vmatpush1.msra.mxu0 0.0
  %3619 = vmatprep.subr.mxu0 0.0
  %3620 = vmatpush1.msra.mxu0 0.0
  %3621 = vmatprep.mubr.f32.mxu0 0.0
  %3622 = vmatmul.mubr.f32.gmra.mrb[0].mxu0 %v3447
  %v3623 = vpop.f32.mrb[0].mxu0
  %v3624 = vadd.f32 0.0, %v3623
  %v3625 = vpop.f32.mrb[0].mxu0
  %3626 = vmatprep.mubr.f32.mxu0 0.0
  %3627 = vmatmul.mubr.f32.gmra.mrb[0].mxu0 %v3450
  %v3628 = vpop.f32.mrb[0].mxu0
  %v3629 = vadd.f32 0.0, %v3628
  %v3630 = vpop.f32.mrb[0].mxu0
  %3631 = vmatprep.mubr.f32.mxu0 0.0
  %3632 = vmatmul.mubr.f32.gmra.mrb[0].mxu0 %v3453
  %v3633 = vpop.f32.mrb[0].mxu0
  %v3634 = vadd.f32 0.0, %v3633
  %v3635 = vpop.f32.mrb[0].mxu0
  %3636 = vmatprep.mubr.f32.mxu0 0.0
  %3637 = vmatmul.mubr.f32.gmra.mrb[0].mxu0 %v3456
  %v3638 = vpop.f32.mrb[0].mxu0
  %v3639 = vadd.f32 0.0, %v3638
  %v3640 = vpop.f32.mrb[0].mxu0
  %3641 = vmatprep.mubr.f32.mxu0 0.0
  %3642 = vmatmul.mubr.f32.gmra.mrb[0].mxu0 %v3459
  %v3643 = vpop.f32.mrb[0].mxu0
  %v3644 = vadd.f32 0.0, %v3643
  %v3645 = vpop.f32.mrb[0].mxu0
  %3646 = vmatprep.mubr.f32.mxu0 0.0
  %3647 = vmatmul.mubr.f32.gmra.mrb[0].mxu0 %v3462
  %v3648 = vpop.f32.mrb[0].mxu0
  %v3649 = vadd.f32 0.0, %v3648
  %v3650 = vpop.f32.mrb[0].mxu0
  %3651 = vmatprep.mubr.f32.mxu0 0.0
  %3652 = vmatmul.mubr.f32.gmra.mrb[0].mxu0 %v3465
  %v3653 = vpop.f32.mrb[0].mxu0
  %v3654 = vadd.f32 0.0, %v3653
  %v3655 = vpop.f32.mrb[0].mxu0
  %3656 = vmatprep.mubr.f32.mxu0 0.0
  %3657 = vmatmul.mubr.f32.gmra.mrb[0].mxu0 %v3468
  %v3658 = vpop.f32.mrb[0].mxu0
  %v3659 = vadd.f32 0.0, %v3658
  %v3660 = vpop.f32.mrb[0].mxu0
  %3661 = vmatprep.mubr.f32.mxu0 0.0
  %3662 = vmatmul.mubr.f32.gmra.mrb[0].mxu0 %v3471
  %v3663 = vpop.f32.mrb[0].mxu0
  %v3664 = vadd.f32 0.0, %v3663
  %v3665 = vpop.f32.mrb[0].mxu0
  %3666 = vmatprep.mubr.f32.mxu0 0.0
  %3667 = vmatmul.mubr.f32.gmra.mrb[0].mxu0 %v3474
  %v3668 = vpop.f32.mrb[0].mxu0
  %v3669 = vadd.f32 0.0, %v3668
  %v3670 = vpop.f32.mrb[0].mxu0
  %3671 = vmatprep.mubr.f32.mxu0 0.0
  %3672 = vmatmul.mubr.f32.gmra.mrb[0].mxu0 %v3477
  %v3673 = vpop.f32.mrb[0].mxu0
  %v3674 = vadd.f32 0.0, %v3673
  %v3675 = vpop.f32.mrb[0].mxu0
  %3676 = vmatprep.mubr.f32.mxu0 0.0
  %3677 = vmatmul.mubr.f32.gmra.mrb[0].mxu0 %v3480
  %v3678 = vpop.f32.mrb[0].mxu0
  %v3679 = vadd.f32 0.0, %v3678
  %v3680 = vpop.f32.mrb[0].mxu0
  %3681 = vmatprep.mubr.f32.mxu0 0.0
  %3682 = vmatmul.mubr.f32.gmra.mrb[0].mxu0 %v3483
  %v3683 = vpop.f32.mrb[0].mxu0
  %v3684 = vadd.f32 0.0, %v3683
  %v3685 = vpop.f32.mrb[0].mxu0
  %3686 = vmatprep.mubr.f32.mxu0 0.0
  %3687 = vmatmul.mubr.f32.gmra.mrb[0].mxu0 %v3486
  %v3688 = vpop.f32.mrb[0].mxu0
  %v3689 = vadd.f32 0.0, %v3688
  %v3690 = vpop.f32.mrb[0].mxu0
  %3691 = vmatprep.mubr.f32.mxu0 0.0
  %3692 = vmatmul.mubr.f32.gmra.mrb[0].mxu0 %v3489
  %v3693 = vpop.f32.mrb[0].mxu0
  %v3694 = vadd.f32 0.0, %v3693
  %v3695 = vpop.f32.mrb[0].mxu0
  %3696 = vmatprep.mubr.f32.mxu0 0.0
  %3697 = vmatmul.mubr.f32.gmra.mrb[0].mxu0 %v3492
  %v3698 = vpop.f32.mrb[0].mxu0
  %v3699 = vadd.f32 0.0, %v3698
  %v3700 = vpop.f32.mrb[0].mxu0
  %3701 = vmatprep.mubr.f32.mxu0 0.0
  %3702 = vmatmul.mubr.f32.gmra.mrb[0].mxu0 %v3495
  %v3703 = vpop.f32.mrb[0].mxu0
  %v3704 = vadd.f32 0.0, %v3703
  %v3705 = vpop.f32.mrb[0].mxu0
  %3706 = vmatprep.mubr.f32.mxu0 0.0
  %3707 = vmatmul.mubr.f32.gmra.mrb[0].mxu0 %v3498
  %v3708 = vpop.f32.mrb[0].mxu0
  %v3709 = vadd.f32 0.0, %v3708
  %v3710 = vpop.f32.mrb[0].mxu0
  %3711 = vmatprep.mubr.f32.mxu0 0.0
  %3712 = vmatmul.mubr.f32.gmra.mrb[0].mxu0 %v3501
  %v3713 = vpop.f32.mrb[0].mxu0
  %v3714 = vadd.f32 0.0, %v3713
  %v3715 = vpop.f32.mrb[0].mxu0
  %3716 = vmatprep.mubr.f32.mxu0 0.0
  %3717 = vmatmul.mubr.f32.gmra.mrb[0].mxu0 %v3504
  %v3718 = vpop.f32.mrb[0].mxu0
  %v3719 = vadd.f32 0.0, %v3718
  %v3720 = vpop.f32.mrb[0].mxu0
  %3721 = vmatprep.mubr.f32.mxu0 0.0
  %3722 = vmatmul.mubr.f32.gmra.mrb[0].mxu0 %v3507
  %v3723 = vpop.f32.mrb[0].mxu0
  %v3724 = vadd.f32 0.0, %v3723
  %v3725 = vpop.f32.mrb[0].mxu0
  %3726 = vmatprep.mubr.f32.mxu0 0.0
  %3727 = vmatmul.mubr.f32.gmra.mrb[0].mxu0 %v3510
  %v3728 = vpop.f32.mrb[0].mxu0
  %v3729 = vadd.f32 0.0, %v3728
  %v3730 = vpop.f32.mrb[0].mxu0
  %3731 = vmatprep.mubr.f32.mxu0 0.0
  %3732 = vmatmul.mubr.f32.gmra.mrb[0].mxu0 %v3513
  %v3733 = vpop.f32.mrb[0].mxu0
  %v3734 = vadd.f32 0.0, %v3733
  %v3735 = vpop.f32.mrb[0].mxu0
  %3736 = vmatprep.mubr.f32.mxu0 0.0
  %3737 = vmatmul.mubr.f32.gmra.mrb[0].mxu0 %v3516
  %v3738 = vpop.f32.mrb[0].mxu0
  %v3739 = vadd.f32 0.0, %v3738
  %v3740 = vpop.f32.mrb[0].mxu0
  %3741 = vmatprep.mubr.f32.mxu0 0.0
  %3742 = vmatmul.mubr.f32.gmra.mrb[0].mxu0 %v3519
  %v3743 = vpop.f32.mrb[0].mxu0
  %v3744 = vadd.f32 0.0, %v3743
  %v3745 = vpop.f32.mrb[0].mxu0
  %3746 = vmatprep.mubr.f32.mxu0 0.0
  %3747 = vmatmul.mubr.f32.gmra.mrb[0].mxu0 %v3522
  %v3748 = vpop.f32.mrb[0].mxu0
  %v3749 = vadd.f32 0.0, %v3748
  %v3750 = vpop.f32.mrb[0].mxu0
  %3751 = vmatprep.mubr.f32.mxu0 0.0
  %3752 = vmatmul.mubr.f32.gmra.mrb[0].mxu0 %v3525
  %v3753 = vpop.f32.mrb[0].mxu0
  %v3754 = vadd.f32 0.0, %v3753
  %v3755 = vpop.f32.mrb[0].mxu0
  %3756 = vmatprep.mubr.f32.mxu0 0.0
  %3757 = vmatmul.mubr.f32.gmra.mrb[0].mxu0 %v3528
  %v3758 = vpop.f32.mrb[0].mxu0
  %v3759 = vadd.f32 0.0, %v3758
  %v3760 = vpop.f32.mrb[0].mxu0
  %3761 = vmatprep.mubr.f32.mxu0 0.0
  %3762 = vmatmul.mubr.f32.gmra.mrb[0].mxu0 %v3531
  %v3763 = vpop.f32.mrb[0].mxu0
  %v3764 = vadd.f32 0.0, %v3763
  %v3765 = vpop.f32.mrb[0].mxu0
  %3766 = vmatprep.mubr.f32.mxu0 0.0
  %3767 = vmatmul.mubr.f32.gmra.mrb[0].mxu0 %v3534
  %v3768 = vpop.f32.mrb[0].mxu0
  %v3769 = vadd.f32 0.0, %v3768
  %v3770 = vpop.f32.mrb[0].mxu0
  %3771 = vmatprep.mubr.f32.mxu0 0.0
  %3772 = vmatmul.mubr.f32.gmra.mrb[0].mxu0 %v3537
  %v3773 = vpop.f32.mrb[0].mxu0
  %v3774 = vadd.f32 0.0, %v3773
  %v3775 = vpop.f32.mrb[0].mxu0
  %3776 = vmatprep.mubr.f32.mxu0 0.0
  %3777 = vmatmul.mubr.f32.gmra.mrb[0].mxu0 %v3540
  %v3778 = vpop.f32.mrb[0].mxu0
  %v3779 = vadd.f32 0.0, %v3778
  %v3780 = vpop.f32.mrb[0].mxu0
  %3781 = vmatprep.mubr.f32.mxu0 0.0
  %3782 = vmatmul.mubr.f32.gmra.mrb[0].mxu0 %v3543
  %v3783 = vpop.f32.mrb[0].mxu0
  %v3784 = vadd.f32 0.0, %v3783
  %v3785 = vpop.f32.mrb[0].mxu0
  %3786 = vmatprep.mubr.f32.mxu0 0.0
  %3787 = vmatmul.mubr.f32.gmra.mrb[0].mxu0 %v3546
  %v3788 = vpop.f32.mrb[0].mxu0
  %v3789 = vadd.f32 0.0, %v3788
  %v3790 = vpop.f32.mrb[0].mxu0
  %3791 = vmatprep.mubr.f32.mxu0 0.0
  %3792 = vmatmul.mubr.f32.gmra.mrb[0].mxu0 %v3549
  %v3793 = vpop.f32.mrb[0].mxu0
  %v3794 = vadd.f32 0.0, %v3793
  %v3795 = vpop.f32.mrb[0].mxu0
  %3796 = vmatprep.mubr.f32.mxu0 0.0
  %3797 = vmatmul.mubr.f32.gmra.mrb[0].mxu0 %v3552
  %v3798 = vpop.f32.mrb[0].mxu0
  %v3799 = vadd.f32 0.0, %v3798
  %v3800 = vpop.f32.mrb[0].mxu0
  %3801 = vdwg.mxu0
  %v3802 = vadd.f32 %v3373, %v3624
  %v3803 = vadd.f32 %v3374, %v3629
  %v3804 = vadd.f32 %v3375, %v3634
  %v3805 = vadd.f32 %v3376, %v3639
  %v3806 = vadd.f32 %v3377, %v3644
  %v3807 = vadd.f32 %v3378, %v3649
  %v3808 = vadd.f32 %v3379, %v3654
  %v3809 = vadd.f32 %v3380, %v3659
  %v3810 = vadd.f32 %v3381, %v3664
  %v3811 = vadd.f32 %v3382, %v3669
  %v3812 = vadd.f32 %v3383, %v3674
  %v3813 = vadd.f32 %v3384, %v3679
  %v3814 = vadd.f32 %v3385, %v3684
  %v3815 = vadd.f32 %v3386, %v3689
  %v3816 = vadd.f32 %v3387, %v3694
  %v3817 = vadd.f32 %v3388, %v3699
  %v3818 = vadd.f32 %v3389, %v3704
  %v3819 = vadd.f32 %v3390, %v3709
  %v3820 = vadd.f32 %v3391, %v3714
  %v3821 = vadd.f32 %v3392, %v3719
  %v3822 = vadd.f32 %v3393, %v3724
  %v3823 = vadd.f32 %v3394, %v3729
  %v3824 = vadd.f32 %v3395, %v3734
  %v3825 = vadd.f32 %v3396, %v3739
  %v3826 = vadd.f32 %v3397, %v3744
  %v3827 = vadd.f32 %v3398, %v3749
  %v3828 = vadd.f32 %v3399, %v3754
  %v3829 = vadd.f32 %v3400, %v3759
  %v3830 = vadd.f32 %v3401, %v3764
  %v3831 = vadd.f32 %v3402, %v3769
  %v3832 = vadd.f32 %v3403, %v3774
  %v3833 = vadd.f32 %v3404, %v3779
  %v3834 = vadd.f32 %v3405, %v3784
  %v3835 = vadd.f32 %v3406, %v3789
  %v3836 = vadd.f32 %v3407, %v3794
  %v3837 = vadd.f32 %v3408, %v3799
  %v3838 = vld [vmem:[%s2] sm:$0x1]
  %v3840 = vlaneseq
  %v3841 = vshrl.u32 %v3840, 7
  %v3842 = vsub.s32 0, %v3841
  %v3843 = vrot.slane %v3838, %v3842
  %v3845 = vadd.f32 %v3802, %v3843
  %v3846 = vadd.f32 %v3803, %v3843
  %v3847 = vadd.f32 %v3804, %v3843
  %v3848 = vadd.f32 %v3805, %v3843
  %v3849 = vadd.f32 %v3806, %v3843
  %v3850 = vadd.f32 %v3807, %v3843
  %v3851 = vadd.f32 %v3808, %v3843
  %v3852 = vadd.f32 %v3809, %v3843
  %v3853 = vadd.f32 %v3810, %v3843
  %v3854 = vadd.f32 %v3811, %v3843
  %v3855 = vadd.f32 %v3812, %v3843
  %v3856 = vadd.f32 %v3813, %v3843
  %v3857 = vadd.f32 %v3814, %v3843
  %v3858 = vadd.f32 %v3815, %v3843
  %v3859 = vadd.f32 %v3816, %v3843
  %v3860 = vadd.f32 %v3817, %v3843
  %v3861 = vadd.f32 %v3818, %v3843
  %v3862 = vadd.f32 %v3819, %v3843
  %v3863 = vadd.f32 %v3820, %v3843
  %v3864 = vadd.f32 %v3821, %v3843
  %v3865 = vadd.f32 %v3822, %v3843
  %v3866 = vadd.f32 %v3823, %v3843
  %v3867 = vadd.f32 %v3824, %v3843
  %v3868 = vadd.f32 %v3825, %v3843
  %v3869 = vadd.f32 %v3826, %v3843
  %v3870 = vadd.f32 %v3827, %v3843
  %v3871 = vadd.f32 %v3828, %v3843
  %v3872 = vadd.f32 %v3829, %v3843
  %v3873 = vadd.f32 %v3830, %v3843
  %v3874 = vadd.f32 %v3831, %v3843
  %v3875 = vadd.f32 %v3832, %v3843
  %v3876 = vadd.f32 %v3833, %v3843
  %v3877 = vadd.f32 %v3834, %v3843
  %v3878 = vadd.f32 %v3835, %v3843
  %v3879 = vadd.f32 %v3836, %v3843
  %v3880 = vadd.f32 %v3837, %v3843
  %v3881 = vmax.f32 %v3845, 0.0
  %v3882 = vmax.f32 %v3846, 0.0
  %v3883 = vmax.f32 %v3847, 0.0
  %v3884 = vmax.f32 %v3848, 0.0
  %v3885 = vmax.f32 %v3849, 0.0
  %v3886 = vmax.f32 %v3850, 0.0
  %v3887 = vmax.f32 %v3851, 0.0
  %v3888 = vmax.f32 %v3852, 0.0
  %v3889 = vmax.f32 %v3853, 0.0
  %v3890 = vmax.f32 %v3854, 0.0
  %v3891 = vmax.f32 %v3855, 0.0
  %v3892 = vmax.f32 %v3856, 0.0
  %v3893 = vmax.f32 %v3857, 0.0
  %v3894 = vmax.f32 %v3858, 0.0
  %v3895 = vmax.f32 %v3859, 0.0
  %v3896 = vmax.f32 %v3860, 0.0
  %v3897 = vmax.f32 %v3861, 0.0
  %v3898 = vmax.f32 %v3862, 0.0
  %v3899 = vmax.f32 %v3863, 0.0
  %v3900 = vmax.f32 %v3864, 0.0
  %v3901 = vmax.f32 %v3865, 0.0
  %v3902 = vmax.f32 %v3866, 0.0
  %v3903 = vmax.f32 %v3867, 0.0
  %v3904 = vmax.f32 %v3868, 0.0
  %v3905 = vmax.f32 %v3869, 0.0
  %v3906 = vmax.f32 %v3870, 0.0
  %v3907 = vmax.f32 %v3871, 0.0
  %v3908 = vmax.f32 %v3872, 0.0
  %v3909 = vmax.f32 %v3873, 0.0
  %v3910 = vmax.f32 %v3874, 0.0
  %v3911 = vmax.f32 %v3875, 0.0
  %v3912 = vmax.f32 %v3876, 0.0
  %v3913 = vmax.f32 %v3877, 0.0
  %v3914 = vmax.f32 %v3878, 0.0
  %v3915 = vmax.f32 %v3879, 0.0
  %v3916 = vmax.f32 %v3880, 0.0
  %vm3917 = vcmask 130048
  %3918 = vst.msk [vmem:[#allocation2] sm:$0xff] %vm3917, %v3881
  %3919 = vst.msk [vmem:[#allocation2 + $0x8] sm:$0xff] %vm3917, %v3882
  %3920 = vst.msk [vmem:[#allocation2 + $0x10] sm:$0xff] %vm3917, %v3883
  %3921 = vst.msk [vmem:[#allocation2 + $0x18] sm:$0xff] %vm3917, %v3884
  %3922 = vst.msk [vmem:[#allocation2 + $0x20] sm:$0xff] %vm3917, %v3885
  %3923 = vst.msk [vmem:[#allocation2 + $0x28] sm:$0xff] %vm3917, %v3886
  %3924 = vst.msk [vmem:[#allocation2 + $0x30] sm:$0xff] %vm3917, %v3887
  %3925 = vst.msk [vmem:[#allocation2 + $0x38] sm:$0xff] %vm3917, %v3888
  %3926 = vst.msk [vmem:[#allocation2 + $0x40] sm:$0xff] %vm3917, %v3889
  %3927 = vst.msk [vmem:[#allocation2 + $0x48] sm:$0xff] %vm3917, %v3890
  %3928 = vst.msk [vmem:[#allocation2 + $0x50] sm:$0xff] %vm3917, %v3891
  %3929 = vst.msk [vmem:[#allocation2 + $0x58] sm:$0xff] %vm3917, %v3892
  %3930 = vst.msk [vmem:[#allocation2 + $0x60] sm:$0xff] %vm3917, %v3893
  %3931 = vst.msk [vmem:[#allocation2 + $0x68] sm:$0xff] %vm3917, %v3894
  %3932 = vst.msk [vmem:[#allocation2 + $0x70] sm:$0xff] %vm3917, %v3895
  %3933 = vst.msk [vmem:[#allocation2 + $0x78] sm:$0xff] %vm3917, %v3896
  %3934 = vst.msk [vmem:[#allocation2 + $0x80] sm:$0xff] %vm3917, %v3897
  %3935 = vst.msk [vmem:[#allocation2 + $0x88] sm:$0xff] %vm3917, %v3898
  %3936 = vst.msk [vmem:[#allocation2 + $0x90] sm:$0xff] %vm3917, %v3899
  %3937 = vst.msk [vmem:[#allocation2 + $0x98] sm:$0xff] %vm3917, %v3900
  %3938 = vst.msk [vmem:[#allocation2 + $0xa0] sm:$0xff] %vm3917, %v3901
  %3939 = vst.msk [vmem:[#allocation2 + $0xa8] sm:$0xff] %vm3917, %v3902
  %3940 = vst.msk [vmem:[#allocation2 + $0xb0] sm:$0xff] %vm3917, %v3903
  %3941 = vst.msk [vmem:[#allocation2 + $0xb8] sm:$0xff] %vm3917, %v3904
  %3942 = vst.msk [vmem:[#allocation2 + $0xc0] sm:$0xff] %vm3917, %v3905
  %3943 = vst.msk [vmem:[#allocation2 + $0xc8] sm:$0xff] %vm3917, %v3906
  %3944 = vst.msk [vmem:[#allocation2 + $0xd0] sm:$0xff] %vm3917, %v3907
  %3945 = vst.msk [vmem:[#allocation2 + $0xd8] sm:$0xff] %vm3917, %v3908
  %3946 = vst.msk [vmem:[#allocation2 + $0xe0] sm:$0xff] %vm3917, %v3909
  %3947 = vst.msk [vmem:[#allocation2 + $0xe8] sm:$0xff] %vm3917, %v3910
  %3948 = vst.msk [vmem:[#allocation2 + $0xf0] sm:$0xff] %vm3917, %v3911
  %3949 = vst.msk [vmem:[#allocation2 + $0xf8] sm:$0xff] %vm3917, %v3912
  %3950 = vst.msk [vmem:[#allocation2 + $0x100] sm:$0xff] %vm3917, %v3913
  %3951 = vst.msk [vmem:[#allocation2 + $0x108] sm:$0xff] %vm3917, %v3914
  %3952 = vst.msk [vmem:[#allocation2 + $0x110] sm:$0xff] %vm3917, %v3915
  %3953 = vst.msk [vmem:[#allocation2 + $0x118] sm:$0xff] %vm3917, %v3916
  %v3954 = vld [vmem:[#allocation2] sm:$0xff]
  %v3955 = vld [vmem:[#allocation2 + $0x8] sm:$0xff]
  %v3956 = vld [vmem:[#allocation2 + $0x10] sm:$0xff]
  %v3957 = vld [vmem:[#allocation2 + $0x18] sm:$0xff]
  %v3958 = vld [vmem:[#allocation2 + $0x20] sm:$0xff]
  %v3959 = vld [vmem:[#allocation2 + $0x28] sm:$0xff]
  %v3960 = vld [vmem:[#allocation2 + $0x30] sm:$0xff]
  %v3961 = vld [vmem:[#allocation2 + $0x38] sm:$0xff]
  %v3962 = vld [vmem:[#allocation2 + $0x40] sm:$0xff]
  %v3963 = vld [vmem:[#allocation2 + $0x48] sm:$0xff]
  %v3964 = vld [vmem:[#allocation2 + $0x50] sm:$0xff]
  %v3965 = vld [vmem:[#allocation2 + $0x58] sm:$0xff]
  %v3966 = vld [vmem:[#allocation2 + $0x60] sm:$0xff]
  %v3967 = vld [vmem:[#allocation2 + $0x68] sm:$0xff]
  %v3968 = vld [vmem:[#allocation2 + $0x70] sm:$0xff]
  %v3969 = vld [vmem:[#allocation2 + $0x78] sm:$0xff]
  %v3970 = vld [vmem:[#allocation2 + $0x80] sm:$0xff]
  %v3971 = vld [vmem:[#allocation2 + $0x88] sm:$0xff]
  %v3972 = vld [vmem:[#allocation2 + $0x90] sm:$0xff]
  %v3973 = vld [vmem:[#allocation2 + $0x98] sm:$0xff]
  %v3974 = vld [vmem:[#allocation2 + $0xa0] sm:$0xff]
  %v3975 = vld [vmem:[#allocation2 + $0xa8] sm:$0xff]
  %v3976 = vld [vmem:[#allocation2 + $0xb0] sm:$0xff]
  %v3977 = vld [vmem:[#allocation2 + $0xb8] sm:$0xff]
  %v3978 = vld [vmem:[#allocation2 + $0xc0] sm:$0xff]
  %v3979 = vld [vmem:[#allocation2 + $0xc8] sm:$0xff]
  %v3980 = vld [vmem:[#allocation2 + $0xd0] sm:$0xff]
  %v3981 = vld [vmem:[#allocation2 + $0xd8] sm:$0xff]
  %v3982 = vld [vmem:[#allocation2 + $0xe0] sm:$0xff]
  %v3983 = vld [vmem:[#allocation2 + $0xe8] sm:$0xff]
  %v3984 = vld [vmem:[#allocation2 + $0xf0] sm:$0xff]
  %v3985 = vld [vmem:[#allocation2 + $0xf8] sm:$0xff]
  %v3986 = vld [vmem:[#allocation2 + $0x100] sm:$0xff]
  %v3987 = vld [vmem:[#allocation2 + $0x108] sm:$0x1f]
  %v3988 = vld [vmem:[#allocation2 + $0x1] sm:$0xff]
  %v3989 = vld [vmem:[#allocation2 + $0x9] sm:$0xff]
  %v3990 = vld [vmem:[#allocation2 + $0x11] sm:$0xff]
  %v3991 = vld [vmem:[#allocation2 + $0x19] sm:$0xff]
  %v3992 = vld [vmem:[#allocation2 + $0x21] sm:$0xff]
  %v3993 = vld [vmem:[#allocation2 + $0x29] sm:$0xff]
  %v3994 = vld [vmem:[#allocation2 + $0x31] sm:$0xff]
  %v3995 = vld [vmem:[#allocation2 + $0x39] sm:$0xff]
  %v3996 = vld [vmem:[#allocation2 + $0x41] sm:$0xff]
  %v3997 = vld [vmem:[#allocation2 + $0x49] sm:$0xff]
  %v3998 = vld [vmem:[#allocation2 + $0x51] sm:$0xff]
  %v3999 = vld [vmem:[#allocation2 + $0x59] sm:$0xff]
  %v4000 = vld [vmem:[#allocation2 + $0x61] sm:$0xff]
  %v4001 = vld [vmem:[#allocation2 + $0x69] sm:$0xff]
  %v4002 = vld [vmem:[#allocation2 + $0x71] sm:$0xff]
  %v4003 = vld [vmem:[#allocation2 + $0x79] sm:$0xff]
  %v4004 = vld [vmem:[#allocation2 + $0x81] sm:$0xff]
  %v4005 = vld [vmem:[#allocation2 + $0x89] sm:$0xff]
  %v4006 = vld [vmem:[#allocation2 + $0x91] sm:$0xff]
  %v4007 = vld [vmem:[#allocation2 + $0x99] sm:$0xff]
  %v4008 = vld [vmem:[#allocation2 + $0xa1] sm:$0xff]
  %v4009 = vld [vmem:[#allocation2 + $0xa9] sm:$0xff]
  %v4010 = vld [vmem:[#allocation2 + $0xb1] sm:$0xff]
  %v4011 = vld [vmem:[#allocation2 + $0xb9] sm:$0xff]
  %v4012 = vld [vmem:[#allocation2 + $0xc1] sm:$0xff]
  %v4013 = vld [vmem:[#allocation2 + $0xc9] sm:$0xff]
  %v4014 = vld [vmem:[#allocation2 + $0xd1] sm:$0xff]
  %v4015 = vld [vmem:[#allocation2 + $0xd9] sm:$0xff]
  %v4016 = vld [vmem:[#allocation2 + $0xe1] sm:$0xff]
  %v4017 = vld [vmem:[#allocation2 + $0xe9] sm:$0xff]
  %v4018 = vld [vmem:[#allocation2 + $0xf1] sm:$0xff]
  %v4019 = vld [vmem:[#allocation2 + $0xf9] sm:$0xff]
  %v4020 = vld [vmem:[#allocation2 + $0x101] sm:$0xff]
  %v4021 = vld [vmem:[#allocation2 + $0x109] sm:$0x1f]
  %v4022 = vmax.f32 %v3954, %v3988
  %v4023 = vmax.f32 %v3955, %v3989
  %v4024 = vmax.f32 %v3956, %v3990
  %v4025 = vmax.f32 %v3957, %v3991
  %v4026 = vmax.f32 %v3958, %v3992
  %v4027 = vmax.f32 %v3959, %v3993
  %v4028 = vmax.f32 %v3960, %v3994
  %v4029 = vmax.f32 %v3961, %v3995
  %v4030 = vmax.f32 %v3962, %v3996
  %v4031 = vmax.f32 %v3963, %v3997
  %v4032 = vmax.f32 %v3964, %v3998
  %v4033 = vmax.f32 %v3965, %v3999
  %v4034 = vmax.f32 %v3966, %v4000
  %v4035 = vmax.f32 %v3967, %v4001
  %v4036 = vmax.f32 %v3968, %v4002
  %v4037 = vmax.f32 %v3969, %v4003
  %v4038 = vmax.f32 %v3970, %v4004
  %v4039 = vmax.f32 %v3971, %v4005
  %v4040 = vmax.f32 %v3972, %v4006
  %v4041 = vmax.f32 %v3973, %v4007
  %v4042 = vmax.f32 %v3974, %v4008
  %v4043 = vmax.f32 %v3975, %v4009
  %v4044 = vmax.f32 %v3976, %v4010
  %v4045 = vmax.f32 %v3977, %v4011
  %v4046 = vmax.f32 %v3978, %v4012
  %v4047 = vmax.f32 %v3979, %v4013
  %v4048 = vmax.f32 %v3980, %v4014
  %v4049 = vmax.f32 %v3981, %v4015
  %v4050 = vmax.f32 %v3982, %v4016
  %v4051 = vmax.f32 %v3983, %v4017
  %v4052 = vmax.f32 %v3984, %v4018
  %v4053 = vmax.f32 %v3985, %v4019
  %v4054 = vmax.f32 %v3986, %v4020
  %v4055 = vmax.f32 %v3987, %v4021
  %v4056 = vld [vmem:[#allocation2 + $0x12] sm:$0xff]
  %v4057 = vld [vmem:[#allocation2 + $0x1a] sm:$0xff]
  %v4058 = vld [vmem:[#allocation2 + $0x22] sm:$0xff]
  %v4059 = vld [vmem:[#allocation2 + $0x2a] sm:$0xff]
  %v4060 = vld [vmem:[#allocation2 + $0x32] sm:$0xff]
  %v4061 = vld [vmem:[#allocation2 + $0x3a] sm:$0xff]
  %v4062 = vld [vmem:[#allocation2 + $0x42] sm:$0xff]
  %v4063 = vld [vmem:[#allocation2 + $0x4a] sm:$0xff]
  %v4064 = vld [vmem:[#allocation2 + $0x52] sm:$0xff]
  %v4065 = vld [vmem:[#allocation2 + $0x5a] sm:$0xff]
  %v4066 = vld [vmem:[#allocation2 + $0x62] sm:$0xff]
  %v4067 = vld [vmem:[#allocation2 + $0x6a] sm:$0xff]
  %v4068 = vld [vmem:[#allocation2 + $0x72] sm:$0xff]
  %v4069 = vld [vmem:[#allocation2 + $0x7a] sm:$0xff]
  %v4070 = vld [vmem:[#allocation2 + $0x82] sm:$0xff]
  %v4071 = vld [vmem:[#allocation2 + $0x8a] sm:$0xff]
  %v4072 = vld [vmem:[#allocation2 + $0x92] sm:$0xff]
  %v4073 = vld [vmem:[#allocation2 + $0x9a] sm:$0xff]
  %v4074 = vld [vmem:[#allocation2 + $0xa2] sm:$0xff]
  %v4075 = vld [vmem:[#allocation2 + $0xaa] sm:$0xff]
  %v4076 = vld [vmem:[#allocation2 + $0xb2] sm:$0xff]
  %v4077 = vld [vmem:[#allocation2 + $0xba] sm:$0xff]
  %v4078 = vld [vmem:[#allocation2 + $0xc2] sm:$0xff]
  %v4079 = vld [vmem:[#allocation2 + $0xca] sm:$0xff]
  %v4080 = vld [vmem:[#allocation2 + $0xd2] sm:$0xff]
  %v4081 = vld [vmem:[#allocation2 + $0xda] sm:$0xff]
  %v4082 = vld [vmem:[#allocation2 + $0xe2] sm:$0xff]
  %v4083 = vld [vmem:[#allocation2 + $0xea] sm:$0xff]
  %v4084 = vld [vmem:[#allocation2 + $0xf2] sm:$0xff]
  %v4085 = vld [vmem:[#allocation2 + $0xfa] sm:$0xff]
  %v4086 = vld [vmem:[#allocation2 + $0x102] sm:$0xff]
  %v4087 = vld [vmem:[#allocation2 + $0x10a] sm:$0xff]
  %v4088 = vld [vmem:[#allocation2 + $0x112] sm:$0xff]
  %v4089 = vld [vmem:[#allocation2 + $0x11a] sm:$0x1f]
  %v4090 = vld [vmem:[#allocation2 + $0x13] sm:$0xff]
  %v4091 = vld [vmem:[#allocation2 + $0x1b] sm:$0xff]
  %v4092 = vld [vmem:[#allocation2 + $0x23] sm:$0xff]
  %v4093 = vld [vmem:[#allocation2 + $0x2b] sm:$0xff]
  %v4094 = vld [vmem:[#allocation2 + $0x33] sm:$0xff]
  %v4095 = vld [vmem:[#allocation2 + $0x3b] sm:$0xff]
  %v4096 = vld [vmem:[#allocation2 + $0x43] sm:$0xff]
  %v4097 = vld [vmem:[#allocation2 + $0x4b] sm:$0xff]
  %v4098 = vld [vmem:[#allocation2 + $0x53] sm:$0xff]
  %v4099 = vld [vmem:[#allocation2 + $0x5b] sm:$0xff]
  %v4100 = vld [vmem:[#allocation2 + $0x63] sm:$0xff]
  %v4101 = vld [vmem:[#allocation2 + $0x6b] sm:$0xff]
  %v4102 = vld [vmem:[#allocation2 + $0x73] sm:$0xff]
  %v4103 = vld [vmem:[#allocation2 + $0x7b] sm:$0xff]
  %v4104 = vld [vmem:[#allocation2 + $0x83] sm:$0xff]
  %v4105 = vld [vmem:[#allocation2 + $0x8b] sm:$0xff]
  %v4106 = vld [vmem:[#allocation2 + $0x93] sm:$0xff]
  %v4107 = vld [vmem:[#allocation2 + $0x9b] sm:$0xff]
  %v4108 = vld [vmem:[#allocation2 + $0xa3] sm:$0xff]
  %v4109 = vld [vmem:[#allocation2 + $0xab] sm:$0xff]
  %v4110 = vld [vmem:[#allocation2 + $0xb3] sm:$0xff]
  %v4111 = vld [vmem:[#allocation2 + $0xbb] sm:$0xff]
  %v4112 = vld [vmem:[#allocation2 + $0xc3] sm:$0xff]
  %v4113 = vld [vmem:[#allocation2 + $0xcb] sm:$0xff]
  %v4114 = vld [vmem:[#allocation2 + $0xd3] sm:$0xff]
  %v4115 = vld [vmem:[#allocation2 + $0xdb] sm:$0xff]
  %v4116 = vld [vmem:[#allocation2 + $0xe3] sm:$0xff]
  %v4117 = vld [vmem:[#allocation2 + $0xeb] sm:$0xff]
  %v4118 = vld [vmem:[#allocation2 + $0xf3] sm:$0xff]
  %v4119 = vld [vmem:[#allocation2 + $0xfb] sm:$0xff]
  %v4120 = vld [vmem:[#allocation2 + $0x103] sm:$0xff]
  %v4121 = vld [vmem:[#allocation2 + $0x10b] sm:$0xff]
  %v4122 = vld [vmem:[#allocation2 + $0x113] sm:$0xff]
  %v4123 = vld [vmem:[#allocation2 + $0x11b] sm:$0x1f]
  %v4124 = vmax.f32 %v4056, %v4090
  %v4125 = vmax.f32 %v4057, %v4091
  %v4126 = vmax.f32 %v4058, %v4092
  %v4127 = vmax.f32 %v4059, %v4093
  %v4128 = vmax.f32 %v4060, %v4094
  %v4129 = vmax.f32 %v4061, %v4095
  %v4130 = vmax.f32 %v4062, %v4096
  %v4131 = vmax.f32 %v4063, %v4097
  %v4132 = vmax.f32 %v4064, %v4098
  %v4133 = vmax.f32 %v4065, %v4099
  %v4134 = vmax.f32 %v4066, %v4100
  %v4135 = vmax.f32 %v4067, %v4101
  %v4136 = vmax.f32 %v4068, %v4102
  %v4137 = vmax.f32 %v4069, %v4103
  %v4138 = vmax.f32 %v4070, %v4104
  %v4139 = vmax.f32 %v4071, %v4105
  %v4140 = vmax.f32 %v4072, %v4106
  %v4141 = vmax.f32 %v4073, %v4107
  %v4142 = vmax.f32 %v4074, %v4108
  %v4143 = vmax.f32 %v4075, %v4109
  %v4144 = vmax.f32 %v4076, %v4110
  %v4145 = vmax.f32 %v4077, %v4111
  %v4146 = vmax.f32 %v4078, %v4112
  %v4147 = vmax.f32 %v4079, %v4113
  %v4148 = vmax.f32 %v4080, %v4114
  %v4149 = vmax.f32 %v4081, %v4115
  %v4150 = vmax.f32 %v4082, %v4116
  %v4151 = vmax.f32 %v4083, %v4117
  %v4152 = vmax.f32 %v4084, %v4118
  %v4153 = vmax.f32 %v4085, %v4119
  %v4154 = vmax.f32 %v4086, %v4120
  %v4155 = vmax.f32 %v4087, %v4121
  %v4156 = vmax.f32 %v4088, %v4122
  %v4157 = vmax.f32 %v4089, %v4123
  %v4158 = vmax.f32 %v4022, %v4124
  %v4159 = vmax.f32 %v4023, %v4125
  %v4160 = vmax.f32 %v4024, %v4126
  %v4161 = vmax.f32 %v4025, %v4127
  %v4162 = vmax.f32 %v4026, %v4128
  %v4163 = vmax.f32 %v4027, %v4129
  %v4164 = vmax.f32 %v4028, %v4130
  %v4165 = vmax.f32 %v4029, %v4131
  %v4166 = vmax.f32 %v4030, %v4132
  %v4167 = vmax.f32 %v4031, %v4133
  %v4168 = vmax.f32 %v4032, %v4134
  %v4169 = vmax.f32 %v4033, %v4135
  %v4170 = vmax.f32 %v4034, %v4136
  %v4171 = vmax.f32 %v4035, %v4137
  %v4172 = vmax.f32 %v4036, %v4138
  %v4173 = vmax.f32 %v4037, %v4139
  %v4174 = vmax.f32 %v4038, %v4140
  %v4175 = vmax.f32 %v4039, %v4141
  %v4176 = vmax.f32 %v4040, %v4142
  %v4177 = vmax.f32 %v4041, %v4143
  %v4178 = vmax.f32 %v4042, %v4144
  %v4179 = vmax.f32 %v4043, %v4145
  %v4180 = vmax.f32 %v4044, %v4146
  %v4181 = vmax.f32 %v4045, %v4147
  %v4182 = vmax.f32 %v4046, %v4148
  %v4183 = vmax.f32 %v4047, %v4149
  %v4184 = vmax.f32 %v4048, %v4150
  %v4185 = vmax.f32 %v4049, %v4151
  %v4186 = vmax.f32 %v4050, %v4152
  %v4187 = vmax.f32 %v4051, %v4153
  %v4188 = vmax.f32 %v4052, %v4154
  %v4189 = vmax.f32 %v4053, %v4155
  %v4190 = vmax.f32 %v4054, %v4156
  %v4191 = vmax.f32 %v4055, %v4157
  %v4192 = vld [vmem:[%s3] sm:$0xff]
  %v4193 = vld [vmem:[%s3 + $0x8] sm:$0xff]
  %v4194 = vld [vmem:[%s3 + $0x10] sm:$0xff]
  %v4195 = vld [vmem:[%s3 + $0x18] sm:$0xff]
  %v4196 = vld [vmem:[%s3 + $0x20] sm:$0xff]
  %v4197 = vld [vmem:[%s3 + $0x28] sm:$0xff]
  %v4198 = vld [vmem:[%s3 + $0x30] sm:$0xff]
  %v4199 = vld [vmem:[%s3 + $0x38] sm:$0xff]
  %v4200 = vld [vmem:[%s3 + $0x40] sm:$0xff]
  %v4201 = vld [vmem:[%s3 + $0x48] sm:$0xff]
  %v4202 = vld [vmem:[%s3 + $0x50] sm:$0xff]
  %v4203 = vld [vmem:[%s3 + $0x58] sm:$0xff]
  %v4204 = vld [vmem:[%s3 + $0x60] sm:$0xff]
  %v4205 = vld [vmem:[%s3 + $0x68] sm:$0xff]
  %v4206 = vld [vmem:[%s3 + $0x70] sm:$0xff]
  %v4207 = vld [vmem:[%s3 + $0x78] sm:$0xff]
  %v4208 = vld [vmem:[%s3 + $0x80] sm:$0xff]
  %v4209 = vld [vmem:[%s3 + $0x88] sm:$0xff]
  %v4210 = vld [vmem:[%s3 + $0x90] sm:$0xff]
  %v4211 = vld [vmem:[%s3 + $0x98] sm:$0xff]
  %v4212 = vld [vmem:[%s3 + $0xa0] sm:$0xff]
  %v4213 = vld [vmem:[%s3 + $0xa8] sm:$0xff]
  %v4214 = vld [vmem:[%s3 + $0xb0] sm:$0xff]
  %v4215 = vld [vmem:[%s3 + $0xb8] sm:$0xff]
  %v4216 = vld [vmem:[%s3 + $0xc0] sm:$0xff]
  %v4217 = vld [vmem:[%s3 + $0xc8] sm:$0xff]
  %v4218 = vld [vmem:[%s3 + $0xd0] sm:$0xff]
  %v4219 = vld [vmem:[%s3 + $0xd8] sm:$0xff]
  %v4220 = vld [vmem:[%s3 + $0xe0] sm:$0xff]
  %v4221 = vld [vmem:[%s3 + $0xe8] sm:$0xff]
  %v4222 = vld [vmem:[%s3 + $0xf0] sm:$0xff]
  %v4223 = vld [vmem:[%s3 + $0xf8] sm:$0xff]
  %v4224 = vld [vmem:[%s3 + $0x100] sm:$0xff]
  %v4225 = vld [vmem:[%s3 + $0x108] sm:$0xff]
  %v4226 = vld [vmem:[%s3 + $0x110] sm:$0xff]
  %v4227 = vld [vmem:[%s3 + $0x118] sm:$0xff]
  %v4228 = vld [vmem:[%s3 + $0x120] sm:$0x3f]
  %v4229 = vld [vmem:[%s3 + $0x128] sm:$0x3f]
  %v4230 = vld [vmem:[%s3 + $0x130] sm:$0x3f]
  %vm4231 = vcmask 105472
  %v4233 = vsel %vm4231, %v4194, 0
  %v4236 = vsel %vm4231, %v4197, 0
  %v4239 = vsel %vm4231, %v4200, 0
  %v4242 = vsel %vm4231, %v4203, 0
  %v4245 = vsel %vm4231, %v4206, 0
  %v4248 = vsel %vm4231, %v4209, 0
  %v4251 = vsel %vm4231, %v4212, 0
  %v4254 = vsel %vm4231, %v4215, 0
  %v4257 = vsel %vm4231, %v4218, 0
  %v4260 = vsel %vm4231, %v4221, 0
  %v4263 = vsel %vm4231, %v4224, 0
  %v4266 = vsel %vm4231, %v4227, 0
  %v4269 = vsel %vm4231, %v4230, 0
  %vm4271 = vcmask 1044480
  %v4273 = vsel %vm4271, %v4191, 0
  %4275 = vmatprep.subr.mxu0 0.0
  %4276 = vmatpush1.msra.mxu0 %v4158
  %4277 = vmatprep.subr.mxu0 0.0
  %4278 = vmatpush1.msra.mxu0 %v4159
  %4279 = vmatprep.subr.mxu0 0.0
  %4280 = vmatpush1.msra.mxu0 %v4160
  %4281 = vmatprep.subr.mxu0 0.0
  %4282 = vmatpush1.msra.mxu0 %v4161
  %4283 = vmatprep.subr.mxu0 0.0
  %4284 = vmatpush1.msra.mxu0 %v4162
  %4285 = vmatprep.subr.mxu0 0.0
  %4286 = vmatpush1.msra.mxu0 %v4163
  %4287 = vmatprep.subr.mxu0 0.0
  %4288 = vmatpush1.msra.mxu0 %v4164
  %4289 = vmatprep.subr.mxu0 0.0
  %4290 = vmatpush1.msra.mxu0 %v4165
  %4291 = vmatprep.subr.mxu0 0.0
  %4292 = vmatpush1.msra.mxu0 %v4166
  %4293 = vmatprep.subr.mxu0 0.0
  %4294 = vmatpush1.msra.mxu0 %v4167
  %4295 = vmatprep.subr.mxu0 0.0
  %4296 = vmatpush1.msra.mxu0 %v4168
  %4297 = vmatprep.subr.mxu0 0.0
  %4298 = vmatpush1.msra.mxu0 %v4169
  %4299 = vmatprep.subr.mxu0 0.0
  %4300 = vmatpush1.msra.mxu0 %v4170
  %4301 = vmatprep.subr.mxu0 0.0
  %4302 = vmatpush1.msra.mxu0 %v4171
  %4303 = vmatprep.subr.mxu0 0.0
  %4304 = vmatpush1.msra.mxu0 %v4172
  %4305 = vmatprep.subr.mxu0 0.0
  %4306 = vmatpush1.msra.mxu0 %v4173
  %4307 = vmatprep.subr.mxu0 0.0
  %4308 = vmatpush1.msra.mxu0 %v4174
  %4309 = vmatprep.subr.mxu0 0.0
  %4310 = vmatpush1.msra.mxu0 %v4175
  %4311 = vmatprep.subr.mxu0 0.0
  %4312 = vmatpush1.msra.mxu0 %v4176
  %4313 = vmatprep.subr.mxu0 0.0
  %4314 = vmatpush1.msra.mxu0 %v4177
  %4315 = vmatprep.subr.mxu0 0.0
  %4316 = vmatpush1.msra.mxu0 %v4178
  %4317 = vmatprep.subr.mxu0 0.0
  %4318 = vmatpush1.msra.mxu0 %v4179
  %4319 = vmatprep.subr.mxu0 0.0
  %4320 = vmatpush1.msra.mxu0 %v4180
  %4321 = vmatprep.subr.mxu0 0.0
  %4322 = vmatpush1.msra.mxu0 %v4181
  %4323 = vmatprep.subr.mxu0 0.0
  %4324 = vmatpush1.msra.mxu0 %v4182
  %4325 = vmatprep.subr.mxu0 0.0
  %4326 = vmatpush1.msra.mxu0 %v4183
  %4327 = vmatprep.subr.mxu0 0.0
  %4328 = vmatpush1.msra.mxu0 %v4184
  %4329 = vmatprep.subr.mxu0 0.0
  %4330 = vmatpush1.msra.mxu0 %v4185
  %4331 = vmatprep.subr.mxu0 0.0
  %4332 = vmatpush1.msra.mxu0 %v4186
  %4333 = vmatprep.subr.mxu0 0.0
  %4334 = vmatpush1.msra.mxu0 %v4187
  %4335 = vmatprep.subr.mxu0 0.0
  %4336 = vmatpush1.msra.mxu0 %v4188
  %4337 = vmatprep.subr.mxu0 0.0
  %4338 = vmatpush1.msra.mxu0 %v4189
  %4339 = vmatprep.mubr.f32.mxu0 %v4193
  %4340 = vmatmul.mubr.f32.gmra.mrb[0].mxu0 %v4192
  %v4341 = vpop.f32.mrb[0].mxu0
  %v4342 = vadd.f32 0.0, %v4341
  %v4343 = vpop.f32.mrb[0].mxu0
  %4344 = vmatprep.mubr.f32.mxu0 %v4196
  %4345 = vmatmul.mubr.f32.gmra.mrb[0].mxu0 %v4195
  %v4346 = vpop.f32.mrb[0].mxu0
  %v4347 = vadd.f32 0.0, %v4346
  %v4348 = vpop.f32.mrb[0].mxu0
  %4349 = vmatprep.mubr.f32.mxu0 %v4199
  %4350 = vmatmul.mubr.f32.gmra.mrb[0].mxu0 %v4198
  %v4351 = vpop.f32.mrb[0].mxu0
  %v4352 = vadd.f32 0.0, %v4351
  %v4353 = vpop.f32.mrb[0].mxu0
  %4354 = vmatprep.mubr.f32.mxu0 %v4202
  %4355 = vmatmul.mubr.f32.gmra.mrb[0].mxu0 %v4201
  %v4356 = vpop.f32.mrb[0].mxu0
  %v4357 = vadd.f32 0.0, %v4356
  %v4358 = vpop.f32.mrb[0].mxu0
  %4359 = vmatprep.mubr.f32.mxu0 %v4205
  %4360 = vmatmul.mubr.f32.gmra.mrb[0].mxu0 %v4204
  %v4361 = vpop.f32.mrb[0].mxu0
  %v4362 = vadd.f32 0.0, %v4361
  %v4363 = vpop.f32.mrb[0].mxu0
  %4364 = vmatprep.mubr.f32.mxu0 %v4208
  %4365 = vmatmul.mubr.f32.gmra.mrb[0].mxu0 %v4207
  %v4366 = vpop.f32.mrb[0].mxu0
  %v4367 = vadd.f32 0.0, %v4366
  %v4368 = vpop.f32.mrb[0].mxu0
  %4369 = vmatprep.mubr.f32.mxu0 %v4211
  %4370 = vmatmul.mubr.f32.gmra.mrb[0].mxu0 %v4210
  %v4371 = vpop.f32.mrb[0].mxu0
  %v4372 = vadd.f32 0.0, %v4371
  %v4373 = vpop.f32.mrb[0].mxu0
  %4374 = vmatprep.mubr.f32.mxu0 %v4214
  %4375 = vmatmul.mubr.f32.gmra.mrb[0].mxu0 %v4213
  %v4376 = vpop.f32.mrb[0].mxu0
  %v4377 = vadd.f32 0.0, %v4376
  %v4378 = vpop.f32.mrb[0].mxu0
  %4379 = vmatprep.mubr.f32.mxu0 %v4217
  %4380 = vmatmul.mubr.f32.gmra.mrb[0].mxu0 %v4216
  %v4381 = vpop.f32.mrb[0].mxu0
  %v4382 = vadd.f32 0.0, %v4381
  %v4383 = vpop.f32.mrb[0].mxu0
  %4384 = vmatprep.mubr.f32.mxu0 %v4220
  %4385 = vmatmul.mubr.f32.gmra.mrb[0].mxu0 %v4219
  %v4386 = vpop.f32.mrb[0].mxu0
  %v4387 = vadd.f32 0.0, %v4386
  %v4388 = vpop.f32.mrb[0].mxu0
  %4389 = vmatprep.mubr.f32.mxu0 %v4223
  %4390 = vmatmul.mubr.f32.gmra.mrb[0].mxu0 %v4222
  %v4391 = vpop.f32.mrb[0].mxu0
  %v4392 = vadd.f32 0.0, %v4391
  %v4393 = vpop.f32.mrb[0].mxu0
  %4394 = vmatprep.mubr.f32.mxu0 %v4226
  %4395 = vmatmul.mubr.f32.gmra.mrb[0].mxu0 %v4225
  %v4396 = vpop.f32.mrb[0].mxu0
  %v4397 = vadd.f32 0.0, %v4396
  %v4398 = vpop.f32.mrb[0].mxu0
  %4399 = vmatprep.mubr.f32.mxu0 %v4229
  %4400 = vmatmul.mubr.f32.gmra.mrb[0].mxu0 %v4228
  %v4401 = vpop.f32.mrb[0].mxu0
  %v4402 = vadd.f32 0.0, %v4401
  %v4403 = vpop.f32.mrb[0].mxu0
  %4404 = vdwg.mxu0
  %4405 = vmatprep.subr.mxu0 0.0
  %4406 = vmatpush1.msra.mxu0 %v4190
  %4407 = vmatprep.subr.mxu0 0.0
  %4408 = vmatpush1.msra.mxu0 %v4273
  %4409 = vmatprep.subr.mxu0 0.0
  %4410 = vmatpush1.msra.mxu0 0.0
  %4411 = vmatprep.subr.mxu0 0.0
  %4412 = vmatpush1.msra.mxu0 0.0
  %4413 = vmatprep.subr.mxu0 0.0
  %4414 = vmatpush1.msra.mxu0 0.0
  %4415 = vmatprep.subr.mxu0 0.0
  %4416 = vmatpush1.msra.mxu0 0.0
  %4417 = vmatprep.subr.mxu0 0.0
  %4418 = vmatpush1.msra.mxu0 0.0
  %4419 = vmatprep.subr.mxu0 0.0
  %4420 = vmatpush1.msra.mxu0 0.0
  %4421 = vmatprep.subr.mxu0 0.0
  %4422 = vmatpush1.msra.mxu0 0.0
  %4423 = vmatprep.subr.mxu0 0.0
  %4424 = vmatpush1.msra.mxu0 0.0
  %4425 = vmatprep.subr.mxu0 0.0
  %4426 = vmatpush1.msra.mxu0 0.0
  %4427 = vmatprep.subr.mxu0 0.0
  %4428 = vmatpush1.msra.mxu0 0.0
  %4429 = vmatprep.subr.mxu0 0.0
  %4430 = vmatpush1.msra.mxu0 0.0
  %4431 = vmatprep.subr.mxu0 0.0
  %4432 = vmatpush1.msra.mxu0 0.0
  %4433 = vmatprep.subr.mxu0 0.0
  %4434 = vmatpush1.msra.mxu0 0.0
  %4435 = vmatprep.subr.mxu0 0.0
  %4436 = vmatpush1.msra.mxu0 0.0
  %4437 = vmatprep.subr.mxu0 0.0
  %4438 = vmatpush1.msra.mxu0 0.0
  %4439 = vmatprep.subr.mxu0 0.0
  %4440 = vmatpush1.msra.mxu0 0.0
  %4441 = vmatprep.subr.mxu0 0.0
  %4442 = vmatpush1.msra.mxu0 0.0
  %4443 = vmatprep.subr.mxu0 0.0
  %4444 = vmatpush1.msra.mxu0 0.0
  %4445 = vmatprep.subr.mxu0 0.0
  %4446 = vmatpush1.msra.mxu0 0.0
  %4447 = vmatprep.subr.mxu0 0.0
  %4448 = vmatpush1.msra.mxu0 0.0
  %4449 = vmatprep.subr.mxu0 0.0
  %4450 = vmatpush1.msra.mxu0 0.0
  %4451 = vmatprep.subr.mxu0 0.0
  %4452 = vmatpush1.msra.mxu0 0.0
  %4453 = vmatprep.subr.mxu0 0.0
  %4454 = vmatpush1.msra.mxu0 0.0
  %4455 = vmatprep.subr.mxu0 0.0
  %4456 = vmatpush1.msra.mxu0 0.0
  %4457 = vmatprep.subr.mxu0 0.0
  %4458 = vmatpush1.msra.mxu0 0.0
  %4459 = vmatprep.subr.mxu0 0.0
  %4460 = vmatpush1.msra.mxu0 0.0
  %4461 = vmatprep.subr.mxu0 0.0
  %4462 = vmatpush1.msra.mxu0 0.0
  %4463 = vmatprep.subr.mxu0 0.0
  %4464 = vmatpush1.msra.mxu0 0.0
  %4465 = vmatprep.subr.mxu0 0.0
  %4466 = vmatpush1.msra.mxu0 0.0
  %4467 = vmatprep.subr.mxu0 0.0
  %4468 = vmatpush1.msra.mxu0 0.0
  %4469 = vmatprep.mubr.f32.mxu0 0.0
  %4470 = vmatmul.mubr.f32.gmra.mrb[0].mxu0 %v4233
  %v4471 = vpop.f32.mrb[0].mxu0
  %v4472 = vadd.f32 %v4342, %v4471
  %v4473 = vpop.f32.mrb[0].mxu0
  %4474 = vmatprep.mubr.f32.mxu0 0.0
  %4475 = vmatmul.mubr.f32.gmra.mrb[0].mxu0 %v4236
  %v4476 = vpop.f32.mrb[0].mxu0
  %v4477 = vadd.f32 %v4347, %v4476
  %v4478 = vpop.f32.mrb[0].mxu0
  %4479 = vmatprep.mubr.f32.mxu0 0.0
  %4480 = vmatmul.mubr.f32.gmra.mrb[0].mxu0 %v4239
  %v4481 = vpop.f32.mrb[0].mxu0
  %v4482 = vadd.f32 %v4352, %v4481
  %v4483 = vpop.f32.mrb[0].mxu0
  %4484 = vmatprep.mubr.f32.mxu0 0.0
  %4485 = vmatmul.mubr.f32.gmra.mrb[0].mxu0 %v4242
  %v4486 = vpop.f32.mrb[0].mxu0
  %v4487 = vadd.f32 %v4357, %v4486
  %v4488 = vpop.f32.mrb[0].mxu0
  %4489 = vmatprep.mubr.f32.mxu0 0.0
  %4490 = vmatmul.mubr.f32.gmra.mrb[0].mxu0 %v4245
  %v4491 = vpop.f32.mrb[0].mxu0
  %v4492 = vadd.f32 %v4362, %v4491
  %v4493 = vpop.f32.mrb[0].mxu0
  %4494 = vmatprep.mubr.f32.mxu0 0.0
  %4495 = vmatmul.mubr.f32.gmra.mrb[0].mxu0 %v4248
  %v4496 = vpop.f32.mrb[0].mxu0
  %v4497 = vadd.f32 %v4367, %v4496
  %v4498 = vpop.f32.mrb[0].mxu0
  %4499 = vmatprep.mubr.f32.mxu0 0.0
  %4500 = vmatmul.mubr.f32.gmra.mrb[0].mxu0 %v4251
  %v4501 = vpop.f32.mrb[0].mxu0
  %v4502 = vadd.f32 %v4372, %v4501
  %v4503 = vpop.f32.mrb[0].mxu0
  %4504 = vmatprep.mubr.f32.mxu0 0.0
  %4505 = vmatmul.mubr.f32.gmra.mrb[0].mxu0 %v4254
  %v4506 = vpop.f32.mrb[0].mxu0
  %v4507 = vadd.f32 %v4377, %v4506
  %v4508 = vpop.f32.mrb[0].mxu0
  %4509 = vmatprep.mubr.f32.mxu0 0.0
  %4510 = vmatmul.mubr.f32.gmra.mrb[0].mxu0 %v4257
  %v4511 = vpop.f32.mrb[0].mxu0
  %v4512 = vadd.f32 %v4382, %v4511
  %v4513 = vpop.f32.mrb[0].mxu0
  %4514 = vmatprep.mubr.f32.mxu0 0.0
  %4515 = vmatmul.mubr.f32.gmra.mrb[0].mxu0 %v4260
  %v4516 = vpop.f32.mrb[0].mxu0
  %v4517 = vadd.f32 %v4387, %v4516
  %v4518 = vpop.f32.mrb[0].mxu0
  %4519 = vmatprep.mubr.f32.mxu0 0.0
  %4520 = vmatmul.mubr.f32.gmra.mrb[0].mxu0 %v4263
  %v4521 = vpop.f32.mrb[0].mxu0
  %v4522 = vadd.f32 %v4392, %v4521
  %v4523 = vpop.f32.mrb[0].mxu0
  %4524 = vmatprep.mubr.f32.mxu0 0.0
  %4525 = vmatmul.mubr.f32.gmra.mrb[0].mxu0 %v4266
  %v4526 = vpop.f32.mrb[0].mxu0
  %v4527 = vadd.f32 %v4397, %v4526
  %v4528 = vpop.f32.mrb[0].mxu0
  %4529 = vmatprep.mubr.f32.mxu0 0.0
  %4530 = vmatmul.mubr.f32.gmra.mrb[0].mxu0 %v4269
  %v4531 = vpop.f32.mrb[0].mxu0
  %v4532 = vadd.f32 %v4402, %v4531
  %v4533 = vpop.f32.mrb[0].mxu0
  %4534 = vdwg.mxu0
  %4535 = vst.msk [vmem:[#allocation3] sm:$0xff] %vm3917, %v4472
  %4536 = vst.msk [vmem:[#allocation3 + $0x8] sm:$0xff] %vm3917, %v4477
  %4537 = vst.msk [vmem:[#allocation3 + $0x10] sm:$0xff] %vm3917, %v4482
  %4538 = vst.msk [vmem:[#allocation3 + $0x18] sm:$0xff] %vm3917, %v4487
  %4539 = vst.msk [vmem:[#allocation3 + $0x20] sm:$0xff] %vm3917, %v4492
  %4540 = vst.msk [vmem:[#allocation3 + $0x28] sm:$0xff] %vm3917, %v4497
  %4541 = vst.msk [vmem:[#allocation3 + $0x30] sm:$0xff] %vm3917, %v4502
  %4542 = vst.msk [vmem:[#allocation3 + $0x38] sm:$0xff] %vm3917, %v4507
  %4543 = vst.msk [vmem:[#allocation3 + $0x40] sm:$0xff] %vm3917, %v4512
  %4544 = vst.msk [vmem:[#allocation3 + $0x48] sm:$0xff] %vm3917, %v4517
  %4545 = vst.msk [vmem:[#allocation3 + $0x50] sm:$0xff] %vm3917, %v4522
  %4546 = vst.msk [vmem:[#allocation3 + $0x58] sm:$0xff] %vm3917, %v4527
  %vm4547 = vcmask 128000
  %4548 = vst.msk [vmem:[#allocation3 + $0x60] sm:$0x3f] %vm4547, %v4532
  %v4549 = vld [vmem:[#allocation3] sm:$0xff]
  %v4550 = vld [vmem:[#allocation3 + $0x8] sm:$0xff]
  %v4551 = vld [vmem:[#allocation3 + $0x10] sm:$0xff]
  %v4552 = vld [vmem:[#allocation3 + $0x18] sm:$0xff]
  %v4553 = vld [vmem:[#allocation3 + $0x20] sm:$0xff]
  %v4554 = vld [vmem:[#allocation3 + $0x28] sm:$0xff]
  %v4555 = vld [vmem:[#allocation3 + $0x30] sm:$0xff]
  %v4556 = vld [vmem:[#allocation3 + $0x38] sm:$0xff]
  %v4557 = vld [vmem:[#allocation3 + $0x40] sm:$0xff]
  %v4558 = vld [vmem:[#allocation3 + $0x48] sm:$0xff]
  %v4559 = vld [vmem:[%s4] sm:$0xff]
  %v4560 = vld [vmem:[%s4 + $0x8] sm:$0xff]
  %v4561 = vld [vmem:[#allocation3 + $0x1] sm:$0xff]
  %v4562 = vld [vmem:[#allocation3 + $0x9] sm:$0xff]
  %v4563 = vld [vmem:[#allocation3 + $0x11] sm:$0xff]
  %v4564 = vld [vmem:[#allocation3 + $0x19] sm:$0xff]
  %v4565 = vld [vmem:[#allocation3 + $0x21] sm:$0xff]
  %v4566 = vld [vmem:[#allocation3 + $0x29] sm:$0xff]
  %v4567 = vld [vmem:[#allocation3 + $0x31] sm:$0xff]
  %v4568 = vld [vmem:[#allocation3 + $0x39] sm:$0xff]
  %v4569 = vld [vmem:[#allocation3 + $0x41] sm:$0xff]
  %v4570 = vld [vmem:[#allocation3 + $0x49] sm:$0xff]
  %v4571 = vld [vmem:[%s4 + $0x10] sm:$0xff]
  %v4572 = vld [vmem:[%s4 + $0x18] sm:$0xff]
  %v4574 = vsel %vm3917, %v4561, 0
  %v4577 = vsel %vm3917, %v4562, 0
  %v4580 = vsel %vm3917, %v4563, 0
  %v4583 = vsel %vm3917, %v4564, 0
  %v4586 = vsel %vm3917, %v4565, 0
  %v4589 = vsel %vm3917, %v4566, 0
  %v4592 = vsel %vm3917, %v4567, 0
  %v4595 = vsel %vm3917, %v4568, 0
  %v4598 = vsel %vm3917, %v4569, 0
  %v4601 = vsel %vm3917, %v4570, 0
  %4603 = vmatprep.subr.mxu0 0.0
  %4604 = vmatpush1.msra.mxu0 %v4571
  %4605 = vmatprep.subr.mxu0 0.0
  %4606 = vmatpush1.msra.mxu0 %v4572
  %4607 = vmatprep.subr.mxu0 0.0
  %4608 = vmatpush1.msra.mxu0 0.0
  %4609 = vmatprep.subr.mxu0 0.0
  %4610 = vmatpush1.msra.mxu0 0.0
  %4611 = vmatprep.subr.mxu0 0.0
  %4612 = vmatpush1.msra.mxu0 0.0
  %4613 = vmatprep.subr.mxu0 0.0
  %4614 = vmatpush1.msra.mxu0 0.0
  %4615 = vmatprep.subr.mxu0 0.0
  %4616 = vmatpush1.msra.mxu0 0.0
  %4617 = vmatprep.subr.mxu0 0.0
  %4618 = vmatpush1.msra.mxu0 0.0
  %4619 = vmatprep.subr.mxu0 0.0
  %4620 = vmatpush1.msra.mxu0 0.0
  %4621 = vmatprep.subr.mxu0 0.0
  %4622 = vmatpush1.msra.mxu0 0.0
  %4623 = vmatprep.subr.mxu0 0.0
  %4624 = vmatpush1.msra.mxu0 0.0
  %4625 = vmatprep.subr.mxu0 0.0
  %4626 = vmatpush1.msra.mxu0 0.0
  %4627 = vmatprep.subr.mxu0 0.0
  %4628 = vmatpush1.msra.mxu0 0.0
  %4629 = vmatprep.subr.mxu0 0.0
  %4630 = vmatpush1.msra.mxu0 0.0
  %4631 = vmatprep.subr.mxu0 0.0
  %4632 = vmatpush1.msra.mxu0 0.0
  %4633 = vmatprep.subr.mxu0 0.0
  %4634 = vmatpush1.msra.mxu0 0.0
  %4635 = vmatprep.subr.mxu0 0.0
  %4636 = vmatpush1.msra.mxu0 0.0
  %4637 = vmatprep.subr.mxu0 0.0
  %4638 = vmatpush1.msra.mxu0 0.0
  %4639 = vmatprep.subr.mxu0 0.0
  %4640 = vmatpush1.msra.mxu0 0.0
  %4641 = vmatprep.subr.mxu0 0.0
  %4642 = vmatpush1.msra.mxu0 0.0
  %4643 = vmatprep.subr.mxu0 0.0
  %4644 = vmatpush1.msra.mxu0 0.0
  %4645 = vmatprep.subr.mxu0 0.0
  %4646 = vmatpush1.msra.mxu0 0.0
  %4647 = vmatprep.subr.mxu0 0.0
  %4648 = vmatpush1.msra.mxu0 0.0
  %4649 = vmatprep.subr.mxu0 0.0
  %4650 = vmatpush1.msra.mxu0 0.0
  %4651 = vmatprep.subr.mxu0 0.0
  %4652 = vmatpush1.msra.mxu0 0.0
  %4653 = vmatprep.subr.mxu0 0.0
  %4654 = vmatpush1.msra.mxu0 0.0
  %4655 = vmatprep.subr.mxu0 0.0
  %4656 = vmatpush1.msra.mxu0 0.0
  %4657 = vmatprep.subr.mxu0 0.0
  %4658 = vmatpush1.msra.mxu0 0.0
  %4659 = vmatprep.subr.mxu0 0.0
  %4660 = vmatpush1.msra.mxu0 0.0
  %4661 = vmatprep.subr.mxu0 0.0
  %4662 = vmatpush1.msra.mxu0 0.0
  %4663 = vmatprep.subr.mxu0 0.0
  %4664 = vmatpush1.msra.mxu0 0.0
  %4665 = vmatprep.subr.mxu0 0.0
  %4666 = vmatpush1.msra.mxu0 0.0
  %4667 = vmatprep.mubr.f32.mxu0 0.0
  %4668 = vmatmul.mubr.f32.gmra.mrb[0].mxu0 %v4574
  %v4669 = vpop.f32.mrb[0].mxu0
  %v4670 = vadd.f32 0.0, %v4669
  %v4671 = vpop.f32.mrb[0].mxu0
  %4672 = vmatprep.mubr.f32.mxu0 0.0
  %4673 = vmatmul.mubr.f32.gmra.mrb[0].mxu0 %v4577
  %v4674 = vpop.f32.mrb[0].mxu0
  %v4675 = vadd.f32 0.0, %v4674
  %v4676 = vpop.f32.mrb[0].mxu0
  %4677 = vmatprep.mubr.f32.mxu0 0.0
  %4678 = vmatmul.mubr.f32.gmra.mrb[0].mxu0 %v4580
  %v4679 = vpop.f32.mrb[0].mxu0
  %v4680 = vadd.f32 0.0, %v4679
  %v4681 = vpop.f32.mrb[0].mxu0
  %4682 = vmatprep.mubr.f32.mxu0 0.0
  %4683 = vmatmul.mubr.f32.gmra.mrb[0].mxu0 %v4583
  %v4684 = vpop.f32.mrb[0].mxu0
  %v4685 = vadd.f32 0.0, %v4684
  %v4686 = vpop.f32.mrb[0].mxu0
  %4687 = vmatprep.mubr.f32.mxu0 0.0
  %4688 = vmatmul.mubr.f32.gmra.mrb[0].mxu0 %v4586
  %v4689 = vpop.f32.mrb[0].mxu0
  %v4690 = vadd.f32 0.0, %v4689
  %v4691 = vpop.f32.mrb[0].mxu0
  %4692 = vmatprep.mubr.f32.mxu0 0.0
  %4693 = vmatmul.mubr.f32.gmra.mrb[0].mxu0 %v4589
  %v4694 = vpop.f32.mrb[0].mxu0
  %v4695 = vadd.f32 0.0, %v4694
  %v4696 = vpop.f32.mrb[0].mxu0
  %4697 = vmatprep.mubr.f32.mxu0 0.0
  %4698 = vmatmul.mubr.f32.gmra.mrb[0].mxu0 %v4592
  %v4699 = vpop.f32.mrb[0].mxu0
  %v4700 = vadd.f32 0.0, %v4699
  %v4701 = vpop.f32.mrb[0].mxu0
  %4702 = vmatprep.mubr.f32.mxu0 0.0
  %4703 = vmatmul.mubr.f32.gmra.mrb[0].mxu0 %v4595
  %v4704 = vpop.f32.mrb[0].mxu0
  %v4705 = vadd.f32 0.0, %v4704
  %v4706 = vpop.f32.mrb[0].mxu0
  %4707 = vmatprep.mubr.f32.mxu0 0.0
  %4708 = vmatmul.mubr.f32.gmra.mrb[0].mxu0 %v4598
  %v4709 = vpop.f32.mrb[0].mxu0
  %v4710 = vadd.f32 0.0, %v4709
  %v4711 = vpop.f32.mrb[0].mxu0
  %4712 = vmatprep.mubr.f32.mxu0 0.0
  %4713 = vmatmul.mubr.f32.gmra.mrb[0].mxu0 %v4601
  %v4714 = vpop.f32.mrb[0].mxu0
  %v4715 = vadd.f32 0.0, %v4714
  %v4716 = vpop.f32.mrb[0].mxu0
  %4717 = vdwg.mxu0
  %v4719 = vsel %vm3917, %v4549, 0
  %v4722 = vsel %vm3917, %v4550, 0
  %v4725 = vsel %vm3917, %v4551, 0
  %v4728 = vsel %vm3917, %v4552, 0
  %v4731 = vsel %vm3917, %v4553, 0
  %v4734 = vsel %vm3917, %v4554, 0
  %v4737 = vsel %vm3917, %v4555, 0
  %v4740 = vsel %vm3917, %v4556, 0
  %v4743 = vsel %vm3917, %v4557, 0
  %v4746 = vsel %vm3917, %v4558, 0
  %4748 = vmatprep.subr.mxu0 0.0
  %4749 = vmatpush1.msra.mxu0 %v4559
  %4750 = vmatprep.subr.mxu0 0.0
  %4751 = vmatpush1.msra.mxu0 %v4560
  %4752 = vmatprep.subr.mxu0 0.0
  %4753 = vmatpush1.msra.mxu0 0.0
  %4754 = vmatprep.subr.mxu0 0.0
  %4755 = vmatpush1.msra.mxu0 0.0
  %4756 = vmatprep.subr.mxu0 0.0
  %4757 = vmatpush1.msra.mxu0 0.0
  %4758 = vmatprep.subr.mxu0 0.0
  %4759 = vmatpush1.msra.mxu0 0.0
  %4760 = vmatprep.subr.mxu0 0.0
  %4761 = vmatpush1.msra.mxu0 0.0
  %4762 = vmatprep.subr.mxu0 0.0
  %4763 = vmatpush1.msra.mxu0 0.0
  %4764 = vmatprep.subr.mxu0 0.0
  %4765 = vmatpush1.msra.mxu0 0.0
  %4766 = vmatprep.subr.mxu0 0.0
  %4767 = vmatpush1.msra.mxu0 0.0
  %4768 = vmatprep.subr.mxu0 0.0
  %4769 = vmatpush1.msra.mxu0 0.0
  %4770 = vmatprep.subr.mxu0 0.0
  %4771 = vmatpush1.msra.mxu0 0.0
  %4772 = vmatprep.subr.mxu0 0.0
  %4773 = vmatpush1.msra.mxu0 0.0
  %4774 = vmatprep.subr.mxu0 0.0
  %4775 = vmatpush1.msra.mxu0 0.0
  %4776 = vmatprep.subr.mxu0 0.0
  %4777 = vmatpush1.msra.mxu0 0.0
  %4778 = vmatprep.subr.mxu0 0.0
  %4779 = vmatpush1.msra.mxu0 0.0
  %4780 = vmatprep.subr.mxu0 0.0
  %4781 = vmatpush1.msra.mxu0 0.0
  %4782 = vmatprep.subr.mxu0 0.0
  %4783 = vmatpush1.msra.mxu0 0.0
  %4784 = vmatprep.subr.mxu0 0.0
  %4785 = vmatpush1.msra.mxu0 0.0
  %4786 = vmatprep.subr.mxu0 0.0
  %4787 = vmatpush1.msra.mxu0 0.0
  %4788 = vmatprep.subr.mxu0 0.0
  %4789 = vmatpush1.msra.mxu0 0.0
  %4790 = vmatprep.subr.mxu0 0.0
  %4791 = vmatpush1.msra.mxu0 0.0
  %4792 = vmatprep.subr.mxu0 0.0
  %4793 = vmatpush1.msra.mxu0 0.0
  %4794 = vmatprep.subr.mxu0 0.0
  %4795 = vmatpush1.msra.mxu0 0.0
  %4796 = vmatprep.subr.mxu0 0.0
  %4797 = vmatpush1.msra.mxu0 0.0
  %4798 = vmatprep.subr.mxu0 0.0
  %4799 = vmatpush1.msra.mxu0 0.0
  %4800 = vmatprep.subr.mxu0 0.0
  %4801 = vmatpush1.msra.mxu0 0.0
  %4802 = vmatprep.subr.mxu0 0.0
  %4803 = vmatpush1.msra.mxu0 0.0
  %4804 = vmatprep.subr.mxu0 0.0
  %4805 = vmatpush1.msra.mxu0 0.0
  %4806 = vmatprep.subr.mxu0 0.0
  %4807 = vmatpush1.msra.mxu0 0.0
  %4808 = vmatprep.subr.mxu0 0.0
  %4809 = vmatpush1.msra.mxu0 0.0
  %4810 = vmatprep.subr.mxu0 0.0
  %4811 = vmatpush1.msra.mxu0 0.0
  %4812 = vmatprep.mubr.f32.mxu0 0.0
  %4813 = vmatmul.mubr.f32.gmra.mrb[0].mxu0 %v4719
  %v4814 = vpop.f32.mrb[0].mxu0
  %v4815 = vadd.f32 %v4670, %v4814
  %v4816 = vpop.f32.mrb[0].mxu0
  %4817 = vmatprep.mubr.f32.mxu0 0.0
  %4818 = vmatmul.mubr.f32.gmra.mrb[0].mxu0 %v4722
  %v4819 = vpop.f32.mrb[0].mxu0
  %v4820 = vadd.f32 %v4675, %v4819
  %v4821 = vpop.f32.mrb[0].mxu0
  %4822 = vmatprep.mubr.f32.mxu0 0.0
  %4823 = vmatmul.mubr.f32.gmra.mrb[0].mxu0 %v4725
  %v4824 = vpop.f32.mrb[0].mxu0
  %v4825 = vadd.f32 %v4680, %v4824
  %v4826 = vpop.f32.mrb[0].mxu0
  %4827 = vmatprep.mubr.f32.mxu0 0.0
  %4828 = vmatmul.mubr.f32.gmra.mrb[0].mxu0 %v4728
  %v4829 = vpop.f32.mrb[0].mxu0
  %v4830 = vadd.f32 %v4685, %v4829
  %v4831 = vpop.f32.mrb[0].mxu0
  %4832 = vmatprep.mubr.f32.mxu0 0.0
  %4833 = vmatmul.mubr.f32.gmra.mrb[0].mxu0 %v4731
  %v4834 = vpop.f32.mrb[0].mxu0
  %v4835 = vadd.f32 %v4690, %v4834
  %v4836 = vpop.f32.mrb[0].mxu0
  %4837 = vmatprep.mubr.f32.mxu0 0.0
  %4838 = vmatmul.mubr.f32.gmra.mrb[0].mxu0 %v4734
  %v4839 = vpop.f32.mrb[0].mxu0
  %v4840 = vadd.f32 %v4695, %v4839
  %v4841 = vpop.f32.mrb[0].mxu0
  %4842 = vmatprep.mubr.f32.mxu0 0.0
  %4843 = vmatmul.mubr.f32.gmra.mrb[0].mxu0 %v4737
  %v4844 = vpop.f32.mrb[0].mxu0
  %v4845 = vadd.f32 %v4700, %v4844
  %v4846 = vpop.f32.mrb[0].mxu0
  %4847 = vmatprep.mubr.f32.mxu0 0.0
  %4848 = vmatmul.mubr.f32.gmra.mrb[0].mxu0 %v4740
  %v4849 = vpop.f32.mrb[0].mxu0
  %v4850 = vadd.f32 %v4705, %v4849
  %v4851 = vpop.f32.mrb[0].mxu0
  %4852 = vmatprep.mubr.f32.mxu0 0.0
  %4853 = vmatmul.mubr.f32.gmra.mrb[0].mxu0 %v4743
  %v4854 = vpop.f32.mrb[0].mxu0
  %v4855 = vadd.f32 %v4710, %v4854
  %v4856 = vpop.f32.mrb[0].mxu0
  %4857 = vmatprep.mubr.f32.mxu0 0.0
  %4858 = vmatmul.mubr.f32.gmra.mrb[0].mxu0 %v4746
  %v4859 = vpop.f32.mrb[0].mxu0
  %v4860 = vadd.f32 %v4715, %v4859
  %v4861 = vpop.f32.mrb[0].mxu0
  %4862 = vdwg.mxu0
  %v4863 = vld [vmem:[#allocation3 + $0x2] sm:$0xff]
  %v4864 = vld [vmem:[#allocation3 + $0xa] sm:$0xff]
  %v4865 = vld [vmem:[#allocation3 + $0x12] sm:$0xff]
  %v4866 = vld [vmem:[#allocation3 + $0x1a] sm:$0xff]
  %v4867 = vld [vmem:[#allocation3 + $0x22] sm:$0xff]
  %v4868 = vld [vmem:[#allocation3 + $0x2a] sm:$0xff]
  %v4869 = vld [vmem:[#allocation3 + $0x32] sm:$0xff]
  %v4870 = vld [vmem:[#allocation3 + $0x3a] sm:$0xff]
  %v4871 = vld [vmem:[#allocation3 + $0x42] sm:$0xff]
  %v4872 = vld [vmem:[#allocation3 + $0x4a] sm:$0xff]
  %v4873 = vld [vmem:[%s4 + $0x20] sm:$0xff]
  %v4874 = vld [vmem:[%s4 + $0x28] sm:$0xff]
  %v4876 = vsel %vm3917, %v4863, 0
  %v4879 = vsel %vm3917, %v4864, 0
  %v4882 = vsel %vm3917, %v4865, 0
  %v4885 = vsel %vm3917, %v4866, 0
  %v4888 = vsel %vm3917, %v4867, 0
  %v4891 = vsel %vm3917, %v4868, 0
  %v4894 = vsel %vm3917, %v4869, 0
  %v4897 = vsel %vm3917, %v4870, 0
  %v4900 = vsel %vm3917, %v4871, 0
  %v4903 = vsel %vm3917, %v4872, 0
  %4905 = vmatprep.subr.mxu0 0.0
  %4906 = vmatpush1.msra.mxu0 %v4873
  %4907 = vmatprep.subr.mxu0 0.0
  %4908 = vmatpush1.msra.mxu0 %v4874
  %4909 = vmatprep.subr.mxu0 0.0
  %4910 = vmatpush1.msra.mxu0 0.0
  %4911 = vmatprep.subr.mxu0 0.0
  %4912 = vmatpush1.msra.mxu0 0.0
  %4913 = vmatprep.subr.mxu0 0.0
  %4914 = vmatpush1.msra.mxu0 0.0
  %4915 = vmatprep.subr.mxu0 0.0
  %4916 = vmatpush1.msra.mxu0 0.0
  %4917 = vmatprep.subr.mxu0 0.0
  %4918 = vmatpush1.msra.mxu0 0.0
  %4919 = vmatprep.subr.mxu0 0.0
  %4920 = vmatpush1.msra.mxu0 0.0
  %4921 = vmatprep.subr.mxu0 0.0
  %4922 = vmatpush1.msra.mxu0 0.0
  %4923 = vmatprep.subr.mxu0 0.0
  %4924 = vmatpush1.msra.mxu0 0.0
  %4925 = vmatprep.subr.mxu0 0.0
  %4926 = vmatpush1.msra.mxu0 0.0
  %4927 = vmatprep.subr.mxu0 0.0
  %4928 = vmatpush1.msra.mxu0 0.0
  %4929 = vmatprep.subr.mxu0 0.0
  %4930 = vmatpush1.msra.mxu0 0.0
  %4931 = vmatprep.subr.mxu0 0.0
  %4932 = vmatpush1.msra.mxu0 0.0
  %4933 = vmatprep.subr.mxu0 0.0
  %4934 = vmatpush1.msra.mxu0 0.0
  %4935 = vmatprep.subr.mxu0 0.0
  %4936 = vmatpush1.msra.mxu0 0.0
  %4937 = vmatprep.subr.mxu0 0.0
  %4938 = vmatpush1.msra.mxu0 0.0
  %4939 = vmatprep.subr.mxu0 0.0
  %4940 = vmatpush1.msra.mxu0 0.0
  %4941 = vmatprep.subr.mxu0 0.0
  %4942 = vmatpush1.msra.mxu0 0.0
  %4943 = vmatprep.subr.mxu0 0.0
  %4944 = vmatpush1.msra.mxu0 0.0
  %4945 = vmatprep.subr.mxu0 0.0
  %4946 = vmatpush1.msra.mxu0 0.0
  %4947 = vmatprep.subr.mxu0 0.0
  %4948 = vmatpush1.msra.mxu0 0.0
  %4949 = vmatprep.subr.mxu0 0.0
  %4950 = vmatpush1.msra.mxu0 0.0
  %4951 = vmatprep.subr.mxu0 0.0
  %4952 = vmatpush1.msra.mxu0 0.0
  %4953 = vmatprep.subr.mxu0 0.0
  %4954 = vmatpush1.msra.mxu0 0.0
  %4955 = vmatprep.subr.mxu0 0.0
  %4956 = vmatpush1.msra.mxu0 0.0
  %4957 = vmatprep.subr.mxu0 0.0
  %4958 = vmatpush1.msra.mxu0 0.0
  %4959 = vmatprep.subr.mxu0 0.0
  %4960 = vmatpush1.msra.mxu0 0.0
  %4961 = vmatprep.subr.mxu0 0.0
  %4962 = vmatpush1.msra.mxu0 0.0
  %4963 = vmatprep.subr.mxu0 0.0
  %4964 = vmatpush1.msra.mxu0 0.0
  %4965 = vmatprep.subr.mxu0 0.0
  %4966 = vmatpush1.msra.mxu0 0.0
  %4967 = vmatprep.subr.mxu0 0.0
  %4968 = vmatpush1.msra.mxu0 0.0
  %4969 = vmatprep.mubr.f32.mxu0 0.0
  %4970 = vmatmul.mubr.f32.gmra.mrb[0].mxu0 %v4876
  %v4971 = vpop.f32.mrb[0].mxu0
  %v4972 = vadd.f32 0.0, %v4971
  %v4973 = vpop.f32.mrb[0].mxu0
  %4974 = vmatprep.mubr.f32.mxu0 0.0
  %4975 = vmatmul.mubr.f32.gmra.mrb[0].mxu0 %v4879
  %v4976 = vpop.f32.mrb[0].mxu0
  %v4977 = vadd.f32 0.0, %v4976
  %v4978 = vpop.f32.mrb[0].mxu0
  %4979 = vmatprep.mubr.f32.mxu0 0.0
  %4980 = vmatmul.mubr.f32.gmra.mrb[0].mxu0 %v4882
  %v4981 = vpop.f32.mrb[0].mxu0
  %v4982 = vadd.f32 0.0, %v4981
  %v4983 = vpop.f32.mrb[0].mxu0
  %4984 = vmatprep.mubr.f32.mxu0 0.0
  %4985 = vmatmul.mubr.f32.gmra.mrb[0].mxu0 %v4885
  %v4986 = vpop.f32.mrb[0].mxu0
  %v4987 = vadd.f32 0.0, %v4986
  %v4988 = vpop.f32.mrb[0].mxu0
  %4989 = vmatprep.mubr.f32.mxu0 0.0
  %4990 = vmatmul.mubr.f32.gmra.mrb[0].mxu0 %v4888
  %v4991 = vpop.f32.mrb[0].mxu0
  %v4992 = vadd.f32 0.0, %v4991
  %v4993 = vpop.f32.mrb[0].mxu0
  %4994 = vmatprep.mubr.f32.mxu0 0.0
  %4995 = vmatmul.mubr.f32.gmra.mrb[0].mxu0 %v4891
  %v4996 = vpop.f32.mrb[0].mxu0
  %v4997 = vadd.f32 0.0, %v4996
  %v4998 = vpop.f32.mrb[0].mxu0
  %4999 = vmatprep.mubr.f32.mxu0 0.0
  %5000 = vmatmul.mubr.f32.gmra.mrb[0].mxu0 %v4894
  %v5001 = vpop.f32.mrb[0].mxu0
  %v5002 = vadd.f32 0.0, %v5001
  %v5003 = vpop.f32.mrb[0].mxu0
  %5004 = vmatprep.mubr.f32.mxu0 0.0
  %5005 = vmatmul.mubr.f32.gmra.mrb[0].mxu0 %v4897
  %v5006 = vpop.f32.mrb[0].mxu0
  %v5007 = vadd.f32 0.0, %v5006
  %v5008 = vpop.f32.mrb[0].mxu0
  %5009 = vmatprep.mubr.f32.mxu0 0.0
  %5010 = vmatmul.mubr.f32.gmra.mrb[0].mxu0 %v4900
  %v5011 = vpop.f32.mrb[0].mxu0
  %v5012 = vadd.f32 0.0, %v5011
  %v5013 = vpop.f32.mrb[0].mxu0
  %5014 = vmatprep.mubr.f32.mxu0 0.0
  %5015 = vmatmul.mubr.f32.gmra.mrb[0].mxu0 %v4903
  %v5016 = vpop.f32.mrb[0].mxu0
  %v5017 = vadd.f32 0.0, %v5016
  %v5018 = vpop.f32.mrb[0].mxu0
  %5019 = vdwg.mxu0
  %v5020 = vadd.f32 %v4815, %v4972
  %v5021 = vadd.f32 %v4820, %v4977
  %v5022 = vadd.f32 %v4825, %v4982
  %v5023 = vadd.f32 %v4830, %v4987
  %v5024 = vadd.f32 %v4835, %v4992
  %v5025 = vadd.f32 %v4840, %v4997
  %v5026 = vadd.f32 %v4845, %v5002
  %v5027 = vadd.f32 %v4850, %v5007
  %v5028 = vadd.f32 %v4855, %v5012
  %v5029 = vadd.f32 %v4860, %v5017
  %v5030 = vld [vmem:[#allocation3 + $0xa] sm:$0xff]
  %v5031 = vld [vmem:[#allocation3 + $0x12] sm:$0xff]
  %v5032 = vld [vmem:[#allocation3 + $0x1a] sm:$0xff]
  %v5033 = vld [vmem:[#allocation3 + $0x22] sm:$0xff]
  %v5034 = vld [vmem:[#allocation3 + $0x2a] sm:$0xff]
  %v5035 = vld [vmem:[#allocation3 + $0x32] sm:$0xff]
  %v5036 = vld [vmem:[#allocation3 + $0x3a] sm:$0xff]
  %v5037 = vld [vmem:[#allocation3 + $0x42] sm:$0xff]
  %v5038 = vld [vmem:[#allocation3 + $0x4a] sm:$0xff]
  %v5039 = vld [vmem:[#allocation3 + $0x52] sm:$0xff]
  %v5040 = vld [vmem:[%s4 + $0x30] sm:$0xff]
  %v5041 = vld [vmem:[%s4 + $0x38] sm:$0xff]
  %v5043 = vsel %vm3917, %v5030, 0
  %v5046 = vsel %vm3917, %v5031, 0
  %v5049 = vsel %vm3917, %v5032, 0
  %v5052 = vsel %vm3917, %v5033, 0
  %v5055 = vsel %vm3917, %v5034, 0
  %v5058 = vsel %vm3917, %v5035, 0
  %v5061 = vsel %vm3917, %v5036, 0
  %v5064 = vsel %vm3917, %v5037, 0
  %v5067 = vsel %vm3917, %v5038, 0
  %v5070 = vsel %vm3917, %v5039, 0
  %5072 = vmatprep.subr.mxu0 0.0
  %5073 = vmatpush1.msra.mxu0 %v5040
  %5074 = vmatprep.subr.mxu0 0.0
  %5075 = vmatpush1.msra.mxu0 %v5041
  %5076 = vmatprep.subr.mxu0 0.0
  %5077 = vmatpush1.msra.mxu0 0.0
  %5078 = vmatprep.subr.mxu0 0.0
  %5079 = vmatpush1.msra.mxu0 0.0
  %5080 = vmatprep.subr.mxu0 0.0
  %5081 = vmatpush1.msra.mxu0 0.0
  %5082 = vmatprep.subr.mxu0 0.0
  %5083 = vmatpush1.msra.mxu0 0.0
  %5084 = vmatprep.subr.mxu0 0.0
  %5085 = vmatpush1.msra.mxu0 0.0
  %5086 = vmatprep.subr.mxu0 0.0
  %5087 = vmatpush1.msra.mxu0 0.0
  %5088 = vmatprep.subr.mxu0 0.0
  %5089 = vmatpush1.msra.mxu0 0.0
  %5090 = vmatprep.subr.mxu0 0.0
  %5091 = vmatpush1.msra.mxu0 0.0
  %5092 = vmatprep.subr.mxu0 0.0
  %5093 = vmatpush1.msra.mxu0 0.0
  %5094 = vmatprep.subr.mxu0 0.0
  %5095 = vmatpush1.msra.mxu0 0.0
  %5096 = vmatprep.subr.mxu0 0.0
  %5097 = vmatpush1.msra.mxu0 0.0
  %5098 = vmatprep.subr.mxu0 0.0
  %5099 = vmatpush1.msra.mxu0 0.0
  %5100 = vmatprep.subr.mxu0 0.0
  %5101 = vmatpush1.msra.mxu0 0.0
  %5102 = vmatprep.subr.mxu0 0.0
  %5103 = vmatpush1.msra.mxu0 0.0
  %5104 = vmatprep.subr.mxu0 0.0
  %5105 = vmatpush1.msra.mxu0 0.0
  %5106 = vmatprep.subr.mxu0 0.0
  %5107 = vmatpush1.msra.mxu0 0.0
  %5108 = vmatprep.subr.mxu0 0.0
  %5109 = vmatpush1.msra.mxu0 0.0
  %5110 = vmatprep.subr.mxu0 0.0
  %5111 = vmatpush1.msra.mxu0 0.0
  %5112 = vmatprep.subr.mxu0 0.0
  %5113 = vmatpush1.msra.mxu0 0.0
  %5114 = vmatprep.subr.mxu0 0.0
  %5115 = vmatpush1.msra.mxu0 0.0
  %5116 = vmatprep.subr.mxu0 0.0
  %5117 = vmatpush1.msra.mxu0 0.0
  %5118 = vmatprep.subr.mxu0 0.0
  %5119 = vmatpush1.msra.mxu0 0.0
  %5120 = vmatprep.subr.mxu0 0.0
  %5121 = vmatpush1.msra.mxu0 0.0
  %5122 = vmatprep.subr.mxu0 0.0
  %5123 = vmatpush1.msra.mxu0 0.0
  %5124 = vmatprep.subr.mxu0 0.0
  %5125 = vmatpush1.msra.mxu0 0.0
  %5126 = vmatprep.subr.mxu0 0.0
  %5127 = vmatpush1.msra.mxu0 0.0
  %5128 = vmatprep.subr.mxu0 0.0
  %5129 = vmatpush1.msra.mxu0 0.0
  %5130 = vmatprep.subr.mxu0 0.0
  %5131 = vmatpush1.msra.mxu0 0.0
  %5132 = vmatprep.subr.mxu0 0.0
  %5133 = vmatpush1.msra.mxu0 0.0
  %5134 = vmatprep.subr.mxu0 0.0
  %5135 = vmatpush1.msra.mxu0 0.0
  %5136 = vmatprep.mubr.f32.mxu0 0.0
  %5137 = vmatmul.mubr.f32.gmra.mrb[0].mxu0 %v5043
  %v5138 = vpop.f32.mrb[0].mxu0
  %v5139 = vadd.f32 0.0, %v5138
  %v5140 = vpop.f32.mrb[0].mxu0
  %5141 = vmatprep.mubr.f32.mxu0 0.0
  %5142 = vmatmul.mubr.f32.gmra.mrb[0].mxu0 %v5046
  %v5143 = vpop.f32.mrb[0].mxu0
  %v5144 = vadd.f32 0.0, %v5143
  %v5145 = vpop.f32.mrb[0].mxu0
  %5146 = vmatprep.mubr.f32.mxu0 0.0
  %5147 = vmatmul.mubr.f32.gmra.mrb[0].mxu0 %v5049
  %v5148 = vpop.f32.mrb[0].mxu0
  %v5149 = vadd.f32 0.0, %v5148
  %v5150 = vpop.f32.mrb[0].mxu0
  %5151 = vmatprep.mubr.f32.mxu0 0.0
  %5152 = vmatmul.mubr.f32.gmra.mrb[0].mxu0 %v5052
  %v5153 = vpop.f32.mrb[0].mxu0
  %v5154 = vadd.f32 0.0, %v5153
  %v5155 = vpop.f32.mrb[0].mxu0
  %5156 = vmatprep.mubr.f32.mxu0 0.0
  %5157 = vmatmul.mubr.f32.gmra.mrb[0].mxu0 %v5055
  %v5158 = vpop.f32.mrb[0].mxu0
  %v5159 = vadd.f32 0.0, %v5158
  %v5160 = vpop.f32.mrb[0].mxu0
  %5161 = vmatprep.mubr.f32.mxu0 0.0
  %5162 = vmatmul.mubr.f32.gmra.mrb[0].mxu0 %v5058
  %v5163 = vpop.f32.mrb[0].mxu0
  %v5164 = vadd.f32 0.0, %v5163
  %v5165 = vpop.f32.mrb[0].mxu0
  %5166 = vmatprep.mubr.f32.mxu0 0.0
  %5167 = vmatmul.mubr.f32.gmra.mrb[0].mxu0 %v5061
  %v5168 = vpop.f32.mrb[0].mxu0
  %v5169 = vadd.f32 0.0, %v5168
  %v5170 = vpop.f32.mrb[0].mxu0
  %5171 = vmatprep.mubr.f32.mxu0 0.0
  %5172 = vmatmul.mubr.f32.gmra.mrb[0].mxu0 %v5064
  %v5173 = vpop.f32.mrb[0].mxu0
  %v5174 = vadd.f32 0.0, %v5173
  %v5175 = vpop.f32.mrb[0].mxu0
  %5176 = vmatprep.mubr.f32.mxu0 0.0
  %5177 = vmatmul.mubr.f32.gmra.mrb[0].mxu0 %v5067
  %v5178 = vpop.f32.mrb[0].mxu0
  %v5179 = vadd.f32 0.0, %v5178
  %v5180 = vpop.f32.mrb[0].mxu0
  %5181 = vmatprep.mubr.f32.mxu0 0.0
  %5182 = vmatmul.mubr.f32.gmra.mrb[0].mxu0 %v5070
  %v5183 = vpop.f32.mrb[0].mxu0
  %v5184 = vadd.f32 0.0, %v5183
  %v5185 = vpop.f32.mrb[0].mxu0
  %5186 = vdwg.mxu0
  %v5187 = vadd.f32 %v5020, %v5139
  %v5188 = vadd.f32 %v5021, %v5144
  %v5189 = vadd.f32 %v5022, %v5149
  %v5190 = vadd.f32 %v5023, %v5154
  %v5191 = vadd.f32 %v5024, %v5159
  %v5192 = vadd.f32 %v5025, %v5164
  %v5193 = vadd.f32 %v5026, %v5169
  %v5194 = vadd.f32 %v5027, %v5174
  %v5195 = vadd.f32 %v5028, %v5179
  %v5196 = vadd.f32 %v5029, %v5184
  %v5197 = vld [vmem:[#allocation3 + $0xb] sm:$0xff]
  %v5198 = vld [vmem:[#allocation3 + $0x13] sm:$0xff]
  %v5199 = vld [vmem:[#allocation3 + $0x1b] sm:$0xff]
  %v5200 = vld [vmem:[#allocation3 + $0x23] sm:$0xff]
  %v5201 = vld [vmem:[#allocation3 + $0x2b] sm:$0xff]
  %v5202 = vld [vmem:[#allocation3 + $0x33] sm:$0xff]
  %v5203 = vld [vmem:[#allocation3 + $0x3b] sm:$0xff]
  %v5204 = vld [vmem:[#allocation3 + $0x43] sm:$0xff]
  %v5205 = vld [vmem:[#allocation3 + $0x4b] sm:$0xff]
  %v5206 = vld [vmem:[#allocation3 + $0x53] sm:$0xff]
  %v5207 = vld [vmem:[%s4 + $0x40] sm:$0xff]
  %v5208 = vld [vmem:[%s4 + $0x48] sm:$0xff]
  %v5210 = vsel %vm3917, %v5197, 0
  %v5213 = vsel %vm3917, %v5198, 0
  %v5216 = vsel %vm3917, %v5199, 0
  %v5219 = vsel %vm3917, %v5200, 0
  %v5222 = vsel %vm3917, %v5201, 0
  %v5225 = vsel %vm3917, %v5202, 0
  %v5228 = vsel %vm3917, %v5203, 0
  %v5231 = vsel %vm3917, %v5204, 0
  %v5234 = vsel %vm3917, %v5205, 0
  %v5237 = vsel %vm3917, %v5206, 0
  %5239 = vmatprep.subr.mxu0 0.0
  %5240 = vmatpush1.msra.mxu0 %v5207
  %5241 = vmatprep.subr.mxu0 0.0
  %5242 = vmatpush1.msra.mxu0 %v5208
  %5243 = vmatprep.subr.mxu0 0.0
  %5244 = vmatpush1.msra.mxu0 0.0
  %5245 = vmatprep.subr.mxu0 0.0
  %5246 = vmatpush1.msra.mxu0 0.0
  %5247 = vmatprep.subr.mxu0 0.0
  %5248 = vmatpush1.msra.mxu0 0.0
  %5249 = vmatprep.subr.mxu0 0.0
  %5250 = vmatpush1.msra.mxu0 0.0
  %5251 = vmatprep.subr.mxu0 0.0
  %5252 = vmatpush1.msra.mxu0 0.0
  %5253 = vmatprep.subr.mxu0 0.0
  %5254 = vmatpush1.msra.mxu0 0.0
  %5255 = vmatprep.subr.mxu0 0.0
  %5256 = vmatpush1.msra.mxu0 0.0
  %5257 = vmatprep.subr.mxu0 0.0
  %5258 = vmatpush1.msra.mxu0 0.0
  %5259 = vmatprep.subr.mxu0 0.0
  %5260 = vmatpush1.msra.mxu0 0.0
  %5261 = vmatprep.subr.mxu0 0.0
  %5262 = vmatpush1.msra.mxu0 0.0
  %5263 = vmatprep.subr.mxu0 0.0
  %5264 = vmatpush1.msra.mxu0 0.0
  %5265 = vmatprep.subr.mxu0 0.0
  %5266 = vmatpush1.msra.mxu0 0.0
  %5267 = vmatprep.subr.mxu0 0.0
  %5268 = vmatpush1.msra.mxu0 0.0
  %5269 = vmatprep.subr.mxu0 0.0
  %5270 = vmatpush1.msra.mxu0 0.0
  %5271 = vmatprep.subr.mxu0 0.0
  %5272 = vmatpush1.msra.mxu0 0.0
  %5273 = vmatprep.subr.mxu0 0.0
  %5274 = vmatpush1.msra.mxu0 0.0
  %5275 = vmatprep.subr.mxu0 0.0
  %5276 = vmatpush1.msra.mxu0 0.0
  %5277 = vmatprep.subr.mxu0 0.0
  %5278 = vmatpush1.msra.mxu0 0.0
  %5279 = vmatprep.subr.mxu0 0.0
  %5280 = vmatpush1.msra.mxu0 0.0
  %5281 = vmatprep.subr.mxu0 0.0
  %5282 = vmatpush1.msra.mxu0 0.0
  %5283 = vmatprep.subr.mxu0 0.0
  %5284 = vmatpush1.msra.mxu0 0.0
  %5285 = vmatprep.subr.mxu0 0.0
  %5286 = vmatpush1.msra.mxu0 0.0
  %5287 = vmatprep.subr.mxu0 0.0
  %5288 = vmatpush1.msra.mxu0 0.0
  %5289 = vmatprep.subr.mxu0 0.0
  %5290 = vmatpush1.msra.mxu0 0.0
  %5291 = vmatprep.subr.mxu0 0.0
  %5292 = vmatpush1.msra.mxu0 0.0
  %5293 = vmatprep.subr.mxu0 0.0
  %5294 = vmatpush1.msra.mxu0 0.0
  %5295 = vmatprep.subr.mxu0 0.0
  %5296 = vmatpush1.msra.mxu0 0.0
  %5297 = vmatprep.subr.mxu0 0.0
  %5298 = vmatpush1.msra.mxu0 0.0
  %5299 = vmatprep.subr.mxu0 0.0
  %5300 = vmatpush1.msra.mxu0 0.0
  %5301 = vmatprep.subr.mxu0 0.0
  %5302 = vmatpush1.msra.mxu0 0.0
  %5303 = vmatprep.mubr.f32.mxu0 0.0
  %5304 = vmatmul.mubr.f32.gmra.mrb[0].mxu0 %v5210
  %v5305 = vpop.f32.mrb[0].mxu0
  %v5306 = vadd.f32 0.0, %v5305
  %v5307 = vpop.f32.mrb[0].mxu0
  %5308 = vmatprep.mubr.f32.mxu0 0.0
  %5309 = vmatmul.mubr.f32.gmra.mrb[0].mxu0 %v5213
  %v5310 = vpop.f32.mrb[0].mxu0
  %v5311 = vadd.f32 0.0, %v5310
  %v5312 = vpop.f32.mrb[0].mxu0
  %5313 = vmatprep.mubr.f32.mxu0 0.0
  %5314 = vmatmul.mubr.f32.gmra.mrb[0].mxu0 %v5216
  %v5315 = vpop.f32.mrb[0].mxu0
  %v5316 = vadd.f32 0.0, %v5315
  %v5317 = vpop.f32.mrb[0].mxu0
  %5318 = vmatprep.mubr.f32.mxu0 0.0
  %5319 = vmatmul.mubr.f32.gmra.mrb[0].mxu0 %v5219
  %v5320 = vpop.f32.mrb[0].mxu0
  %v5321 = vadd.f32 0.0, %v5320
  %v5322 = vpop.f32.mrb[0].mxu0
  %5323 = vmatprep.mubr.f32.mxu0 0.0
  %5324 = vmatmul.mubr.f32.gmra.mrb[0].mxu0 %v5222
  %v5325 = vpop.f32.mrb[0].mxu0
  %v5326 = vadd.f32 0.0, %v5325
  %v5327 = vpop.f32.mrb[0].mxu0
  %5328 = vmatprep.mubr.f32.mxu0 0.0
  %5329 = vmatmul.mubr.f32.gmra.mrb[0].mxu0 %v5225
  %v5330 = vpop.f32.mrb[0].mxu0
  %v5331 = vadd.f32 0.0, %v5330
  %v5332 = vpop.f32.mrb[0].mxu0
  %5333 = vmatprep.mubr.f32.mxu0 0.0
  %5334 = vmatmul.mubr.f32.gmra.mrb[0].mxu0 %v5228
  %v5335 = vpop.f32.mrb[0].mxu0
  %v5336 = vadd.f32 0.0, %v5335
  %v5337 = vpop.f32.mrb[0].mxu0
  %5338 = vmatprep.mubr.f32.mxu0 0.0
  %5339 = vmatmul.mubr.f32.gmra.mrb[0].mxu0 %v5231
  %v5340 = vpop.f32.mrb[0].mxu0
  %v5341 = vadd.f32 0.0, %v5340
  %v5342 = vpop.f32.mrb[0].mxu0
  %5343 = vmatprep.mubr.f32.mxu0 0.0
  %5344 = vmatmul.mubr.f32.gmra.mrb[0].mxu0 %v5234
  %v5345 = vpop.f32.mrb[0].mxu0
  %v5346 = vadd.f32 0.0, %v5345
  %v5347 = vpop.f32.mrb[0].mxu0
  %5348 = vmatprep.mubr.f32.mxu0 0.0
  %5349 = vmatmul.mubr.f32.gmra.mrb[0].mxu0 %v5237
  %v5350 = vpop.f32.mrb[0].mxu0
  %v5351 = vadd.f32 0.0, %v5350
  %v5352 = vpop.f32.mrb[0].mxu0
  %5353 = vdwg.mxu0
  %v5354 = vadd.f32 %v5187, %v5306
  %v5355 = vadd.f32 %v5188, %v5311
  %v5356 = vadd.f32 %v5189, %v5316
  %v5357 = vadd.f32 %v5190, %v5321
  %v5358 = vadd.f32 %v5191, %v5326
  %v5359 = vadd.f32 %v5192, %v5331
  %v5360 = vadd.f32 %v5193, %v5336
  %v5361 = vadd.f32 %v5194, %v5341
  %v5362 = vadd.f32 %v5195, %v5346
  %v5363 = vadd.f32 %v5196, %v5351
  %v5364 = vld [vmem:[#allocation3 + $0xc] sm:$0xff]
  %v5365 = vld [vmem:[#allocation3 + $0x14] sm:$0xff]
  %v5366 = vld [vmem:[#allocation3 + $0x1c] sm:$0xff]
  %v5367 = vld [vmem:[#allocation3 + $0x24] sm:$0xff]
  %v5368 = vld [vmem:[#allocation3 + $0x2c] sm:$0xff]
  %v5369 = vld [vmem:[#allocation3 + $0x34] sm:$0xff]
  %v5370 = vld [vmem:[#allocation3 + $0x3c] sm:$0xff]
  %v5371 = vld [vmem:[#allocation3 + $0x44] sm:$0xff]
  %v5372 = vld [vmem:[#allocation3 + $0x4c] sm:$0xff]
  %v5373 = vld [vmem:[#allocation3 + $0x54] sm:$0xff]
  %v5374 = vld [vmem:[%s4 + $0x50] sm:$0xff]
  %v5375 = vld [vmem:[%s4 + $0x58] sm:$0xff]
  %v5377 = vsel %vm3917, %v5364, 0
  %v5380 = vsel %vm3917, %v5365, 0
  %v5383 = vsel %vm3917, %v5366, 0
  %v5386 = vsel %vm3917, %v5367, 0
  %v5389 = vsel %vm3917, %v5368, 0
  %v5392 = vsel %vm3917, %v5369, 0
  %v5395 = vsel %vm3917, %v5370, 0
  %v5398 = vsel %vm3917, %v5371, 0
  %v5401 = vsel %vm3917, %v5372, 0
  %v5404 = vsel %vm3917, %v5373, 0
  %5406 = vmatprep.subr.mxu0 0.0
  %5407 = vmatpush1.msra.mxu0 %v5374
  %5408 = vmatprep.subr.mxu0 0.0
  %5409 = vmatpush1.msra.mxu0 %v5375
  %5410 = vmatprep.subr.mxu0 0.0
  %5411 = vmatpush1.msra.mxu0 0.0
  %5412 = vmatprep.subr.mxu0 0.0
  %5413 = vmatpush1.msra.mxu0 0.0
  %5414 = vmatprep.subr.mxu0 0.0
  %5415 = vmatpush1.msra.mxu0 0.0
  %5416 = vmatprep.subr.mxu0 0.0
  %5417 = vmatpush1.msra.mxu0 0.0
  %5418 = vmatprep.subr.mxu0 0.0
  %5419 = vmatpush1.msra.mxu0 0.0
  %5420 = vmatprep.subr.mxu0 0.0
  %5421 = vmatpush1.msra.mxu0 0.0
  %5422 = vmatprep.subr.mxu0 0.0
  %5423 = vmatpush1.msra.mxu0 0.0
  %5424 = vmatprep.subr.mxu0 0.0
  %5425 = vmatpush1.msra.mxu0 0.0
  %5426 = vmatprep.subr.mxu0 0.0
  %5427 = vmatpush1.msra.mxu0 0.0
  %5428 = vmatprep.subr.mxu0 0.0
  %5429 = vmatpush1.msra.mxu0 0.0
  %5430 = vmatprep.subr.mxu0 0.0
  %5431 = vmatpush1.msra.mxu0 0.0
  %5432 = vmatprep.subr.mxu0 0.0
  %5433 = vmatpush1.msra.mxu0 0.0
  %5434 = vmatprep.subr.mxu0 0.0
  %5435 = vmatpush1.msra.mxu0 0.0
  %5436 = vmatprep.subr.mxu0 0.0
  %5437 = vmatpush1.msra.mxu0 0.0
  %5438 = vmatprep.subr.mxu0 0.0
  %5439 = vmatpush1.msra.mxu0 0.0
  %5440 = vmatprep.subr.mxu0 0.0
  %5441 = vmatpush1.msra.mxu0 0.0
  %5442 = vmatprep.subr.mxu0 0.0
  %5443 = vmatpush1.msra.mxu0 0.0
  %5444 = vmatprep.subr.mxu0 0.0
  %5445 = vmatpush1.msra.mxu0 0.0
  %5446 = vmatprep.subr.mxu0 0.0
  %5447 = vmatpush1.msra.mxu0 0.0
  %5448 = vmatprep.subr.mxu0 0.0
  %5449 = vmatpush1.msra.mxu0 0.0
  %5450 = vmatprep.subr.mxu0 0.0
  %5451 = vmatpush1.msra.mxu0 0.0
  %5452 = vmatprep.subr.mxu0 0.0
  %5453 = vmatpush1.msra.mxu0 0.0
  %5454 = vmatprep.subr.mxu0 0.0
  %5455 = vmatpush1.msra.mxu0 0.0
  %5456 = vmatprep.subr.mxu0 0.0
  %5457 = vmatpush1.msra.mxu0 0.0
  %5458 = vmatprep.subr.mxu0 0.0
  %5459 = vmatpush1.msra.mxu0 0.0
  %5460 = vmatprep.subr.mxu0 0.0
  %5461 = vmatpush1.msra.mxu0 0.0
  %5462 = vmatprep.subr.mxu0 0.0
  %5463 = vmatpush1.msra.mxu0 0.0
  %5464 = vmatprep.subr.mxu0 0.0
  %5465 = vmatpush1.msra.mxu0 0.0
  %5466 = vmatprep.subr.mxu0 0.0
  %5467 = vmatpush1.msra.mxu0 0.0
  %5468 = vmatprep.subr.mxu0 0.0
  %5469 = vmatpush1.msra.mxu0 0.0
  %5470 = vmatprep.mubr.f32.mxu0 0.0
  %5471 = vmatmul.mubr.f32.gmra.mrb[0].mxu0 %v5377
  %v5472 = vpop.f32.mrb[0].mxu0
  %v5473 = vadd.f32 0.0, %v5472
  %v5474 = vpop.f32.mrb[0].mxu0
  %5475 = vmatprep.mubr.f32.mxu0 0.0
  %5476 = vmatmul.mubr.f32.gmra.mrb[0].mxu0 %v5380
  %v5477 = vpop.f32.mrb[0].mxu0
  %v5478 = vadd.f32 0.0, %v5477
  %v5479 = vpop.f32.mrb[0].mxu0
  %5480 = vmatprep.mubr.f32.mxu0 0.0
  %5481 = vmatmul.mubr.f32.gmra.mrb[0].mxu0 %v5383
  %v5482 = vpop.f32.mrb[0].mxu0
  %v5483 = vadd.f32 0.0, %v5482
  %v5484 = vpop.f32.mrb[0].mxu0
  %5485 = vmatprep.mubr.f32.mxu0 0.0
  %5486 = vmatmul.mubr.f32.gmra.mrb[0].mxu0 %v5386
  %v5487 = vpop.f32.mrb[0].mxu0
  %v5488 = vadd.f32 0.0, %v5487
  %v5489 = vpop.f32.mrb[0].mxu0
  %5490 = vmatprep.mubr.f32.mxu0 0.0
  %5491 = vmatmul.mubr.f32.gmra.mrb[0].mxu0 %v5389
  %v5492 = vpop.f32.mrb[0].mxu0
  %v5493 = vadd.f32 0.0, %v5492
  %v5494 = vpop.f32.mrb[0].mxu0
  %5495 = vmatprep.mubr.f32.mxu0 0.0
  %5496 = vmatmul.mubr.f32.gmra.mrb[0].mxu0 %v5392
  %v5497 = vpop.f32.mrb[0].mxu0
  %v5498 = vadd.f32 0.0, %v5497
  %v5499 = vpop.f32.mrb[0].mxu0
  %5500 = vmatprep.mubr.f32.mxu0 0.0
  %5501 = vmatmul.mubr.f32.gmra.mrb[0].mxu0 %v5395
  %v5502 = vpop.f32.mrb[0].mxu0
  %v5503 = vadd.f32 0.0, %v5502
  %v5504 = vpop.f32.mrb[0].mxu0
  %5505 = vmatprep.mubr.f32.mxu0 0.0
  %5506 = vmatmul.mubr.f32.gmra.mrb[0].mxu0 %v5398
  %v5507 = vpop.f32.mrb[0].mxu0
  %v5508 = vadd.f32 0.0, %v5507
  %v5509 = vpop.f32.mrb[0].mxu0
  %5510 = vmatprep.mubr.f32.mxu0 0.0
  %5511 = vmatmul.mubr.f32.gmra.mrb[0].mxu0 %v5401
  %v5512 = vpop.f32.mrb[0].mxu0
  %v5513 = vadd.f32 0.0, %v5512
  %v5514 = vpop.f32.mrb[0].mxu0
  %5515 = vmatprep.mubr.f32.mxu0 0.0
  %5516 = vmatmul.mubr.f32.gmra.mrb[0].mxu0 %v5404
  %v5517 = vpop.f32.mrb[0].mxu0
  %v5518 = vadd.f32 0.0, %v5517
  %v5519 = vpop.f32.mrb[0].mxu0
  %5520 = vdwg.mxu0
  %v5521 = vadd.f32 %v5354, %v5473
  %v5522 = vadd.f32 %v5355, %v5478
  %v5523 = vadd.f32 %v5356, %v5483
  %v5524 = vadd.f32 %v5357, %v5488
  %v5525 = vadd.f32 %v5358, %v5493
  %v5526 = vadd.f32 %v5359, %v5498
  %v5527 = vadd.f32 %v5360, %v5503
  %v5528 = vadd.f32 %v5361, %v5508
  %v5529 = vadd.f32 %v5362, %v5513
  %v5530 = vadd.f32 %v5363, %v5518
  %v5531 = vld [vmem:[#allocation3 + $0x14] sm:$0xff]
  %v5532 = vld [vmem:[#allocation3 + $0x1c] sm:$0xff]
  %v5533 = vld [vmem:[#allocation3 + $0x24] sm:$0xff]
  %v5534 = vld [vmem:[#allocation3 + $0x2c] sm:$0xff]
  %v5535 = vld [vmem:[#allocation3 + $0x34] sm:$0xff]
  %v5536 = vld [vmem:[#allocation3 + $0x3c] sm:$0xff]
  %v5537 = vld [vmem:[#allocation3 + $0x44] sm:$0xff]
  %v5538 = vld [vmem:[#allocation3 + $0x4c] sm:$0xff]
  %v5539 = vld [vmem:[#allocation3 + $0x54] sm:$0xff]
  %v5540 = vld [vmem:[#allocation3 + $0x5c] sm:$0xff]
  %v5541 = vld [vmem:[%s4 + $0x60] sm:$0xff]
  %v5542 = vld [vmem:[%s4 + $0x68] sm:$0xff]
  %v5544 = vsel %vm3917, %v5531, 0
  %v5547 = vsel %vm3917, %v5532, 0
  %v5550 = vsel %vm3917, %v5533, 0
  %v5553 = vsel %vm3917, %v5534, 0
  %v5556 = vsel %vm3917, %v5535, 0
  %v5559 = vsel %vm3917, %v5536, 0
  %v5562 = vsel %vm3917, %v5537, 0
  %v5565 = vsel %vm3917, %v5538, 0
  %v5568 = vsel %vm3917, %v5539, 0
  %v5571 = vsel %vm3917, %v5540, 0
  %5573 = vmatprep.subr.mxu0 0.0
  %5574 = vmatpush1.msra.mxu0 %v5541
  %5575 = vmatprep.subr.mxu0 0.0
  %5576 = vmatpush1.msra.mxu0 %v5542
  %5577 = vmatprep.subr.mxu0 0.0
  %5578 = vmatpush1.msra.mxu0 0.0
  %5579 = vmatprep.subr.mxu0 0.0
  %5580 = vmatpush1.msra.mxu0 0.0
  %5581 = vmatprep.subr.mxu0 0.0
  %5582 = vmatpush1.msra.mxu0 0.0
  %5583 = vmatprep.subr.mxu0 0.0
  %5584 = vmatpush1.msra.mxu0 0.0
  %5585 = vmatprep.subr.mxu0 0.0
  %5586 = vmatpush1.msra.mxu0 0.0
  %5587 = vmatprep.subr.mxu0 0.0
  %5588 = vmatpush1.msra.mxu0 0.0
  %5589 = vmatprep.subr.mxu0 0.0
  %5590 = vmatpush1.msra.mxu0 0.0
  %5591 = vmatprep.subr.mxu0 0.0
  %5592 = vmatpush1.msra.mxu0 0.0
  %5593 = vmatprep.subr.mxu0 0.0
  %5594 = vmatpush1.msra.mxu0 0.0
  %5595 = vmatprep.subr.mxu0 0.0
  %5596 = vmatpush1.msra.mxu0 0.0
  %5597 = vmatprep.subr.mxu0 0.0
  %5598 = vmatpush1.msra.mxu0 0.0
  %5599 = vmatprep.subr.mxu0 0.0
  %5600 = vmatpush1.msra.mxu0 0.0
  %5601 = vmatprep.subr.mxu0 0.0
  %5602 = vmatpush1.msra.mxu0 0.0
  %5603 = vmatprep.subr.mxu0 0.0
  %5604 = vmatpush1.msra.mxu0 0.0
  %5605 = vmatprep.subr.mxu0 0.0
  %5606 = vmatpush1.msra.mxu0 0.0
  %5607 = vmatprep.subr.mxu0 0.0
  %5608 = vmatpush1.msra.mxu0 0.0
  %5609 = vmatprep.subr.mxu0 0.0
  %5610 = vmatpush1.msra.mxu0 0.0
  %5611 = vmatprep.subr.mxu0 0.0
  %5612 = vmatpush1.msra.mxu0 0.0
  %5613 = vmatprep.subr.mxu0 0.0
  %5614 = vmatpush1.msra.mxu0 0.0
  %5615 = vmatprep.subr.mxu0 0.0
  %5616 = vmatpush1.msra.mxu0 0.0
  %5617 = vmatprep.subr.mxu0 0.0
  %5618 = vmatpush1.msra.mxu0 0.0
  %5619 = vmatprep.subr.mxu0 0.0
  %5620 = vmatpush1.msra.mxu0 0.0
  %5621 = vmatprep.subr.mxu0 0.0
  %5622 = vmatpush1.msra.mxu0 0.0
  %5623 = vmatprep.subr.mxu0 0.0
  %5624 = vmatpush1.msra.mxu0 0.0
  %5625 = vmatprep.subr.mxu0 0.0
  %5626 = vmatpush1.msra.mxu0 0.0
  %5627 = vmatprep.subr.mxu0 0.0
  %5628 = vmatpush1.msra.mxu0 0.0
  %5629 = vmatprep.subr.mxu0 0.0
  %5630 = vmatpush1.msra.mxu0 0.0
  %5631 = vmatprep.subr.mxu0 0.0
  %5632 = vmatpush1.msra.mxu0 0.0
  %5633 = vmatprep.subr.mxu0 0.0
  %5634 = vmatpush1.msra.mxu0 0.0
  %5635 = vmatprep.subr.mxu0 0.0
  %5636 = vmatpush1.msra.mxu0 0.0
  %5637 = vmatprep.mubr.f32.mxu0 0.0
  %5638 = vmatmul.mubr.f32.gmra.mrb[0].mxu0 %v5544
  %v5639 = vpop.f32.mrb[0].mxu0
  %v5640 = vadd.f32 0.0, %v5639
  %v5641 = vpop.f32.mrb[0].mxu0
  %5642 = vmatprep.mubr.f32.mxu0 0.0
  %5643 = vmatmul.mubr.f32.gmra.mrb[0].mxu0 %v5547
  %v5644 = vpop.f32.mrb[0].mxu0
  %v5645 = vadd.f32 0.0, %v5644
  %v5646 = vpop.f32.mrb[0].mxu0
  %5647 = vmatprep.mubr.f32.mxu0 0.0
  %5648 = vmatmul.mubr.f32.gmra.mrb[0].mxu0 %v5550
  %v5649 = vpop.f32.mrb[0].mxu0
  %v5650 = vadd.f32 0.0, %v5649
  %v5651 = vpop.f32.mrb[0].mxu0
  %5652 = vmatprep.mubr.f32.mxu0 0.0
  %5653 = vmatmul.mubr.f32.gmra.mrb[0].mxu0 %v5553
  %v5654 = vpop.f32.mrb[0].mxu0
  %v5655 = vadd.f32 0.0, %v5654
  %v5656 = vpop.f32.mrb[0].mxu0
  %5657 = vmatprep.mubr.f32.mxu0 0.0
  %5658 = vmatmul.mubr.f32.gmra.mrb[0].mxu0 %v5556
  %v5659 = vpop.f32.mrb[0].mxu0
  %v5660 = vadd.f32 0.0, %v5659
  %v5661 = vpop.f32.mrb[0].mxu0
  %5662 = vmatprep.mubr.f32.mxu0 0.0
  %5663 = vmatmul.mubr.f32.gmra.mrb[0].mxu0 %v5559
  %v5664 = vpop.f32.mrb[0].mxu0
  %v5665 = vadd.f32 0.0, %v5664
  %v5666 = vpop.f32.mrb[0].mxu0
  %5667 = vmatprep.mubr.f32.mxu0 0.0
  %5668 = vmatmul.mubr.f32.gmra.mrb[0].mxu0 %v5562
  %v5669 = vpop.f32.mrb[0].mxu0
  %v5670 = vadd.f32 0.0, %v5669
  %v5671 = vpop.f32.mrb[0].mxu0
  %5672 = vmatprep.mubr.f32.mxu0 0.0
  %5673 = vmatmul.mubr.f32.gmra.mrb[0].mxu0 %v5565
  %v5674 = vpop.f32.mrb[0].mxu0
  %v5675 = vadd.f32 0.0, %v5674
  %v5676 = vpop.f32.mrb[0].mxu0
  %5677 = vmatprep.mubr.f32.mxu0 0.0
  %5678 = vmatmul.mubr.f32.gmra.mrb[0].mxu0 %v5568
  %v5679 = vpop.f32.mrb[0].mxu0
  %v5680 = vadd.f32 0.0, %v5679
  %v5681 = vpop.f32.mrb[0].mxu0
  %5682 = vmatprep.mubr.f32.mxu0 0.0
  %5683 = vmatmul.mubr.f32.gmra.mrb[0].mxu0 %v5571
  %v5684 = vpop.f32.mrb[0].mxu0
  %v5685 = vadd.f32 0.0, %v5684
  %v5686 = vpop.f32.mrb[0].mxu0
  %5687 = vdwg.mxu0
  %v5688 = vadd.f32 %v5521, %v5640
  %v5689 = vadd.f32 %v5522, %v5645
  %v5690 = vadd.f32 %v5523, %v5650
  %v5691 = vadd.f32 %v5524, %v5655
  %v5692 = vadd.f32 %v5525, %v5660
  %v5693 = vadd.f32 %v5526, %v5665
  %v5694 = vadd.f32 %v5527, %v5670
  %v5695 = vadd.f32 %v5528, %v5675
  %v5696 = vadd.f32 %v5529, %v5680
  %v5697 = vadd.f32 %v5530, %v5685
  %v5698 = vld [vmem:[#allocation3 + $0x15] sm:$0xff]
  %v5699 = vld [vmem:[#allocation3 + $0x1d] sm:$0xff]
  %v5700 = vld [vmem:[#allocation3 + $0x25] sm:$0xff]
  %v5701 = vld [vmem:[#allocation3 + $0x2d] sm:$0xff]
  %v5702 = vld [vmem:[#allocation3 + $0x35] sm:$0xff]
  %v5703 = vld [vmem:[#allocation3 + $0x3d] sm:$0xff]
  %v5704 = vld [vmem:[#allocation3 + $0x45] sm:$0xff]
  %v5705 = vld [vmem:[#allocation3 + $0x4d] sm:$0xff]
  %v5706 = vld [vmem:[#allocation3 + $0x55] sm:$0xff]
  %v5707 = vld [vmem:[#allocation3 + $0x5d] sm:$0xff]
  %v5708 = vld [vmem:[%s4 + $0x70] sm:$0xff]
  %v5709 = vld [vmem:[%s4 + $0x78] sm:$0xff]
  %v5711 = vsel %vm3917, %v5698, 0
  %v5714 = vsel %vm3917, %v5699, 0
  %v5717 = vsel %vm3917, %v5700, 0
  %v5720 = vsel %vm3917, %v5701, 0
  %v5723 = vsel %vm3917, %v5702, 0
  %v5726 = vsel %vm3917, %v5703, 0
  %v5729 = vsel %vm3917, %v5704, 0
  %v5732 = vsel %vm3917, %v5705, 0
  %v5735 = vsel %vm3917, %v5706, 0
  %v5738 = vsel %vm3917, %v5707, 0
  %5740 = vmatprep.subr.mxu0 0.0
  %5741 = vmatpush1.msra.mxu0 %v5708
  %5742 = vmatprep.subr.mxu0 0.0
  %5743 = vmatpush1.msra.mxu0 %v5709
  %5744 = vmatprep.subr.mxu0 0.0
  %5745 = vmatpush1.msra.mxu0 0.0
  %5746 = vmatprep.subr.mxu0 0.0
  %5747 = vmatpush1.msra.mxu0 0.0
  %5748 = vmatprep.subr.mxu0 0.0
  %5749 = vmatpush1.msra.mxu0 0.0
  %5750 = vmatprep.subr.mxu0 0.0
  %5751 = vmatpush1.msra.mxu0 0.0
  %5752 = vmatprep.subr.mxu0 0.0
  %5753 = vmatpush1.msra.mxu0 0.0
  %5754 = vmatprep.subr.mxu0 0.0
  %5755 = vmatpush1.msra.mxu0 0.0
  %5756 = vmatprep.subr.mxu0 0.0
  %5757 = vmatpush1.msra.mxu0 0.0
  %5758 = vmatprep.subr.mxu0 0.0
  %5759 = vmatpush1.msra.mxu0 0.0
  %5760 = vmatprep.subr.mxu0 0.0
  %5761 = vmatpush1.msra.mxu0 0.0
  %5762 = vmatprep.subr.mxu0 0.0
  %5763 = vmatpush1.msra.mxu0 0.0
  %5764 = vmatprep.subr.mxu0 0.0
  %5765 = vmatpush1.msra.mxu0 0.0
  %5766 = vmatprep.subr.mxu0 0.0
  %5767 = vmatpush1.msra.mxu0 0.0
  %5768 = vmatprep.subr.mxu0 0.0
  %5769 = vmatpush1.msra.mxu0 0.0
  %5770 = vmatprep.subr.mxu0 0.0
  %5771 = vmatpush1.msra.mxu0 0.0
  %5772 = vmatprep.subr.mxu0 0.0
  %5773 = vmatpush1.msra.mxu0 0.0
  %5774 = vmatprep.subr.mxu0 0.0
  %5775 = vmatpush1.msra.mxu0 0.0
  %5776 = vmatprep.subr.mxu0 0.0
  %5777 = vmatpush1.msra.mxu0 0.0
  %5778 = vmatprep.subr.mxu0 0.0
  %5779 = vmatpush1.msra.mxu0 0.0
  %5780 = vmatprep.subr.mxu0 0.0
  %5781 = vmatpush1.msra.mxu0 0.0
  %5782 = vmatprep.subr.mxu0 0.0
  %5783 = vmatpush1.msra.mxu0 0.0
  %5784 = vmatprep.subr.mxu0 0.0
  %5785 = vmatpush1.msra.mxu0 0.0
  %5786 = vmatprep.subr.mxu0 0.0
  %5787 = vmatpush1.msra.mxu0 0.0
  %5788 = vmatprep.subr.mxu0 0.0
  %5789 = vmatpush1.msra.mxu0 0.0
  %5790 = vmatprep.subr.mxu0 0.0
  %5791 = vmatpush1.msra.mxu0 0.0
  %5792 = vmatprep.subr.mxu0 0.0
  %5793 = vmatpush1.msra.mxu0 0.0
  %5794 = vmatprep.subr.mxu0 0.0
  %5795 = vmatpush1.msra.mxu0 0.0
  %5796 = vmatprep.subr.mxu0 0.0
  %5797 = vmatpush1.msra.mxu0 0.0
  %5798 = vmatprep.subr.mxu0 0.0
  %5799 = vmatpush1.msra.mxu0 0.0
  %5800 = vmatprep.subr.mxu0 0.0
  %5801 = vmatpush1.msra.mxu0 0.0
  %5802 = vmatprep.subr.mxu0 0.0
  %5803 = vmatpush1.msra.mxu0 0.0
  %5804 = vmatprep.mubr.f32.mxu0 0.0
  %5805 = vmatmul.mubr.f32.gmra.mrb[0].mxu0 %v5711
  %v5806 = vpop.f32.mrb[0].mxu0
  %v5807 = vadd.f32 0.0, %v5806
  %v5808 = vpop.f32.mrb[0].mxu0
  %5809 = vmatprep.mubr.f32.mxu0 0.0
  %5810 = vmatmul.mubr.f32.gmra.mrb[0].mxu0 %v5714
  %v5811 = vpop.f32.mrb[0].mxu0
  %v5812 = vadd.f32 0.0, %v5811
  %v5813 = vpop.f32.mrb[0].mxu0
  %5814 = vmatprep.mubr.f32.mxu0 0.0
  %5815 = vmatmul.mubr.f32.gmra.mrb[0].mxu0 %v5717
  %v5816 = vpop.f32.mrb[0].mxu0
  %v5817 = vadd.f32 0.0, %v5816
  %v5818 = vpop.f32.mrb[0].mxu0
  %5819 = vmatprep.mubr.f32.mxu0 0.0
  %5820 = vmatmul.mubr.f32.gmra.mrb[0].mxu0 %v5720
  %v5821 = vpop.f32.mrb[0].mxu0
  %v5822 = vadd.f32 0.0, %v5821
  %v5823 = vpop.f32.mrb[0].mxu0
  %5824 = vmatprep.mubr.f32.mxu0 0.0
  %5825 = vmatmul.mubr.f32.gmra.mrb[0].mxu0 %v5723
  %v5826 = vpop.f32.mrb[0].mxu0
  %v5827 = vadd.f32 0.0, %v5826
  %v5828 = vpop.f32.mrb[0].mxu0
  %5829 = vmatprep.mubr.f32.mxu0 0.0
  %5830 = vmatmul.mubr.f32.gmra.mrb[0].mxu0 %v5726
  %v5831 = vpop.f32.mrb[0].mxu0
  %v5832 = vadd.f32 0.0, %v5831
  %v5833 = vpop.f32.mrb[0].mxu0
  %5834 = vmatprep.mubr.f32.mxu0 0.0
  %5835 = vmatmul.mubr.f32.gmra.mrb[0].mxu0 %v5729
  %v5836 = vpop.f32.mrb[0].mxu0
  %v5837 = vadd.f32 0.0, %v5836
  %v5838 = vpop.f32.mrb[0].mxu0
  %5839 = vmatprep.mubr.f32.mxu0 0.0
  %5840 = vmatmul.mubr.f32.gmra.mrb[0].mxu0 %v5732
  %v5841 = vpop.f32.mrb[0].mxu0
  %v5842 = vadd.f32 0.0, %v5841
  %v5843 = vpop.f32.mrb[0].mxu0
  %5844 = vmatprep.mubr.f32.mxu0 0.0
  %5845 = vmatmul.mubr.f32.gmra.mrb[0].mxu0 %v5735
  %v5846 = vpop.f32.mrb[0].mxu0
  %v5847 = vadd.f32 0.0, %v5846
  %v5848 = vpop.f32.mrb[0].mxu0
  %5849 = vmatprep.mubr.f32.mxu0 0.0
  %5850 = vmatmul.mubr.f32.gmra.mrb[0].mxu0 %v5738
  %v5851 = vpop.f32.mrb[0].mxu0
  %v5852 = vadd.f32 0.0, %v5851
  %v5853 = vpop.f32.mrb[0].mxu0
  %5854 = vdwg.mxu0
  %v5855 = vadd.f32 %v5688, %v5807
  %v5856 = vadd.f32 %v5689, %v5812
  %v5857 = vadd.f32 %v5690, %v5817
  %v5858 = vadd.f32 %v5691, %v5822
  %v5859 = vadd.f32 %v5692, %v5827
  %v5860 = vadd.f32 %v5693, %v5832
  %v5861 = vadd.f32 %v5694, %v5837
  %v5862 = vadd.f32 %v5695, %v5842
  %v5863 = vadd.f32 %v5696, %v5847
  %v5864 = vadd.f32 %v5697, %v5852
  %v5865 = vld [vmem:[#allocation3 + $0x16] sm:$0xff]
  %v5866 = vld [vmem:[#allocation3 + $0x1e] sm:$0xff]
  %v5867 = vld [vmem:[#allocation3 + $0x26] sm:$0xff]
  %v5868 = vld [vmem:[#allocation3 + $0x2e] sm:$0xff]
  %v5869 = vld [vmem:[#allocation3 + $0x36] sm:$0xff]
  %v5870 = vld [vmem:[#allocation3 + $0x3e] sm:$0xff]
  %v5871 = vld [vmem:[#allocation3 + $0x46] sm:$0xff]
  %v5872 = vld [vmem:[#allocation3 + $0x4e] sm:$0xff]
  %v5873 = vld [vmem:[#allocation3 + $0x56] sm:$0xff]
  %v5874 = vld [vmem:[#allocation3 + $0x5e] sm:$0xff]
  %v5875 = vld [vmem:[%s4 + $0x80] sm:$0xff]
  %v5876 = vld [vmem:[%s4 + $0x88] sm:$0xff]
  %v5878 = vsel %vm3917, %v5865, 0
  %v5881 = vsel %vm3917, %v5866, 0
  %v5884 = vsel %vm3917, %v5867, 0
  %v5887 = vsel %vm3917, %v5868, 0
  %v5890 = vsel %vm3917, %v5869, 0
  %v5893 = vsel %vm3917, %v5870, 0
  %v5896 = vsel %vm3917, %v5871, 0
  %v5899 = vsel %vm3917, %v5872, 0
  %v5902 = vsel %vm3917, %v5873, 0
  %v5905 = vsel %vm3917, %v5874, 0
  %5907 = vmatprep.subr.mxu0 0.0
  %5908 = vmatpush1.msra.mxu0 %v5875
  %5909 = vmatprep.subr.mxu0 0.0
  %5910 = vmatpush1.msra.mxu0 %v5876
  %5911 = vmatprep.subr.mxu0 0.0
  %5912 = vmatpush1.msra.mxu0 0.0
  %5913 = vmatprep.subr.mxu0 0.0
  %5914 = vmatpush1.msra.mxu0 0.0
  %5915 = vmatprep.subr.mxu0 0.0
  %5916 = vmatpush1.msra.mxu0 0.0
  %5917 = vmatprep.subr.mxu0 0.0
  %5918 = vmatpush1.msra.mxu0 0.0
  %5919 = vmatprep.subr.mxu0 0.0
  %5920 = vmatpush1.msra.mxu0 0.0
  %5921 = vmatprep.subr.mxu0 0.0
  %5922 = vmatpush1.msra.mxu0 0.0
  %5923 = vmatprep.subr.mxu0 0.0
  %5924 = vmatpush1.msra.mxu0 0.0
  %5925 = vmatprep.subr.mxu0 0.0
  %5926 = vmatpush1.msra.mxu0 0.0
  %5927 = vmatprep.subr.mxu0 0.0
  %5928 = vmatpush1.msra.mxu0 0.0
  %5929 = vmatprep.subr.mxu0 0.0
  %5930 = vmatpush1.msra.mxu0 0.0
  %5931 = vmatprep.subr.mxu0 0.0
  %5932 = vmatpush1.msra.mxu0 0.0
  %5933 = vmatprep.subr.mxu0 0.0
  %5934 = vmatpush1.msra.mxu0 0.0
  %5935 = vmatprep.subr.mxu0 0.0
  %5936 = vmatpush1.msra.mxu0 0.0
  %5937 = vmatprep.subr.mxu0 0.0
  %5938 = vmatpush1.msra.mxu0 0.0
  %5939 = vmatprep.subr.mxu0 0.0
  %5940 = vmatpush1.msra.mxu0 0.0
  %5941 = vmatprep.subr.mxu0 0.0
  %5942 = vmatpush1.msra.mxu0 0.0
  %5943 = vmatprep.subr.mxu0 0.0
  %5944 = vmatpush1.msra.mxu0 0.0
  %5945 = vmatprep.subr.mxu0 0.0
  %5946 = vmatpush1.msra.mxu0 0.0
  %5947 = vmatprep.subr.mxu0 0.0
  %5948 = vmatpush1.msra.mxu0 0.0
  %5949 = vmatprep.subr.mxu0 0.0
  %5950 = vmatpush1.msra.mxu0 0.0
  %5951 = vmatprep.subr.mxu0 0.0
  %5952 = vmatpush1.msra.mxu0 0.0
  %5953 = vmatprep.subr.mxu0 0.0
  %5954 = vmatpush1.msra.mxu0 0.0
  %5955 = vmatprep.subr.mxu0 0.0
  %5956 = vmatpush1.msra.mxu0 0.0
  %5957 = vmatprep.subr.mxu0 0.0
  %5958 = vmatpush1.msra.mxu0 0.0
  %5959 = vmatprep.subr.mxu0 0.0
  %5960 = vmatpush1.msra.mxu0 0.0
  %5961 = vmatprep.subr.mxu0 0.0
  %5962 = vmatpush1.msra.mxu0 0.0
  %5963 = vmatprep.subr.mxu0 0.0
  %5964 = vmatpush1.msra.mxu0 0.0
  %5965 = vmatprep.subr.mxu0 0.0
  %5966 = vmatpush1.msra.mxu0 0.0
  %5967 = vmatprep.subr.mxu0 0.0
  %5968 = vmatpush1.msra.mxu0 0.0
  %5969 = vmatprep.subr.mxu0 0.0
  %5970 = vmatpush1.msra.mxu0 0.0
  %5971 = vmatprep.mubr.f32.mxu0 0.0
  %5972 = vmatmul.mubr.f32.gmra.mrb[0].mxu0 %v5878
  %v5973 = vpop.f32.mrb[0].mxu0
  %v5974 = vadd.f32 0.0, %v5973
  %v5975 = vpop.f32.mrb[0].mxu0
  %5976 = vmatprep.mubr.f32.mxu0 0.0
  %5977 = vmatmul.mubr.f32.gmra.mrb[0].mxu0 %v5881
  %v5978 = vpop.f32.mrb[0].mxu0
  %v5979 = vadd.f32 0.0, %v5978
  %v5980 = vpop.f32.mrb[0].mxu0
  %5981 = vmatprep.mubr.f32.mxu0 0.0
  %5982 = vmatmul.mubr.f32.gmra.mrb[0].mxu0 %v5884
  %v5983 = vpop.f32.mrb[0].mxu0
  %v5984 = vadd.f32 0.0, %v5983
  %v5985 = vpop.f32.mrb[0].mxu0
  %5986 = vmatprep.mubr.f32.mxu0 0.0
  %5987 = vmatmul.mubr.f32.gmra.mrb[0].mxu0 %v5887
  %v5988 = vpop.f32.mrb[0].mxu0
  %v5989 = vadd.f32 0.0, %v5988
  %v5990 = vpop.f32.mrb[0].mxu0
  %5991 = vmatprep.mubr.f32.mxu0 0.0
  %5992 = vmatmul.mubr.f32.gmra.mrb[0].mxu0 %v5890
  %v5993 = vpop.f32.mrb[0].mxu0
  %v5994 = vadd.f32 0.0, %v5993
  %v5995 = vpop.f32.mrb[0].mxu0
  %5996 = vmatprep.mubr.f32.mxu0 0.0
  %5997 = vmatmul.mubr.f32.gmra.mrb[0].mxu0 %v5893
  %v5998 = vpop.f32.mrb[0].mxu0
  %v5999 = vadd.f32 0.0, %v5998
  %v6000 = vpop.f32.mrb[0].mxu0
  %6001 = vmatprep.mubr.f32.mxu0 0.0
  %6002 = vmatmul.mubr.f32.gmra.mrb[0].mxu0 %v5896
  %v6003 = vpop.f32.mrb[0].mxu0
  %v6004 = vadd.f32 0.0, %v6003
  %v6005 = vpop.f32.mrb[0].mxu0
  %6006 = vmatprep.mubr.f32.mxu0 0.0
  %6007 = vmatmul.mubr.f32.gmra.mrb[0].mxu0 %v5899
  %v6008 = vpop.f32.mrb[0].mxu0
  %v6009 = vadd.f32 0.0, %v6008
  %v6010 = vpop.f32.mrb[0].mxu0
  %6011 = vmatprep.mubr.f32.mxu0 0.0
  %6012 = vmatmul.mubr.f32.gmra.mrb[0].mxu0 %v5902
  %v6013 = vpop.f32.mrb[0].mxu0
  %v6014 = vadd.f32 0.0, %v6013
  %v6015 = vpop.f32.mrb[0].mxu0
  %6016 = vmatprep.mubr.f32.mxu0 0.0
  %6017 = vmatmul.mubr.f32.gmra.mrb[0].mxu0 %v5905
  %v6018 = vpop.f32.mrb[0].mxu0
  %v6019 = vadd.f32 0.0, %v6018
  %v6020 = vpop.f32.mrb[0].mxu0
  %6021 = vdwg.mxu0
  %v6022 = vadd.f32 %v5855, %v5974
  %v6023 = vadd.f32 %v5856, %v5979
  %v6024 = vadd.f32 %v5857, %v5984
  %v6025 = vadd.f32 %v5858, %v5989
  %v6026 = vadd.f32 %v5859, %v5994
  %v6027 = vadd.f32 %v5860, %v5999
  %v6028 = vadd.f32 %v5861, %v6004
  %v6029 = vadd.f32 %v5862, %v6009
  %v6030 = vadd.f32 %v5863, %v6014
  %v6031 = vadd.f32 %v5864, %v6019
  %v6032 = vld [vmem:[%s5] sm:$0x1]
  %v6034 = vlaneseq
  %v6035 = vshrl.u32 %v6034, 7
  %v6036 = vsub.s32 0, %v6035
  %v6037 = vrot.slane %v6032, %v6036
  %v6039 = vadd.f32 %v6022, %v6037
  %v6040 = vadd.f32 %v6023, %v6037
  %v6041 = vadd.f32 %v6024, %v6037
  %v6042 = vadd.f32 %v6025, %v6037
  %v6043 = vadd.f32 %v6026, %v6037
  %v6044 = vadd.f32 %v6027, %v6037
  %v6045 = vadd.f32 %v6028, %v6037
  %v6046 = vadd.f32 %v6029, %v6037
  %v6047 = vadd.f32 %v6030, %v6037
  %v6048 = vadd.f32 %v6031, %v6037
  %v6049 = vmax.f32 %v6039, 0.0
  %v6050 = vmax.f32 %v6040, 0.0
  %v6051 = vmax.f32 %v6041, 0.0
  %v6052 = vmax.f32 %v6042, 0.0
  %v6053 = vmax.f32 %v6043, 0.0
  %v6054 = vmax.f32 %v6044, 0.0
  %v6055 = vmax.f32 %v6045, 0.0
  %v6056 = vmax.f32 %v6046, 0.0
  %v6057 = vmax.f32 %v6047, 0.0
  %v6058 = vmax.f32 %v6048, 0.0
  %vm6059 = vcmask 261120
  %6060 = vst.msk [vmem:[#allocation4] sm:$0xff] %vm6059, %v6049
  %6061 = vst.msk [vmem:[#allocation4 + $0x8] sm:$0xff] %vm6059, %v6050
  %6062 = vst.msk [vmem:[#allocation4 + $0x10] sm:$0xff] %vm6059, %v6051
  %6063 = vst.msk [vmem:[#allocation4 + $0x18] sm:$0xff] %vm6059, %v6052
  %6064 = vst.msk [vmem:[#allocation4 + $0x20] sm:$0xff] %vm6059, %v6053
  %6065 = vst.msk [vmem:[#allocation4 + $0x28] sm:$0xff] %vm6059, %v6054
  %6066 = vst.msk [vmem:[#allocation4 + $0x30] sm:$0xff] %vm6059, %v6055
  %6067 = vst.msk [vmem:[#allocation4 + $0x38] sm:$0xff] %vm6059, %v6056
  %6068 = vst.msk [vmem:[#allocation4 + $0x40] sm:$0xff] %vm6059, %v6057
  %6069 = vst.msk [vmem:[#allocation4 + $0x48] sm:$0xff] %vm6059, %v6058
  %v6070 = vld [vmem:[#allocation4] sm:$0xff]
  %v6071 = vld [vmem:[#allocation4 + $0x8] sm:$0xff]
  %v6072 = vld [vmem:[#allocation4 + $0x10] sm:$0xff]
  %v6073 = vld [vmem:[#allocation4 + $0x18] sm:$0xff]
  %v6074 = vld [vmem:[#allocation4 + $0x20] sm:$0xff]
  %v6075 = vld [vmem:[#allocation4 + $0x28] sm:$0xff]
  %v6076 = vld [vmem:[#allocation4 + $0x30] sm:$0xff]
  %v6077 = vld [vmem:[#allocation4 + $0x38] sm:$0xff]
  %v6078 = vld [vmem:[#allocation4 + $0x40] sm:$0x1f]
  %v6079 = vld [vmem:[#allocation4 + $0x1] sm:$0xff]
  %v6080 = vld [vmem:[#allocation4 + $0x9] sm:$0xff]
  %v6081 = vld [vmem:[#allocation4 + $0x11] sm:$0xff]
  %v6082 = vld [vmem:[#allocation4 + $0x19] sm:$0xff]
  %v6083 = vld [vmem:[#allocation4 + $0x21] sm:$0xff]
  %v6084 = vld [vmem:[#allocation4 + $0x29] sm:$0xff]
  %v6085 = vld [vmem:[#allocation4 + $0x31] sm:$0xff]
  %v6086 = vld [vmem:[#allocation4 + $0x39] sm:$0xff]
  %v6087 = vld [vmem:[#allocation4 + $0x41] sm:$0x1f]
  %v6088 = vmax.f32 %v6070, %v6079
  %v6089 = vmax.f32 %v6071, %v6080
  %v6090 = vmax.f32 %v6072, %v6081
  %v6091 = vmax.f32 %v6073, %v6082
  %v6092 = vmax.f32 %v6074, %v6083
  %v6093 = vmax.f32 %v6075, %v6084
  %v6094 = vmax.f32 %v6076, %v6085
  %v6095 = vmax.f32 %v6077, %v6086
  %v6096 = vmax.f32 %v6078, %v6087
  %v6097 = vld [vmem:[#allocation4 + $0xa] sm:$0xff]
  %v6098 = vld [vmem:[#allocation4 + $0x12] sm:$0xff]
  %v6099 = vld [vmem:[#allocation4 + $0x1a] sm:$0xff]
  %v6100 = vld [vmem:[#allocation4 + $0x22] sm:$0xff]
  %v6101 = vld [vmem:[#allocation4 + $0x2a] sm:$0xff]
  %v6102 = vld [vmem:[#allocation4 + $0x32] sm:$0xff]
  %v6103 = vld [vmem:[#allocation4 + $0x3a] sm:$0xff]
  %v6104 = vld [vmem:[#allocation4 + $0x42] sm:$0xff]
  %v6105 = vld [vmem:[#allocation4 + $0x4a] sm:$0x1f]
  %v6106 = vld [vmem:[#allocation4 + $0xb] sm:$0xff]
  %v6107 = vld [vmem:[#allocation4 + $0x13] sm:$0xff]
  %v6108 = vld [vmem:[#allocation4 + $0x1b] sm:$0xff]
  %v6109 = vld [vmem:[#allocation4 + $0x23] sm:$0xff]
  %v6110 = vld [vmem:[#allocation4 + $0x2b] sm:$0xff]
  %v6111 = vld [vmem:[#allocation4 + $0x33] sm:$0xff]
  %v6112 = vld [vmem:[#allocation4 + $0x3b] sm:$0xff]
  %v6113 = vld [vmem:[#allocation4 + $0x43] sm:$0xff]
  %v6114 = vld [vmem:[#allocation4 + $0x4b] sm:$0x1f]
  %v6115 = vmax.f32 %v6097, %v6106
  %v6116 = vmax.f32 %v6098, %v6107
  %v6117 = vmax.f32 %v6099, %v6108
  %v6118 = vmax.f32 %v6100, %v6109
  %v6119 = vmax.f32 %v6101, %v6110
  %v6120 = vmax.f32 %v6102, %v6111
  %v6121 = vmax.f32 %v6103, %v6112
  %v6122 = vmax.f32 %v6104, %v6113
  %v6123 = vmax.f32 %v6105, %v6114
  %v6124 = vmax.f32 %v6088, %v6115
  %v6125 = vmax.f32 %v6089, %v6116
  %v6126 = vmax.f32 %v6090, %v6117
  %v6127 = vmax.f32 %v6091, %v6118
  %v6128 = vmax.f32 %v6092, %v6119
  %v6129 = vmax.f32 %v6093, %v6120
  %v6130 = vmax.f32 %v6094, %v6121
  %v6131 = vmax.f32 %v6095, %v6122
  %v6132 = vmax.f32 %v6096, %v6123
  %v6133 = vld [vmem:[%s6] sm:$0xff]
  %v6134 = vld [vmem:[%s6 + $0x8] sm:$0xff]
  %v6135 = vld [vmem:[%s6 + $0x10] sm:$0xff]
  %v6136 = vld [vmem:[%s6 + $0x18] sm:$0xff]
  %v6137 = vld [vmem:[%s6 + $0x20] sm:$0x3f]
  %vm6138 = vcmask 564224
  %v6140 = vsel %vm6138, %v6133, 0
  %v6143 = vsel %vm6138, %v6134, 0
  %v6146 = vsel %vm6138, %v6135, 0
  %v6149 = vsel %vm6138, %v6136, 0
  %v6152 = vsel %vm6138, %v6137, 0
  %v6155 = vsel %vm4271, %v6132, 0
  %6157 = vmatprep.subr.mxu0 0.0
  %6158 = vmatpush1.msra.mxu0 %v6124
  %6159 = vmatprep.subr.mxu0 0.0
  %6160 = vmatpush1.msra.mxu0 %v6125
  %6161 = vmatprep.subr.mxu0 0.0
  %6162 = vmatpush1.msra.mxu0 %v6126
  %6163 = vmatprep.subr.mxu0 0.0
  %6164 = vmatpush1.msra.mxu0 %v6127
  %6165 = vmatprep.subr.mxu0 0.0
  %6166 = vmatpush1.msra.mxu0 %v6128
  %6167 = vmatprep.subr.mxu0 0.0
  %6168 = vmatpush1.msra.mxu0 %v6129
  %6169 = vmatprep.subr.mxu0 0.0
  %6170 = vmatpush1.msra.mxu0 %v6130
  %6171 = vmatprep.subr.mxu0 0.0
  %6172 = vmatpush1.msra.mxu0 %v6131
  %6173 = vmatprep.subr.mxu0 0.0
  %6174 = vmatpush1.msra.mxu0 %v6155
  %6175 = vmatprep.subr.mxu0 0.0
  %6176 = vmatpush1.msra.mxu0 0.0
  %6177 = vmatprep.subr.mxu0 0.0
  %6178 = vmatpush1.msra.mxu0 0.0
  %6179 = vmatprep.subr.mxu0 0.0
  %6180 = vmatpush1.msra.mxu0 0.0
  %6181 = vmatprep.subr.mxu0 0.0
  %6182 = vmatpush1.msra.mxu0 0.0
  %6183 = vmatprep.subr.mxu0 0.0
  %6184 = vmatpush1.msra.mxu0 0.0
  %6185 = vmatprep.subr.mxu0 0.0
  %6186 = vmatpush1.msra.mxu0 0.0
  %6187 = vmatprep.subr.mxu0 0.0
  %6188 = vmatpush1.msra.mxu0 0.0
  %6189 = vmatprep.subr.mxu0 0.0
  %6190 = vmatpush1.msra.mxu0 0.0
  %6191 = vmatprep.subr.mxu0 0.0
  %6192 = vmatpush1.msra.mxu0 0.0
  %6193 = vmatprep.subr.mxu0 0.0
  %6194 = vmatpush1.msra.mxu0 0.0
  %6195 = vmatprep.subr.mxu0 0.0
  %6196 = vmatpush1.msra.mxu0 0.0
  %6197 = vmatprep.subr.mxu0 0.0
  %6198 = vmatpush1.msra.mxu0 0.0
  %6199 = vmatprep.subr.mxu0 0.0
  %6200 = vmatpush1.msra.mxu0 0.0
  %6201 = vmatprep.subr.mxu0 0.0
  %6202 = vmatpush1.msra.mxu0 0.0
  %6203 = vmatprep.subr.mxu0 0.0
  %6204 = vmatpush1.msra.mxu0 0.0
  %6205 = vmatprep.subr.mxu0 0.0
  %6206 = vmatpush1.msra.mxu0 0.0
  %6207 = vmatprep.subr.mxu0 0.0
  %6208 = vmatpush1.msra.mxu0 0.0
  %6209 = vmatprep.subr.mxu0 0.0
  %6210 = vmatpush1.msra.mxu0 0.0
  %6211 = vmatprep.subr.mxu0 0.0
  %6212 = vmatpush1.msra.mxu0 0.0
  %6213 = vmatprep.subr.mxu0 0.0
  %6214 = vmatpush1.msra.mxu0 0.0
  %6215 = vmatprep.subr.mxu0 0.0
  %6216 = vmatpush1.msra.mxu0 0.0
  %6217 = vmatprep.subr.mxu0 0.0
  %6218 = vmatpush1.msra.mxu0 0.0
  %6219 = vmatprep.subr.mxu0 0.0
  %6220 = vmatpush1.msra.mxu0 0.0
  %6221 = vmatprep.mubr.f32.mxu0 0.0
  %6222 = vmatmul.mubr.f32.gmra.mrb[0].mxu0 %v6140
  %v6223 = vpop.f32.mrb[0].mxu0
  %v6224 = vadd.f32 0.0, %v6223
  %v6225 = vpop.f32.mrb[0].mxu0
  %6226 = vmatprep.mubr.f32.mxu0 0.0
  %6227 = vmatmul.mubr.f32.gmra.mrb[0].mxu0 %v6143
  %v6228 = vpop.f32.mrb[0].mxu0
  %v6229 = vadd.f32 0.0, %v6228
  %v6230 = vpop.f32.mrb[0].mxu0
  %6231 = vmatprep.mubr.f32.mxu0 0.0
  %6232 = vmatmul.mubr.f32.gmra.mrb[0].mxu0 %v6146
  %v6233 = vpop.f32.mrb[0].mxu0
  %v6234 = vadd.f32 0.0, %v6233
  %v6235 = vpop.f32.mrb[0].mxu0
  %6236 = vmatprep.mubr.f32.mxu0 0.0
  %6237 = vmatmul.mubr.f32.gmra.mrb[0].mxu0 %v6149
  %v6238 = vpop.f32.mrb[0].mxu0
  %v6239 = vadd.f32 0.0, %v6238
  %v6240 = vpop.f32.mrb[0].mxu0
  %6241 = vmatprep.mubr.f32.mxu0 0.0
  %6242 = vmatmul.mubr.f32.gmra.mrb[0].mxu0 %v6152
  %v6243 = vpop.f32.mrb[0].mxu0
  %v6244 = vadd.f32 0.0, %v6243
  %v6245 = vpop.f32.mrb[0].mxu0
  %6246 = vdwg.mxu0
  %6247 = vst.msk [vmem:[#allocation5] sm:$0xff] %vm6059, %v6224
  %6248 = vst.msk [vmem:[#allocation5 + $0x8] sm:$0xff] %vm6059, %v6229
  %6249 = vst.msk [vmem:[#allocation5 + $0x10] sm:$0xff] %vm6059, %v6234
  %6250 = vst.msk [vmem:[#allocation5 + $0x18] sm:$0xff] %vm6059, %v6239
  %vm6251 = vcmask 259072
  %6252 = vst.msk [vmem:[#allocation5 + $0x20] sm:$0x3f] %vm6251, %v6244
  %v6253 = vld [vmem:[#allocation5] sm:$0xff]
  %v6254 = vld [vmem:[#allocation5 + $0x8] sm:$0xff]
  %v6255 = vld [vmem:[#allocation5 + $0x10] sm:$0xff]
  %v6256 = vld [vmem:[%s7] sm:$0xff]
  %v6257 = vld [vmem:[%s7 + $0x8] sm:$0xff]
  %v6258 = vld [vmem:[%s7 + $0x10] sm:$0xff]
  %v6259 = vld [vmem:[%s7 + $0x18] sm:$0xff]
  %v6260 = vld [vmem:[#allocation5 + $0x1] sm:$0xff]
  %v6261 = vld [vmem:[#allocation5 + $0x9] sm:$0xff]
  %v6262 = vld [vmem:[#allocation5 + $0x11] sm:$0xff]
  %v6263 = vld [vmem:[%s7 + $0x20] sm:$0xff]
  %v6264 = vld [vmem:[%s7 + $0x28] sm:$0xff]
  %v6265 = vld [vmem:[%s7 + $0x30] sm:$0xff]
  %v6266 = vld [vmem:[%s7 + $0x38] sm:$0xff]
  %v6268 = vsel %vm6059, %v6260, 0
  %v6271 = vsel %vm6059, %v6261, 0
  %v6274 = vsel %vm6059, %v6262, 0
  %6276 = vmatprep.subr.mxu0 0.0
  %6277 = vmatpush1.msra.mxu0 %v6263
  %6278 = vmatprep.subr.mxu0 0.0
  %6279 = vmatpush1.msra.mxu0 %v6264
  %6280 = vmatprep.subr.mxu0 0.0
  %6281 = vmatpush1.msra.mxu0 %v6265
  %6282 = vmatprep.subr.mxu0 0.0
  %6283 = vmatpush1.msra.mxu0 %v6266
  %6284 = vmatprep.subr.mxu0 0.0
  %6285 = vmatpush1.msra.mxu0 0.0
  %6286 = vmatprep.subr.mxu0 0.0
  %6287 = vmatpush1.msra.mxu0 0.0
  %6288 = vmatprep.subr.mxu0 0.0
  %6289 = vmatpush1.msra.mxu0 0.0
  %6290 = vmatprep.subr.mxu0 0.0
  %6291 = vmatpush1.msra.mxu0 0.0
  %6292 = vmatprep.subr.mxu0 0.0
  %6293 = vmatpush1.msra.mxu0 0.0
  %6294 = vmatprep.subr.mxu0 0.0
  %6295 = vmatpush1.msra.mxu0 0.0
  %6296 = vmatprep.subr.mxu0 0.0
  %6297 = vmatpush1.msra.mxu0 0.0
  %6298 = vmatprep.subr.mxu0 0.0
  %6299 = vmatpush1.msra.mxu0 0.0
  %6300 = vmatprep.subr.mxu0 0.0
  %6301 = vmatpush1.msra.mxu0 0.0
  %6302 = vmatprep.subr.mxu0 0.0
  %6303 = vmatpush1.msra.mxu0 0.0
  %6304 = vmatprep.subr.mxu0 0.0
  %6305 = vmatpush1.msra.mxu0 0.0
  %6306 = vmatprep.subr.mxu0 0.0
  %6307 = vmatpush1.msra.mxu0 0.0
  %6308 = vmatprep.subr.mxu0 0.0
  %6309 = vmatpush1.msra.mxu0 0.0
  %6310 = vmatprep.subr.mxu0 0.0
  %6311 = vmatpush1.msra.mxu0 0.0
  %6312 = vmatprep.subr.mxu0 0.0
  %6313 = vmatpush1.msra.mxu0 0.0
  %6314 = vmatprep.subr.mxu0 0.0
  %6315 = vmatpush1.msra.mxu0 0.0
  %6316 = vmatprep.subr.mxu0 0.0
  %6317 = vmatpush1.msra.mxu0 0.0
  %6318 = vmatprep.subr.mxu0 0.0
  %6319 = vmatpush1.msra.mxu0 0.0
  %6320 = vmatprep.subr.mxu0 0.0
  %6321 = vmatpush1.msra.mxu0 0.0
  %6322 = vmatprep.subr.mxu0 0.0
  %6323 = vmatpush1.msra.mxu0 0.0
  %6324 = vmatprep.subr.mxu0 0.0
  %6325 = vmatpush1.msra.mxu0 0.0
  %6326 = vmatprep.subr.mxu0 0.0
  %6327 = vmatpush1.msra.mxu0 0.0
  %6328 = vmatprep.subr.mxu0 0.0
  %6329 = vmatpush1.msra.mxu0 0.0
  %6330 = vmatprep.subr.mxu0 0.0
  %6331 = vmatpush1.msra.mxu0 0.0
  %6332 = vmatprep.subr.mxu0 0.0
  %6333 = vmatpush1.msra.mxu0 0.0
  %6334 = vmatprep.subr.mxu0 0.0
  %6335 = vmatpush1.msra.mxu0 0.0
  %6336 = vmatprep.subr.mxu0 0.0
  %6337 = vmatpush1.msra.mxu0 0.0
  %6338 = vmatprep.subr.mxu0 0.0
  %6339 = vmatpush1.msra.mxu0 0.0
  %6340 = vmatprep.mubr.f32.mxu0 0.0
  %6341 = vmatmul.mubr.f32.gmra.mrb[0].mxu0 %v6268
  %v6342 = vpop.f32.mrb[0].mxu0
  %v6343 = vadd.f32 0.0, %v6342
  %v6344 = vpop.f32.mrb[0].mxu0
  %6345 = vmatprep.mubr.f32.mxu0 0.0
  %6346 = vmatmul.mubr.f32.gmra.mrb[0].mxu0 %v6271
  %v6347 = vpop.f32.mrb[0].mxu0
  %v6348 = vadd.f32 0.0, %v6347
  %v6349 = vpop.f32.mrb[0].mxu0
  %6350 = vmatprep.mubr.f32.mxu0 0.0
  %6351 = vmatmul.mubr.f32.gmra.mrb[0].mxu0 %v6274
  %v6352 = vpop.f32.mrb[0].mxu0
  %v6353 = vadd.f32 0.0, %v6352
  %v6354 = vpop.f32.mrb[0].mxu0
  %6355 = vdwg.mxu0
  %v6357 = vsel %vm6059, %v6253, 0
  %v6360 = vsel %vm6059, %v6254, 0
  %v6363 = vsel %vm6059, %v6255, 0
  %6365 = vmatprep.subr.mxu0 0.0
  %6366 = vmatpush1.msra.mxu0 %v6256
  %6367 = vmatprep.subr.mxu0 0.0
  %6368 = vmatpush1.msra.mxu0 %v6257
  %6369 = vmatprep.subr.mxu0 0.0
  %6370 = vmatpush1.msra.mxu0 %v6258
  %6371 = vmatprep.subr.mxu0 0.0
  %6372 = vmatpush1.msra.mxu0 %v6259
  %6373 = vmatprep.subr.mxu0 0.0
  %6374 = vmatpush1.msra.mxu0 0.0
  %6375 = vmatprep.subr.mxu0 0.0
  %6376 = vmatpush1.msra.mxu0 0.0
  %6377 = vmatprep.subr.mxu0 0.0
  %6378 = vmatpush1.msra.mxu0 0.0
  %6379 = vmatprep.subr.mxu0 0.0
  %6380 = vmatpush1.msra.mxu0 0.0
  %6381 = vmatprep.subr.mxu0 0.0
  %6382 = vmatpush1.msra.mxu0 0.0
  %6383 = vmatprep.subr.mxu0 0.0
  %6384 = vmatpush1.msra.mxu0 0.0
  %6385 = vmatprep.subr.mxu0 0.0
  %6386 = vmatpush1.msra.mxu0 0.0
  %6387 = vmatprep.subr.mxu0 0.0
  %6388 = vmatpush1.msra.mxu0 0.0
  %6389 = vmatprep.subr.mxu0 0.0
  %6390 = vmatpush1.msra.mxu0 0.0
  %6391 = vmatprep.subr.mxu0 0.0
  %6392 = vmatpush1.msra.mxu0 0.0
  %6393 = vmatprep.subr.mxu0 0.0
  %6394 = vmatpush1.msra.mxu0 0.0
  %6395 = vmatprep.subr.mxu0 0.0
  %6396 = vmatpush1.msra.mxu0 0.0
  %6397 = vmatprep.subr.mxu0 0.0
  %6398 = vmatpush1.msra.mxu0 0.0
  %6399 = vmatprep.subr.mxu0 0.0
  %6400 = vmatpush1.msra.mxu0 0.0
  %6401 = vmatprep.subr.mxu0 0.0
  %6402 = vmatpush1.msra.mxu0 0.0
  %6403 = vmatprep.subr.mxu0 0.0
  %6404 = vmatpush1.msra.mxu0 0.0
  %6405 = vmatprep.subr.mxu0 0.0
  %6406 = vmatpush1.msra.mxu0 0.0
  %6407 = vmatprep.subr.mxu0 0.0
  %6408 = vmatpush1.msra.mxu0 0.0
  %6409 = vmatprep.subr.mxu0 0.0
  %6410 = vmatpush1.msra.mxu0 0.0
  %6411 = vmatprep.subr.mxu0 0.0
  %6412 = vmatpush1.msra.mxu0 0.0
  %6413 = vmatprep.subr.mxu0 0.0
  %6414 = vmatpush1.msra.mxu0 0.0
  %6415 = vmatprep.subr.mxu0 0.0
  %6416 = vmatpush1.msra.mxu0 0.0
  %6417 = vmatprep.subr.mxu0 0.0
  %6418 = vmatpush1.msra.mxu0 0.0
  %6419 = vmatprep.subr.mxu0 0.0
  %6420 = vmatpush1.msra.mxu0 0.0
  %6421 = vmatprep.subr.mxu0 0.0
  %6422 = vmatpush1.msra.mxu0 0.0
  %6423 = vmatprep.subr.mxu0 0.0
  %6424 = vmatpush1.msra.mxu0 0.0
  %6425 = vmatprep.subr.mxu0 0.0
  %6426 = vmatpush1.msra.mxu0 0.0
  %6427 = vmatprep.subr.mxu0 0.0
  %6428 = vmatpush1.msra.mxu0 0.0
  %6429 = vmatprep.mubr.f32.mxu0 0.0
  %6430 = vmatmul.mubr.f32.gmra.mrb[0].mxu0 %v6357
  %v6431 = vpop.f32.mrb[0].mxu0
  %v6432 = vadd.f32 %v6343, %v6431
  %v6433 = vpop.f32.mrb[0].mxu0
  %6434 = vmatprep.mubr.f32.mxu0 0.0
  %6435 = vmatmul.mubr.f32.gmra.mrb[0].mxu0 %v6360
  %v6436 = vpop.f32.mrb[0].mxu0
  %v6437 = vadd.f32 %v6348, %v6436
  %v6438 = vpop.f32.mrb[0].mxu0
  %6439 = vmatprep.mubr.f32.mxu0 0.0
  %6440 = vmatmul.mubr.f32.gmra.mrb[0].mxu0 %v6363
  %v6441 = vpop.f32.mrb[0].mxu0
  %v6442 = vadd.f32 %v6353, %v6441
  %v6443 = vpop.f32.mrb[0].mxu0
  %6444 = vdwg.mxu0
  %v6445 = vld [vmem:[#allocation5 + $0x2] sm:$0xff]
  %v6446 = vld [vmem:[#allocation5 + $0xa] sm:$0xff]
  %v6447 = vld [vmem:[#allocation5 + $0x12] sm:$0xff]
  %v6448 = vld [vmem:[%s7 + $0x40] sm:$0xff]
  %v6449 = vld [vmem:[%s7 + $0x48] sm:$0xff]
  %v6450 = vld [vmem:[%s7 + $0x50] sm:$0xff]
  %v6451 = vld [vmem:[%s7 + $0x58] sm:$0xff]
  %v6453 = vsel %vm6059, %v6445, 0
  %v6456 = vsel %vm6059, %v6446, 0
  %v6459 = vsel %vm6059, %v6447, 0
  %6461 = vmatprep.subr.mxu0 0.0
  %6462 = vmatpush1.msra.mxu0 %v6448
  %6463 = vmatprep.subr.mxu0 0.0
  %6464 = vmatpush1.msra.mxu0 %v6449
  %6465 = vmatprep.subr.mxu0 0.0
  %6466 = vmatpush1.msra.mxu0 %v6450
  %6467 = vmatprep.subr.mxu0 0.0
  %6468 = vmatpush1.msra.mxu0 %v6451
  %6469 = vmatprep.subr.mxu0 0.0
  %6470 = vmatpush1.msra.mxu0 0.0
  %6471 = vmatprep.subr.mxu0 0.0
  %6472 = vmatpush1.msra.mxu0 0.0
  %6473 = vmatprep.subr.mxu0 0.0
  %6474 = vmatpush1.msra.mxu0 0.0
  %6475 = vmatprep.subr.mxu0 0.0
  %6476 = vmatpush1.msra.mxu0 0.0
  %6477 = vmatprep.subr.mxu0 0.0
  %6478 = vmatpush1.msra.mxu0 0.0
  %6479 = vmatprep.subr.mxu0 0.0
  %6480 = vmatpush1.msra.mxu0 0.0
  %6481 = vmatprep.subr.mxu0 0.0
  %6482 = vmatpush1.msra.mxu0 0.0
  %6483 = vmatprep.subr.mxu0 0.0
  %6484 = vmatpush1.msra.mxu0 0.0
  %6485 = vmatprep.subr.mxu0 0.0
  %6486 = vmatpush1.msra.mxu0 0.0
  %6487 = vmatprep.subr.mxu0 0.0
  %6488 = vmatpush1.msra.mxu0 0.0
  %6489 = vmatprep.subr.mxu0 0.0
  %6490 = vmatpush1.msra.mxu0 0.0
  %6491 = vmatprep.subr.mxu0 0.0
  %6492 = vmatpush1.msra.mxu0 0.0
  %6493 = vmatprep.subr.mxu0 0.0
  %6494 = vmatpush1.msra.mxu0 0.0
  %6495 = vmatprep.subr.mxu0 0.0
  %6496 = vmatpush1.msra.mxu0 0.0
  %6497 = vmatprep.subr.mxu0 0.0
  %6498 = vmatpush1.msra.mxu0 0.0
  %6499 = vmatprep.subr.mxu0 0.0
  %6500 = vmatpush1.msra.mxu0 0.0
  %6501 = vmatprep.subr.mxu0 0.0
  %6502 = vmatpush1.msra.mxu0 0.0
  %6503 = vmatprep.subr.mxu0 0.0
  %6504 = vmatpush1.msra.mxu0 0.0
  %6505 = vmatprep.subr.mxu0 0.0
  %6506 = vmatpush1.msra.mxu0 0.0
  %6507 = vmatprep.subr.mxu0 0.0
  %6508 = vmatpush1.msra.mxu0 0.0
  %6509 = vmatprep.subr.mxu0 0.0
  %6510 = vmatpush1.msra.mxu0 0.0
  %6511 = vmatprep.subr.mxu0 0.0
  %6512 = vmatpush1.msra.mxu0 0.0
  %6513 = vmatprep.subr.mxu0 0.0
  %6514 = vmatpush1.msra.mxu0 0.0
  %6515 = vmatprep.subr.mxu0 0.0
  %6516 = vmatpush1.msra.mxu0 0.0
  %6517 = vmatprep.subr.mxu0 0.0
  %6518 = vmatpush1.msra.mxu0 0.0
  %6519 = vmatprep.subr.mxu0 0.0
  %6520 = vmatpush1.msra.mxu0 0.0
  %6521 = vmatprep.subr.mxu0 0.0
  %6522 = vmatpush1.msra.mxu0 0.0
  %6523 = vmatprep.subr.mxu0 0.0
  %6524 = vmatpush1.msra.mxu0 0.0
  %6525 = vmatprep.mubr.f32.mxu0 0.0
  %6526 = vmatmul.mubr.f32.gmra.mrb[0].mxu0 %v6453
  %v6527 = vpop.f32.mrb[0].mxu0
  %v6528 = vadd.f32 0.0, %v6527
  %v6529 = vpop.f32.mrb[0].mxu0
  %6530 = vmatprep.mubr.f32.mxu0 0.0
  %6531 = vmatmul.mubr.f32.gmra.mrb[0].mxu0 %v6456
  %v6532 = vpop.f32.mrb[0].mxu0
  %v6533 = vadd.f32 0.0, %v6532
  %v6534 = vpop.f32.mrb[0].mxu0
  %6535 = vmatprep.mubr.f32.mxu0 0.0
  %6536 = vmatmul.mubr.f32.gmra.mrb[0].mxu0 %v6459
  %v6537 = vpop.f32.mrb[0].mxu0
  %v6538 = vadd.f32 0.0, %v6537
  %v6539 = vpop.f32.mrb[0].mxu0
  %6540 = vdwg.mxu0
  %v6541 = vadd.f32 %v6432, %v6528
  %v6542 = vadd.f32 %v6437, %v6533
  %v6543 = vadd.f32 %v6442, %v6538
  %v6544 = vld [vmem:[#allocation5 + $0x6] sm:$0xff]
  %v6545 = vld [vmem:[#allocation5 + $0xe] sm:$0xff]
  %v6546 = vld [vmem:[#allocation5 + $0x16] sm:$0xff]
  %v6547 = vld [vmem:[%s7 + $0x60] sm:$0xff]
  %v6548 = vld [vmem:[%s7 + $0x68] sm:$0xff]
  %v6549 = vld [vmem:[%s7 + $0x70] sm:$0xff]
  %v6550 = vld [vmem:[%s7 + $0x78] sm:$0xff]
  %v6552 = vsel %vm6059, %v6544, 0
  %v6555 = vsel %vm6059, %v6545, 0
  %v6558 = vsel %vm6059, %v6546, 0
  %6560 = vmatprep.subr.mxu0 0.0
  %6561 = vmatpush1.msra.mxu0 %v6547
  %6562 = vmatprep.subr.mxu0 0.0
  %6563 = vmatpush1.msra.mxu0 %v6548
  %6564 = vmatprep.subr.mxu0 0.0
  %6565 = vmatpush1.msra.mxu0 %v6549
  %6566 = vmatprep.subr.mxu0 0.0
  %6567 = vmatpush1.msra.mxu0 %v6550
  %6568 = vmatprep.subr.mxu0 0.0
  %6569 = vmatpush1.msra.mxu0 0.0
  %6570 = vmatprep.subr.mxu0 0.0
  %6571 = vmatpush1.msra.mxu0 0.0
  %6572 = vmatprep.subr.mxu0 0.0
  %6573 = vmatpush1.msra.mxu0 0.0
  %6574 = vmatprep.subr.mxu0 0.0
  %6575 = vmatpush1.msra.mxu0 0.0
  %6576 = vmatprep.subr.mxu0 0.0
  %6577 = vmatpush1.msra.mxu0 0.0
  %6578 = vmatprep.subr.mxu0 0.0
  %6579 = vmatpush1.msra.mxu0 0.0
  %6580 = vmatprep.subr.mxu0 0.0
  %6581 = vmatpush1.msra.mxu0 0.0
  %6582 = vmatprep.subr.mxu0 0.0
  %6583 = vmatpush1.msra.mxu0 0.0
  %6584 = vmatprep.subr.mxu0 0.0
  %6585 = vmatpush1.msra.mxu0 0.0
  %6586 = vmatprep.subr.mxu0 0.0
  %6587 = vmatpush1.msra.mxu0 0.0
  %6588 = vmatprep.subr.mxu0 0.0
  %6589 = vmatpush1.msra.mxu0 0.0
  %6590 = vmatprep.subr.mxu0 0.0
  %6591 = vmatpush1.msra.mxu0 0.0
  %6592 = vmatprep.subr.mxu0 0.0
  %6593 = vmatpush1.msra.mxu0 0.0
  %6594 = vmatprep.subr.mxu0 0.0
  %6595 = vmatpush1.msra.mxu0 0.0
  %6596 = vmatprep.subr.mxu0 0.0
  %6597 = vmatpush1.msra.mxu0 0.0
  %6598 = vmatprep.subr.mxu0 0.0
  %6599 = vmatpush1.msra.mxu0 0.0
  %6600 = vmatprep.subr.mxu0 0.0
  %6601 = vmatpush1.msra.mxu0 0.0
  %6602 = vmatprep.subr.mxu0 0.0
  %6603 = vmatpush1.msra.mxu0 0.0
  %6604 = vmatprep.subr.mxu0 0.0
  %6605 = vmatpush1.msra.mxu0 0.0
  %6606 = vmatprep.subr.mxu0 0.0
  %6607 = vmatpush1.msra.mxu0 0.0
  %6608 = vmatprep.subr.mxu0 0.0
  %6609 = vmatpush1.msra.mxu0 0.0
  %6610 = vmatprep.subr.mxu0 0.0
  %6611 = vmatpush1.msra.mxu0 0.0
  %6612 = vmatprep.subr.mxu0 0.0
  %6613 = vmatpush1.msra.mxu0 0.0
  %6614 = vmatprep.subr.mxu0 0.0
  %6615 = vmatpush1.msra.mxu0 0.0
  %6616 = vmatprep.subr.mxu0 0.0
  %6617 = vmatpush1.msra.mxu0 0.0
  %6618 = vmatprep.subr.mxu0 0.0
  %6619 = vmatpush1.msra.mxu0 0.0
  %6620 = vmatprep.subr.mxu0 0.0
  %6621 = vmatpush1.msra.mxu0 0.0
  %6622 = vmatprep.subr.mxu0 0.0
  %6623 = vmatpush1.msra.mxu0 0.0
  %6624 = vmatprep.mubr.f32.mxu0 0.0
  %6625 = vmatmul.mubr.f32.gmra.mrb[0].mxu0 %v6552
  %v6626 = vpop.f32.mrb[0].mxu0
  %v6627 = vadd.f32 0.0, %v6626
  %v6628 = vpop.f32.mrb[0].mxu0
  %6629 = vmatprep.mubr.f32.mxu0 0.0
  %6630 = vmatmul.mubr.f32.gmra.mrb[0].mxu0 %v6555
  %v6631 = vpop.f32.mrb[0].mxu0
  %v6632 = vadd.f32 0.0, %v6631
  %v6633 = vpop.f32.mrb[0].mxu0
  %6634 = vmatprep.mubr.f32.mxu0 0.0
  %6635 = vmatmul.mubr.f32.gmra.mrb[0].mxu0 %v6558
  %v6636 = vpop.f32.mrb[0].mxu0
  %v6637 = vadd.f32 0.0, %v6636
  %v6638 = vpop.f32.mrb[0].mxu0
  %6639 = vdwg.mxu0
  %v6640 = vadd.f32 %v6541, %v6627
  %v6641 = vadd.f32 %v6542, %v6632
  %v6642 = vadd.f32 %v6543, %v6637
  %v6643 = vld [vmem:[#allocation5 + $0x7] sm:$0xff]
  %v6644 = vld [vmem:[#allocation5 + $0xf] sm:$0xff]
  %v6645 = vld [vmem:[#allocation5 + $0x17] sm:$0xff]
  %v6646 = vld [vmem:[%s7 + $0x80] sm:$0xff]
  %v6647 = vld [vmem:[%s7 + $0x88] sm:$0xff]
  %v6648 = vld [vmem:[%s7 + $0x90] sm:$0xff]
  %v6649 = vld [vmem:[%s7 + $0x98] sm:$0xff]
  %v6651 = vsel %vm6059, %v6643, 0
  %v6654 = vsel %vm6059, %v6644, 0
  %v6657 = vsel %vm6059, %v6645, 0
  %6659 = vmatprep.subr.mxu0 0.0
  %6660 = vmatpush1.msra.mxu0 %v6646
  %6661 = vmatprep.subr.mxu0 0.0
  %6662 = vmatpush1.msra.mxu0 %v6647
  %6663 = vmatprep.subr.mxu0 0.0
  %6664 = vmatpush1.msra.mxu0 %v6648
  %6665 = vmatprep.subr.mxu0 0.0
  %6666 = vmatpush1.msra.mxu0 %v6649
  %6667 = vmatprep.subr.mxu0 0.0
  %6668 = vmatpush1.msra.mxu0 0.0
  %6669 = vmatprep.subr.mxu0 0.0
  %6670 = vmatpush1.msra.mxu0 0.0
  %6671 = vmatprep.subr.mxu0 0.0
  %6672 = vmatpush1.msra.mxu0 0.0
  %6673 = vmatprep.subr.mxu0 0.0
  %6674 = vmatpush1.msra.mxu0 0.0
  %6675 = vmatprep.subr.mxu0 0.0
  %6676 = vmatpush1.msra.mxu0 0.0
  %6677 = vmatprep.subr.mxu0 0.0
  %6678 = vmatpush1.msra.mxu0 0.0
  %6679 = vmatprep.subr.mxu0 0.0
  %6680 = vmatpush1.msra.mxu0 0.0
  %6681 = vmatprep.subr.mxu0 0.0
  %6682 = vmatpush1.msra.mxu0 0.0
  %6683 = vmatprep.subr.mxu0 0.0
  %6684 = vmatpush1.msra.mxu0 0.0
  %6685 = vmatprep.subr.mxu0 0.0
  %6686 = vmatpush1.msra.mxu0 0.0
  %6687 = vmatprep.subr.mxu0 0.0
  %6688 = vmatpush1.msra.mxu0 0.0
  %6689 = vmatprep.subr.mxu0 0.0
  %6690 = vmatpush1.msra.mxu0 0.0
  %6691 = vmatprep.subr.mxu0 0.0
  %6692 = vmatpush1.msra.mxu0 0.0
  %6693 = vmatprep.subr.mxu0 0.0
  %6694 = vmatpush1.msra.mxu0 0.0
  %6695 = vmatprep.subr.mxu0 0.0
  %6696 = vmatpush1.msra.mxu0 0.0
  %6697 = vmatprep.subr.mxu0 0.0
  %6698 = vmatpush1.msra.mxu0 0.0
  %6699 = vmatprep.subr.mxu0 0.0
  %6700 = vmatpush1.msra.mxu0 0.0
  %6701 = vmatprep.subr.mxu0 0.0
  %6702 = vmatpush1.msra.mxu0 0.0
  %6703 = vmatprep.subr.mxu0 0.0
  %6704 = vmatpush1.msra.mxu0 0.0
  %6705 = vmatprep.subr.mxu0 0.0
  %6706 = vmatpush1.msra.mxu0 0.0
  %6707 = vmatprep.subr.mxu0 0.0
  %6708 = vmatpush1.msra.mxu0 0.0
  %6709 = vmatprep.subr.mxu0 0.0
  %6710 = vmatpush1.msra.mxu0 0.0
  %6711 = vmatprep.subr.mxu0 0.0
  %6712 = vmatpush1.msra.mxu0 0.0
  %6713 = vmatprep.subr.mxu0 0.0
  %6714 = vmatpush1.msra.mxu0 0.0
  %6715 = vmatprep.subr.mxu0 0.0
  %6716 = vmatpush1.msra.mxu0 0.0
  %6717 = vmatprep.subr.mxu0 0.0
  %6718 = vmatpush1.msra.mxu0 0.0
  %6719 = vmatprep.subr.mxu0 0.0
  %6720 = vmatpush1.msra.mxu0 0.0
  %6721 = vmatprep.subr.mxu0 0.0
  %6722 = vmatpush1.msra.mxu0 0.0
  %6723 = vmatprep.mubr.f32.mxu0 0.0
  %6724 = vmatmul.mubr.f32.gmra.mrb[0].mxu0 %v6651
  %v6725 = vpop.f32.mrb[0].mxu0
  %v6726 = vadd.f32 0.0, %v6725
  %v6727 = vpop.f32.mrb[0].mxu0
  %6728 = vmatprep.mubr.f32.mxu0 0.0
  %6729 = vmatmul.mubr.f32.gmra.mrb[0].mxu0 %v6654
  %v6730 = vpop.f32.mrb[0].mxu0
  %v6731 = vadd.f32 0.0, %v6730
  %v6732 = vpop.f32.mrb[0].mxu0
  %6733 = vmatprep.mubr.f32.mxu0 0.0
  %6734 = vmatmul.mubr.f32.gmra.mrb[0].mxu0 %v6657
  %v6735 = vpop.f32.mrb[0].mxu0
  %v6736 = vadd.f32 0.0, %v6735
  %v6737 = vpop.f32.mrb[0].mxu0
  %6738 = vdwg.mxu0
  %v6739 = vadd.f32 %v6640, %v6726
  %v6740 = vadd.f32 %v6641, %v6731
  %v6741 = vadd.f32 %v6642, %v6736
  %v6742 = vld [vmem:[#allocation5 + $0x8] sm:$0xff]
  %v6743 = vld [vmem:[#allocation5 + $0x10] sm:$0xff]
  %v6744 = vld [vmem:[#allocation5 + $0x18] sm:$0xff]
  %v6745 = vld [vmem:[%s7 + $0xa0] sm:$0xff]
  %v6746 = vld [vmem:[%s7 + $0xa8] sm:$0xff]
  %v6747 = vld [vmem:[%s7 + $0xb0] sm:$0xff]
  %v6748 = vld [vmem:[%s7 + $0xb8] sm:$0xff]
  %v6750 = vsel %vm6059, %v6742, 0
  %v6753 = vsel %vm6059, %v6743, 0
  %v6756 = vsel %vm6059, %v6744, 0
  %6758 = vmatprep.subr.mxu0 0.0
  %6759 = vmatpush1.msra.mxu0 %v6745
  %6760 = vmatprep.subr.mxu0 0.0
  %6761 = vmatpush1.msra.mxu0 %v6746
  %6762 = vmatprep.subr.mxu0 0.0
  %6763 = vmatpush1.msra.mxu0 %v6747
  %6764 = vmatprep.subr.mxu0 0.0
  %6765 = vmatpush1.msra.mxu0 %v6748
  %6766 = vmatprep.subr.mxu0 0.0
  %6767 = vmatpush1.msra.mxu0 0.0
  %6768 = vmatprep.subr.mxu0 0.0
  %6769 = vmatpush1.msra.mxu0 0.0
  %6770 = vmatprep.subr.mxu0 0.0
  %6771 = vmatpush1.msra.mxu0 0.0
  %6772 = vmatprep.subr.mxu0 0.0
  %6773 = vmatpush1.msra.mxu0 0.0
  %6774 = vmatprep.subr.mxu0 0.0
  %6775 = vmatpush1.msra.mxu0 0.0
  %6776 = vmatprep.subr.mxu0 0.0
  %6777 = vmatpush1.msra.mxu0 0.0
  %6778 = vmatprep.subr.mxu0 0.0
  %6779 = vmatpush1.msra.mxu0 0.0
  %6780 = vmatprep.subr.mxu0 0.0
  %6781 = vmatpush1.msra.mxu0 0.0
  %6782 = vmatprep.subr.mxu0 0.0
  %6783 = vmatpush1.msra.mxu0 0.0
  %6784 = vmatprep.subr.mxu0 0.0
  %6785 = vmatpush1.msra.mxu0 0.0
  %6786 = vmatprep.subr.mxu0 0.0
  %6787 = vmatpush1.msra.mxu0 0.0
  %6788 = vmatprep.subr.mxu0 0.0
  %6789 = vmatpush1.msra.mxu0 0.0
  %6790 = vmatprep.subr.mxu0 0.0
  %6791 = vmatpush1.msra.mxu0 0.0
  %6792 = vmatprep.subr.mxu0 0.0
  %6793 = vmatpush1.msra.mxu0 0.0
  %6794 = vmatprep.subr.mxu0 0.0
  %6795 = vmatpush1.msra.mxu0 0.0
  %6796 = vmatprep.subr.mxu0 0.0
  %6797 = vmatpush1.msra.mxu0 0.0
  %6798 = vmatprep.subr.mxu0 0.0
  %6799 = vmatpush1.msra.mxu0 0.0
  %6800 = vmatprep.subr.mxu0 0.0
  %6801 = vmatpush1.msra.mxu0 0.0
  %6802 = vmatprep.subr.mxu0 0.0
  %6803 = vmatpush1.msra.mxu0 0.0
  %6804 = vmatprep.subr.mxu0 0.0
  %6805 = vmatpush1.msra.mxu0 0.0
  %6806 = vmatprep.subr.mxu0 0.0
  %6807 = vmatpush1.msra.mxu0 0.0
  %6808 = vmatprep.subr.mxu0 0.0
  %6809 = vmatpush1.msra.mxu0 0.0
  %6810 = vmatprep.subr.mxu0 0.0
  %6811 = vmatpush1.msra.mxu0 0.0
  %6812 = vmatprep.subr.mxu0 0.0
  %6813 = vmatpush1.msra.mxu0 0.0
  %6814 = vmatprep.subr.mxu0 0.0
  %6815 = vmatpush1.msra.mxu0 0.0
  %6816 = vmatprep.subr.mxu0 0.0
  %6817 = vmatpush1.msra.mxu0 0.0
  %6818 = vmatprep.subr.mxu0 0.0
  %6819 = vmatpush1.msra.mxu0 0.0
  %6820 = vmatprep.subr.mxu0 0.0
  %6821 = vmatpush1.msra.mxu0 0.0
  %6822 = vmatprep.mubr.f32.mxu0 0.0
  %6823 = vmatmul.mubr.f32.gmra.mrb[0].mxu0 %v6750
  %v6824 = vpop.f32.mrb[0].mxu0
  %v6825 = vadd.f32 0.0, %v6824
  %v6826 = vpop.f32.mrb[0].mxu0
  %6827 = vmatprep.mubr.f32.mxu0 0.0
  %6828 = vmatmul.mubr.f32.gmra.mrb[0].mxu0 %v6753
  %v6829 = vpop.f32.mrb[0].mxu0
  %v6830 = vadd.f32 0.0, %v6829
  %v6831 = vpop.f32.mrb[0].mxu0
  %6832 = vmatprep.mubr.f32.mxu0 0.0
  %6833 = vmatmul.mubr.f32.gmra.mrb[0].mxu0 %v6756
  %v6834 = vpop.f32.mrb[0].mxu0
  %v6835 = vadd.f32 0.0, %v6834
  %v6836 = vpop.f32.mrb[0].mxu0
  %6837 = vdwg.mxu0
  %v6838 = vadd.f32 %v6739, %v6825
  %v6839 = vadd.f32 %v6740, %v6830
  %v6840 = vadd.f32 %v6741, %v6835
  %v6841 = vld [vmem:[#allocation5 + $0xc] sm:$0xff]
  %v6842 = vld [vmem:[#allocation5 + $0x14] sm:$0xff]
  %v6843 = vld [vmem:[#allocation5 + $0x1c] sm:$0xff]
  %v6844 = vld [vmem:[%s7 + $0xc0] sm:$0xff]
  %v6845 = vld [vmem:[%s7 + $0xc8] sm:$0xff]
  %v6846 = vld [vmem:[%s7 + $0xd0] sm:$0xff]
  %v6847 = vld [vmem:[%s7 + $0xd8] sm:$0xff]
  %v6849 = vsel %vm6059, %v6841, 0
  %v6852 = vsel %vm6059, %v6842, 0
  %v6855 = vsel %vm6059, %v6843, 0
  %6857 = vmatprep.subr.mxu0 0.0
  %6858 = vmatpush1.msra.mxu0 %v6844
  %6859 = vmatprep.subr.mxu0 0.0
  %6860 = vmatpush1.msra.mxu0 %v6845
  %6861 = vmatprep.subr.mxu0 0.0
  %6862 = vmatpush1.msra.mxu0 %v6846
  %6863 = vmatprep.subr.mxu0 0.0
  %6864 = vmatpush1.msra.mxu0 %v6847
  %6865 = vmatprep.subr.mxu0 0.0
  %6866 = vmatpush1.msra.mxu0 0.0
  %6867 = vmatprep.subr.mxu0 0.0
  %6868 = vmatpush1.msra.mxu0 0.0
  %6869 = vmatprep.subr.mxu0 0.0
  %6870 = vmatpush1.msra.mxu0 0.0
  %6871 = vmatprep.subr.mxu0 0.0
  %6872 = vmatpush1.msra.mxu0 0.0
  %6873 = vmatprep.subr.mxu0 0.0
  %6874 = vmatpush1.msra.mxu0 0.0
  %6875 = vmatprep.subr.mxu0 0.0
  %6876 = vmatpush1.msra.mxu0 0.0
  %6877 = vmatprep.subr.mxu0 0.0
  %6878 = vmatpush1.msra.mxu0 0.0
  %6879 = vmatprep.subr.mxu0 0.0
  %6880 = vmatpush1.msra.mxu0 0.0
  %6881 = vmatprep.subr.mxu0 0.0
  %6882 = vmatpush1.msra.mxu0 0.0
  %6883 = vmatprep.subr.mxu0 0.0
  %6884 = vmatpush1.msra.mxu0 0.0
  %6885 = vmatprep.subr.mxu0 0.0
  %6886 = vmatpush1.msra.mxu0 0.0
  %6887 = vmatprep.subr.mxu0 0.0
  %6888 = vmatpush1.msra.mxu0 0.0
  %6889 = vmatprep.subr.mxu0 0.0
  %6890 = vmatpush1.msra.mxu0 0.0
  %6891 = vmatprep.subr.mxu0 0.0
  %6892 = vmatpush1.msra.mxu0 0.0
  %6893 = vmatprep.subr.mxu0 0.0
  %6894 = vmatpush1.msra.mxu0 0.0
  %6895 = vmatprep.subr.mxu0 0.0
  %6896 = vmatpush1.msra.mxu0 0.0
  %6897 = vmatprep.subr.mxu0 0.0
  %6898 = vmatpush1.msra.mxu0 0.0
  %6899 = vmatprep.subr.mxu0 0.0
  %6900 = vmatpush1.msra.mxu0 0.0
  %6901 = vmatprep.subr.mxu0 0.0
  %6902 = vmatpush1.msra.mxu0 0.0
  %6903 = vmatprep.subr.mxu0 0.0
  %6904 = vmatpush1.msra.mxu0 0.0
  %6905 = vmatprep.subr.mxu0 0.0
  %6906 = vmatpush1.msra.mxu0 0.0
  %6907 = vmatprep.subr.mxu0 0.0
  %6908 = vmatpush1.msra.mxu0 0.0
  %6909 = vmatprep.subr.mxu0 0.0
  %6910 = vmatpush1.msra.mxu0 0.0
  %6911 = vmatprep.subr.mxu0 0.0
  %6912 = vmatpush1.msra.mxu0 0.0
  %6913 = vmatprep.subr.mxu0 0.0
  %6914 = vmatpush1.msra.mxu0 0.0
  %6915 = vmatprep.subr.mxu0 0.0
  %6916 = vmatpush1.msra.mxu0 0.0
  %6917 = vmatprep.subr.mxu0 0.0
  %6918 = vmatpush1.msra.mxu0 0.0
  %6919 = vmatprep.subr.mxu0 0.0
  %6920 = vmatpush1.msra.mxu0 0.0
  %6921 = vmatprep.mubr.f32.mxu0 0.0
  %6922 = vmatmul.mubr.f32.gmra.mrb[0].mxu0 %v6849
  %v6923 = vpop.f32.mrb[0].mxu0
  %v6924 = vadd.f32 0.0, %v6923
  %v6925 = vpop.f32.mrb[0].mxu0
  %6926 = vmatprep.mubr.f32.mxu0 0.0
  %6927 = vmatmul.mubr.f32.gmra.mrb[0].mxu0 %v6852
  %v6928 = vpop.f32.mrb[0].mxu0
  %v6929 = vadd.f32 0.0, %v6928
  %v6930 = vpop.f32.mrb[0].mxu0
  %6931 = vmatprep.mubr.f32.mxu0 0.0
  %6932 = vmatmul.mubr.f32.gmra.mrb[0].mxu0 %v6855
  %v6933 = vpop.f32.mrb[0].mxu0
  %v6934 = vadd.f32 0.0, %v6933
  %v6935 = vpop.f32.mrb[0].mxu0
  %6936 = vdwg.mxu0
  %v6937 = vadd.f32 %v6838, %v6924
  %v6938 = vadd.f32 %v6839, %v6929
  %v6939 = vadd.f32 %v6840, %v6934
  %v6940 = vld [vmem:[#allocation5 + $0xd] sm:$0xff]
  %v6941 = vld [vmem:[#allocation5 + $0x15] sm:$0xff]
  %v6942 = vld [vmem:[#allocation5 + $0x1d] sm:$0xff]
  %v6943 = vld [vmem:[%s7 + $0xe0] sm:$0xff]
  %v6944 = vld [vmem:[%s7 + $0xe8] sm:$0xff]
  %v6945 = vld [vmem:[%s7 + $0xf0] sm:$0xff]
  %v6946 = vld [vmem:[%s7 + $0xf8] sm:$0xff]
  %v6948 = vsel %vm6059, %v6940, 0
  %v6951 = vsel %vm6059, %v6941, 0
  %v6954 = vsel %vm6059, %v6942, 0
  %6956 = vmatprep.subr.mxu0 0.0
  %6957 = vmatpush1.msra.mxu0 %v6943
  %6958 = vmatprep.subr.mxu0 0.0
  %6959 = vmatpush1.msra.mxu0 %v6944
  %6960 = vmatprep.subr.mxu0 0.0
  %6961 = vmatpush1.msra.mxu0 %v6945
  %6962 = vmatprep.subr.mxu0 0.0
  %6963 = vmatpush1.msra.mxu0 %v6946
  %6964 = vmatprep.subr.mxu0 0.0
  %6965 = vmatpush1.msra.mxu0 0.0
  %6966 = vmatprep.subr.mxu0 0.0
  %6967 = vmatpush1.msra.mxu0 0.0
  %6968 = vmatprep.subr.mxu0 0.0
  %6969 = vmatpush1.msra.mxu0 0.0
  %6970 = vmatprep.subr.mxu0 0.0
  %6971 = vmatpush1.msra.mxu0 0.0
  %6972 = vmatprep.subr.mxu0 0.0
  %6973 = vmatpush1.msra.mxu0 0.0
  %6974 = vmatprep.subr.mxu0 0.0
  %6975 = vmatpush1.msra.mxu0 0.0
  %6976 = vmatprep.subr.mxu0 0.0
  %6977 = vmatpush1.msra.mxu0 0.0
  %6978 = vmatprep.subr.mxu0 0.0
  %6979 = vmatpush1.msra.mxu0 0.0
  %6980 = vmatprep.subr.mxu0 0.0
  %6981 = vmatpush1.msra.mxu0 0.0
  %6982 = vmatprep.subr.mxu0 0.0
  %6983 = vmatpush1.msra.mxu0 0.0
  %6984 = vmatprep.subr.mxu0 0.0
  %6985 = vmatpush1.msra.mxu0 0.0
  %6986 = vmatprep.subr.mxu0 0.0
  %6987 = vmatpush1.msra.mxu0 0.0
  %6988 = vmatprep.subr.mxu0 0.0
  %6989 = vmatpush1.msra.mxu0 0.0
  %6990 = vmatprep.subr.mxu0 0.0
  %6991 = vmatpush1.msra.mxu0 0.0
  %6992 = vmatprep.subr.mxu0 0.0
  %6993 = vmatpush1.msra.mxu0 0.0
  %6994 = vmatprep.subr.mxu0 0.0
  %6995 = vmatpush1.msra.mxu0 0.0
  %6996 = vmatprep.subr.mxu0 0.0
  %6997 = vmatpush1.msra.mxu0 0.0
  %6998 = vmatprep.subr.mxu0 0.0
  %6999 = vmatpush1.msra.mxu0 0.0
  %7000 = vmatprep.subr.mxu0 0.0
  %7001 = vmatpush1.msra.mxu0 0.0
  %7002 = vmatprep.subr.mxu0 0.0
  %7003 = vmatpush1.msra.mxu0 0.0
  %7004 = vmatprep.subr.mxu0 0.0
  %7005 = vmatpush1.msra.mxu0 0.0
  %7006 = vmatprep.subr.mxu0 0.0
  %7007 = vmatpush1.msra.mxu0 0.0
  %7008 = vmatprep.subr.mxu0 0.0
  %7009 = vmatpush1.msra.mxu0 0.0
  %7010 = vmatprep.subr.mxu0 0.0
  %7011 = vmatpush1.msra.mxu0 0.0
  %7012 = vmatprep.subr.mxu0 0.0
  %7013 = vmatpush1.msra.mxu0 0.0
  %7014 = vmatprep.subr.mxu0 0.0
  %7015 = vmatpush1.msra.mxu0 0.0
  %7016 = vmatprep.subr.mxu0 0.0
  %7017 = vmatpush1.msra.mxu0 0.0
  %7018 = vmatprep.subr.mxu0 0.0
  %7019 = vmatpush1.msra.mxu0 0.0
  %7020 = vmatprep.mubr.f32.mxu0 0.0
  %7021 = vmatmul.mubr.f32.gmra.mrb[0].mxu0 %v6948
  %v7022 = vpop.f32.mrb[0].mxu0
  %v7023 = vadd.f32 0.0, %v7022
  %v7024 = vpop.f32.mrb[0].mxu0
  %7025 = vmatprep.mubr.f32.mxu0 0.0
  %7026 = vmatmul.mubr.f32.gmra.mrb[0].mxu0 %v6951
  %v7027 = vpop.f32.mrb[0].mxu0
  %v7028 = vadd.f32 0.0, %v7027
  %v7029 = vpop.f32.mrb[0].mxu0
  %7030 = vmatprep.mubr.f32.mxu0 0.0
  %7031 = vmatmul.mubr.f32.gmra.mrb[0].mxu0 %v6954
  %v7032 = vpop.f32.mrb[0].mxu0
  %v7033 = vadd.f32 0.0, %v7032
  %v7034 = vpop.f32.mrb[0].mxu0
  %7035 = vdwg.mxu0
  %v7036 = vadd.f32 %v6937, %v7023
  %v7037 = vadd.f32 %v6938, %v7028
  %v7038 = vadd.f32 %v6939, %v7033
  %v7039 = vld [vmem:[#allocation5 + $0xe] sm:$0xff]
  %v7040 = vld [vmem:[#allocation5 + $0x16] sm:$0xff]
  %v7041 = vld [vmem:[#allocation5 + $0x1e] sm:$0xff]
  %v7042 = vld [vmem:[%s7 + $0x100] sm:$0xff]
  %v7043 = vld [vmem:[%s7 + $0x108] sm:$0xff]
  %v7044 = vld [vmem:[%s7 + $0x110] sm:$0xff]
  %v7045 = vld [vmem:[%s7 + $0x118] sm:$0xff]
  %v7047 = vsel %vm6059, %v7039, 0
  %v7050 = vsel %vm6059, %v7040, 0
  %v7053 = vsel %vm6059, %v7041, 0
  %7055 = vmatprep.subr.mxu0 0.0
  %7056 = vmatpush1.msra.mxu0 %v7042
  %7057 = vmatprep.subr.mxu0 0.0
  %7058 = vmatpush1.msra.mxu0 %v7043
  %7059 = vmatprep.subr.mxu0 0.0
  %7060 = vmatpush1.msra.mxu0 %v7044
  %7061 = vmatprep.subr.mxu0 0.0
  %7062 = vmatpush1.msra.mxu0 %v7045
  %7063 = vmatprep.subr.mxu0 0.0
  %7064 = vmatpush1.msra.mxu0 0.0
  %7065 = vmatprep.subr.mxu0 0.0
  %7066 = vmatpush1.msra.mxu0 0.0
  %7067 = vmatprep.subr.mxu0 0.0
  %7068 = vmatpush1.msra.mxu0 0.0
  %7069 = vmatprep.subr.mxu0 0.0
  %7070 = vmatpush1.msra.mxu0 0.0
  %7071 = vmatprep.subr.mxu0 0.0
  %7072 = vmatpush1.msra.mxu0 0.0
  %7073 = vmatprep.subr.mxu0 0.0
  %7074 = vmatpush1.msra.mxu0 0.0
  %7075 = vmatprep.subr.mxu0 0.0
  %7076 = vmatpush1.msra.mxu0 0.0
  %7077 = vmatprep.subr.mxu0 0.0
  %7078 = vmatpush1.msra.mxu0 0.0
  %7079 = vmatprep.subr.mxu0 0.0
  %7080 = vmatpush1.msra.mxu0 0.0
  %7081 = vmatprep.subr.mxu0 0.0
  %7082 = vmatpush1.msra.mxu0 0.0
  %7083 = vmatprep.subr.mxu0 0.0
  %7084 = vmatpush1.msra.mxu0 0.0
  %7085 = vmatprep.subr.mxu0 0.0
  %7086 = vmatpush1.msra.mxu0 0.0
  %7087 = vmatprep.subr.mxu0 0.0
  %7088 = vmatpush1.msra.mxu0 0.0
  %7089 = vmatprep.subr.mxu0 0.0
  %7090 = vmatpush1.msra.mxu0 0.0
  %7091 = vmatprep.subr.mxu0 0.0
  %7092 = vmatpush1.msra.mxu0 0.0
  %7093 = vmatprep.subr.mxu0 0.0
  %7094 = vmatpush1.msra.mxu0 0.0
  %7095 = vmatprep.subr.mxu0 0.0
  %7096 = vmatpush1.msra.mxu0 0.0
  %7097 = vmatprep.subr.mxu0 0.0
  %7098 = vmatpush1.msra.mxu0 0.0
  %7099 = vmatprep.subr.mxu0 0.0
  %7100 = vmatpush1.msra.mxu0 0.0
  %7101 = vmatprep.subr.mxu0 0.0
  %7102 = vmatpush1.msra.mxu0 0.0
  %7103 = vmatprep.subr.mxu0 0.0
  %7104 = vmatpush1.msra.mxu0 0.0
  %7105 = vmatprep.subr.mxu0 0.0
  %7106 = vmatpush1.msra.mxu0 0.0
  %7107 = vmatprep.subr.mxu0 0.0
  %7108 = vmatpush1.msra.mxu0 0.0
  %7109 = vmatprep.subr.mxu0 0.0
  %7110 = vmatpush1.msra.mxu0 0.0
  %7111 = vmatprep.subr.mxu0 0.0
  %7112 = vmatpush1.msra.mxu0 0.0
  %7113 = vmatprep.subr.mxu0 0.0
  %7114 = vmatpush1.msra.mxu0 0.0
  %7115 = vmatprep.subr.mxu0 0.0
  %7116 = vmatpush1.msra.mxu0 0.0
  %7117 = vmatprep.subr.mxu0 0.0
  %7118 = vmatpush1.msra.mxu0 0.0
  %7119 = vmatprep.mubr.f32.mxu0 0.0
  %7120 = vmatmul.mubr.f32.gmra.mrb[0].mxu0 %v7047
  %v7121 = vpop.f32.mrb[0].mxu0
  %v7122 = vadd.f32 0.0, %v7121
  %v7123 = vpop.f32.mrb[0].mxu0
  %7124 = vmatprep.mubr.f32.mxu0 0.0
  %7125 = vmatmul.mubr.f32.gmra.mrb[0].mxu0 %v7050
  %v7126 = vpop.f32.mrb[0].mxu0
  %v7127 = vadd.f32 0.0, %v7126
  %v7128 = vpop.f32.mrb[0].mxu0
  %7129 = vmatprep.mubr.f32.mxu0 0.0
  %7130 = vmatmul.mubr.f32.gmra.mrb[0].mxu0 %v7053
  %v7131 = vpop.f32.mrb[0].mxu0
  %v7132 = vadd.f32 0.0, %v7131
  %v7133 = vpop.f32.mrb[0].mxu0
  %7134 = vdwg.mxu0
  %v7135 = vadd.f32 %v7036, %v7122
  %v7136 = vadd.f32 %v7037, %v7127
  %v7137 = vadd.f32 %v7038, %v7132
  %v7138 = vld [vmem:[%s8] sm:$0x1]
  %v7140 = vlaneseq
  %v7141 = vshrl.u32 %v7140, 7
  %v7142 = vsub.s32 0, %v7141
  %v7143 = vrot.slane %v7138, %v7142
  %v7145 = vadd.f32 %v7135, %v7143
  %v7146 = vadd.f32 %v7136, %v7143
  %v7147 = vadd.f32 %v7137, %v7143
  %v7148 = vmax.f32 %v7145, 0.0
  %v7149 = vmax.f32 %v7146, 0.0
  %v7150 = vmax.f32 %v7147, 0.0
  %vm7151 = vcmask 523264
  %7152 = vst.msk [vmem:[#allocation6] sm:$0xff] %vm7151, %v7148
  %7153 = vst.msk [vmem:[#allocation6 + $0x8] sm:$0xff] %vm7151, %v7149
  %7154 = vst.msk [vmem:[#allocation6 + $0x10] sm:$0xff] %vm7151, %v7150
  %v7155 = vld [vmem:[#allocation6] sm:$0xff]
  %v7156 = vld [vmem:[#allocation6 + $0x8] sm:$0xff]
  %v7157 = vld [vmem:[#allocation6 + $0x10] sm:$0x1]
  %v7158 = vld [vmem:[#allocation6 + $0x1] sm:$0xff]
  %v7159 = vld [vmem:[#allocation6 + $0x9] sm:$0xff]
  %v7160 = vld [vmem:[#allocation6 + $0x11] sm:$0x1]
  %v7161 = vmax.f32 %v7155, %v7158
  %v7162 = vmax.f32 %v7156, %v7159
  %v7163 = vmax.f32 %v7157, %v7160
  %v7164 = vld [vmem:[#allocation6 + $0x6] sm:$0xff]
  %v7165 = vld [vmem:[#allocation6 + $0xe] sm:$0xff]
  %v7166 = vld [vmem:[#allocation6 + $0x16] sm:$0x1]
  %v7167 = vld [vmem:[#allocation6 + $0x7] sm:$0xff]
  %v7168 = vld [vmem:[#allocation6 + $0xf] sm:$0xff]
  %v7169 = vld [vmem:[#allocation6 + $0x17] sm:$0x1]
  %v7170 = vmax.f32 %v7164, %v7167
  %v7171 = vmax.f32 %v7165, %v7168
  %v7172 = vmax.f32 %v7166, %v7169
  %v7173 = vmax.f32 %v7161, %v7170
  %v7174 = vmax.f32 %v7162, %v7171
  %v7175 = vmax.f32 %v7163, %v7172
  %v7176 = vld [vmem:[%s9] sm:$0xf]
  %vm7177 = vcmask 138240
  %v7179 = vsel %vm7177, %v7176, 0
  %vm7181 = vcmask 1040384
  %v7183 = vsel %vm7181, %v7175, 0
  %7185 = vmatprep.subr.mxu0 0.0
  %7186 = vmatpush1.msra.mxu0 %v7173
  %7187 = vmatprep.subr.mxu0 0.0
  %7188 = vmatpush1.msra.mxu0 %v7174
  %7189 = vmatprep.subr.mxu0 0.0
  %7190 = vmatpush1.msra.mxu0 %v7183
  %7191 = vmatprep.subr.mxu0 0.0
  %7192 = vmatpush1.msra.mxu0 0.0
  %7193 = vmatprep.subr.mxu0 0.0
  %7194 = vmatpush1.msra.mxu0 0.0
  %7195 = vmatprep.subr.mxu0 0.0
  %7196 = vmatpush1.msra.mxu0 0.0
  %7197 = vmatprep.subr.mxu0 0.0
  %7198 = vmatpush1.msra.mxu0 0.0
  %7199 = vmatprep.subr.mxu0 0.0
  %7200 = vmatpush1.msra.mxu0 0.0
  %7201 = vmatprep.subr.mxu0 0.0
  %7202 = vmatpush1.msra.mxu0 0.0
  %7203 = vmatprep.subr.mxu0 0.0
  %7204 = vmatpush1.msra.mxu0 0.0
  %7205 = vmatprep.subr.mxu0 0.0
  %7206 = vmatpush1.msra.mxu0 0.0
  %7207 = vmatprep.subr.mxu0 0.0
  %7208 = vmatpush1.msra.mxu0 0.0
  %7209 = vmatprep.subr.mxu0 0.0
  %7210 = vmatpush1.msra.mxu0 0.0
  %7211 = vmatprep.subr.mxu0 0.0
  %7212 = vmatpush1.msra.mxu0 0.0
  %7213 = vmatprep.subr.mxu0 0.0
  %7214 = vmatpush1.msra.mxu0 0.0
  %7215 = vmatprep.subr.mxu0 0.0
  %7216 = vmatpush1.msra.mxu0 0.0
  %7217 = vmatprep.subr.mxu0 0.0
  %7218 = vmatpush1.msra.mxu0 0.0
  %7219 = vmatprep.subr.mxu0 0.0
  %7220 = vmatpush1.msra.mxu0 0.0
  %7221 = vmatprep.subr.mxu0 0.0
  %7222 = vmatpush1.msra.mxu0 0.0
  %7223 = vmatprep.subr.mxu0 0.0
  %7224 = vmatpush1.msra.mxu0 0.0
  %7225 = vmatprep.subr.mxu0 0.0
  %7226 = vmatpush1.msra.mxu0 0.0
  %7227 = vmatprep.subr.mxu0 0.0
  %7228 = vmatpush1.msra.mxu0 0.0
  %7229 = vmatprep.subr.mxu0 0.0
  %7230 = vmatpush1.msra.mxu0 0.0
  %7231 = vmatprep.subr.mxu0 0.0
  %7232 = vmatpush1.msra.mxu0 0.0
  %7233 = vmatprep.subr.mxu0 0.0
  %7234 = vmatpush1.msra.mxu0 0.0
  %7235 = vmatprep.subr.mxu0 0.0
  %7236 = vmatpush1.msra.mxu0 0.0
  %7237 = vmatprep.subr.mxu0 0.0
  %7238 = vmatpush1.msra.mxu0 0.0
  %7239 = vmatprep.subr.mxu0 0.0
  %7240 = vmatpush1.msra.mxu0 0.0
  %7241 = vmatprep.subr.mxu0 0.0
  %7242 = vmatpush1.msra.mxu0 0.0
  %7243 = vmatprep.subr.mxu0 0.0
  %7244 = vmatpush1.msra.mxu0 0.0
  %7245 = vmatprep.subr.mxu0 0.0
  %7246 = vmatpush1.msra.mxu0 0.0
  %7247 = vmatprep.subr.mxu0 0.0
  %7248 = vmatpush1.msra.mxu0 0.0
  %7249 = vmatprep.mubr.f32.mxu0 0.0
  %7250 = vmatmul.mubr.f32.gmra.mrb[0].mxu0 %v7179
  %v7251 = vpop.f32.mrb[0].mxu0
  %v7252 = vadd.f32 0.0, %v7251
  %v7253 = vpop.f32.mrb[0].mxu0
  %7254 = vdwg.mxu0
  %vm7255 = vcmask 519168
  %7256 = vst.msk [vmem:[#allocation7] sm:$0xf] %vm7255, %v7252
  %v7257 = vld [vmem:[%s11] sm:$0x1]
  %v7258 = vld [vmem:[#allocation7] sm:$0x1]
  %v7259 = vld [vmem:[%s10] sm:$0xff]
  %v7260 = vld [vmem:[%s10 + $0x8] sm:$0xff]
  %v7261 = vld [vmem:[%s10 + $0x10] sm:$0xff]
  %v7262 = vld [vmem:[%s10 + $0x18] sm:$0xff]
  %v7263 = vld [vmem:[%s10 + $0x20] sm:$0xff]
  %v7264 = vld [vmem:[%s10 + $0x28] sm:$0xff]
  %v7265 = vld [vmem:[%s10 + $0x30] sm:$0xff]
  %v7266 = vld [vmem:[%s10 + $0x38] sm:$0xff]
  %v7268 = vsel %vm7151, %v7258, 0
  %7270 = vmatprep.subr.mxu0 0.0
  %7271 = vmatpush1.msra.mxu0 %v7259
  %7272 = vmatprep.subr.mxu0 0.0
  %7273 = vmatpush1.msra.mxu0 %v7260
  %7274 = vmatprep.subr.mxu0 0.0
  %7275 = vmatpush1.msra.mxu0 %v7261
  %7276 = vmatprep.subr.mxu0 0.0
  %7277 = vmatpush1.msra.mxu0 %v7262
  %7278 = vmatprep.subr.mxu0 0.0
  %7279 = vmatpush1.msra.mxu0 %v7263
  %7280 = vmatprep.subr.mxu0 0.0
  %7281 = vmatpush1.msra.mxu0 %v7264
  %7282 = vmatprep.subr.mxu0 0.0
  %7283 = vmatpush1.msra.mxu0 %v7265
  %7284 = vmatprep.subr.mxu0 0.0
  %7285 = vmatpush1.msra.mxu0 %v7266
  %7286 = vmatprep.subr.mxu0 0.0
  %7287 = vmatpush1.msra.mxu0 0.0
  %7288 = vmatprep.subr.mxu0 0.0
  %7289 = vmatpush1.msra.mxu0 0.0
  %7290 = vmatprep.subr.mxu0 0.0
  %7291 = vmatpush1.msra.mxu0 0.0
  %7292 = vmatprep.subr.mxu0 0.0
  %7293 = vmatpush1.msra.mxu0 0.0
  %7294 = vmatprep.subr.mxu0 0.0
  %7295 = vmatpush1.msra.mxu0 0.0
  %7296 = vmatprep.subr.mxu0 0.0
  %7297 = vmatpush1.msra.mxu0 0.0
  %7298 = vmatprep.subr.mxu0 0.0
  %7299 = vmatpush1.msra.mxu0 0.0
  %7300 = vmatprep.subr.mxu0 0.0
  %7301 = vmatpush1.msra.mxu0 0.0
  %7302 = vmatprep.subr.mxu0 0.0
  %7303 = vmatpush1.msra.mxu0 0.0
  %7304 = vmatprep.subr.mxu0 0.0
  %7305 = vmatpush1.msra.mxu0 0.0
  %7306 = vmatprep.subr.mxu0 0.0
  %7307 = vmatpush1.msra.mxu0 0.0
  %7308 = vmatprep.subr.mxu0 0.0
  %7309 = vmatpush1.msra.mxu0 0.0
  %7310 = vmatprep.subr.mxu0 0.0
  %7311 = vmatpush1.msra.mxu0 0.0
  %7312 = vmatprep.subr.mxu0 0.0
  %7313 = vmatpush1.msra.mxu0 0.0
  %7314 = vmatprep.subr.mxu0 0.0
  %7315 = vmatpush1.msra.mxu0 0.0
  %7316 = vmatprep.subr.mxu0 0.0
  %7317 = vmatpush1.msra.mxu0 0.0
  %7318 = vmatprep.subr.mxu0 0.0
  %7319 = vmatpush1.msra.mxu0 0.0
  %7320 = vmatprep.subr.mxu0 0.0
  %7321 = vmatpush1.msra.mxu0 0.0
  %7322 = vmatprep.subr.mxu0 0.0
  %7323 = vmatpush1.msra.mxu0 0.0
  %7324 = vmatprep.subr.mxu0 0.0
  %7325 = vmatpush1.msra.mxu0 0.0
  %7326 = vmatprep.subr.mxu0 0.0
  %7327 = vmatpush1.msra.mxu0 0.0
  %7328 = vmatprep.subr.mxu0 0.0
  %7329 = vmatpush1.msra.mxu0 0.0
  %7330 = vmatprep.subr.mxu0 0.0
  %7331 = vmatpush1.msra.mxu0 0.0
  %7332 = vmatprep.subr.mxu0 0.0
  %7333 = vmatpush1.msra.mxu0 0.0
  %7334 = vmatprep.mubr.f32.mxu0 0.0
  %7335 = vmatmul.mubr.f32.gmra.mrb[0].mxu0 %v7268
  %v7336 = vpop.f32.mrb[0].mxu0
  %v7337 = vadd.f32 0.0, %v7336
  %v7338 = vpop.f32.mrb[0].mxu0
  %7339 = vdwg.mxu0
  %v7340 = vadd.f32 %v7257, %v7337
  %v7341 = vld [vmem:[#allocation7 + $0x1] sm:$0x1]
  %v7342 = vld [vmem:[%s10 + $0x40] sm:$0xff]
  %v7343 = vld [vmem:[%s10 + $0x48] sm:$0xff]
  %v7344 = vld [vmem:[%s10 + $0x50] sm:$0xff]
  %v7345 = vld [vmem:[%s10 + $0x58] sm:$0xff]
  %v7346 = vld [vmem:[%s10 + $0x60] sm:$0xff]
  %v7347 = vld [vmem:[%s10 + $0x68] sm:$0xff]
  %v7348 = vld [vmem:[%s10 + $0x70] sm:$0xff]
  %v7349 = vld [vmem:[%s10 + $0x78] sm:$0xff]
  %v7351 = vsel %vm7151, %v7341, 0
  %7353 = vmatprep.subr.mxu0 0.0
  %7354 = vmatpush1.msra.mxu0 %v7342
  %7355 = vmatprep.subr.mxu0 0.0
  %7356 = vmatpush1.msra.mxu0 %v7343
  %7357 = vmatprep.subr.mxu0 0.0
  %7358 = vmatpush1.msra.mxu0 %v7344
  %7359 = vmatprep.subr.mxu0 0.0
  %7360 = vmatpush1.msra.mxu0 %v7345
  %7361 = vmatprep.subr.mxu0 0.0
  %7362 = vmatpush1.msra.mxu0 %v7346
  %7363 = vmatprep.subr.mxu0 0.0
  %7364 = vmatpush1.msra.mxu0 %v7347
  %7365 = vmatprep.subr.mxu0 0.0
  %7366 = vmatpush1.msra.mxu0 %v7348
  %7367 = vmatprep.subr.mxu0 0.0
  %7368 = vmatpush1.msra.mxu0 %v7349
  %7369 = vmatprep.subr.mxu0 0.0
  %7370 = vmatpush1.msra.mxu0 0.0
  %7371 = vmatprep.subr.mxu0 0.0
  %7372 = vmatpush1.msra.mxu0 0.0
  %7373 = vmatprep.subr.mxu0 0.0
  %7374 = vmatpush1.msra.mxu0 0.0
  %7375 = vmatprep.subr.mxu0 0.0
  %7376 = vmatpush1.msra.mxu0 0.0
  %7377 = vmatprep.subr.mxu0 0.0
  %7378 = vmatpush1.msra.mxu0 0.0
  %7379 = vmatprep.subr.mxu0 0.0
  %7380 = vmatpush1.msra.mxu0 0.0
  %7381 = vmatprep.subr.mxu0 0.0
  %7382 = vmatpush1.msra.mxu0 0.0
  %7383 = vmatprep.subr.mxu0 0.0
  %7384 = vmatpush1.msra.mxu0 0.0
  %7385 = vmatprep.subr.mxu0 0.0
  %7386 = vmatpush1.msra.mxu0 0.0
  %7387 = vmatprep.subr.mxu0 0.0
  %7388 = vmatpush1.msra.mxu0 0.0
  %7389 = vmatprep.subr.mxu0 0.0
  %7390 = vmatpush1.msra.mxu0 0.0
  %7391 = vmatprep.subr.mxu0 0.0
  %7392 = vmatpush1.msra.mxu0 0.0
  %7393 = vmatprep.subr.mxu0 0.0
  %7394 = vmatpush1.msra.mxu0 0.0
  %7395 = vmatprep.subr.mxu0 0.0
  %7396 = vmatpush1.msra.mxu0 0.0
  %7397 = vmatprep.subr.mxu0 0.0
  %7398 = vmatpush1.msra.mxu0 0.0
  %7399 = vmatprep.subr.mxu0 0.0
  %7400 = vmatpush1.msra.mxu0 0.0
  %7401 = vmatprep.subr.mxu0 0.0
  %7402 = vmatpush1.msra.mxu0 0.0
  %7403 = vmatprep.subr.mxu0 0.0
  %7404 = vmatpush1.msra.mxu0 0.0
  %7405 = vmatprep.subr.mxu0 0.0
  %7406 = vmatpush1.msra.mxu0 0.0
  %7407 = vmatprep.subr.mxu0 0.0
  %7408 = vmatpush1.msra.mxu0 0.0
  %7409 = vmatprep.subr.mxu0 0.0
  %7410 = vmatpush1.msra.mxu0 0.0
  %7411 = vmatprep.subr.mxu0 0.0
  %7412 = vmatpush1.msra.mxu0 0.0
  %7413 = vmatprep.subr.mxu0 0.0
  %7414 = vmatpush1.msra.mxu0 0.0
  %7415 = vmatprep.subr.mxu0 0.0
  %7416 = vmatpush1.msra.mxu0 0.0
  %7417 = vmatprep.mubr.f32.mxu0 0.0
  %7418 = vmatmul.mubr.f32.gmra.mrb[0].mxu0 %v7351
  %v7419 = vpop.f32.mrb[0].mxu0
  %v7420 = vadd.f32 0.0, %v7419
  %v7421 = vpop.f32.mrb[0].mxu0
  %7422 = vdwg.mxu0
  %v7423 = vadd.f32 %v7340, %v7420
  %v7424 = vld [vmem:[#allocation7 + $0x2] sm:$0x1]
  %v7425 = vld [vmem:[%s10 + $0x80] sm:$0xff]
  %v7426 = vld [vmem:[%s10 + $0x88] sm:$0xff]
  %v7427 = vld [vmem:[%s10 + $0x90] sm:$0xff]
  %v7428 = vld [vmem:[%s10 + $0x98] sm:$0xff]
  %v7429 = vld [vmem:[%s10 + $0xa0] sm:$0xff]
  %v7430 = vld [vmem:[%s10 + $0xa8] sm:$0xff]
  %v7431 = vld [vmem:[%s10 + $0xb0] sm:$0xff]
  %v7432 = vld [vmem:[%s10 + $0xb8] sm:$0xff]
  %v7434 = vsel %vm7151, %v7424, 0
  %7436 = vmatprep.subr.mxu0 0.0
  %7437 = vmatpush1.msra.mxu0 %v7425
  %7438 = vmatprep.subr.mxu0 0.0
  %7439 = vmatpush1.msra.mxu0 %v7426
  %7440 = vmatprep.subr.mxu0 0.0
  %7441 = vmatpush1.msra.mxu0 %v7427
  %7442 = vmatprep.subr.mxu0 0.0
  %7443 = vmatpush1.msra.mxu0 %v7428
  %7444 = vmatprep.subr.mxu0 0.0
  %7445 = vmatpush1.msra.mxu0 %v7429
  %7446 = vmatprep.subr.mxu0 0.0
  %7447 = vmatpush1.msra.mxu0 %v7430
  %7448 = vmatprep.subr.mxu0 0.0
  %7449 = vmatpush1.msra.mxu0 %v7431
  %7450 = vmatprep.subr.mxu0 0.0
  %7451 = vmatpush1.msra.mxu0 %v7432
  %7452 = vmatprep.subr.mxu0 0.0
  %7453 = vmatpush1.msra.mxu0 0.0
  %7454 = vmatprep.subr.mxu0 0.0
  %7455 = vmatpush1.msra.mxu0 0.0
  %7456 = vmatprep.subr.mxu0 0.0
  %7457 = vmatpush1.msra.mxu0 0.0
  %7458 = vmatprep.subr.mxu0 0.0
  %7459 = vmatpush1.msra.mxu0 0.0
  %7460 = vmatprep.subr.mxu0 0.0
  %7461 = vmatpush1.msra.mxu0 0.0
  %7462 = vmatprep.subr.mxu0 0.0
  %7463 = vmatpush1.msra.mxu0 0.0
  %7464 = vmatprep.subr.mxu0 0.0
  %7465 = vmatpush1.msra.mxu0 0.0
  %7466 = vmatprep.subr.mxu0 0.0
  %7467 = vmatpush1.msra.mxu0 0.0
  %7468 = vmatprep.subr.mxu0 0.0
  %7469 = vmatpush1.msra.mxu0 0.0
  %7470 = vmatprep.subr.mxu0 0.0
  %7471 = vmatpush1.msra.mxu0 0.0
  %7472 = vmatprep.subr.mxu0 0.0
  %7473 = vmatpush1.msra.mxu0 0.0
  %7474 = vmatprep.subr.mxu0 0.0
  %7475 = vmatpush1.msra.mxu0 0.0
  %7476 = vmatprep.subr.mxu0 0.0
  %7477 = vmatpush1.msra.mxu0 0.0
  %7478 = vmatprep.subr.mxu0 0.0
  %7479 = vmatpush1.msra.mxu0 0.0
  %7480 = vmatprep.subr.mxu0 0.0
  %7481 = vmatpush1.msra.mxu0 0.0
  %7482 = vmatprep.subr.mxu0 0.0
  %7483 = vmatpush1.msra.mxu0 0.0
  %7484 = vmatprep.subr.mxu0 0.0
  %7485 = vmatpush1.msra.mxu0 0.0
  %7486 = vmatprep.subr.mxu0 0.0
  %7487 = vmatpush1.msra.mxu0 0.0
  %7488 = vmatprep.subr.mxu0 0.0
  %7489 = vmatpush1.msra.mxu0 0.0
  %7490 = vmatprep.subr.mxu0 0.0
  %7491 = vmatpush1.msra.mxu0 0.0
  %7492 = vmatprep.subr.mxu0 0.0
  %7493 = vmatpush1.msra.mxu0 0.0
  %7494 = vmatprep.subr.mxu0 0.0
  %7495 = vmatpush1.msra.mxu0 0.0
  %7496 = vmatprep.subr.mxu0 0.0
  %7497 = vmatpush1.msra.mxu0 0.0
  %7498 = vmatprep.subr.mxu0 0.0
  %7499 = vmatpush1.msra.mxu0 0.0
  %7500 = vmatprep.mubr.f32.mxu0 0.0
  %7501 = vmatmul.mubr.f32.gmra.mrb[0].mxu0 %v7434
  %v7502 = vpop.f32.mrb[0].mxu0
  %v7503 = vadd.f32 0.0, %v7502
  %v7504 = vpop.f32.mrb[0].mxu0
  %7505 = vdwg.mxu0
  %v7506 = vadd.f32 %v7423, %v7503
  %v7507 = vld [vmem:[#allocation7 + $0x3] sm:$0x1]
  %v7508 = vld [vmem:[%s10 + $0xc0] sm:$0xff]
  %v7509 = vld [vmem:[%s10 + $0xc8] sm:$0xff]
  %v7510 = vld [vmem:[%s10 + $0xd0] sm:$0xff]
  %v7511 = vld [vmem:[%s10 + $0xd8] sm:$0xff]
  %v7512 = vld [vmem:[%s10 + $0xe0] sm:$0xff]
  %v7513 = vld [vmem:[%s10 + $0xe8] sm:$0xff]
  %v7514 = vld [vmem:[%s10 + $0xf0] sm:$0xff]
  %v7515 = vld [vmem:[%s10 + $0xf8] sm:$0xff]
  %v7517 = vsel %vm7151, %v7507, 0
  %7519 = vmatprep.subr.mxu0 0.0
  %7520 = vmatpush1.msra.mxu0 %v7508
  %7521 = vmatprep.subr.mxu0 0.0
  %7522 = vmatpush1.msra.mxu0 %v7509
  %7523 = vmatprep.subr.mxu0 0.0
  %7524 = vmatpush1.msra.mxu0 %v7510
  %7525 = vmatprep.subr.mxu0 0.0
  %7526 = vmatpush1.msra.mxu0 %v7511
  %7527 = vmatprep.subr.mxu0 0.0
  %7528 = vmatpush1.msra.mxu0 %v7512
  %7529 = vmatprep.subr.mxu0 0.0
  %7530 = vmatpush1.msra.mxu0 %v7513
  %7531 = vmatprep.subr.mxu0 0.0
  %7532 = vmatpush1.msra.mxu0 %v7514
  %7533 = vmatprep.subr.mxu0 0.0
  %7534 = vmatpush1.msra.mxu0 %v7515
  %7535 = vmatprep.subr.mxu0 0.0
  %7536 = vmatpush1.msra.mxu0 0.0
  %7537 = vmatprep.subr.mxu0 0.0
  %7538 = vmatpush1.msra.mxu0 0.0
  %7539 = vmatprep.subr.mxu0 0.0
  %7540 = vmatpush1.msra.mxu0 0.0
  %7541 = vmatprep.subr.mxu0 0.0
  %7542 = vmatpush1.msra.mxu0 0.0
  %7543 = vmatprep.subr.mxu0 0.0
  %7544 = vmatpush1.msra.mxu0 0.0
  %7545 = vmatprep.subr.mxu0 0.0
  %7546 = vmatpush1.msra.mxu0 0.0
  %7547 = vmatprep.subr.mxu0 0.0
  %7548 = vmatpush1.msra.mxu0 0.0
  %7549 = vmatprep.subr.mxu0 0.0
  %7550 = vmatpush1.msra.mxu0 0.0
  %7551 = vmatprep.subr.mxu0 0.0
  %7552 = vmatpush1.msra.mxu0 0.0
  %7553 = vmatprep.subr.mxu0 0.0
  %7554 = vmatpush1.msra.mxu0 0.0
  %7555 = vmatprep.subr.mxu0 0.0
  %7556 = vmatpush1.msra.mxu0 0.0
  %7557 = vmatprep.subr.mxu0 0.0
  %7558 = vmatpush1.msra.mxu0 0.0
  %7559 = vmatprep.subr.mxu0 0.0
  %7560 = vmatpush1.msra.mxu0 0.0
  %7561 = vmatprep.subr.mxu0 0.0
  %7562 = vmatpush1.msra.mxu0 0.0
  %7563 = vmatprep.subr.mxu0 0.0
  %7564 = vmatpush1.msra.mxu0 0.0
  %7565 = vmatprep.subr.mxu0 0.0
  %7566 = vmatpush1.msra.mxu0 0.0
  %7567 = vmatprep.subr.mxu0 0.0
  %7568 = vmatpush1.msra.mxu0 0.0
  %7569 = vmatprep.subr.mxu0 0.0
  %7570 = vmatpush1.msra.mxu0 0.0
  %7571 = vmatprep.subr.mxu0 0.0
  %7572 = vmatpush1.msra.mxu0 0.0
  %7573 = vmatprep.subr.mxu0 0.0
  %7574 = vmatpush1.msra.mxu0 0.0
  %7575 = vmatprep.subr.mxu0 0.0
  %7576 = vmatpush1.msra.mxu0 0.0
  %7577 = vmatprep.subr.mxu0 0.0
  %7578 = vmatpush1.msra.mxu0 0.0
  %7579 = vmatprep.subr.mxu0 0.0
  %7580 = vmatpush1.msra.mxu0 0.0
  %7581 = vmatprep.subr.mxu0 0.0
  %7582 = vmatpush1.msra.mxu0 0.0
  %7583 = vmatprep.mubr.f32.mxu0 0.0
  %7584 = vmatmul.mubr.f32.gmra.mrb[0].mxu0 %v7517
  %v7585 = vpop.f32.mrb[0].mxu0
  %v7586 = vadd.f32 0.0, %v7585
  %v7587 = vpop.f32.mrb[0].mxu0
  %7588 = vdwg.mxu0
  %v7589 = vadd.f32 %v7506, %v7586
  %v7590 = vmax.f32 %v7589, 0.0
  %v7591 = vld [vmem:[%s12] sm:$0xff]
  %v7592 = vld [vmem:[%s12 + $0x8] sm:$0xff]
  %v7593 = vld [vmem:[%s12 + $0x10] sm:$0xff]
  %v7594 = vld [vmem:[%s12 + $0x18] sm:$0xff]
  %v7595 = vld [vmem:[%s12 + $0x20] sm:$0xff]
  %v7596 = vld [vmem:[%s12 + $0x28] sm:$0xff]
  %v7597 = vld [vmem:[%s12 + $0x30] sm:$0xff]
  %v7598 = vld [vmem:[%s12 + $0x38] sm:$0xff]
  %v7599 = vld [vmem:[%s13] sm:$0x1]
  %v7601 = vsel %vm7151, %v7590, 0
  %7603 = vmatprep.subr.mxu0 0.0
  %7604 = vmatpush1.msra.mxu0 %v7591
  %7605 = vmatprep.subr.mxu0 0.0
  %7606 = vmatpush1.msra.mxu0 %v7592
  %7607 = vmatprep.subr.mxu0 0.0
  %7608 = vmatpush1.msra.mxu0 %v7593
  %7609 = vmatprep.subr.mxu0 0.0
  %7610 = vmatpush1.msra.mxu0 %v7594
  %7611 = vmatprep.subr.mxu0 0.0
  %7612 = vmatpush1.msra.mxu0 %v7595
  %7613 = vmatprep.subr.mxu0 0.0
  %7614 = vmatpush1.msra.mxu0 %v7596
  %7615 = vmatprep.subr.mxu0 0.0
  %7616 = vmatpush1.msra.mxu0 %v7597
  %7617 = vmatprep.subr.mxu0 0.0
  %7618 = vmatpush1.msra.mxu0 %v7598
  %7619 = vmatprep.subr.mxu0 0.0
  %7620 = vmatpush1.msra.mxu0 0.0
  %7621 = vmatprep.subr.mxu0 0.0
  %7622 = vmatpush1.msra.mxu0 0.0
  %7623 = vmatprep.subr.mxu0 0.0
  %7624 = vmatpush1.msra.mxu0 0.0
  %7625 = vmatprep.subr.mxu0 0.0
  %7626 = vmatpush1.msra.mxu0 0.0
  %7627 = vmatprep.subr.mxu0 0.0
  %7628 = vmatpush1.msra.mxu0 0.0
  %7629 = vmatprep.subr.mxu0 0.0
  %7630 = vmatpush1.msra.mxu0 0.0
  %7631 = vmatprep.subr.mxu0 0.0
  %7632 = vmatpush1.msra.mxu0 0.0
  %7633 = vmatprep.subr.mxu0 0.0
  %7634 = vmatpush1.msra.mxu0 0.0
  %7635 = vmatprep.subr.mxu0 0.0
  %7636 = vmatpush1.msra.mxu0 0.0
  %7637 = vmatprep.subr.mxu0 0.0
  %7638 = vmatpush1.msra.mxu0 0.0
  %7639 = vmatprep.subr.mxu0 0.0
  %7640 = vmatpush1.msra.mxu0 0.0
  %7641 = vmatprep.subr.mxu0 0.0
  %7642 = vmatpush1.msra.mxu0 0.0
  %7643 = vmatprep.subr.mxu0 0.0
  %7644 = vmatpush1.msra.mxu0 0.0
  %7645 = vmatprep.subr.mxu0 0.0
  %7646 = vmatpush1.msra.mxu0 0.0
  %7647 = vmatprep.subr.mxu0 0.0
  %7648 = vmatpush1.msra.mxu0 0.0
  %7649 = vmatprep.subr.mxu0 0.0
  %7650 = vmatpush1.msra.mxu0 0.0
  %7651 = vmatprep.subr.mxu0 0.0
  %7652 = vmatpush1.msra.mxu0 0.0
  %7653 = vmatprep.subr.mxu0 0.0
  %7654 = vmatpush1.msra.mxu0 0.0
  %7655 = vmatprep.subr.mxu0 0.0
  %7656 = vmatpush1.msra.mxu0 0.0
  %7657 = vmatprep.subr.mxu0 0.0
  %7658 = vmatpush1.msra.mxu0 0.0
  %7659 = vmatprep.subr.mxu0 0.0
  %7660 = vmatpush1.msra.mxu0 0.0
  %7661 = vmatprep.subr.mxu0 0.0
  %7662 = vmatpush1.msra.mxu0 0.0
  %7663 = vmatprep.subr.mxu0 0.0
  %7664 = vmatpush1.msra.mxu0 0.0
  %7665 = vmatprep.subr.mxu0 0.0
  %7666 = vmatpush1.msra.mxu0 0.0
  %7667 = vmatprep.mubr.f32.mxu0 0.0
  %7668 = vmatmul.mubr.f32.gmra.mrb[0].mxu0 %v7601
  %v7669 = vpop.f32.mrb[0].mxu0
  %v7670 = vadd.f32 %v7599, %v7669
  %v7671 = vpop.f32.mrb[0].mxu0
  %7672 = vdwg.mxu0
  %vm7673 = vcmask 57344
  %7674 = vst.msk [vmem:[%s14] sm:$0x1] %vm7673, %v7670
  // Predicated region
  $region58: #{cnn_forward.1} parent=0 // pred_check
    _
  $region59: #{cnn_forward.1} parent=0 // pred_check_branch
    %7676 = sbr.rel (0) target = $region61
  $region60: #{cnn_forward.1} parent=0 // pred_region
    _
  $region61: #{cnn_forward.1} parent=0 // pred_fallthru
    _
  // Predicated region
  $region62: #{cnn_forward.1} parent=0 // pred_check
    _
  $region63: #{cnn_forward.1} parent=0 // pred_check_branch
    %7678 = sbr.rel (0) target = $region65
  $region64: #{cnn_forward.1} parent=0 // pred_region
    _
  $region65: #{cnn_forward.1} parent=0 // pred_fallthru
    _

</llo_original>
